<compile_context>
chip_gen: v6e
topology: v6e:2x2x1
jax: 0.10.0
libtpu: 0.0.40
codegen_flags: <defaults>
</compile_context>

<pallas_src>
import jax
import jax.numpy as jnp
import numpy as np
from jax import lax
from jax.experimental import pallas as pl
from jax.experimental.pallas import tpu as pltpu


# --------------------------------------------------------------------------
# Fused Pallas kernel: 2 GRU layers + FC head, everything resident in VMEM.
# --------------------------------------------------------------------------
def _gru_encoder_kernel(x_ref,
                        wih0_ref, whh0_ref, b0_ref, bhn0_ref,
                        wih1_ref, whh1_ref, b1_ref, bhn1_ref,
                        fcw_ref, fcb_ref,
                        out_ref,
                        gi_ref, hseq_ref):
    """Fused forward pass.

    x_ref    : (T, B, D)      time-major input (whole array in VMEM)
    wih*_ref : (Din, 3H)      input->hidden weights, gates stacked (r, z, n)
    whh*_ref : (H, 3H)        hidden->hidden weights, gates stacked (r, z, n)
    b*_ref   : (1, 3H)        fused bias: (bih+bhh) for r,z ; bih only for n
    bhn*_ref : (1, H)         hidden bias of the n gate (needed inside r*(...))
    fcw_ref  : (H, O), fcb_ref: (1, O)
    out_ref  : (B, O)         final output (only HBM writeback)
    gi_ref   : VMEM (T, B, 3H) hoisted input-projection scratch (reused per layer)
    hseq_ref : VMEM (T, B, H)  layer-0 output sequence scratch
    """
    T, B, D = x_ref.shape
    H = whh0_ref.shape[0]

    def run_layer(whh_ref, bhn_ref, write_seq):
        # Hoist the n-gate hidden-bias broadcast out of the serial loop.
        bhn = jnp.broadcast_to(bhn_ref[...], (B, H))
        whh = whh_ref[...]

        def step(t, h):
            gi = gi_ref[t]                                      # (B, 3H)
            gh = jnp.dot(h, whh,
                         preferred_element_type=jnp.float32)    # (B, 3H)
            r = jax.nn.sigmoid(gi[:, :H] + gh[:, :H])
            z = jax.nn.sigmoid(gi[:, H:2 * H] + gh[:, H:2 * H])
            n = jnp.tanh(gi[:, 2 * H:] + r * (gh[:, 2 * H:] + bhn))
            h_new = (1.0 - z) * n + z * h
            if write_seq:
                hseq_ref[t] = h_new
            return h_new

        h0 = jnp.zeros((B, H), jnp.float32)
        return lax.fori_loop(0, T, step, h0, unroll=True)

    # ---------------- Layer 0 ----------------
    # Hoisted input projection for all time steps in one MXU-friendly matmul.
    # (T, B, D) -> (T*B, D) is an outer-dim collapse (lane dim untouched).
    gi0 = jnp.dot(x_ref[...].reshape(T * B, D), wih0_ref[...],
                  preferred_element_type=jnp.float32) + b0_ref[...]
    gi_ref[...] = gi0.reshape(T, B, 3 * H)
    run_layer(whh0_ref, bhn0_ref, write_seq=True)

    # ---------------- Layer 1 ----------------
    gi1 = jnp.dot(hseq_ref[...].reshape(T * B, H), wih1_ref[...],
                  preferred_element_type=jnp.float32) + b1_ref[...]
    gi_ref[...] = gi1.reshape(T, B, 3 * H)
    h_last = run_layer(whh1_ref, bhn1_ref, write_seq=False)   # = h_n[-1]

    # ---------------- FC head ----------------
    out_ref[...] = (jnp.dot(h_last, fcw_ref[...],
                            preferred_element_type=jnp.float32)
                    + fcb_ref[...]).astype(out_ref.dtype)


# --------------------------------------------------------------------------
# Wrapper
# --------------------------------------------------------------------------
@jax.jit
def gru_encoder_forward(x_btd, params):
    """Equivalent of GRUEncoder.forward(x): fc(h_n[-1]). x_btd: (B, T, D)."""
    B, T, D = x_btd.shape
    H = params["gru_layers"][0]["whh"].shape[0]
    O = params["fc_w"].shape[-1]

    def prep(layer):
        bih, bhh = layer["bih"], layer["bhh"]
        # r,z gates: bih+bhh always add; n gate keeps bih here, bhh separate.
        b_fused = jnp.concatenate(
            [bih[:, :2 * H] + bhh[:, :2 * H], bih[:, 2 * H:]], axis=1)
        b_hn = bhh[:, 2 * H:]
        return layer["wih"], layer["whh"], b_fused, b_hn

    wih0, whh0, b0, bhn0 = prep(params["gru_layers"][0])
    wih1, whh1, b1, bhn1 = prep(params["gru_layers"][1])
    fc_w, fc_b = params["fc_w"], params["fc_b"]

    # Layout plumbing only: hand the kernel a time-major input so the kernel
    # never has to transpose in VMEM.
    x_tbd = jnp.transpose(x_btd, (1, 0, 2))   # (T, B, D)

    # TODO(synk): kernel is specialized to num_layers=2 (the module's default).
    return pl.pallas_call(
        _gru_encoder_kernel,
        out_shape=jax.ShapeDtypeStruct((B, O), jnp.float32),
        grid_spec=pltpu.PrefetchScalarGridSpec(
            num_scalar_prefetch=0,
            grid=(1,),
            in_specs=[
                pl.BlockSpec((T, B, D), lambda i: (0, 0, 0)),
                pl.BlockSpec((D, 3 * H), lambda i: (0, 0)),
                pl.BlockSpec((H, 3 * H), lambda i: (0, 0)),
                pl.BlockSpec((1, 3 * H), lambda i: (0, 0)),
                pl.BlockSpec((1, H), lambda i: (0, 0)),
                pl.BlockSpec((H, 3 * H), lambda i: (0, 0)),
                pl.BlockSpec((H, 3 * H), lambda i: (0, 0)),
                pl.BlockSpec((1, 3 * H), lambda i: (0, 0)),
                pl.BlockSpec((1, H), lambda i: (0, 0)),
                pl.BlockSpec((H, O), lambda i: (0, 0)),
                pl.BlockSpec((1, O), lambda i: (0, 0)),
            ],
            out_specs=pl.BlockSpec((B, O), lambda i: (0, 0)),
            scratch_shapes=[
                pltpu.VMEM((T, B, 3 * H), jnp.float32),   # hoisted input proj
                pltpu.VMEM((T, B, H), jnp.float32),       # layer-0 sequence
            ],
        ),
        compiler_params=pltpu.CompilerParams(
            dimension_semantics=("arbitrary",),
            vmem_limit_bytes=64 << 20),
    )(x_tbd, wih0, whh0, b0, bhn0, wih1, whh1, b1, bhn1, fc_w, fc_b)


# --------------------------------------------------------------------------
# Deterministic parameter init (PyTorch-style U(-1/sqrt(H), 1/sqrt(H))),
# stored directly in gate-stacked layout: (Din, 3H) / (H, 3H) / (1, 3H).
# --------------------------------------------------------------------------
def init_params(key, input_dim, hidden_dim, output_dim, num_layers):
    k = 1.0 / np.sqrt(hidden_dim)
    layers = []
    for l in range(num_layers):
        d_in = input_dim if l == 0 else hidden_dim
        key, k1, k2, k3, k4 = jax.random.split(key, 5)
        layers.append({
            "wih": jax.random.uniform(k1, (d_in, 3 * hidden_dim),
                                      jnp.float32, -k, k),
            "whh": jax.random.uniform(k2, (hidden_dim, 3 * hidden_dim),
                                      jnp.float32, -k, k),
            "bih": jax.random.uniform(k3, (1, 3 * hidden_dim),
                                      jnp.float32, -k, k),
            "bhh": jax.random.uniform(k4, (1, 3 * hidden_dim),
                                      jnp.float32, -k, k),
        })
    key, k5, k6 = jax.random.split(key, 3)
    params = {
        "gru_layers": layers,
        "fc_w": jax.random.uniform(k5, (hidden_dim, output_dim),
                                   jnp.float32, -k, k),
        "fc_b": jax.random.uniform(k6, (1, output_dim),
                                   jnp.float32, -k, k),
    }
    return params


# --------------------------------------------------------------------------
# Pure-JAX reference (same math as torch.nn.GRU, gate order r,z,n)
# --------------------------------------------------------------------------
def gru_encoder_ref(x_btd, params):
    h_seq = jnp.transpose(x_btd, (1, 0, 2))  # (T, B, D)
    for layer in params["gru_layers"]:
        wih, whh, bih, bhh = (layer["wih"], layer["whh"],
                              layer["bih"], layer["bhh"])
        H = whh.shape[0]

        def step(h_prev, x_t):
            gi = x_t @ wih + bih          # (B, 3H)
            gh = h_prev @ whh + bhh       # (B, 3H)
            r = jax.nn.sigmoid(gi[:, :H] + gh[:, :H])
            z = jax.nn.sigmoid(gi[:, H:2 * H] + gh[:, H:2 * H])
            n = jnp.tanh(gi[:, 2 * H:] + r * gh[:, 2 * H:])
            h_new = (1.0 - z) * n + z * h_prev
            return h_new, h_new

        h0 = jnp.zeros((x_btd.shape[0], H), jnp.float32)
        _, h_seq = lax.scan(step, h0, h_seq)
    h_last = h_seq[-1]
    return h_last @ params["fc_w"] + params["fc_b"]


# --------------------------------------------------------------------------
if __name__ == "__main__":
    # Small shapes consistent with the module: hidden_dim=256, output_dim=128.
    B, T, D_IN, H, O = 8, 8, 16, 256, 128
    NUM_LAYERS = 2

    key = jax.random.PRNGKey(0)
    key, kx = jax.random.split(key)
    x = jax.random.normal(kx, (B, T, D_IN), jnp.float32)

    params = init_params(key, D_IN, H, O, NUM_LAYERS)

    out = gru_encoder_forward(x, params)
    out = jax.block_until_ready(out)

    ref = gru_encoder_ref(x, params)
    np.testing.assert_allclose(np.asarray(out), np.asarray(ref),
                               rtol=1e-4, atol=1e-4)
    assert out.shape == (B, O)
    print("KERNEL_OK")
</pallas_src>

<mosaic_0001>
module attributes {stable_mosaic.version = 11 : i64} {
  func.func @_gru_encoder_kernel(%arg0: i32, %arg1: memref<8x8x16xf32, #tpu.memory_space<vmem>>, %arg2: memref<16x768xf32, #tpu.memory_space<vmem>>, %arg3: memref<256x768xf32, #tpu.memory_space<vmem>>, %arg4: memref<1x768xf32, #tpu.memory_space<vmem>>, %arg5: memref<1x256xf32, #tpu.memory_space<vmem>>, %arg6: memref<256x768xf32, #tpu.memory_space<vmem>>, %arg7: memref<256x768xf32, #tpu.memory_space<vmem>>, %arg8: memref<1x768xf32, #tpu.memory_space<vmem>>, %arg9: memref<1x256xf32, #tpu.memory_space<vmem>>, %arg10: memref<256x128xf32, #tpu.memory_space<vmem>>, %arg11: memref<1x128xf32, #tpu.memory_space<vmem>>, %arg12: memref<8x128xf32, #tpu.memory_space<vmem>>, %arg13: memref<8x8x768xf32, #tpu.memory_space<vmem>>, %arg14: memref<8x8x256xf32, #tpu.memory_space<vmem>>) attributes {dimension_semantics = [#tpu.dimension_semantics<arbitrary>], iteration_bounds = array<i64: 1>, scalar_prefetch = 0 : i64, scratch_operands = 2 : i64, tpu.core_type = #tpu.core_type<tc>, window_params = [{pipeline_mode = #tpu.pipeline_mode<synchronous>, transform_indices = @transform_0, window_bounds = array<i64: 8, 8, 16>}, {pipeline_mode = #tpu.pipeline_mode<synchronous>, transform_indices = @transform_1, window_bounds = array<i64: 16, 768>}, {pipeline_mode = #tpu.pipeline_mode<synchronous>, transform_indices = @transform_2, window_bounds = array<i64: 256, 768>}, {pipeline_mode = #tpu.pipeline_mode<synchronous>, transform_indices = @transform_3, window_bounds = array<i64: 1, 768>}, {pipeline_mode = #tpu.pipeline_mode<synchronous>, transform_indices = @transform_4, window_bounds = array<i64: 1, 256>}, {pipeline_mode = #tpu.pipeline_mode<synchronous>, transform_indices = @transform_5, window_bounds = array<i64: 256, 768>}, {pipeline_mode = #tpu.pipeline_mode<synchronous>, transform_indices = @transform_6, window_bounds = array<i64: 256, 768>}, {pipeline_mode = #tpu.pipeline_mode<synchronous>, transform_indices = @transform_7, window_bounds = array<i64: 1, 768>}, {pipeline_mode = #tpu.pipeline_mode<synchronous>, transform_indices = @transform_8, window_bounds = array<i64: 1, 256>}, {pipeline_mode = #tpu.pipeline_mode<synchronous>, transform_indices = @transform_9, window_bounds = array<i64: 256, 128>}, {pipeline_mode = #tpu.pipeline_mode<synchronous>, transform_indices = @transform_10, window_bounds = array<i64: 1, 128>}, {pipeline_mode = #tpu.pipeline_mode<synchronous>, transform_indices = @transform_11, window_bounds = array<i64: 8, 128>}]} {
    %c0 = arith.constant 0 : index
    %c0_0 = arith.constant 0 : index
    %c0_1 = arith.constant 0 : index
    %0 = vector.load %arg1[%c0, %c0_0, %c0_1] : memref<8x8x16xf32, #tpu.memory_space<vmem>>, vector<8x8x16xf32>
    %1 = vector.shape_cast %0 : vector<8x8x16xf32> to vector<64x16xf32>
    %c0_2 = arith.constant 0 : index
    %c0_3 = arith.constant 0 : index
    %2 = vector.load %arg2[%c0_2, %c0_3] : memref<16x768xf32, #tpu.memory_space<vmem>>, vector<16x768xf32>
    %cst = arith.constant dense<0.000000e+00> : vector<64x768xf32>
    %3 = tpu.matmul %1, %2, %cst {dimension_numbers = #tpu.dot_dimension_numbers<[1], [0], [0], [1], [0, 0, 1, 1], [], []>} : vector<64x16xf32>, vector<16x768xf32>, vector<64x768xf32> -> vector<64x768xf32>
    %c0_4 = arith.constant 0 : index
    %c0_5 = arith.constant 0 : index
    %4 = vector.load %arg4[%c0_4, %c0_5] : memref<1x768xf32, #tpu.memory_space<vmem>>, vector<1x768xf32>
    %5 = vector.broadcast %4 : vector<1x768xf32> to vector<64x768xf32>
    %6 = arith.addf %3, %5 : vector<64x768xf32>
    %7 = vector.shape_cast %6 : vector<64x768xf32> to vector<8x8x768xf32>
    %c0_6 = arith.constant 0 : index
    %c0_7 = arith.constant 0 : index
    %c0_8 = arith.constant 0 : index
    %8 = vector.load %arg13[%c0_6, %c0_7, %c0_8] : memref<8x8x768xf32, #tpu.memory_space<vmem>>, vector<8x8x768xf32>
    tpu.vector_store %arg13[%c0_6, %c0_7, %c0_8], %7 {strides = array<i32>} : memref<8x8x768xf32, #tpu.memory_space<vmem>>, vector<8x8x768xf32>,
    %c0_9 = arith.constant 0 : index
    %c0_10 = arith.constant 0 : index
    %9 = vector.load %arg5[%c0_9, %c0_10] : memref<1x256xf32, #tpu.memory_space<vmem>>, vector<1x256xf32>
    %10 = vector.shape_cast %9 : vector<1x256xf32> to vector<1x256xf32>
    %11 = vector.broadcast %10 : vector<1x256xf32> to vector<8x256xf32>
    %c0_11 = arith.constant 0 : index
    %c0_12 = arith.constant 0 : index
    %12 = vector.load %arg3[%c0_11, %c0_12] : memref<256x768xf32, #tpu.memory_space<vmem>>, vector<256x768xf32>
    %cst_13 = arith.constant 0.000000e+00 : f32
    %13 = vector.broadcast %cst_13 : f32 to vector<8x256xf32>
    %c0_i32 = arith.constant 0 : i32
    %14 = arith.index_cast %c0_i32 : i32 to index
    %c0_14 = arith.constant 0 : index
    %c0_15 = arith.constant 0 : index
    %15 = vector.load %arg13[%14, %c0_14, %c0_15] : memref<8x8x768xf32, #tpu.memory_space<vmem>>, vector<1x8x768xf32>
    %16 = vector.shape_cast %15 : vector<1x8x768xf32> to vector<8x768xf32>
    %cst_16 = arith.constant dense<0.000000e+00> : vector<8x768xf32>
    %17 = tpu.matmul %13, %12, %cst_16 {dimension_numbers = #tpu.dot_dimension_numbers<[1], [0], [0], [1], [0, 0, 1, 1], [], []>} : vector<8x256xf32>, vector<256x768xf32>, vector<8x768xf32> -> vector<8x768xf32>
    %18 = vector.extract_strided_slice %16 {offsets = [0, 0], sizes = [8, 256], strides = [1, 1]} : vector<8x768xf32> to vector<8x256xf32>
    %19 = vector.extract_strided_slice %17 {offsets = [0, 0], sizes = [8, 256], strides = [1, 1]} : vector<8x768xf32> to vector<8x256xf32>
    %20 = arith.addf %18, %19 : vector<8x256xf32>
    %21 = arith.negf %20 : vector<8x256xf32>
    %22 = math.exp %21 : vector<8x256xf32>
    %cst_17 = arith.constant 1.000000e+00 : f32
    %23 = vector.broadcast %cst_17 : f32 to vector<8x256xf32>
    %24 = arith.addf %23, %22 : vector<8x256xf32>
    %25 = arith.divf %23, %24 : vector<8x256xf32>
    %26 = vector.extract_strided_slice %16 {offsets = [0, 256], sizes = [8, 256], strides = [1, 1]} : vector<8x768xf32> to vector<8x256xf32>
    %27 = vector.extract_strided_slice %17 {offsets = [0, 256], sizes = [8, 256], strides = [1, 1]} : vector<8x768xf32> to vector<8x256xf32>
    %28 = arith.addf %26, %27 : vector<8x256xf32>
    %29 = arith.negf %28 : vector<8x256xf32>
    %30 = math.exp %29 : vector<8x256xf32>
    %cst_18 = arith.constant 1.000000e+00 : f32
    %31 = vector.broadcast %cst_18 : f32 to vector<8x256xf32>
    %32 = arith.addf %31, %30 : vector<8x256xf32>
    %33 = arith.divf %31, %32 : vector<8x256xf32>
    %34 = vector.extract_strided_slice %16 {offsets = [0, 512], sizes = [8, 256], strides = [1, 1]} : vector<8x768xf32> to vector<8x256xf32>
    %35 = vector.extract_strided_slice %17 {offsets = [0, 512], sizes = [8, 256], strides = [1, 1]} : vector<8x768xf32> to vector<8x256xf32>
    %36 = arith.addf %35, %11 : vector<8x256xf32>
    %37 = arith.mulf %25, %36 : vector<8x256xf32>
    %38 = arith.addf %34, %37 : vector<8x256xf32>
    %39 = math.tanh %38 : vector<8x256xf32>
    %cst_19 = arith.constant 1.000000e+00 : f32
    %40 = vector.broadcast %cst_19 : f32 to vector<8x256xf32>
    %41 = arith.subf %40, %33 : vector<8x256xf32>
    %42 = arith.mulf %41, %39 : vector<8x256xf32>
    %43 = arith.mulf %33, %13 : vector<8x256xf32>
    %44 = arith.addf %42, %43 : vector<8x256xf32>
    %45 = arith.index_cast %c0_i32 : i32 to index
    %c0_20 = arith.constant 0 : index
    %c0_21 = arith.constant 0 : index
    %46 = vector.load %arg14[%45, %c0_20, %c0_21] : memref<8x8x256xf32, #tpu.memory_space<vmem>>, vector<1x8x256xf32>
    %47 = vector.shape_cast %46 : vector<1x8x256xf32> to vector<8x256xf32>
    %48 = vector.shape_cast %44 : vector<8x256xf32> to vector<1x8x256xf32>
    tpu.vector_store %arg14[%45, %c0_20, %c0_21], %48 {strides = array<i32>} : memref<8x8x256xf32, #tpu.memory_space<vmem>>, vector<1x8x256xf32>,
    %c1_i32 = arith.constant 1 : i32
    %49 = arith.index_cast %c1_i32 : i32 to index
    %c0_22 = arith.constant 0 : index
    %c0_23 = arith.constant 0 : index
    %50 = vector.load %arg13[%49, %c0_22, %c0_23] : memref<8x8x768xf32, #tpu.memory_space<vmem>>, vector<1x8x768xf32>
    %51 = vector.shape_cast %50 : vector<1x8x768xf32> to vector<8x768xf32>
    %cst_24 = arith.constant dense<0.000000e+00> : vector<8x768xf32>
    %52 = tpu.matmul %44, %12, %cst_24 {dimension_numbers = #tpu.dot_dimension_numbers<[1], [0], [0], [1], [0, 0, 1, 1], [], []>} : vector<8x256xf32>, vector<256x768xf32>, vector<8x768xf32> -> vector<8x768xf32>
    %53 = vector.extract_strided_slice %51 {offsets = [0, 0], sizes = [8, 256], strides = [1, 1]} : vector<8x768xf32> to vector<8x256xf32>
    %54 = vector.extract_strided_slice %52 {offsets = [0, 0], sizes = [8, 256], strides = [1, 1]} : vector<8x768xf32> to vector<8x256xf32>
    %55 = arith.addf %53, %54 : vector<8x256xf32>
    %56 = arith.negf %55 : vector<8x256xf32>
    %57 = math.exp %56 : vector<8x256xf32>
    %cst_25 = arith.constant 1.000000e+00 : f32
    %58 = vector.broadcast %cst_25 : f32 to vector<8x256xf32>
    %59 = arith.addf %58, %57 : vector<8x256xf32>
    %60 = arith.divf %58, %59 : vector<8x256xf32>
    %61 = vector.extract_strided_slice %51 {offsets = [0, 256], sizes = [8, 256], strides = [1, 1]} : vector<8x768xf32> to vector<8x256xf32>
    %62 = vector.extract_strided_slice %52 {offsets = [0, 256], sizes = [8, 256], strides = [1, 1]} : vector<8x768xf32> to vector<8x256xf32>
    %63 = arith.addf %61, %62 : vector<8x256xf32>
    %64 = arith.negf %63 : vector<8x256xf32>
    %65 = math.exp %64 : vector<8x256xf32>
    %cst_26 = arith.constant 1.000000e+00 : f32
    %66 = vector.broadcast %cst_26 : f32 to vector<8x256xf32>
    %67 = arith.addf %66, %65 : vector<8x256xf32>
    %68 = arith.divf %66, %67 : vector<8x256xf32>
    %69 = vector.extract_strided_slice %51 {offsets = [0, 512], sizes = [8, 256], strides = [1, 1]} : vector<8x768xf32> to vector<8x256xf32>
    %70 = vector.extract_strided_slice %52 {offsets = [0, 512], sizes = [8, 256], strides = [1, 1]} : vector<8x768xf32> to vector<8x256xf32>
    %71 = arith.addf %70, %11 : vector<8x256xf32>
    %72 = arith.mulf %60, %71 : vector<8x256xf32>
    %73 = arith.addf %69, %72 : vector<8x256xf32>
    %74 = math.tanh %73 : vector<8x256xf32>
    %cst_27 = arith.constant 1.000000e+00 : f32
    %75 = vector.broadcast %cst_27 : f32 to vector<8x256xf32>
    %76 = arith.subf %75, %68 : vector<8x256xf32>
    %77 = arith.mulf %76, %74 : vector<8x256xf32>
    %78 = arith.mulf %68, %44 : vector<8x256xf32>
    %79 = arith.addf %77, %78 : vector<8x256xf32>
    %80 = arith.index_cast %c1_i32 : i32 to index
    %c0_28 = arith.constant 0 : index
    %c0_29 = arith.constant 0 : index
    %81 = vector.load %arg14[%80, %c0_28, %c0_29] : memref<8x8x256xf32, #tpu.memory_space<vmem>>, vector<1x8x256xf32>
    %82 = vector.shape_cast %81 : vector<1x8x256xf32> to vector<8x256xf32>
    %83 = vector.shape_cast %79 : vector<8x256xf32> to vector<1x8x256xf32>
    tpu.vector_store %arg14[%80, %c0_28, %c0_29], %83 {strides = array<i32>} : memref<8x8x256xf32, #tpu.memory_space<vmem>>, vector<1x8x256xf32>,
    %c2_i32 = arith.constant 2 : i32
    %84 = arith.index_cast %c2_i32 : i32 to index
    %c0_30 = arith.constant 0 : index
    %c0_31 = arith.constant 0 : index
    %85 = vector.load %arg13[%84, %c0_30, %c0_31] : memref<8x8x768xf32, #tpu.memory_space<vmem>>, vector<1x8x768xf32>
    %86 = vector.shape_cast %85 : vector<1x8x768xf32> to vector<8x768xf32>
    %cst_32 = arith.constant dense<0.000000e+00> : vector<8x768xf32>
    %87 = tpu.matmul %79, %12, %cst_32 {dimension_numbers = #tpu.dot_dimension_numbers<[1], [0], [0], [1], [0, 0, 1, 1], [], []>} : vector<8x256xf32>, vector<256x768xf32>, vector<8x768xf32> -> vector<8x768xf32>
    %88 = vector.extract_strided_slice %86 {offsets = [0, 0], sizes = [8, 256], strides = [1, 1]} : vector<8x768xf32> to vector<8x256xf32>
    %89 = vector.extract_strided_slice %87 {offsets = [0, 0], sizes = [8, 256], strides = [1, 1]} : vector<8x768xf32> to vector<8x256xf32>
    %90 = arith.addf %88, %89 : vector<8x256xf32>
    %91 = arith.negf %90 : vector<8x256xf32>
    %92 = math.exp %91 : vector<8x256xf32>
    %cst_33 = arith.constant 1.000000e+00 : f32
    %93 = vector.broadcast %cst_33 : f32 to vector<8x256xf32>
    %94 = arith.addf %93, %92 : vector<8x256xf32>
    %95 = arith.divf %93, %94 : vector<8x256xf32>
    %96 = vector.extract_strided_slice %86 {offsets = [0, 256], sizes = [8, 256], strides = [1, 1]} : vector<8x768xf32> to vector<8x256xf32>
    %97 = vector.extract_strided_slice %87 {offsets = [0, 256], sizes = [8, 256], strides = [1, 1]} : vector<8x768xf32> to vector<8x256xf32>
    %98 = arith.addf %96, %97 : vector<8x256xf32>
    %99 = arith.negf %98 : vector<8x256xf32>
    %100 = math.exp %99 : vector<8x256xf32>
    %cst_34 = arith.constant 1.000000e+00 : f32
    %101 = vector.broadcast %cst_34 : f32 to vector<8x256xf32>
    %102 = arith.addf %101, %100 : vector<8x256xf32>
    %103 = arith.divf %101, %102 : vector<8x256xf32>
    %104 = vector.extract_strided_slice %86 {offsets = [0, 512], sizes = [8, 256], strides = [1, 1]} : vector<8x768xf32> to vector<8x256xf32>
    %105 = vector.extract_strided_slice %87 {offsets = [0, 512], sizes = [8, 256], strides = [1, 1]} : vector<8x768xf32> to vector<8x256xf32>
    %106 = arith.addf %105, %11 : vector<8x256xf32>
    %107 = arith.mulf %95, %106 : vector<8x256xf32>
    %108 = arith.addf %104, %107 : vector<8x256xf32>
    %109 = math.tanh %108 : vector<8x256xf32>
    %cst_35 = arith.constant 1.000000e+00 : f32
    %110 = vector.broadcast %cst_35 : f32 to vector<8x256xf32>
    %111 = arith.subf %110, %103 : vector<8x256xf32>
    %112 = arith.mulf %111, %109 : vector<8x256xf32>
    %113 = arith.mulf %103, %79 : vector<8x256xf32>
    %114 = arith.addf %112, %113 : vector<8x256xf32>
    %115 = arith.index_cast %c2_i32 : i32 to index
    %c0_36 = arith.constant 0 : index
    %c0_37 = arith.constant 0 : index
    %116 = vector.load %arg14[%115, %c0_36, %c0_37] : memref<8x8x256xf32, #tpu.memory_space<vmem>>, vector<1x8x256xf32>
    %117 = vector.shape_cast %116 : vector<1x8x256xf32> to vector<8x256xf32>
    %118 = vector.shape_cast %114 : vector<8x256xf32> to vector<1x8x256xf32>
    tpu.vector_store %arg14[%115, %c0_36, %c0_37], %118 {strides = array<i32>} : memref<8x8x256xf32, #tpu.memory_space<vmem>>, vector<1x8x256xf32>,
    %c3_i32 = arith.constant 3 : i32
    %119 = arith.index_cast %c3_i32 : i32 to index
    %c0_38 = arith.constant 0 : index
    %c0_39 = arith.constant 0 : index
    %120 = vector.load %arg13[%119, %c0_38, %c0_39] : memref<8x8x768xf32, #tpu.memory_space<vmem>>, vector<1x8x768xf32>
    %121 = vector.shape_cast %120 : vector<1x8x768xf32> to vector<8x768xf32>
    %cst_40 = arith.constant dense<0.000000e+00> : vector<8x768xf32>
    %122 = tpu.matmul %114, %12, %cst_40 {dimension_numbers = #tpu.dot_dimension_numbers<[1], [0], [0], [1], [0, 0, 1, 1], [], []>} : vector<8x256xf32>, vector<256x768xf32>, vector<8x768xf32> -> vector<8x768xf32>
    %123 = vector.extract_strided_slice %121 {offsets = [0, 0], sizes = [8, 256], strides = [1, 1]} : vector<8x768xf32> to vector<8x256xf32>
    %124 = vector.extract_strided_slice %122 {offsets = [0, 0], sizes = [8, 256], strides = [1, 1]} : vector<8x768xf32> to vector<8x256xf32>
    %125 = arith.addf %123, %124 : vector<8x256xf32>
    %126 = arith.negf %125 : vector<8x256xf32>
    %127 = math.exp %126 : vector<8x256xf32>
    %cst_41 = arith.constant 1.000000e+00 : f32
    %128 = vector.broadcast %cst_41 : f32 to vector<8x256xf32>
    %129 = arith.addf %128, %127 : vector<8x256xf32>
    %130 = arith.divf %128, %129 : vector<8x256xf32>
    %131 = vector.extract_strided_slice %121 {offsets = [0, 256], sizes = [8, 256], strides = [1, 1]} : vector<8x768xf32> to vector<8x256xf32>
    %132 = vector.extract_strided_slice %122 {offsets = [0, 256], sizes = [8, 256], strides = [1, 1]} : vector<8x768xf32> to vector<8x256xf32>
    %133 = arith.addf %131, %132 : vector<8x256xf32>
    %134 = arith.negf %133 : vector<8x256xf32>
    %135 = math.exp %134 : vector<8x256xf32>
    %cst_42 = arith.constant 1.000000e+00 : f32
    %136 = vector.broadcast %cst_42 : f32 to vector<8x256xf32>
    %137 = arith.addf %136, %135 : vector<8x256xf32>
    %138 = arith.divf %136, %137 : vector<8x256xf32>
    %139 = vector.extract_strided_slice %121 {offsets = [0, 512], sizes = [8, 256], strides = [1, 1]} : vector<8x768xf32> to vector<8x256xf32>
    %140 = vector.extract_strided_slice %122 {offsets = [0, 512], sizes = [8, 256], strides = [1, 1]} : vector<8x768xf32> to vector<8x256xf32>
    %141 = arith.addf %140, %11 : vector<8x256xf32>
    %142 = arith.mulf %130, %141 : vector<8x256xf32>
    %143 = arith.addf %139, %142 : vector<8x256xf32>
    %144 = math.tanh %143 : vector<8x256xf32>
    %cst_43 = arith.constant 1.000000e+00 : f32
    %145 = vector.broadcast %cst_43 : f32 to vector<8x256xf32>
    %146 = arith.subf %145, %138 : vector<8x256xf32>
    %147 = arith.mulf %146, %144 : vector<8x256xf32>
    %148 = arith.mulf %138, %114 : vector<8x256xf32>
    %149 = arith.addf %147, %148 : vector<8x256xf32>
    %150 = arith.index_cast %c3_i32 : i32 to index
    %c0_44 = arith.constant 0 : index
    %c0_45 = arith.constant 0 : index
    %151 = vector.load %arg14[%150, %c0_44, %c0_45] : memref<8x8x256xf32, #tpu.memory_space<vmem>>, vector<1x8x256xf32>
    %152 = vector.shape_cast %151 : vector<1x8x256xf32> to vector<8x256xf32>
    %153 = vector.shape_cast %149 : vector<8x256xf32> to vector<1x8x256xf32>
    tpu.vector_store %arg14[%150, %c0_44, %c0_45], %153 {strides = array<i32>} : memref<8x8x256xf32, #tpu.memory_space<vmem>>, vector<1x8x256xf32>,
    %c4_i32 = arith.constant 4 : i32
    %154 = arith.index_cast %c4_i32 : i32 to index
    %c0_46 = arith.constant 0 : index
    %c0_47 = arith.constant 0 : index
    %155 = vector.load %arg13[%154, %c0_46, %c0_47] : memref<8x8x768xf32, #tpu.memory_space<vmem>>, vector<1x8x768xf32>
    %156 = vector.shape_cast %155 : vector<1x8x768xf32> to vector<8x768xf32>
    %cst_48 = arith.constant dense<0.000000e+00> : vector<8x768xf32>
    %157 = tpu.matmul %149, %12, %cst_48 {dimension_numbers = #tpu.dot_dimension_numbers<[1], [0], [0], [1], [0, 0, 1, 1], [], []>} : vector<8x256xf32>, vector<256x768xf32>, vector<8x768xf32> -> vector<8x768xf32>
    %158 = vector.extract_strided_slice %156 {offsets = [0, 0], sizes = [8, 256], strides = [1, 1]} : vector<8x768xf32> to vector<8x256xf32>
    %159 = vector.extract_strided_slice %157 {offsets = [0, 0], sizes = [8, 256], strides = [1, 1]} : vector<8x768xf32> to vector<8x256xf32>
    %160 = arith.addf %158, %159 : vector<8x256xf32>
    %161 = arith.negf %160 : vector<8x256xf32>
    %162 = math.exp %161 : vector<8x256xf32>
    %cst_49 = arith.constant 1.000000e+00 : f32
    %163 = vector.broadcast %cst_49 : f32 to vector<8x256xf32>
    %164 = arith.addf %163, %162 : vector<8x256xf32>
    %165 = arith.divf %163, %164 : vector<8x256xf32>
    %166 = vector.extract_strided_slice %156 {offsets = [0, 256], sizes = [8, 256], strides = [1, 1]} : vector<8x768xf32> to vector<8x256xf32>
    %167 = vector.extract_strided_slice %157 {offsets = [0, 256], sizes = [8, 256], strides = [1, 1]} : vector<8x768xf32> to vector<8x256xf32>
    %168 = arith.addf %166, %167 : vector<8x256xf32>
    %169 = arith.negf %168 : vector<8x256xf32>
    %170 = math.exp %169 : vector<8x256xf32>
    %cst_50 = arith.constant 1.000000e+00 : f32
    %171 = vector.broadcast %cst_50 : f32 to vector<8x256xf32>
    %172 = arith.addf %171, %170 : vector<8x256xf32>
    %173 = arith.divf %171, %172 : vector<8x256xf32>
    %174 = vector.extract_strided_slice %156 {offsets = [0, 512], sizes = [8, 256], strides = [1, 1]} : vector<8x768xf32> to vector<8x256xf32>
    %175 = vector.extract_strided_slice %157 {offsets = [0, 512], sizes = [8, 256], strides = [1, 1]} : vector<8x768xf32> to vector<8x256xf32>
    %176 = arith.addf %175, %11 : vector<8x256xf32>
    %177 = arith.mulf %165, %176 : vector<8x256xf32>
    %178 = arith.addf %174, %177 : vector<8x256xf32>
    %179 = math.tanh %178 : vector<8x256xf32>
    %cst_51 = arith.constant 1.000000e+00 : f32
    %180 = vector.broadcast %cst_51 : f32 to vector<8x256xf32>
    %181 = arith.subf %180, %173 : vector<8x256xf32>
    %182 = arith.mulf %181, %179 : vector<8x256xf32>
    %183 = arith.mulf %173, %149 : vector<8x256xf32>
    %184 = arith.addf %182, %183 : vector<8x256xf32>
    %185 = arith.index_cast %c4_i32 : i32 to index
    %c0_52 = arith.constant 0 : index
    %c0_53 = arith.constant 0 : index
    %186 = vector.load %arg14[%185, %c0_52, %c0_53] : memref<8x8x256xf32, #tpu.memory_space<vmem>>, vector<1x8x256xf32>
    %187 = vector.shape_cast %186 : vector<1x8x256xf32> to vector<8x256xf32>
    %188 = vector.shape_cast %184 : vector<8x256xf32> to vector<1x8x256xf32>
    tpu.vector_store %arg14[%185, %c0_52, %c0_53], %188 {strides = array<i32>} : memref<8x8x256xf32, #tpu.memory_space<vmem>>, vector<1x8x256xf32>,
    %c5_i32 = arith.constant 5 : i32
    %189 = arith.index_cast %c5_i32 : i32 to index
    %c0_54 = arith.constant 0 : index
    %c0_55 = arith.constant 0 : index
    %190 = vector.load %arg13[%189, %c0_54, %c0_55] : memref<8x8x768xf32, #tpu.memory_space<vmem>>, vector<1x8x768xf32>
    %191 = vector.shape_cast %190 : vector<1x8x768xf32> to vector<8x768xf32>
    %cst_56 = arith.constant dense<0.000000e+00> : vector<8x768xf32>
    %192 = tpu.matmul %184, %12, %cst_56 {dimension_numbers = #tpu.dot_dimension_numbers<[1], [0], [0], [1], [0, 0, 1, 1], [], []>} : vector<8x256xf32>, vector<256x768xf32>, vector<8x768xf32> -> vector<8x768xf32>
    %193 = vector.extract_strided_slice %191 {offsets = [0, 0], sizes = [8, 256], strides = [1, 1]} : vector<8x768xf32> to vector<8x256xf32>
    %194 = vector.extract_strided_slice %192 {offsets = [0, 0], sizes = [8, 256], strides = [1, 1]} : vector<8x768xf32> to vector<8x256xf32>
    %195 = arith.addf %193, %194 : vector<8x256xf32>
    %196 = arith.negf %195 : vector<8x256xf32>
    %197 = math.exp %196 : vector<8x256xf32>
    %cst_57 = arith.constant 1.000000e+00 : f32
    %198 = vector.broadcast %cst_57 : f32 to vector<8x256xf32>
    %199 = arith.addf %198, %197 : vector<8x256xf32>
    %200 = arith.divf %198, %199 : vector<8x256xf32>
    %201 = vector.extract_strided_slice %191 {offsets = [0, 256], sizes = [8, 256], strides = [1, 1]} : vector<8x768xf32> to vector<8x256xf32>
    %202 = vector.extract_strided_slice %192 {offsets = [0, 256], sizes = [8, 256], strides = [1, 1]} : vector<8x768xf32> to vector<8x256xf32>
    %203 = arith.addf %201, %202 : vector<8x256xf32>
    %204 = arith.negf %203 : vector<8x256xf32>
    %205 = math.exp %204 : vector<8x256xf32>
    %cst_58 = arith.constant 1.000000e+00 : f32
    %206 = vector.broadcast %cst_58 : f32 to vector<8x256xf32>
    %207 = arith.addf %206, %205 : vector<8x256xf32>
    %208 = arith.divf %206, %207 : vector<8x256xf32>
    %209 = vector.extract_strided_slice %191 {offsets = [0, 512], sizes = [8, 256], strides = [1, 1]} : vector<8x768xf32> to vector<8x256xf32>
    %210 = vector.extract_strided_slice %192 {offsets = [0, 512], sizes = [8, 256], strides = [1, 1]} : vector<8x768xf32> to vector<8x256xf32>
    %211 = arith.addf %210, %11 : vector<8x256xf32>
    %212 = arith.mulf %200, %211 : vector<8x256xf32>
    %213 = arith.addf %209, %212 : vector<8x256xf32>
    %214 = math.tanh %213 : vector<8x256xf32>
    %cst_59 = arith.constant 1.000000e+00 : f32
    %215 = vector.broadcast %cst_59 : f32 to vector<8x256xf32>
    %216 = arith.subf %215, %208 : vector<8x256xf32>
    %217 = arith.mulf %216, %214 : vector<8x256xf32>
    %218 = arith.mulf %208, %184 : vector<8x256xf32>
    %219 = arith.addf %217, %218 : vector<8x256xf32>
    %220 = arith.index_cast %c5_i32 : i32 to index
    %c0_60 = arith.constant 0 : index
    %c0_61 = arith.constant 0 : index
    %221 = vector.load %arg14[%220, %c0_60, %c0_61] : memref<8x8x256xf32, #tpu.memory_space<vmem>>, vector<1x8x256xf32>
    %222 = vector.shape_cast %221 : vector<1x8x256xf32> to vector<8x256xf32>
    %223 = vector.shape_cast %219 : vector<8x256xf32> to vector<1x8x256xf32>
    tpu.vector_store %arg14[%220, %c0_60, %c0_61], %223 {strides = array<i32>} : memref<8x8x256xf32, #tpu.memory_space<vmem>>, vector<1x8x256xf32>,
    %c6_i32 = arith.constant 6 : i32
    %224 = arith.index_cast %c6_i32 : i32 to index
    %c0_62 = arith.constant 0 : index
    %c0_63 = arith.constant 0 : index
    %225 = vector.load %arg13[%224, %c0_62, %c0_63] : memref<8x8x768xf32, #tpu.memory_space<vmem>>, vector<1x8x768xf32>
    %226 = vector.shape_cast %225 : vector<1x8x768xf32> to vector<8x768xf32>
    %cst_64 = arith.constant dense<0.000000e+00> : vector<8x768xf32>
    %227 = tpu.matmul %219, %12, %cst_64 {dimension_numbers = #tpu.dot_dimension_numbers<[1], [0], [0], [1], [0, 0, 1, 1], [], []>} : vector<8x256xf32>, vector<256x768xf32>, vector<8x768xf32> -> vector<8x768xf32>
    %228 = vector.extract_strided_slice %226 {offsets = [0, 0], sizes = [8, 256], strides = [1, 1]} : vector<8x768xf32> to vector<8x256xf32>
    %229 = vector.extract_strided_slice %227 {offsets = [0, 0], sizes = [8, 256], strides = [1, 1]} : vector<8x768xf32> to vector<8x256xf32>
    %230 = arith.addf %228, %229 : vector<8x256xf32>
    %231 = arith.negf %230 : vector<8x256xf32>
    %232 = math.exp %231 : vector<8x256xf32>
    %cst_65 = arith.constant 1.000000e+00 : f32
    %233 = vector.broadcast %cst_65 : f32 to vector<8x256xf32>
    %234 = arith.addf %233, %232 : vector<8x256xf32>
    %235 = arith.divf %233, %234 : vector<8x256xf32>
    %236 = vector.extract_strided_slice %226 {offsets = [0, 256], sizes = [8, 256], strides = [1, 1]} : vector<8x768xf32> to vector<8x256xf32>
    %237 = vector.extract_strided_slice %227 {offsets = [0, 256], sizes = [8, 256], strides = [1, 1]} : vector<8x768xf32> to vector<8x256xf32>
    %238 = arith.addf %236, %237 : vector<8x256xf32>
    %239 = arith.negf %238 : vector<8x256xf32>
    %240 = math.exp %239 : vector<8x256xf32>
    %cst_66 = arith.constant 1.000000e+00 : f32
    %241 = vector.broadcast %cst_66 : f32 to vector<8x256xf32>
    %242 = arith.addf %241, %240 : vector<8x256xf32>
    %243 = arith.divf %241, %242 : vector<8x256xf32>
    %244 = vector.extract_strided_slice %226 {offsets = [0, 512], sizes = [8, 256], strides = [1, 1]} : vector<8x768xf32> to vector<8x256xf32>
    %245 = vector.extract_strided_slice %227 {offsets = [0, 512], sizes = [8, 256], strides = [1, 1]} : vector<8x768xf32> to vector<8x256xf32>
    %246 = arith.addf %245, %11 : vector<8x256xf32>
    %247 = arith.mulf %235, %246 : vector<8x256xf32>
    %248 = arith.addf %244, %247 : vector<8x256xf32>
    %249 = math.tanh %248 : vector<8x256xf32>
    %cst_67 = arith.constant 1.000000e+00 : f32
    %250 = vector.broadcast %cst_67 : f32 to vector<8x256xf32>
    %251 = arith.subf %250, %243 : vector<8x256xf32>
    %252 = arith.mulf %251, %249 : vector<8x256xf32>
    %253 = arith.mulf %243, %219 : vector<8x256xf32>
    %254 = arith.addf %252, %253 : vector<8x256xf32>
    %255 = arith.index_cast %c6_i32 : i32 to index
    %c0_68 = arith.constant 0 : index
    %c0_69 = arith.constant 0 : index
    %256 = vector.load %arg14[%255, %c0_68, %c0_69] : memref<8x8x256xf32, #tpu.memory_space<vmem>>, vector<1x8x256xf32>
    %257 = vector.shape_cast %256 : vector<1x8x256xf32> to vector<8x256xf32>
    %258 = vector.shape_cast %254 : vector<8x256xf32> to vector<1x8x256xf32>
    tpu.vector_store %arg14[%255, %c0_68, %c0_69], %258 {strides = array<i32>} : memref<8x8x256xf32, #tpu.memory_space<vmem>>, vector<1x8x256xf32>,
    %c7_i32 = arith.constant 7 : i32
    %259 = arith.index_cast %c7_i32 : i32 to index
    %c0_70 = arith.constant 0 : index
    %c0_71 = arith.constant 0 : index
    %260 = vector.load %arg13[%259, %c0_70, %c0_71] : memref<8x8x768xf32, #tpu.memory_space<vmem>>, vector<1x8x768xf32>
    %261 = vector.shape_cast %260 : vector<1x8x768xf32> to vector<8x768xf32>
    %cst_72 = arith.constant dense<0.000000e+00> : vector<8x768xf32>
    %262 = tpu.matmul %254, %12, %cst_72 {dimension_numbers = #tpu.dot_dimension_numbers<[1], [0], [0], [1], [0, 0, 1, 1], [], []>} : vector<8x256xf32>, vector<256x768xf32>, vector<8x768xf32> -> vector<8x768xf32>
    %263 = vector.extract_strided_slice %261 {offsets = [0, 0], sizes = [8, 256], strides = [1, 1]} : vector<8x768xf32> to vector<8x256xf32>
    %264 = vector.extract_strided_slice %262 {offsets = [0, 0], sizes = [8, 256], strides = [1, 1]} : vector<8x768xf32> to vector<8x256xf32>
    %265 = arith.addf %263, %264 : vector<8x256xf32>
    %266 = arith.negf %265 : vector<8x256xf32>
    %267 = math.exp %266 : vector<8x256xf32>
    %cst_73 = arith.constant 1.000000e+00 : f32
    %268 = vector.broadcast %cst_73 : f32 to vector<8x256xf32>
    %269 = arith.addf %268, %267 : vector<8x256xf32>
    %270 = arith.divf %268, %269 : vector<8x256xf32>
    %271 = vector.extract_strided_slice %261 {offsets = [0, 256], sizes = [8, 256], strides = [1, 1]} : vector<8x768xf32> to vector<8x256xf32>
    %272 = vector.extract_strided_slice %262 {offsets = [0, 256], sizes = [8, 256], strides = [1, 1]} : vector<8x768xf32> to vector<8x256xf32>
    %273 = arith.addf %271, %272 : vector<8x256xf32>
    %274 = arith.negf %273 : vector<8x256xf32>
    %275 = math.exp %274 : vector<8x256xf32>
    %cst_74 = arith.constant 1.000000e+00 : f32
    %276 = vector.broadcast %cst_74 : f32 to vector<8x256xf32>
    %277 = arith.addf %276, %275 : vector<8x256xf32>
    %278 = arith.divf %276, %277 : vector<8x256xf32>
    %279 = vector.extract_strided_slice %261 {offsets = [0, 512], sizes = [8, 256], strides = [1, 1]} : vector<8x768xf32> to vector<8x256xf32>
    %280 = vector.extract_strided_slice %262 {offsets = [0, 512], sizes = [8, 256], strides = [1, 1]} : vector<8x768xf32> to vector<8x256xf32>
    %281 = arith.addf %280, %11 : vector<8x256xf32>
    %282 = arith.mulf %270, %281 : vector<8x256xf32>
    %283 = arith.addf %279, %282 : vector<8x256xf32>
    %284 = math.tanh %283 : vector<8x256xf32>
    %cst_75 = arith.constant 1.000000e+00 : f32
    %285 = vector.broadcast %cst_75 : f32 to vector<8x256xf32>
    %286 = arith.subf %285, %278 : vector<8x256xf32>
    %287 = arith.mulf %286, %284 : vector<8x256xf32>
    %288 = arith.mulf %278, %254 : vector<8x256xf32>
    %289 = arith.addf %287, %288 : vector<8x256xf32>
    %290 = arith.index_cast %c7_i32 : i32 to index
    %c0_76 = arith.constant 0 : index
    %c0_77 = arith.constant 0 : index
    %291 = vector.load %arg14[%290, %c0_76, %c0_77] : memref<8x8x256xf32, #tpu.memory_space<vmem>>, vector<1x8x256xf32>
    %292 = vector.shape_cast %291 : vector<1x8x256xf32> to vector<8x256xf32>
    %293 = vector.shape_cast %289 : vector<8x256xf32> to vector<1x8x256xf32>
    tpu.vector_store %arg14[%290, %c0_76, %c0_77], %293 {strides = array<i32>} : memref<8x8x256xf32, #tpu.memory_space<vmem>>, vector<1x8x256xf32>,
    %c8_i32 = arith.constant 8 : i32
    %c0_78 = arith.constant 0 : index
    %c0_79 = arith.constant 0 : index
    %c0_80 = arith.constant 0 : index
    %294 = vector.load %arg14[%c0_78, %c0_79, %c0_80] : memref<8x8x256xf32, #tpu.memory_space<vmem>>, vector<8x8x256xf32>
    %295 = vector.shape_cast %294 : vector<8x8x256xf32> to vector<64x256xf32>
    %c0_81 = arith.constant 0 : index
    %c0_82 = arith.constant 0 : index
    %296 = vector.load %arg6[%c0_81, %c0_82] : memref<256x768xf32, #tpu.memory_space<vmem>>, vector<256x768xf32>
    %cst_83 = arith.constant dense<0.000000e+00> : vector<64x768xf32>
    %297 = tpu.matmul %295, %296, %cst_83 {dimension_numbers = #tpu.dot_dimension_numbers<[1], [0], [0], [1], [0, 0, 1, 1], [], []>} : vector<64x256xf32>, vector<256x768xf32>, vector<64x768xf32> -> vector<64x768xf32>
    %c0_84 = arith.constant 0 : index
    %c0_85 = arith.constant 0 : index
    %298 = vector.load %arg8[%c0_84, %c0_85] : memref<1x768xf32, #tpu.memory_space<vmem>>, vector<1x768xf32>
    %299 = vector.broadcast %298 : vector<1x768xf32> to vector<64x768xf32>
    %300 = arith.addf %297, %299 : vector<64x768xf32>
    %301 = vector.shape_cast %300 : vector<64x768xf32> to vector<8x8x768xf32>
    %c0_86 = arith.constant 0 : index
    %c0_87 = arith.constant 0 : index
    %c0_88 = arith.constant 0 : index
    %302 = vector.load %arg13[%c0_86, %c0_87, %c0_88] : memref<8x8x768xf32, #tpu.memory_space<vmem>>, vector<8x8x768xf32>
    tpu.vector_store %arg13[%c0_86, %c0_87, %c0_88], %301 {strides = array<i32>} : memref<8x8x768xf32, #tpu.memory_space<vmem>>, vector<8x8x768xf32>,
    %c0_89 = arith.constant 0 : index
    %c0_90 = arith.constant 0 : index
    %303 = vector.load %arg9[%c0_89, %c0_90] : memref<1x256xf32, #tpu.memory_space<vmem>>, vector<1x256xf32>
    %304 = vector.shape_cast %303 : vector<1x256xf32> to vector<1x256xf32>
    %305 = vector.broadcast %304 : vector<1x256xf32> to vector<8x256xf32>
    %c0_91 = arith.constant 0 : index
    %c0_92 = arith.constant 0 : index
    %306 = vector.load %arg7[%c0_91, %c0_92] : memref<256x768xf32, #tpu.memory_space<vmem>>, vector<256x768xf32>
    %cst_93 = arith.constant 0.000000e+00 : f32
    %307 = vector.broadcast %cst_93 : f32 to vector<8x256xf32>
    %c0_i32_94 = arith.constant 0 : i32
    %308 = arith.index_cast %c0_i32_94 : i32 to index
    %c0_95 = arith.constant 0 : index
    %c0_96 = arith.constant 0 : index
    %309 = vector.load %arg13[%308, %c0_95, %c0_96] : memref<8x8x768xf32, #tpu.memory_space<vmem>>, vector<1x8x768xf32>
    %310 = vector.shape_cast %309 : vector<1x8x768xf32> to vector<8x768xf32>
    %cst_97 = arith.constant dense<0.000000e+00> : vector<8x768xf32>
    %311 = tpu.matmul %307, %306, %cst_97 {dimension_numbers = #tpu.dot_dimension_numbers<[1], [0], [0], [1], [0, 0, 1, 1], [], []>} : vector<8x256xf32>, vector<256x768xf32>, vector<8x768xf32> -> vector<8x768xf32>
    %312 = vector.extract_strided_slice %310 {offsets = [0, 0], sizes = [8, 256], strides = [1, 1]} : vector<8x768xf32> to vector<8x256xf32>
    %313 = vector.extract_strided_slice %311 {offsets = [0, 0], sizes = [8, 256], strides = [1, 1]} : vector<8x768xf32> to vector<8x256xf32>
    %314 = arith.addf %312, %313 : vector<8x256xf32>
    %315 = arith.negf %314 : vector<8x256xf32>
    %316 = math.exp %315 : vector<8x256xf32>
    %cst_98 = arith.constant 1.000000e+00 : f32
    %317 = vector.broadcast %cst_98 : f32 to vector<8x256xf32>
    %318 = arith.addf %317, %316 : vector<8x256xf32>
    %319 = arith.divf %317, %318 : vector<8x256xf32>
    %320 = vector.extract_strided_slice %310 {offsets = [0, 256], sizes = [8, 256], strides = [1, 1]} : vector<8x768xf32> to vector<8x256xf32>
    %321 = vector.extract_strided_slice %311 {offsets = [0, 256], sizes = [8, 256], strides = [1, 1]} : vector<8x768xf32> to vector<8x256xf32>
    %322 = arith.addf %320, %321 : vector<8x256xf32>
    %323 = arith.negf %322 : vector<8x256xf32>
    %324 = math.exp %323 : vector<8x256xf32>
    %cst_99 = arith.constant 1.000000e+00 : f32
    %325 = vector.broadcast %cst_99 : f32 to vector<8x256xf32>
    %326 = arith.addf %325, %324 : vector<8x256xf32>
    %327 = arith.divf %325, %326 : vector<8x256xf32>
    %328 = vector.extract_strided_slice %310 {offsets = [0, 512], sizes = [8, 256], strides = [1, 1]} : vector<8x768xf32> to vector<8x256xf32>
    %329 = vector.extract_strided_slice %311 {offsets = [0, 512], sizes = [8, 256], strides = [1, 1]} : vector<8x768xf32> to vector<8x256xf32>
    %330 = arith.addf %329, %305 : vector<8x256xf32>
    %331 = arith.mulf %319, %330 : vector<8x256xf32>
    %332 = arith.addf %328, %331 : vector<8x256xf32>
    %333 = math.tanh %332 : vector<8x256xf32>
    %cst_100 = arith.constant 1.000000e+00 : f32
    %334 = vector.broadcast %cst_100 : f32 to vector<8x256xf32>
    %335 = arith.subf %334, %327 : vector<8x256xf32>
    %336 = arith.mulf %335, %333 : vector<8x256xf32>
    %337 = arith.mulf %327, %307 : vector<8x256xf32>
    %338 = arith.addf %336, %337 : vector<8x256xf32>
    %c1_i32_101 = arith.constant 1 : i32
    %339 = arith.index_cast %c1_i32_101 : i32 to index
    %c0_102 = arith.constant 0 : index
    %c0_103 = arith.constant 0 : index
    %340 = vector.load %arg13[%339, %c0_102, %c0_103] : memref<8x8x768xf32, #tpu.memory_space<vmem>>, vector<1x8x768xf32>
    %341 = vector.shape_cast %340 : vector<1x8x768xf32> to vector<8x768xf32>
    %cst_104 = arith.constant dense<0.000000e+00> : vector<8x768xf32>
    %342 = tpu.matmul %338, %306, %cst_104 {dimension_numbers = #tpu.dot_dimension_numbers<[1], [0], [0], [1], [0, 0, 1, 1], [], []>} : vector<8x256xf32>, vector<256x768xf32>, vector<8x768xf32> -> vector<8x768xf32>
    %343 = vector.extract_strided_slice %341 {offsets = [0, 0], sizes = [8, 256], strides = [1, 1]} : vector<8x768xf32> to vector<8x256xf32>
    %344 = vector.extract_strided_slice %342 {offsets = [0, 0], sizes = [8, 256], strides = [1, 1]} : vector<8x768xf32> to vector<8x256xf32>
    %345 = arith.addf %343, %344 : vector<8x256xf32>
    %346 = arith.negf %345 : vector<8x256xf32>
    %347 = math.exp %346 : vector<8x256xf32>
    %cst_105 = arith.constant 1.000000e+00 : f32
    %348 = vector.broadcast %cst_105 : f32 to vector<8x256xf32>
    %349 = arith.addf %348, %347 : vector<8x256xf32>
    %350 = arith.divf %348, %349 : vector<8x256xf32>
    %351 = vector.extract_strided_slice %341 {offsets = [0, 256], sizes = [8, 256], strides = [1, 1]} : vector<8x768xf32> to vector<8x256xf32>
    %352 = vector.extract_strided_slice %342 {offsets = [0, 256], sizes = [8, 256], strides = [1, 1]} : vector<8x768xf32> to vector<8x256xf32>
    %353 = arith.addf %351, %352 : vector<8x256xf32>
    %354 = arith.negf %353 : vector<8x256xf32>
    %355 = math.exp %354 : vector<8x256xf32>
    %cst_106 = arith.constant 1.000000e+00 : f32
    %356 = vector.broadcast %cst_106 : f32 to vector<8x256xf32>
    %357 = arith.addf %356, %355 : vector<8x256xf32>
    %358 = arith.divf %356, %357 : vector<8x256xf32>
    %359 = vector.extract_strided_slice %341 {offsets = [0, 512], sizes = [8, 256], strides = [1, 1]} : vector<8x768xf32> to vector<8x256xf32>
    %360 = vector.extract_strided_slice %342 {offsets = [0, 512], sizes = [8, 256], strides = [1, 1]} : vector<8x768xf32> to vector<8x256xf32>
    %361 = arith.addf %360, %305 : vector<8x256xf32>
    %362 = arith.mulf %350, %361 : vector<8x256xf32>
    %363 = arith.addf %359, %362 : vector<8x256xf32>
    %364 = math.tanh %363 : vector<8x256xf32>
    %cst_107 = arith.constant 1.000000e+00 : f32
    %365 = vector.broadcast %cst_107 : f32 to vector<8x256xf32>
    %366 = arith.subf %365, %358 : vector<8x256xf32>
    %367 = arith.mulf %366, %364 : vector<8x256xf32>
    %368 = arith.mulf %358, %338 : vector<8x256xf32>
    %369 = arith.addf %367, %368 : vector<8x256xf32>
    %c2_i32_108 = arith.constant 2 : i32
    %370 = arith.index_cast %c2_i32_108 : i32 to index
    %c0_109 = arith.constant 0 : index
    %c0_110 = arith.constant 0 : index
    %371 = vector.load %arg13[%370, %c0_109, %c0_110] : memref<8x8x768xf32, #tpu.memory_space<vmem>>, vector<1x8x768xf32>
    %372 = vector.shape_cast %371 : vector<1x8x768xf32> to vector<8x768xf32>
    %cst_111 = arith.constant dense<0.000000e+00> : vector<8x768xf32>
    %373 = tpu.matmul %369, %306, %cst_111 {dimension_numbers = #tpu.dot_dimension_numbers<[1], [0], [0], [1], [0, 0, 1, 1], [], []>} : vector<8x256xf32>, vector<256x768xf32>, vector<8x768xf32> -> vector<8x768xf32>
    %374 = vector.extract_strided_slice %372 {offsets = [0, 0], sizes = [8, 256], strides = [1, 1]} : vector<8x768xf32> to vector<8x256xf32>
    %375 = vector.extract_strided_slice %373 {offsets = [0, 0], sizes = [8, 256], strides = [1, 1]} : vector<8x768xf32> to vector<8x256xf32>
    %376 = arith.addf %374, %375 : vector<8x256xf32>
    %377 = arith.negf %376 : vector<8x256xf32>
    %378 = math.exp %377 : vector<8x256xf32>
    %cst_112 = arith.constant 1.000000e+00 : f32
    %379 = vector.broadcast %cst_112 : f32 to vector<8x256xf32>
    %380 = arith.addf %379, %378 : vector<8x256xf32>
    %381 = arith.divf %379, %380 : vector<8x256xf32>
    %382 = vector.extract_strided_slice %372 {offsets = [0, 256], sizes = [8, 256], strides = [1, 1]} : vector<8x768xf32> to vector<8x256xf32>
    %383 = vector.extract_strided_slice %373 {offsets = [0, 256], sizes = [8, 256], strides = [1, 1]} : vector<8x768xf32> to vector<8x256xf32>
    %384 = arith.addf %382, %383 : vector<8x256xf32>
    %385 = arith.negf %384 : vector<8x256xf32>
    %386 = math.exp %385 : vector<8x256xf32>
    %cst_113 = arith.constant 1.000000e+00 : f32
    %387 = vector.broadcast %cst_113 : f32 to vector<8x256xf32>
    %388 = arith.addf %387, %386 : vector<8x256xf32>
    %389 = arith.divf %387, %388 : vector<8x256xf32>
    %390 = vector.extract_strided_slice %372 {offsets = [0, 512], sizes = [8, 256], strides = [1, 1]} : vector<8x768xf32> to vector<8x256xf32>
    %391 = vector.extract_strided_slice %373 {offsets = [0, 512], sizes = [8, 256], strides = [1, 1]} : vector<8x768xf32> to vector<8x256xf32>
    %392 = arith.addf %391, %305 : vector<8x256xf32>
    %393 = arith.mulf %381, %392 : vector<8x256xf32>
    %394 = arith.addf %390, %393 : vector<8x256xf32>
    %395 = math.tanh %394 : vector<8x256xf32>
    %cst_114 = arith.constant 1.000000e+00 : f32
    %396 = vector.broadcast %cst_114 : f32 to vector<8x256xf32>
    %397 = arith.subf %396, %389 : vector<8x256xf32>
    %398 = arith.mulf %397, %395 : vector<8x256xf32>
    %399 = arith.mulf %389, %369 : vector<8x256xf32>
    %400 = arith.addf %398, %399 : vector<8x256xf32>
    %c3_i32_115 = arith.constant 3 : i32
    %401 = arith.index_cast %c3_i32_115 : i32 to index
    %c0_116 = arith.constant 0 : index
    %c0_117 = arith.constant 0 : index
    %402 = vector.load %arg13[%401, %c0_116, %c0_117] : memref<8x8x768xf32, #tpu.memory_space<vmem>>, vector<1x8x768xf32>
    %403 = vector.shape_cast %402 : vector<1x8x768xf32> to vector<8x768xf32>
    %cst_118 = arith.constant dense<0.000000e+00> : vector<8x768xf32>
    %404 = tpu.matmul %400, %306, %cst_118 {dimension_numbers = #tpu.dot_dimension_numbers<[1], [0], [0], [1], [0, 0, 1, 1], [], []>} : vector<8x256xf32>, vector<256x768xf32>, vector<8x768xf32> -> vector<8x768xf32>
    %405 = vector.extract_strided_slice %403 {offsets = [0, 0], sizes = [8, 256], strides = [1, 1]} : vector<8x768xf32> to vector<8x256xf32>
    %406 = vector.extract_strided_slice %404 {offsets = [0, 0], sizes = [8, 256], strides = [1, 1]} : vector<8x768xf32> to vector<8x256xf32>
    %407 = arith.addf %405, %406 : vector<8x256xf32>
    %408 = arith.negf %407 : vector<8x256xf32>
    %409 = math.exp %408 : vector<8x256xf32>
    %cst_119 = arith.constant 1.000000e+00 : f32
    %410 = vector.broadcast %cst_119 : f32 to vector<8x256xf32>
    %411 = arith.addf %410, %409 : vector<8x256xf32>
    %412 = arith.divf %410, %411 : vector<8x256xf32>
    %413 = vector.extract_strided_slice %403 {offsets = [0, 256], sizes = [8, 256], strides = [1, 1]} : vector<8x768xf32> to vector<8x256xf32>
    %414 = vector.extract_strided_slice %404 {offsets = [0, 256], sizes = [8, 256], strides = [1, 1]} : vector<8x768xf32> to vector<8x256xf32>
    %415 = arith.addf %413, %414 : vector<8x256xf32>
    %416 = arith.negf %415 : vector<8x256xf32>
    %417 = math.exp %416 : vector<8x256xf32>
    %cst_120 = arith.constant 1.000000e+00 : f32
    %418 = vector.broadcast %cst_120 : f32 to vector<8x256xf32>
    %419 = arith.addf %418, %417 : vector<8x256xf32>
    %420 = arith.divf %418, %419 : vector<8x256xf32>
    %421 = vector.extract_strided_slice %403 {offsets = [0, 512], sizes = [8, 256], strides = [1, 1]} : vector<8x768xf32> to vector<8x256xf32>
    %422 = vector.extract_strided_slice %404 {offsets = [0, 512], sizes = [8, 256], strides = [1, 1]} : vector<8x768xf32> to vector<8x256xf32>
    %423 = arith.addf %422, %305 : vector<8x256xf32>
    %424 = arith.mulf %412, %423 : vector<8x256xf32>
    %425 = arith.addf %421, %424 : vector<8x256xf32>
    %426 = math.tanh %425 : vector<8x256xf32>
    %cst_121 = arith.constant 1.000000e+00 : f32
    %427 = vector.broadcast %cst_121 : f32 to vector<8x256xf32>
    %428 = arith.subf %427, %420 : vector<8x256xf32>
    %429 = arith.mulf %428, %426 : vector<8x256xf32>
    %430 = arith.mulf %420, %400 : vector<8x256xf32>
    %431 = arith.addf %429, %430 : vector<8x256xf32>
    %c4_i32_122 = arith.constant 4 : i32
    %432 = arith.index_cast %c4_i32_122 : i32 to index
    %c0_123 = arith.constant 0 : index
    %c0_124 = arith.constant 0 : index
    %433 = vector.load %arg13[%432, %c0_123, %c0_124] : memref<8x8x768xf32, #tpu.memory_space<vmem>>, vector<1x8x768xf32>
    %434 = vector.shape_cast %433 : vector<1x8x768xf32> to vector<8x768xf32>
    %cst_125 = arith.constant dense<0.000000e+00> : vector<8x768xf32>
    %435 = tpu.matmul %431, %306, %cst_125 {dimension_numbers = #tpu.dot_dimension_numbers<[1], [0], [0], [1], [0, 0, 1, 1], [], []>} : vector<8x256xf32>, vector<256x768xf32>, vector<8x768xf32> -> vector<8x768xf32>
    %436 = vector.extract_strided_slice %434 {offsets = [0, 0], sizes = [8, 256], strides = [1, 1]} : vector<8x768xf32> to vector<8x256xf32>
    %437 = vector.extract_strided_slice %435 {offsets = [0, 0], sizes = [8, 256], strides = [1, 1]} : vector<8x768xf32> to vector<8x256xf32>
    %438 = arith.addf %436, %437 : vector<8x256xf32>
    %439 = arith.negf %438 : vector<8x256xf32>
    %440 = math.exp %439 : vector<8x256xf32>
    %cst_126 = arith.constant 1.000000e+00 : f32
    %441 = vector.broadcast %cst_126 : f32 to vector<8x256xf32>
    %442 = arith.addf %441, %440 : vector<8x256xf32>
    %443 = arith.divf %441, %442 : vector<8x256xf32>
    %444 = vector.extract_strided_slice %434 {offsets = [0, 256], sizes = [8, 256], strides = [1, 1]} : vector<8x768xf32> to vector<8x256xf32>
    %445 = vector.extract_strided_slice %435 {offsets = [0, 256], sizes = [8, 256], strides = [1, 1]} : vector<8x768xf32> to vector<8x256xf32>
    %446 = arith.addf %444, %445 : vector<8x256xf32>
    %447 = arith.negf %446 : vector<8x256xf32>
    %448 = math.exp %447 : vector<8x256xf32>
    %cst_127 = arith.constant 1.000000e+00 : f32
    %449 = vector.broadcast %cst_127 : f32 to vector<8x256xf32>
    %450 = arith.addf %449, %448 : vector<8x256xf32>
    %451 = arith.divf %449, %450 : vector<8x256xf32>
    %452 = vector.extract_strided_slice %434 {offsets = [0, 512], sizes = [8, 256], strides = [1, 1]} : vector<8x768xf32> to vector<8x256xf32>
    %453 = vector.extract_strided_slice %435 {offsets = [0, 512], sizes = [8, 256], strides = [1, 1]} : vector<8x768xf32> to vector<8x256xf32>
    %454 = arith.addf %453, %305 : vector<8x256xf32>
    %455 = arith.mulf %443, %454 : vector<8x256xf32>
    %456 = arith.addf %452, %455 : vector<8x256xf32>
    %457 = math.tanh %456 : vector<8x256xf32>
    %cst_128 = arith.constant 1.000000e+00 : f32
    %458 = vector.broadcast %cst_128 : f32 to vector<8x256xf32>
    %459 = arith.subf %458, %451 : vector<8x256xf32>
    %460 = arith.mulf %459, %457 : vector<8x256xf32>
    %461 = arith.mulf %451, %431 : vector<8x256xf32>
    %462 = arith.addf %460, %461 : vector<8x256xf32>
    %c5_i32_129 = arith.constant 5 : i32
    %463 = arith.index_cast %c5_i32_129 : i32 to index
    %c0_130 = arith.constant 0 : index
    %c0_131 = arith.constant 0 : index
    %464 = vector.load %arg13[%463, %c0_130, %c0_131] : memref<8x8x768xf32, #tpu.memory_space<vmem>>, vector<1x8x768xf32>
    %465 = vector.shape_cast %464 : vector<1x8x768xf32> to vector<8x768xf32>
    %cst_132 = arith.constant dense<0.000000e+00> : vector<8x768xf32>
    %466 = tpu.matmul %462, %306, %cst_132 {dimension_numbers = #tpu.dot_dimension_numbers<[1], [0], [0], [1], [0, 0, 1, 1], [], []>} : vector<8x256xf32>, vector<256x768xf32>, vector<8x768xf32> -> vector<8x768xf32>
    %467 = vector.extract_strided_slice %465 {offsets = [0, 0], sizes = [8, 256], strides = [1, 1]} : vector<8x768xf32> to vector<8x256xf32>
    %468 = vector.extract_strided_slice %466 {offsets = [0, 0], sizes = [8, 256], strides = [1, 1]} : vector<8x768xf32> to vector<8x256xf32>
    %469 = arith.addf %467, %468 : vector<8x256xf32>
    %470 = arith.negf %469 : vector<8x256xf32>
    %471 = math.exp %470 : vector<8x256xf32>
    %cst_133 = arith.constant 1.000000e+00 : f32
    %472 = vector.broadcast %cst_133 : f32 to vector<8x256xf32>
    %473 = arith.addf %472, %471 : vector<8x256xf32>
    %474 = arith.divf %472, %473 : vector<8x256xf32>
    %475 = vector.extract_strided_slice %465 {offsets = [0, 256], sizes = [8, 256], strides = [1, 1]} : vector<8x768xf32> to vector<8x256xf32>
    %476 = vector.extract_strided_slice %466 {offsets = [0, 256], sizes = [8, 256], strides = [1, 1]} : vector<8x768xf32> to vector<8x256xf32>
    %477 = arith.addf %475, %476 : vector<8x256xf32>
    %478 = arith.negf %477 : vector<8x256xf32>
    %479 = math.exp %478 : vector<8x256xf32>
    %cst_134 = arith.constant 1.000000e+00 : f32
    %480 = vector.broadcast %cst_134 : f32 to vector<8x256xf32>
    %481 = arith.addf %480, %479 : vector<8x256xf32>
    %482 = arith.divf %480, %481 : vector<8x256xf32>
    %483 = vector.extract_strided_slice %465 {offsets = [0, 512], sizes = [8, 256], strides = [1, 1]} : vector<8x768xf32> to vector<8x256xf32>
    %484 = vector.extract_strided_slice %466 {offsets = [0, 512], sizes = [8, 256], strides = [1, 1]} : vector<8x768xf32> to vector<8x256xf32>
    %485 = arith.addf %484, %305 : vector<8x256xf32>
    %486 = arith.mulf %474, %485 : vector<8x256xf32>
    %487 = arith.addf %483, %486 : vector<8x256xf32>
    %488 = math.tanh %487 : vector<8x256xf32>
    %cst_135 = arith.constant 1.000000e+00 : f32
    %489 = vector.broadcast %cst_135 : f32 to vector<8x256xf32>
    %490 = arith.subf %489, %482 : vector<8x256xf32>
    %491 = arith.mulf %490, %488 : vector<8x256xf32>
    %492 = arith.mulf %482, %462 : vector<8x256xf32>
    %493 = arith.addf %491, %492 : vector<8x256xf32>
    %c6_i32_136 = arith.constant 6 : i32
    %494 = arith.index_cast %c6_i32_136 : i32 to index
    %c0_137 = arith.constant 0 : index
    %c0_138 = arith.constant 0 : index
    %495 = vector.load %arg13[%494, %c0_137, %c0_138] : memref<8x8x768xf32, #tpu.memory_space<vmem>>, vector<1x8x768xf32>
    %496 = vector.shape_cast %495 : vector<1x8x768xf32> to vector<8x768xf32>
    %cst_139 = arith.constant dense<0.000000e+00> : vector<8x768xf32>
    %497 = tpu.matmul %493, %306, %cst_139 {dimension_numbers = #tpu.dot_dimension_numbers<[1], [0], [0], [1], [0, 0, 1, 1], [], []>} : vector<8x256xf32>, vector<256x768xf32>, vector<8x768xf32> -> vector<8x768xf32>
    %498 = vector.extract_strided_slice %496 {offsets = [0, 0], sizes = [8, 256], strides = [1, 1]} : vector<8x768xf32> to vector<8x256xf32>
    %499 = vector.extract_strided_slice %497 {offsets = [0, 0], sizes = [8, 256], strides = [1, 1]} : vector<8x768xf32> to vector<8x256xf32>
    %500 = arith.addf %498, %499 : vector<8x256xf32>
    %501 = arith.negf %500 : vector<8x256xf32>
    %502 = math.exp %501 : vector<8x256xf32>
    %cst_140 = arith.constant 1.000000e+00 : f32
    %503 = vector.broadcast %cst_140 : f32 to vector<8x256xf32>
    %504 = arith.addf %503, %502 : vector<8x256xf32>
    %505 = arith.divf %503, %504 : vector<8x256xf32>
    %506 = vector.extract_strided_slice %496 {offsets = [0, 256], sizes = [8, 256], strides = [1, 1]} : vector<8x768xf32> to vector<8x256xf32>
    %507 = vector.extract_strided_slice %497 {offsets = [0, 256], sizes = [8, 256], strides = [1, 1]} : vector<8x768xf32> to vector<8x256xf32>
    %508 = arith.addf %506, %507 : vector<8x256xf32>
    %509 = arith.negf %508 : vector<8x256xf32>
    %510 = math.exp %509 : vector<8x256xf32>
    %cst_141 = arith.constant 1.000000e+00 : f32
    %511 = vector.broadcast %cst_141 : f32 to vector<8x256xf32>
    %512 = arith.addf %511, %510 : vector<8x256xf32>
    %513 = arith.divf %511, %512 : vector<8x256xf32>
    %514 = vector.extract_strided_slice %496 {offsets = [0, 512], sizes = [8, 256], strides = [1, 1]} : vector<8x768xf32> to vector<8x256xf32>
    %515 = vector.extract_strided_slice %497 {offsets = [0, 512], sizes = [8, 256], strides = [1, 1]} : vector<8x768xf32> to vector<8x256xf32>
    %516 = arith.addf %515, %305 : vector<8x256xf32>
    %517 = arith.mulf %505, %516 : vector<8x256xf32>
    %518 = arith.addf %514, %517 : vector<8x256xf32>
    %519 = math.tanh %518 : vector<8x256xf32>
    %cst_142 = arith.constant 1.000000e+00 : f32
    %520 = vector.broadcast %cst_142 : f32 to vector<8x256xf32>
    %521 = arith.subf %520, %513 : vector<8x256xf32>
    %522 = arith.mulf %521, %519 : vector<8x256xf32>
    %523 = arith.mulf %513, %493 : vector<8x256xf32>
    %524 = arith.addf %522, %523 : vector<8x256xf32>
    %c7_i32_143 = arith.constant 7 : i32
    %525 = arith.index_cast %c7_i32_143 : i32 to index
    %c0_144 = arith.constant 0 : index
    %c0_145 = arith.constant 0 : index
    %526 = vector.load %arg13[%525, %c0_144, %c0_145] : memref<8x8x768xf32, #tpu.memory_space<vmem>>, vector<1x8x768xf32>
    %527 = vector.shape_cast %526 : vector<1x8x768xf32> to vector<8x768xf32>
    %cst_146 = arith.constant dense<0.000000e+00> : vector<8x768xf32>
    %528 = tpu.matmul %524, %306, %cst_146 {dimension_numbers = #tpu.dot_dimension_numbers<[1], [0], [0], [1], [0, 0, 1, 1], [], []>} : vector<8x256xf32>, vector<256x768xf32>, vector<8x768xf32> -> vector<8x768xf32>
    %529 = vector.extract_strided_slice %527 {offsets = [0, 0], sizes = [8, 256], strides = [1, 1]} : vector<8x768xf32> to vector<8x256xf32>
    %530 = vector.extract_strided_slice %528 {offsets = [0, 0], sizes = [8, 256], strides = [1, 1]} : vector<8x768xf32> to vector<8x256xf32>
    %531 = arith.addf %529, %530 : vector<8x256xf32>
    %532 = arith.negf %531 : vector<8x256xf32>
    %533 = math.exp %532 : vector<8x256xf32>
    %cst_147 = arith.constant 1.000000e+00 : f32
    %534 = vector.broadcast %cst_147 : f32 to vector<8x256xf32>
    %535 = arith.addf %534, %533 : vector<8x256xf32>
    %536 = arith.divf %534, %535 : vector<8x256xf32>
    %537 = vector.extract_strided_slice %527 {offsets = [0, 256], sizes = [8, 256], strides = [1, 1]} : vector<8x768xf32> to vector<8x256xf32>
    %538 = vector.extract_strided_slice %528 {offsets = [0, 256], sizes = [8, 256], strides = [1, 1]} : vector<8x768xf32> to vector<8x256xf32>
    %539 = arith.addf %537, %538 : vector<8x256xf32>
    %540 = arith.negf %539 : vector<8x256xf32>
    %541 = math.exp %540 : vector<8x256xf32>
    %cst_148 = arith.constant 1.000000e+00 : f32
    %542 = vector.broadcast %cst_148 : f32 to vector<8x256xf32>
    %543 = arith.addf %542, %541 : vector<8x256xf32>
    %544 = arith.divf %542, %543 : vector<8x256xf32>
    %545 = vector.extract_strided_slice %527 {offsets = [0, 512], sizes = [8, 256], strides = [1, 1]} : vector<8x768xf32> to vector<8x256xf32>
    %546 = vector.extract_strided_slice %528 {offsets = [0, 512], sizes = [8, 256], strides = [1, 1]} : vector<8x768xf32> to vector<8x256xf32>
    %547 = arith.addf %546, %305 : vector<8x256xf32>
    %548 = arith.mulf %536, %547 : vector<8x256xf32>
    %549 = arith.addf %545, %548 : vector<8x256xf32>
    %550 = math.tanh %549 : vector<8x256xf32>
    %cst_149 = arith.constant 1.000000e+00 : f32
    %551 = vector.broadcast %cst_149 : f32 to vector<8x256xf32>
    %552 = arith.subf %551, %544 : vector<8x256xf32>
    %553 = arith.mulf %552, %550 : vector<8x256xf32>
    %554 = arith.mulf %544, %524 : vector<8x256xf32>
    %555 = arith.addf %553, %554 : vector<8x256xf32>
    %c8_i32_150 = arith.constant 8 : i32
    %c0_151 = arith.constant 0 : index
    %c0_152 = arith.constant 0 : index
    %556 = vector.load %arg10[%c0_151, %c0_152] : memref<256x128xf32, #tpu.memory_space<vmem>>, vector<256x128xf32>
    %cst_153 = arith.constant dense<0.000000e+00> : vector<8x128xf32>
    %557 = tpu.matmul %555, %556, %cst_153 {dimension_numbers = #tpu.dot_dimension_numbers<[1], [0], [0], [1], [0, 0, 1, 1], [], []>} : vector<8x256xf32>, vector<256x128xf32>, vector<8x128xf32> -> vector<8x128xf32>
    %c0_154 = arith.constant 0 : index
    %c0_155 = arith.constant 0 : index
    %558 = vector.load %arg11[%c0_154, %c0_155] : memref<1x128xf32, #tpu.memory_space<vmem>>, vector<1x128xf32>
    %559 = vector.broadcast %558 : vector<1x128xf32> to vector<8x128xf32>
    %560 = arith.addf %557, %559 : vector<8x128xf32>
    %c0_156 = arith.constant 0 : index
    %c0_157 = arith.constant 0 : index
    %561 = vector.load %arg12[%c0_156, %c0_157] : memref<8x128xf32, #tpu.memory_space<vmem>>, vector<8x128xf32>
    tpu.vector_store %arg12[%c0_156, %c0_157], %560 {strides = array<i32>} : memref<8x128xf32, #tpu.memory_space<vmem>>, vector<8x128xf32>,
    return
  }
  func.func @transform_0(%arg0: i32) -> (i32, i32, i32) {
    %c0_i32 = arith.constant 0 : i32
    %c0_i32_0 = arith.constant 0 : i32
    %c0_i32_1 = arith.constant 0 : i32
    %c0_i32_2 = arith.constant 0 : i32
    return %c0_i32, %c0_i32_0, %c0_i32_1 : i32, i32, i32
  }
  func.func @transform_1(%arg0: i32) -> (i32, i32) {
    %c0_i32 = arith.constant 0 : i32
    %c0_i32_0 = arith.constant 0 : i32
    %c0_i32_1 = arith.constant 0 : i32
    return %c0_i32, %c0_i32_0 : i32, i32
  }
  func.func @transform_2(%arg0: i32) -> (i32, i32) {
    %c0_i32 = arith.constant 0 : i32
    %c0_i32_0 = arith.constant 0 : i32
    %c0_i32_1 = arith.constant 0 : i32
    return %c0_i32, %c0_i32_0 : i32, i32
  }
  func.func @transform_3(%arg0: i32) -> (i32, i32) {
    %c0_i32 = arith.constant 0 : i32
    %c0_i32_0 = arith.constant 0 : i32
    %c0_i32_1 = arith.constant 0 : i32
    return %c0_i32, %c0_i32_0 : i32, i32
  }
  func.func @transform_4(%arg0: i32) -> (i32, i32) {
    %c0_i32 = arith.constant 0 : i32
    %c0_i32_0 = arith.constant 0 : i32
    %c0_i32_1 = arith.constant 0 : i32
    return %c0_i32, %c0_i32_0 : i32, i32
  }
  func.func @transform_5(%arg0: i32) -> (i32, i32) {
    %c0_i32 = arith.constant 0 : i32
    %c0_i32_0 = arith.constant 0 : i32
    %c0_i32_1 = arith.constant 0 : i32
    return %c0_i32, %c0_i32_0 : i32, i32
  }
  func.func @transform_6(%arg0: i32) -> (i32, i32) {
    %c0_i32 = arith.constant 0 : i32
    %c0_i32_0 = arith.constant 0 : i32
    %c0_i32_1 = arith.constant 0 : i32
    return %c0_i32, %c0_i32_0 : i32, i32
  }
  func.func @transform_7(%arg0: i32) -> (i32, i32) {
    %c0_i32 = arith.constant 0 : i32
    %c0_i32_0 = arith.constant 0 : i32
    %c0_i32_1 = arith.constant 0 : i32
    return %c0_i32, %c0_i32_0 : i32, i32
  }
  func.func @transform_8(%arg0: i32) -> (i32, i32) {
    %c0_i32 = arith.constant 0 : i32
    %c0_i32_0 = arith.constant 0 : i32
    %c0_i32_1 = arith.constant 0 : i32
    return %c0_i32, %c0_i32_0 : i32, i32
  }
  func.func @transform_9(%arg0: i32) -> (i32, i32) {
    %c0_i32 = arith.constant 0 : i32
    %c0_i32_0 = arith.constant 0 : i32
    %c0_i32_1 = arith.constant 0 : i32
    return %c0_i32, %c0_i32_0 : i32, i32
  }
  func.func @transform_10(%arg0: i32) -> (i32, i32) {
    %c0_i32 = arith.constant 0 : i32
    %c0_i32_0 = arith.constant 0 : i32
    %c0_i32_1 = arith.constant 0 : i32
    return %c0_i32, %c0_i32_0 : i32, i32
  }
  func.func @transform_11(%arg0: i32) -> (i32, i32) {
    %c0_i32 = arith.constant 0 : i32
    %c0_i32_0 = arith.constant 0 : i32
    %c0_i32_1 = arith.constant 0 : i32
    return %c0_i32, %c0_i32_0 : i32, i32
  }
}

</mosaic_0001>

<llo_original>
// kernel: gru_encoder_forward.1
$region0: #{gru_encoder_forward.1}
  #allocation0 [shape = 'u32[]', space=smem, size = 0x4, offset = 0x4, fixed_abs, tag = 'smem constant byte address 0x4 - core index']
  #allocation1 [shape = 'u32[144,128]{1,0:T(1,128)}', space=vmem, size = 0x12000, scoped, tag = 'internal scratch']
  #allocation2 [shape = 'f32[8,8,768]{2,1,0:T(8,128)}', space=vmem, size = 0x30000, scoped, tag = 'scratch operand']
  #allocation3 [shape = 'f32[8,8,256]{2,1,0:T(8,128)}', space=vmem, size = 0x10000, scoped, tag = 'scratch operand']
  %s0 = inlined_call_operand.vmem [shape: f32[8,8,16], index: 0, kind: input, shape index: {}]
  %s1 = inlined_call_operand.vmem [shape: f32[16,768], index: 1, kind: input, shape index: {}]
  %s2 = inlined_call_operand.hbm [shape: f32[256,768], index: 2, kind: input, shape index: {}]
  %s3 = inlined_call_operand.vmem [shape: f32[1,768], index: 3, kind: input, shape index: {}]
  %s4 = inlined_call_operand.vmem [shape: f32[1,256], index: 4, kind: input, shape index: {}]
  %s5 = inlined_call_operand.hbm [shape: f32[256,768], index: 5, kind: input, shape index: {}]
  %s6 = inlined_call_operand.hbm [shape: f32[256,768], index: 6, kind: input, shape index: {}]
  %s7 = inlined_call_operand.vmem [shape: f32[1,768], index: 7, kind: input, shape index: {}]
  %s8 = inlined_call_operand.vmem [shape: f32[1,256], index: 8, kind: input, shape index: {}]
  %s9 = inlined_call_operand.hbm [shape: f32[256,128], index: 9, kind: input, shape index: {}]
  %s10 = inlined_call_operand.vmem [shape: f32[1,128], index: 10, kind: input, shape index: {}]
  %s11 = inlined_call_operand.hbm [shape: f32[8,128], index: 11, kind: output, shape index: {}]
  %s12 = sld [smem:[#allocation0]]
  $region70: #{gru_encoder_forward.1} parent=0
    _
  %s14 = ssub.s32 1, %s12
  %s15 = scalar_select 0, %s14, %s12
  $region1: #{gru_encoder_forward.1} parent=0
    #allocation4 [shape = 'u8[786432]{0}', space=vmem, size = 0xc0000, scoped, tag = 'input window, operand 2, single buffered']
    #allocation5 [shape = 's32[1]{0}', space=sflag, size = 0x4, scoped, tag = 'scoped memory for gru_encoder_forward.1']
    #allocation6 [shape = 's32[1]{0}', space=sflag, size = 0x4, scoped, tag = 'scoped memory for gru_encoder_forward.1']
    #allocation7 [shape = 'u8[786432]{0}', space=vmem, size = 0xc0000, scoped, tag = 'input window, operand 5, single buffered']
    #allocation8 [shape = 's32[1]{0}', space=sflag, size = 0x4, scoped, tag = 'scoped memory for gru_encoder_forward.1']
    #allocation9 [shape = 'u8[786432]{0}', space=vmem, size = 0xc0000, scoped, tag = 'input window, operand 6, single buffered']
    #allocation10 [shape = 'u8[131072]{0}', space=vmem, size = 0x20000, scoped, tag = 'input window, operand 9, single buffered']
    #allocation11 [shape = 's32[1]{0}', space=sflag, size = 0x4, scoped, tag = 'scoped memory for gru_encoder_forward.1']
    #allocation12 [shape = 'u8[4096]{0}', space=vmem, size = 0x1000, scoped, tag = 'output window, operand 0, single buffered']
    %16 = vsyncpa [#allocation5], 0
    %17 = vsyncpa [#allocation8], 0
    %18 = vsyncpa [#allocation11], 0
    %19 = vsyncpa [#allocation6], 0
    // Predicated region
    $region2: #{gru_encoder_forward.1} parent=1 // pred_check
      _
    $region3: #{gru_encoder_forward.1} parent=1 // pred_check_branch
      %21 = sbr.rel (0) target = $region5
    $region4: #{gru_encoder_forward.1} parent=1 // pred_region
      _
    $region5: #{gru_encoder_forward.1} parent=1 // pred_fallthru
      _
    // Predicated region
    $region6: #{gru_encoder_forward.1} parent=1 // pred_check
      _
    $region7: #{gru_encoder_forward.1} parent=1 // pred_check_branch
      %23 = sbr.rel (0) target = $region9
    $region8: #{gru_encoder_forward.1} parent=1 // pred_region
      _
    $region9: #{gru_encoder_forward.1} parent=1 // pred_fallthru
      _
    // Predicated region
    $region10: #{gru_encoder_forward.1} parent=1 // pred_check
      _
    $region11: #{gru_encoder_forward.1} parent=1 // pred_check_branch
      %25 = sbr.rel (0) target = $region13
    $region12: #{gru_encoder_forward.1} parent=1 // pred_region
      %s27 = ssub.s32 24576, 24576
      %28 = vsyncadd [#allocation5], %s27
      %s29 = sshll.u32 [#allocation4], 4
      %s30 = int_to_ptr.vmem [resolvable:$true] %s29
      %35 = dma.hbm_to_vmem [thread:$0]  %s2, 24576, %s30, [#allocation5], 768, 768, 48
    $region13: #{gru_encoder_forward.1} parent=1 // pred_fallthru
      _
    // Predicated region
    $region14: #{gru_encoder_forward.1} parent=1 // pred_check
      _
    $region15: #{gru_encoder_forward.1} parent=1 // pred_check_branch
      %37 = sbr.rel (0) target = $region17
    $region16: #{gru_encoder_forward.1} parent=1 // pred_region
      _
    $region17: #{gru_encoder_forward.1} parent=1 // pred_fallthru
      _
    // Predicated region
    $region18: #{gru_encoder_forward.1} parent=1 // pred_check
      _
    $region19: #{gru_encoder_forward.1} parent=1 // pred_check_branch
      %39 = sbr.rel (0) target = $region21
    $region20: #{gru_encoder_forward.1} parent=1 // pred_region
      _
    $region21: #{gru_encoder_forward.1} parent=1 // pred_fallthru
      _
    // Predicated region
    $region22: #{gru_encoder_forward.1} parent=1 // pred_check
      _
    $region23: #{gru_encoder_forward.1} parent=1 // pred_check_branch
      %41 = sbr.rel (0) target = $region25
    $region24: #{gru_encoder_forward.1} parent=1 // pred_region
      %s43 = ssub.s32 24576, 24576
      %44 = vsyncadd [#allocation8], %s43
      %s45 = sshll.u32 [#allocation7], 4
      %s46 = int_to_ptr.vmem [resolvable:$true] %s45
      %51 = dma.hbm_to_vmem [thread:$0]  %s5, 24576, %s46, [#allocation8], 768, 768, 48
    $region25: #{gru_encoder_forward.1} parent=1 // pred_fallthru
      _
    // Predicated region
    $region26: #{gru_encoder_forward.1} parent=1 // pred_check
      _
    $region27: #{gru_encoder_forward.1} parent=1 // pred_check_branch
      %53 = sbr.rel (0) target = $region29
    $region28: #{gru_encoder_forward.1} parent=1 // pred_region
      %s55 = ssub.s32 24576, 24576
      %56 = vsyncadd [#allocation8], %s55
      %s57 = sshll.u32 [#allocation9], 4
      %s58 = int_to_ptr.vmem [resolvable:$true] %s57
      %63 = dma.hbm_to_vmem [thread:$0]  %s6, 24576, %s58, [#allocation8], 768, 768, 48
    $region29: #{gru_encoder_forward.1} parent=1 // pred_fallthru
      _
    // Predicated region
    $region30: #{gru_encoder_forward.1} parent=1 // pred_check
      _
    $region31: #{gru_encoder_forward.1} parent=1 // pred_check_branch
      %65 = sbr.rel (0) target = $region33
    $region32: #{gru_encoder_forward.1} parent=1 // pred_region
      _
    $region33: #{gru_encoder_forward.1} parent=1 // pred_fallthru
      _
    // Predicated region
    $region34: #{gru_encoder_forward.1} parent=1 // pred_check
      _
    $region35: #{gru_encoder_forward.1} parent=1 // pred_check_branch
      %67 = sbr.rel (0) target = $region37
    $region36: #{gru_encoder_forward.1} parent=1 // pred_region
      _
    $region37: #{gru_encoder_forward.1} parent=1 // pred_fallthru
      _
    // Predicated region
    $region38: #{gru_encoder_forward.1} parent=1 // pred_check
      _
    $region39: #{gru_encoder_forward.1} parent=1 // pred_check_branch
      %69 = sbr.rel (0) target = $region41
    $region40: #{gru_encoder_forward.1} parent=1 // pred_region
      %s71 = ssub.s32 4096, 4096
      %72 = vsyncadd [#allocation11], %s71
      %s73 = sshll.u32 [#allocation10], 4
      %s74 = int_to_ptr.vmem [resolvable:$true] %s73
      %79 = dma.hbm_to_vmem [thread:$0]  %s9, 4096, %s74, [#allocation11], 128, 128, 8
    $region41: #{gru_encoder_forward.1} parent=1 // pred_fallthru
      _
    // Predicated region
    $region42: #{gru_encoder_forward.1} parent=1 // pred_check
      _
    $region43: #{gru_encoder_forward.1} parent=1 // pred_check_branch
      %81 = sbr.rel (0) target = $region45
    $region44: #{gru_encoder_forward.1} parent=1 // pred_region
      _
    $region45: #{gru_encoder_forward.1} parent=1 // pred_fallthru
      _
    // Predicated region
    $region46: #{gru_encoder_forward.1} parent=1 // pred_check
      _
    $region47: #{gru_encoder_forward.1} parent=1 // pred_check_branch
      %83 = sbr.rel (0) target = $region49
    $region48: #{gru_encoder_forward.1} parent=1 // pred_region
      %84 = dma.done [#allocation5], 24576
    $region49: #{gru_encoder_forward.1} parent=1 // pred_fallthru
      _
    // Predicated region
    $region50: #{gru_encoder_forward.1} parent=1 // pred_check
      _
    $region51: #{gru_encoder_forward.1} parent=1 // pred_check_branch
      %86 = sbr.rel (0) target = $region53
    $region52: #{gru_encoder_forward.1} parent=1 // pred_region
      %87 = dma.done [#allocation8], 24576
    $region53: #{gru_encoder_forward.1} parent=1 // pred_fallthru
      _
    // Predicated region
    $region54: #{gru_encoder_forward.1} parent=1 // pred_check
      _
    $region55: #{gru_encoder_forward.1} parent=1 // pred_check_branch
      %89 = sbr.rel (0) target = $region57
    $region56: #{gru_encoder_forward.1} parent=1 // pred_region
      %90 = dma.done [#allocation8], 24576
    $region57: #{gru_encoder_forward.1} parent=1 // pred_fallthru
      _
    // Predicated region
    $region58: #{gru_encoder_forward.1} parent=1 // pred_check
      _
    $region59: #{gru_encoder_forward.1} parent=1 // pred_check_branch
      %92 = sbr.rel (0) target = $region61
    $region60: #{gru_encoder_forward.1} parent=1 // pred_region
      %93 = dma.done [#allocation11], 4096
    $region61: #{gru_encoder_forward.1} parent=1 // pred_fallthru
      _
    %v94 = vld [vmem:[%s0] sm:$0xff]
    %v95 = vld [vmem:[%s0 + $0x8] sm:$0xff]
    %v96 = vld [vmem:[%s0 + $0x10] sm:$0xff]
    %v97 = vld [vmem:[%s0 + $0x18] sm:$0xff]
    %v98 = vld [vmem:[%s0 + $0x20] sm:$0xff]
    %v99 = vld [vmem:[%s0 + $0x28] sm:$0xff]
    %v100 = vld [vmem:[%s0 + $0x30] sm:$0xff]
    %v101 = vld [vmem:[%s0 + $0x38] sm:$0xff]
    %v102 = vld [vmem:[%s1] sm:$0xff]
    %v103 = vld [vmem:[%s1 + $0x8] sm:$0xff]
    %v104 = vld [vmem:[%s1 + $0x10] sm:$0xff]
    %v105 = vld [vmem:[%s1 + $0x18] sm:$0xff]
    %v106 = vld [vmem:[%s1 + $0x20] sm:$0xff]
    %v107 = vld [vmem:[%s1 + $0x28] sm:$0xff]
    %v108 = vld [vmem:[%s1 + $0x30] sm:$0xff]
    %v109 = vld [vmem:[%s1 + $0x38] sm:$0xff]
    %v110 = vld [vmem:[%s1 + $0x40] sm:$0xff]
    %v111 = vld [vmem:[%s1 + $0x48] sm:$0xff]
    %v112 = vld [vmem:[%s1 + $0x50] sm:$0xff]
    %v113 = vld [vmem:[%s1 + $0x58] sm:$0xff]
    %v114 = vld [vmem:[%s3] sm:$0x3f]
    %v116 = vlaneseq
    %v117 = vshrl.u32 %v116, 7
    %v118 = vsub.s32 0, %v117
    %v119 = vrot.slane %v114, %v118
    %v120 = vlaneseq
    %v121 = vshrl.u32 %v120, 7
    %v122 = vsub.s32 1, %v121
    %v123 = vrot.slane %v114, %v122
    %v124 = vlaneseq
    %v125 = vshrl.u32 %v124, 7
    %v126 = vsub.s32 2, %v125
    %v127 = vrot.slane %v114, %v126
    %v128 = vlaneseq
    %v129 = vshrl.u32 %v128, 7
    %v130 = vsub.s32 3, %v129
    %v131 = vrot.slane %v114, %v130
    %v132 = vlaneseq
    %v133 = vshrl.u32 %v132, 7
    %v134 = vsub.s32 4, %v133
    %v135 = vrot.slane %v114, %v134
    %v136 = vlaneseq
    %v137 = vshrl.u32 %v136, 7
    %v138 = vsub.s32 5, %v137
    %v139 = vrot.slane %v114, %v138
    %vm146 = vcmask 130048
    %v148 = vsel %vm146, %v94, 0
    %v151 = vsel %vm146, %v95, 0
    %v154 = vsel %vm146, %v96, 0
    %v157 = vsel %vm146, %v97, 0
    %v160 = vsel %vm146, %v98, 0
    %v163 = vsel %vm146, %v99, 0
    %v166 = vsel %vm146, %v100, 0
    %v169 = vsel %vm146, %v101, 0
    %171 = vmatprep.subr.mxu0 0.0
    %172 = vmatpush1.msra.mxu0 0.0
    %173 = vmatprep.subr.mxu0 0.0
    %174 = vmatpush1.msra.mxu0 0.0
    %175 = vmatprep.subr.mxu0 0.0
    %176 = vmatpush1.msra.mxu0 0.0
    %177 = vmatprep.subr.mxu0 0.0
    %178 = vmatpush1.msra.mxu0 0.0
    %179 = vmatprep.subr.mxu0 0.0
    %180 = vmatpush1.msra.mxu0 0.0
    %181 = vmatprep.subr.mxu0 0.0
    %182 = vmatpush1.msra.mxu0 0.0
    %183 = vmatprep.subr.mxu0 0.0
    %184 = vmatpush1.msra.mxu0 0.0
    %185 = vmatprep.subr.mxu0 0.0
    %186 = vmatpush1.msra.mxu0 0.0
    %187 = vmatprep.subr.mxu0 0.0
    %188 = vmatpush1.msra.mxu0 0.0
    %189 = vmatprep.subr.mxu0 0.0
    %190 = vmatpush1.msra.mxu0 0.0
    %191 = vmatprep.subr.mxu0 0.0
    %192 = vmatpush1.msra.mxu0 0.0
    %193 = vmatprep.subr.mxu0 0.0
    %194 = vmatpush1.msra.mxu0 0.0
    %195 = vmatprep.subr.mxu0 0.0
    %196 = vmatpush1.msra.mxu0 0.0
    %197 = vmatprep.subr.mxu0 0.0
    %198 = vmatpush1.msra.mxu0 0.0
    %199 = vmatprep.subr.mxu0 %v109
    %200 = vmatpush1.msra.mxu0 %v108
    %201 = vmatprep.subr.mxu0 %v103
    %202 = vmatpush1.msra.mxu0 %v102
    %203 = vmatprep.subr.mxu0 0.0
    %204 = vmatpush2.msra.mxu0 0.0
    %205 = vmatprep.subr.mxu0 0.0
    %206 = vmatpush2.msra.mxu0 0.0
    %207 = vmatprep.subr.mxu0 0.0
    %208 = vmatpush2.msra.mxu0 0.0
    %209 = vmatprep.subr.mxu0 0.0
    %210 = vmatpush2.msra.mxu0 0.0
    %211 = vmatprep.subr.mxu0 0.0
    %212 = vmatpush2.msra.mxu0 0.0
    %213 = vmatprep.subr.mxu0 0.0
    %214 = vmatpush2.msra.mxu0 0.0
    %215 = vmatprep.subr.mxu0 0.0
    %216 = vmatpush2.msra.mxu0 0.0
    %217 = vmatprep.subr.mxu0 0.0
    %218 = vmatpush2.msra.mxu0 0.0
    %219 = vmatprep.subr.mxu0 0.0
    %220 = vmatpush2.msra.mxu0 0.0
    %221 = vmatprep.subr.mxu0 0.0
    %222 = vmatpush2.msra.mxu0 0.0
    %223 = vmatprep.subr.mxu0 0.0
    %224 = vmatpush2.msra.mxu0 0.0
    %225 = vmatprep.subr.mxu0 0.0
    %226 = vmatpush2.msra.mxu0 0.0
    %227 = vmatprep.subr.mxu0 0.0
    %228 = vmatpush2.msra.mxu0 0.0
    %229 = vmatprep.subr.mxu0 0.0
    %230 = vmatpush2.msra.mxu0 0.0
    %231 = vmatprep.subr.mxu0 0.0
    %232 = vmatpush2.msra.mxu0 0.0
    %233 = vmatprep.subr.mxu0 0.0
    %234 = vmatpush2.msra.mxu0 0.0
    %235 = vmatprep.mubr.f32.mxu0 0.0
    %236 = vmatmul.mubr.f32.gmra.mxu0 %v148
    %v237 = vpop.f32.mrf.mxu0
    %v238 = vadd.f32 %v119, %v237
    %v239 = vpop.f32.mrf.mxu0
    %v240 = vadd.f32 %v123, %v239
    %241 = vmatprep.mubr.f32.mxu0 0.0
    %242 = vmatmul.mubr.f32.gmra.mxu0 %v151
    %v243 = vpop.f32.mrf.mxu0
    %v244 = vadd.f32 %v119, %v243
    %v245 = vpop.f32.mrf.mxu0
    %v246 = vadd.f32 %v123, %v245
    %247 = vmatprep.mubr.f32.mxu0 0.0
    %248 = vmatmul.mubr.f32.gmra.mxu0 %v154
    %v249 = vpop.f32.mrf.mxu0
    %v250 = vadd.f32 %v119, %v249
    %v251 = vpop.f32.mrf.mxu0
    %v252 = vadd.f32 %v123, %v251
    %253 = vmatprep.mubr.f32.mxu0 0.0
    %254 = vmatmul.mubr.f32.gmra.mxu0 %v157
    %v255 = vpop.f32.mrf.mxu0
    %v256 = vadd.f32 %v119, %v255
    %v257 = vpop.f32.mrf.mxu0
    %v258 = vadd.f32 %v123, %v257
    %259 = vmatprep.mubr.f32.mxu0 0.0
    %260 = vmatmul.mubr.f32.gmra.mxu0 %v160
    %v261 = vpop.f32.mrf.mxu0
    %v262 = vadd.f32 %v119, %v261
    %v263 = vpop.f32.mrf.mxu0
    %v264 = vadd.f32 %v123, %v263
    %265 = vmatprep.mubr.f32.mxu0 0.0
    %266 = vmatmul.mubr.f32.gmra.mxu0 %v163
    %v267 = vpop.f32.mrf.mxu0
    %v268 = vadd.f32 %v119, %v267
    %v269 = vpop.f32.mrf.mxu0
    %v270 = vadd.f32 %v123, %v269
    %271 = vmatprep.mubr.f32.mxu0 0.0
    %272 = vmatmul.mubr.f32.gmra.mxu0 %v166
    %v273 = vpop.f32.mrf.mxu0
    %v274 = vadd.f32 %v119, %v273
    %v275 = vpop.f32.mrf.mxu0
    %v276 = vadd.f32 %v123, %v275
    %277 = vmatprep.mubr.f32.mxu0 0.0
    %278 = vmatmul.mubr.f32.gmra.mxu0 %v169
    %v279 = vpop.f32.mrf.mxu0
    %v280 = vadd.f32 %v119, %v279
    %v281 = vpop.f32.mrf.mxu0
    %v282 = vadd.f32 %v123, %v281
    %283 = vdwg.mxu0
    %284 = vmatprep.subr.mxu0 0.0
    %285 = vmatpush1.msra.mxu0 0.0
    %286 = vmatprep.subr.mxu0 0.0
    %287 = vmatpush1.msra.mxu0 0.0
    %288 = vmatprep.subr.mxu0 0.0
    %289 = vmatpush1.msra.mxu0 0.0
    %290 = vmatprep.subr.mxu0 0.0
    %291 = vmatpush1.msra.mxu0 0.0
    %292 = vmatprep.subr.mxu0 0.0
    %293 = vmatpush1.msra.mxu0 0.0
    %294 = vmatprep.subr.mxu0 0.0
    %295 = vmatpush1.msra.mxu0 0.0
    %296 = vmatprep.subr.mxu0 0.0
    %297 = vmatpush1.msra.mxu0 0.0
    %298 = vmatprep.subr.mxu0 0.0
    %299 = vmatpush1.msra.mxu0 0.0
    %300 = vmatprep.subr.mxu0 0.0
    %301 = vmatpush1.msra.mxu0 0.0
    %302 = vmatprep.subr.mxu0 0.0
    %303 = vmatpush1.msra.mxu0 0.0
    %304 = vmatprep.subr.mxu0 0.0
    %305 = vmatpush1.msra.mxu0 0.0
    %306 = vmatprep.subr.mxu0 0.0
    %307 = vmatpush1.msra.mxu0 0.0
    %308 = vmatprep.subr.mxu0 0.0
    %309 = vmatpush1.msra.mxu0 0.0
    %310 = vmatprep.subr.mxu0 0.0
    %311 = vmatpush1.msra.mxu0 0.0
    %312 = vmatprep.subr.mxu0 %v111
    %313 = vmatpush1.msra.mxu0 %v110
    %314 = vmatprep.subr.mxu0 %v105
    %315 = vmatpush1.msra.mxu0 %v104
    %316 = vmatprep.subr.mxu0 0.0
    %317 = vmatpush2.msra.mxu0 0.0
    %318 = vmatprep.subr.mxu0 0.0
    %319 = vmatpush2.msra.mxu0 0.0
    %320 = vmatprep.subr.mxu0 0.0
    %321 = vmatpush2.msra.mxu0 0.0
    %322 = vmatprep.subr.mxu0 0.0
    %323 = vmatpush2.msra.mxu0 0.0
    %324 = vmatprep.subr.mxu0 0.0
    %325 = vmatpush2.msra.mxu0 0.0
    %326 = vmatprep.subr.mxu0 0.0
    %327 = vmatpush2.msra.mxu0 0.0
    %328 = vmatprep.subr.mxu0 0.0
    %329 = vmatpush2.msra.mxu0 0.0
    %330 = vmatprep.subr.mxu0 0.0
    %331 = vmatpush2.msra.mxu0 0.0
    %332 = vmatprep.subr.mxu0 0.0
    %333 = vmatpush2.msra.mxu0 0.0
    %334 = vmatprep.subr.mxu0 0.0
    %335 = vmatpush2.msra.mxu0 0.0
    %336 = vmatprep.subr.mxu0 0.0
    %337 = vmatpush2.msra.mxu0 0.0
    %338 = vmatprep.subr.mxu0 0.0
    %339 = vmatpush2.msra.mxu0 0.0
    %340 = vmatprep.subr.mxu0 0.0
    %341 = vmatpush2.msra.mxu0 0.0
    %342 = vmatprep.subr.mxu0 0.0
    %343 = vmatpush2.msra.mxu0 0.0
    %344 = vmatprep.subr.mxu0 0.0
    %345 = vmatpush2.msra.mxu0 0.0
    %346 = vmatprep.subr.mxu0 0.0
    %347 = vmatpush2.msra.mxu0 0.0
    %348 = vmatprep.mubr.f32.mxu0 0.0
    %349 = vmatmul.mubr.f32.gmra.mxu0 %v148
    %v350 = vpop.f32.mrf.mxu0
    %v351 = vadd.f32 %v127, %v350
    %v352 = vpop.f32.mrf.mxu0
    %v353 = vadd.f32 %v131, %v352
    %354 = vmatprep.mubr.f32.mxu0 0.0
    %355 = vmatmul.mubr.f32.gmra.mxu0 %v151
    %v356 = vpop.f32.mrf.mxu0
    %v357 = vadd.f32 %v127, %v356
    %v358 = vpop.f32.mrf.mxu0
    %v359 = vadd.f32 %v131, %v358
    %360 = vmatprep.mubr.f32.mxu0 0.0
    %361 = vmatmul.mubr.f32.gmra.mxu0 %v154
    %v362 = vpop.f32.mrf.mxu0
    %v363 = vadd.f32 %v127, %v362
    %v364 = vpop.f32.mrf.mxu0
    %v365 = vadd.f32 %v131, %v364
    %366 = vmatprep.mubr.f32.mxu0 0.0
    %367 = vmatmul.mubr.f32.gmra.mxu0 %v157
    %v368 = vpop.f32.mrf.mxu0
    %v369 = vadd.f32 %v127, %v368
    %v370 = vpop.f32.mrf.mxu0
    %v371 = vadd.f32 %v131, %v370
    %372 = vmatprep.mubr.f32.mxu0 0.0
    %373 = vmatmul.mubr.f32.gmra.mxu0 %v160
    %v374 = vpop.f32.mrf.mxu0
    %v375 = vadd.f32 %v127, %v374
    %v376 = vpop.f32.mrf.mxu0
    %v377 = vadd.f32 %v131, %v376
    %378 = vmatprep.mubr.f32.mxu0 0.0
    %379 = vmatmul.mubr.f32.gmra.mxu0 %v163
    %v380 = vpop.f32.mrf.mxu0
    %v381 = vadd.f32 %v127, %v380
    %v382 = vpop.f32.mrf.mxu0
    %v383 = vadd.f32 %v131, %v382
    %384 = vmatprep.mubr.f32.mxu0 0.0
    %385 = vmatmul.mubr.f32.gmra.mxu0 %v166
    %v386 = vpop.f32.mrf.mxu0
    %v387 = vadd.f32 %v127, %v386
    %v388 = vpop.f32.mrf.mxu0
    %v389 = vadd.f32 %v131, %v388
    %390 = vmatprep.mubr.f32.mxu0 0.0
    %391 = vmatmul.mubr.f32.gmra.mxu0 %v169
    %v392 = vpop.f32.mrf.mxu0
    %v393 = vadd.f32 %v127, %v392
    %v394 = vpop.f32.mrf.mxu0
    %v395 = vadd.f32 %v131, %v394
    %396 = vdwg.mxu0
    %397 = vmatprep.subr.mxu0 0.0
    %398 = vmatpush1.msra.mxu0 0.0
    %399 = vmatprep.subr.mxu0 0.0
    %400 = vmatpush1.msra.mxu0 0.0
    %401 = vmatprep.subr.mxu0 0.0
    %402 = vmatpush1.msra.mxu0 0.0
    %403 = vmatprep.subr.mxu0 0.0
    %404 = vmatpush1.msra.mxu0 0.0
    %405 = vmatprep.subr.mxu0 0.0
    %406 = vmatpush1.msra.mxu0 0.0
    %407 = vmatprep.subr.mxu0 0.0
    %408 = vmatpush1.msra.mxu0 0.0
    %409 = vmatprep.subr.mxu0 0.0
    %410 = vmatpush1.msra.mxu0 0.0
    %411 = vmatprep.subr.mxu0 0.0
    %412 = vmatpush1.msra.mxu0 0.0
    %413 = vmatprep.subr.mxu0 0.0
    %414 = vmatpush1.msra.mxu0 0.0
    %415 = vmatprep.subr.mxu0 0.0
    %416 = vmatpush1.msra.mxu0 0.0
    %417 = vmatprep.subr.mxu0 0.0
    %418 = vmatpush1.msra.mxu0 0.0
    %419 = vmatprep.subr.mxu0 0.0
    %420 = vmatpush1.msra.mxu0 0.0
    %421 = vmatprep.subr.mxu0 0.0
    %422 = vmatpush1.msra.mxu0 0.0
    %423 = vmatprep.subr.mxu0 0.0
    %424 = vmatpush1.msra.mxu0 0.0
    %425 = vmatprep.subr.mxu0 %v113
    %426 = vmatpush1.msra.mxu0 %v112
    %427 = vmatprep.subr.mxu0 %v107
    %428 = vmatpush1.msra.mxu0 %v106
    %429 = vmatprep.subr.mxu0 0.0
    %430 = vmatpush2.msra.mxu0 0.0
    %431 = vmatprep.subr.mxu0 0.0
    %432 = vmatpush2.msra.mxu0 0.0
    %433 = vmatprep.subr.mxu0 0.0
    %434 = vmatpush2.msra.mxu0 0.0
    %435 = vmatprep.subr.mxu0 0.0
    %436 = vmatpush2.msra.mxu0 0.0
    %437 = vmatprep.subr.mxu0 0.0
    %438 = vmatpush2.msra.mxu0 0.0
    %439 = vmatprep.subr.mxu0 0.0
    %440 = vmatpush2.msra.mxu0 0.0
    %441 = vmatprep.subr.mxu0 0.0
    %442 = vmatpush2.msra.mxu0 0.0
    %443 = vmatprep.subr.mxu0 0.0
    %444 = vmatpush2.msra.mxu0 0.0
    %445 = vmatprep.subr.mxu0 0.0
    %446 = vmatpush2.msra.mxu0 0.0
    %447 = vmatprep.subr.mxu0 0.0
    %448 = vmatpush2.msra.mxu0 0.0
    %449 = vmatprep.subr.mxu0 0.0
    %450 = vmatpush2.msra.mxu0 0.0
    %451 = vmatprep.subr.mxu0 0.0
    %452 = vmatpush2.msra.mxu0 0.0
    %453 = vmatprep.subr.mxu0 0.0
    %454 = vmatpush2.msra.mxu0 0.0
    %455 = vmatprep.subr.mxu0 0.0
    %456 = vmatpush2.msra.mxu0 0.0
    %457 = vmatprep.subr.mxu0 0.0
    %458 = vmatpush2.msra.mxu0 0.0
    %459 = vmatprep.subr.mxu0 0.0
    %460 = vmatpush2.msra.mxu0 0.0
    %461 = vmatprep.mubr.f32.mxu0 0.0
    %462 = vmatmul.mubr.f32.gmra.mxu0 %v148
    %v463 = vpop.f32.mrf.mxu0
    %v464 = vadd.f32 %v135, %v463
    %v465 = vpop.f32.mrf.mxu0
    %v466 = vadd.f32 %v139, %v465
    %467 = vmatprep.mubr.f32.mxu0 0.0
    %468 = vmatmul.mubr.f32.gmra.mxu0 %v151
    %v469 = vpop.f32.mrf.mxu0
    %v470 = vadd.f32 %v135, %v469
    %v471 = vpop.f32.mrf.mxu0
    %v472 = vadd.f32 %v139, %v471
    %473 = vmatprep.mubr.f32.mxu0 0.0
    %474 = vmatmul.mubr.f32.gmra.mxu0 %v154
    %v475 = vpop.f32.mrf.mxu0
    %v476 = vadd.f32 %v135, %v475
    %v477 = vpop.f32.mrf.mxu0
    %v478 = vadd.f32 %v139, %v477
    %479 = vmatprep.mubr.f32.mxu0 0.0
    %480 = vmatmul.mubr.f32.gmra.mxu0 %v157
    %v481 = vpop.f32.mrf.mxu0
    %v482 = vadd.f32 %v135, %v481
    %v483 = vpop.f32.mrf.mxu0
    %v484 = vadd.f32 %v139, %v483
    %485 = vmatprep.mubr.f32.mxu0 0.0
    %486 = vmatmul.mubr.f32.gmra.mxu0 %v160
    %v487 = vpop.f32.mrf.mxu0
    %v488 = vadd.f32 %v135, %v487
    %v489 = vpop.f32.mrf.mxu0
    %v490 = vadd.f32 %v139, %v489
    %491 = vmatprep.mubr.f32.mxu0 0.0
    %492 = vmatmul.mubr.f32.gmra.mxu0 %v163
    %v493 = vpop.f32.mrf.mxu0
    %v494 = vadd.f32 %v135, %v493
    %v495 = vpop.f32.mrf.mxu0
    %v496 = vadd.f32 %v139, %v495
    %497 = vmatprep.mubr.f32.mxu0 0.0
    %498 = vmatmul.mubr.f32.gmra.mxu0 %v166
    %v499 = vpop.f32.mrf.mxu0
    %v500 = vadd.f32 %v135, %v499
    %v501 = vpop.f32.mrf.mxu0
    %v502 = vadd.f32 %v139, %v501
    %503 = vmatprep.mubr.f32.mxu0 0.0
    %504 = vmatmul.mubr.f32.gmra.mxu0 %v169
    %v505 = vpop.f32.mrf.mxu0
    %v506 = vadd.f32 %v135, %v505
    %v507 = vpop.f32.mrf.mxu0
    %v508 = vadd.f32 %v139, %v507
    %509 = vdwg.mxu0
    %510 = vst [vmem:[#allocation2] sm:$0xff] %v238
    %511 = vst [vmem:[#allocation2 + $0x8] sm:$0xff] %v240
    %512 = vst [vmem:[#allocation2 + $0x10] sm:$0xff] %v351
    %513 = vst [vmem:[#allocation2 + $0x18] sm:$0xff] %v353
    %514 = vst [vmem:[#allocation2 + $0x20] sm:$0xff] %v464
    %515 = vst [vmem:[#allocation2 + $0x28] sm:$0xff] %v466
    %516 = vst [vmem:[#allocation2 + $0x30] sm:$0xff] %v244
    %517 = vst [vmem:[#allocation2 + $0x38] sm:$0xff] %v246
    %518 = vst [vmem:[#allocation2 + $0x40] sm:$0xff] %v357
    %519 = vst [vmem:[#allocation2 + $0x48] sm:$0xff] %v359
    %520 = vst [vmem:[#allocation2 + $0x50] sm:$0xff] %v470
    %521 = vst [vmem:[#allocation2 + $0x58] sm:$0xff] %v472
    %522 = vst [vmem:[#allocation2 + $0x60] sm:$0xff] %v250
    %523 = vst [vmem:[#allocation2 + $0x68] sm:$0xff] %v252
    %524 = vst [vmem:[#allocation2 + $0x70] sm:$0xff] %v363
    %525 = vst [vmem:[#allocation2 + $0x78] sm:$0xff] %v365
    %526 = vst [vmem:[#allocation2 + $0x80] sm:$0xff] %v476
    %527 = vst [vmem:[#allocation2 + $0x88] sm:$0xff] %v478
    %528 = vst [vmem:[#allocation2 + $0x90] sm:$0xff] %v256
    %529 = vst [vmem:[#allocation2 + $0x98] sm:$0xff] %v258
    %530 = vst [vmem:[#allocation2 + $0xa0] sm:$0xff] %v369
    %531 = vst [vmem:[#allocation2 + $0xa8] sm:$0xff] %v371
    %532 = vst [vmem:[#allocation2 + $0xb0] sm:$0xff] %v482
    %533 = vst [vmem:[#allocation2 + $0xb8] sm:$0xff] %v484
    %534 = vst [vmem:[#allocation2 + $0xc0] sm:$0xff] %v262
    %535 = vst [vmem:[#allocation2 + $0xc8] sm:$0xff] %v264
    %536 = vst [vmem:[#allocation2 + $0xd0] sm:$0xff] %v375
    %537 = vst [vmem:[#allocation2 + $0xd8] sm:$0xff] %v377
    %538 = vst [vmem:[#allocation2 + $0xe0] sm:$0xff] %v488
    %539 = vst [vmem:[#allocation2 + $0xe8] sm:$0xff] %v490
    %540 = vst [vmem:[#allocation2 + $0xf0] sm:$0xff] %v268
    %541 = vst [vmem:[#allocation2 + $0xf8] sm:$0xff] %v270
    %542 = vst [vmem:[#allocation2 + $0x100] sm:$0xff] %v381
    %543 = vst [vmem:[#allocation2 + $0x108] sm:$0xff] %v383
    %544 = vst [vmem:[#allocation2 + $0x110] sm:$0xff] %v494
    %545 = vst [vmem:[#allocation2 + $0x118] sm:$0xff] %v496
    %546 = vst [vmem:[#allocation2 + $0x120] sm:$0xff] %v274
    %547 = vst [vmem:[#allocation2 + $0x128] sm:$0xff] %v276
    %548 = vst [vmem:[#allocation2 + $0x130] sm:$0xff] %v387
    %549 = vst [vmem:[#allocation2 + $0x138] sm:$0xff] %v389
    %550 = vst [vmem:[#allocation2 + $0x140] sm:$0xff] %v500
    %551 = vst [vmem:[#allocation2 + $0x148] sm:$0xff] %v502
    %552 = vst [vmem:[#allocation2 + $0x150] sm:$0xff] %v280
    %553 = vst [vmem:[#allocation2 + $0x158] sm:$0xff] %v282
    %554 = vst [vmem:[#allocation2 + $0x160] sm:$0xff] %v393
    %555 = vst [vmem:[#allocation2 + $0x168] sm:$0xff] %v395
    %556 = vst [vmem:[#allocation2 + $0x170] sm:$0xff] %v506
    %557 = vst [vmem:[#allocation2 + $0x178] sm:$0xff] %v508
    %v558 = vld [vmem:[%s4] sm:$0x3]
    %v560 = vlaneseq
    %v561 = vshrl.u32 %v560, 7
    %v562 = vsub.s32 0, %v561
    %v563 = vrot.slane %v558, %v562
    %v564 = vlaneseq
    %v565 = vshrl.u32 %v564, 7
    %v566 = vsub.s32 1, %v565
    %v567 = vrot.slane %v558, %v566
    %v570 = vld [vmem:[#allocation4] sm:$0xff]
    %v571 = vld [vmem:[#allocation4 + $0x8] sm:$0xff]
    %v572 = vld [vmem:[#allocation4 + $0x10] sm:$0xff]
    %v573 = vld [vmem:[#allocation4 + $0x18] sm:$0xff]
    %v574 = vld [vmem:[#allocation4 + $0x20] sm:$0xff]
    %v575 = vld [vmem:[#allocation4 + $0x28] sm:$0xff]
    %v576 = vld [vmem:[#allocation4 + $0x30] sm:$0xff]
    %v577 = vld [vmem:[#allocation4 + $0x38] sm:$0xff]
    %v578 = vld [vmem:[#allocation4 + $0x40] sm:$0xff]
    %v579 = vld [vmem:[#allocation4 + $0x48] sm:$0xff]
    %v580 = vld [vmem:[#allocation4 + $0x50] sm:$0xff]
    %v581 = vld [vmem:[#allocation4 + $0x58] sm:$0xff]
    %v582 = vld [vmem:[#allocation4 + $0x60] sm:$0xff]
    %v583 = vld [vmem:[#allocation4 + $0x68] sm:$0xff]
    %v584 = vld [vmem:[#allocation4 + $0x70] sm:$0xff]
    %v585 = vld [vmem:[#allocation4 + $0x78] sm:$0xff]
    %v586 = vld [vmem:[#allocation4 + $0x80] sm:$0xff]
    %v587 = vld [vmem:[#allocation4 + $0x88] sm:$0xff]
    %v588 = vld [vmem:[#allocation4 + $0x90] sm:$0xff]
    %v589 = vld [vmem:[#allocation4 + $0x98] sm:$0xff]
    %v590 = vld [vmem:[#allocation4 + $0xa0] sm:$0xff]
    %v591 = vld [vmem:[#allocation4 + $0xa8] sm:$0xff]
    %v592 = vld [vmem:[#allocation4 + $0xb0] sm:$0xff]
    %v593 = vld [vmem:[#allocation4 + $0xb8] sm:$0xff]
    %v594 = vld [vmem:[#allocation4 + $0xc0] sm:$0xff]
    %v595 = vld [vmem:[#allocation4 + $0xc8] sm:$0xff]
    %v596 = vld [vmem:[#allocation4 + $0xd0] sm:$0xff]
    %v597 = vld [vmem:[#allocation4 + $0xd8] sm:$0xff]
    %v598 = vld [vmem:[#allocation4 + $0xe0] sm:$0xff]
    %v599 = vld [vmem:[#allocation4 + $0xe8] sm:$0xff]
    %v600 = vld [vmem:[#allocation4 + $0xf0] sm:$0xff]
    %v601 = vld [vmem:[#allocation4 + $0xf8] sm:$0xff]
    %v602 = vld [vmem:[#allocation4 + $0x100] sm:$0xff]
    %v603 = vld [vmem:[#allocation4 + $0x108] sm:$0xff]
    %v604 = vld [vmem:[#allocation4 + $0x110] sm:$0xff]
    %v605 = vld [vmem:[#allocation4 + $0x118] sm:$0xff]
    %v606 = vld [vmem:[#allocation4 + $0x120] sm:$0xff]
    %v607 = vld [vmem:[#allocation4 + $0x128] sm:$0xff]
    %v608 = vld [vmem:[#allocation4 + $0x130] sm:$0xff]
    %v609 = vld [vmem:[#allocation4 + $0x138] sm:$0xff]
    %v610 = vld [vmem:[#allocation4 + $0x140] sm:$0xff]
    %v611 = vld [vmem:[#allocation4 + $0x148] sm:$0xff]
    %v612 = vld [vmem:[#allocation4 + $0x150] sm:$0xff]
    %v613 = vld [vmem:[#allocation4 + $0x158] sm:$0xff]
    %v614 = vld [vmem:[#allocation4 + $0x160] sm:$0xff]
    %v615 = vld [vmem:[#allocation4 + $0x168] sm:$0xff]
    %v616 = vld [vmem:[#allocation4 + $0x170] sm:$0xff]
    %v617 = vld [vmem:[#allocation4 + $0x178] sm:$0xff]
    %v618 = vld [vmem:[#allocation4 + $0x180] sm:$0xff]
    %v619 = vld [vmem:[#allocation4 + $0x188] sm:$0xff]
    %v620 = vld [vmem:[#allocation4 + $0x190] sm:$0xff]
    %v621 = vld [vmem:[#allocation4 + $0x198] sm:$0xff]
    %v622 = vld [vmem:[#allocation4 + $0x1a0] sm:$0xff]
    %v623 = vld [vmem:[#allocation4 + $0x1a8] sm:$0xff]
    %v624 = vld [vmem:[#allocation4 + $0x1b0] sm:$0xff]
    %v625 = vld [vmem:[#allocation4 + $0x1b8] sm:$0xff]
    %v626 = vld [vmem:[#allocation4 + $0x1c0] sm:$0xff]
    %v627 = vld [vmem:[#allocation4 + $0x1c8] sm:$0xff]
    %v628 = vld [vmem:[#allocation4 + $0x1d0] sm:$0xff]
    %v629 = vld [vmem:[#allocation4 + $0x1d8] sm:$0xff]
    %v630 = vld [vmem:[#allocation4 + $0x1e0] sm:$0xff]
    %v631 = vld [vmem:[#allocation4 + $0x1e8] sm:$0xff]
    %v632 = vld [vmem:[#allocation4 + $0x1f0] sm:$0xff]
    %v633 = vld [vmem:[#allocation4 + $0x1f8] sm:$0xff]
    %v634 = vld [vmem:[#allocation4 + $0x200] sm:$0xff]
    %v635 = vld [vmem:[#allocation4 + $0x208] sm:$0xff]
    %v636 = vld [vmem:[#allocation4 + $0x210] sm:$0xff]
    %v637 = vld [vmem:[#allocation4 + $0x218] sm:$0xff]
    %v638 = vld [vmem:[#allocation4 + $0x220] sm:$0xff]
    %v639 = vld [vmem:[#allocation4 + $0x228] sm:$0xff]
    %v640 = vld [vmem:[#allocation4 + $0x230] sm:$0xff]
    %v641 = vld [vmem:[#allocation4 + $0x238] sm:$0xff]
    %v642 = vld [vmem:[#allocation4 + $0x240] sm:$0xff]
    %v643 = vld [vmem:[#allocation4 + $0x248] sm:$0xff]
    %v644 = vld [vmem:[#allocation4 + $0x250] sm:$0xff]
    %v645 = vld [vmem:[#allocation4 + $0x258] sm:$0xff]
    %v646 = vld [vmem:[#allocation4 + $0x260] sm:$0xff]
    %v647 = vld [vmem:[#allocation4 + $0x268] sm:$0xff]
    %v648 = vld [vmem:[#allocation4 + $0x270] sm:$0xff]
    %v649 = vld [vmem:[#allocation4 + $0x278] sm:$0xff]
    %v650 = vld [vmem:[#allocation4 + $0x280] sm:$0xff]
    %v651 = vld [vmem:[#allocation4 + $0x288] sm:$0xff]
    %v652 = vld [vmem:[#allocation4 + $0x290] sm:$0xff]
    %v653 = vld [vmem:[#allocation4 + $0x298] sm:$0xff]
    %v654 = vld [vmem:[#allocation4 + $0x2a0] sm:$0xff]
    %v655 = vld [vmem:[#allocation4 + $0x2a8] sm:$0xff]
    %v656 = vld [vmem:[#allocation4 + $0x2b0] sm:$0xff]
    %v657 = vld [vmem:[#allocation4 + $0x2b8] sm:$0xff]
    %v658 = vld [vmem:[#allocation4 + $0x2c0] sm:$0xff]
    %v659 = vld [vmem:[#allocation4 + $0x2c8] sm:$0xff]
    %v660 = vld [vmem:[#allocation4 + $0x2d0] sm:$0xff]
    %v661 = vld [vmem:[#allocation4 + $0x2d8] sm:$0xff]
    %v662 = vld [vmem:[#allocation4 + $0x2e0] sm:$0xff]
    %v663 = vld [vmem:[#allocation4 + $0x2e8] sm:$0xff]
    %v664 = vld [vmem:[#allocation4 + $0x2f0] sm:$0xff]
    %v665 = vld [vmem:[#allocation4 + $0x2f8] sm:$0xff]
    %v666 = vld [vmem:[#allocation4 + $0x300] sm:$0xff]
    %v667 = vld [vmem:[#allocation4 + $0x308] sm:$0xff]
    %v668 = vld [vmem:[#allocation4 + $0x310] sm:$0xff]
    %v669 = vld [vmem:[#allocation4 + $0x318] sm:$0xff]
    %v670 = vld [vmem:[#allocation4 + $0x320] sm:$0xff]
    %v671 = vld [vmem:[#allocation4 + $0x328] sm:$0xff]
    %v672 = vld [vmem:[#allocation4 + $0x330] sm:$0xff]
    %v673 = vld [vmem:[#allocation4 + $0x338] sm:$0xff]
    %v674 = vld [vmem:[#allocation4 + $0x340] sm:$0xff]
    %v675 = vld [vmem:[#allocation4 + $0x348] sm:$0xff]
    %v676 = vld [vmem:[#allocation4 + $0x350] sm:$0xff]
    %v677 = vld [vmem:[#allocation4 + $0x358] sm:$0xff]
    %v678 = vld [vmem:[#allocation4 + $0x360] sm:$0xff]
    %v679 = vld [vmem:[#allocation4 + $0x368] sm:$0xff]
    %v680 = vld [vmem:[#allocation4 + $0x370] sm:$0xff]
    %v681 = vld [vmem:[#allocation4 + $0x378] sm:$0xff]
    %v682 = vld [vmem:[#allocation4 + $0x380] sm:$0xff]
    %v683 = vld [vmem:[#allocation4 + $0x388] sm:$0xff]
    %v684 = vld [vmem:[#allocation4 + $0x390] sm:$0xff]
    %v685 = vld [vmem:[#allocation4 + $0x398] sm:$0xff]
    %v686 = vld [vmem:[#allocation4 + $0x3a0] sm:$0xff]
    %v687 = vld [vmem:[#allocation4 + $0x3a8] sm:$0xff]
    %v688 = vld [vmem:[#allocation4 + $0x3b0] sm:$0xff]
    %v689 = vld [vmem:[#allocation4 + $0x3b8] sm:$0xff]
    %v690 = vld [vmem:[#allocation4 + $0x3c0] sm:$0xff]
    %v691 = vld [vmem:[#allocation4 + $0x3c8] sm:$0xff]
    %v692 = vld [vmem:[#allocation4 + $0x3d0] sm:$0xff]
    %v693 = vld [vmem:[#allocation4 + $0x3d8] sm:$0xff]
    %v694 = vld [vmem:[#allocation4 + $0x3e0] sm:$0xff]
    %v695 = vld [vmem:[#allocation4 + $0x3e8] sm:$0xff]
    %v696 = vld [vmem:[#allocation4 + $0x3f0] sm:$0xff]
    %v697 = vld [vmem:[#allocation4 + $0x3f8] sm:$0xff]
    %v698 = vld [vmem:[#allocation4 + $0x400] sm:$0xff]
    %v699 = vld [vmem:[#allocation4 + $0x408] sm:$0xff]
    %v700 = vld [vmem:[#allocation4 + $0x410] sm:$0xff]
    %v701 = vld [vmem:[#allocation4 + $0x418] sm:$0xff]
    %v702 = vld [vmem:[#allocation4 + $0x420] sm:$0xff]
    %v703 = vld [vmem:[#allocation4 + $0x428] sm:$0xff]
    %v704 = vld [vmem:[#allocation4 + $0x430] sm:$0xff]
    %v705 = vld [vmem:[#allocation4 + $0x438] sm:$0xff]
    %v706 = vld [vmem:[#allocation4 + $0x440] sm:$0xff]
    %v707 = vld [vmem:[#allocation4 + $0x448] sm:$0xff]
    %v708 = vld [vmem:[#allocation4 + $0x450] sm:$0xff]
    %v709 = vld [vmem:[#allocation4 + $0x458] sm:$0xff]
    %v710 = vld [vmem:[#allocation4 + $0x460] sm:$0xff]
    %v711 = vld [vmem:[#allocation4 + $0x468] sm:$0xff]
    %v712 = vld [vmem:[#allocation4 + $0x470] sm:$0xff]
    %v713 = vld [vmem:[#allocation4 + $0x478] sm:$0xff]
    %v714 = vld [vmem:[#allocation4 + $0x480] sm:$0xff]
    %v715 = vld [vmem:[#allocation4 + $0x488] sm:$0xff]
    %v716 = vld [vmem:[#allocation4 + $0x490] sm:$0xff]
    %v717 = vld [vmem:[#allocation4 + $0x498] sm:$0xff]
    %v718 = vld [vmem:[#allocation4 + $0x4a0] sm:$0xff]
    %v719 = vld [vmem:[#allocation4 + $0x4a8] sm:$0xff]
    %v720 = vld [vmem:[#allocation4 + $0x4b0] sm:$0xff]
    %v721 = vld [vmem:[#allocation4 + $0x4b8] sm:$0xff]
    %v722 = vld [vmem:[#allocation4 + $0x4c0] sm:$0xff]
    %v723 = vld [vmem:[#allocation4 + $0x4c8] sm:$0xff]
    %v724 = vld [vmem:[#allocation4 + $0x4d0] sm:$0xff]
    %v725 = vld [vmem:[#allocation4 + $0x4d8] sm:$0xff]
    %v726 = vld [vmem:[#allocation4 + $0x4e0] sm:$0xff]
    %v727 = vld [vmem:[#allocation4 + $0x4e8] sm:$0xff]
    %v728 = vld [vmem:[#allocation4 + $0x4f0] sm:$0xff]
    %v729 = vld [vmem:[#allocation4 + $0x4f8] sm:$0xff]
    %v730 = vld [vmem:[#allocation4 + $0x500] sm:$0xff]
    %v731 = vld [vmem:[#allocation4 + $0x508] sm:$0xff]
    %v732 = vld [vmem:[#allocation4 + $0x510] sm:$0xff]
    %v733 = vld [vmem:[#allocation4 + $0x518] sm:$0xff]
    %v734 = vld [vmem:[#allocation4 + $0x520] sm:$0xff]
    %v735 = vld [vmem:[#allocation4 + $0x528] sm:$0xff]
    %v736 = vld [vmem:[#allocation4 + $0x530] sm:$0xff]
    %v737 = vld [vmem:[#allocation4 + $0x538] sm:$0xff]
    %v738 = vld [vmem:[#allocation4 + $0x540] sm:$0xff]
    %v739 = vld [vmem:[#allocation4 + $0x548] sm:$0xff]
    %v740 = vld [vmem:[#allocation4 + $0x550] sm:$0xff]
    %v741 = vld [vmem:[#allocation4 + $0x558] sm:$0xff]
    %v742 = vld [vmem:[#allocation4 + $0x560] sm:$0xff]
    %v743 = vld [vmem:[#allocation4 + $0x568] sm:$0xff]
    %v744 = vld [vmem:[#allocation4 + $0x570] sm:$0xff]
    %v745 = vld [vmem:[#allocation4 + $0x578] sm:$0xff]
    %v746 = vld [vmem:[#allocation4 + $0x580] sm:$0xff]
    %v747 = vld [vmem:[#allocation4 + $0x588] sm:$0xff]
    %v748 = vld [vmem:[#allocation4 + $0x590] sm:$0xff]
    %v749 = vld [vmem:[#allocation4 + $0x598] sm:$0xff]
    %v750 = vld [vmem:[#allocation4 + $0x5a0] sm:$0xff]
    %v751 = vld [vmem:[#allocation4 + $0x5a8] sm:$0xff]
    %v752 = vld [vmem:[#allocation4 + $0x5b0] sm:$0xff]
    %v753 = vld [vmem:[#allocation4 + $0x5b8] sm:$0xff]
    %v754 = vld [vmem:[#allocation4 + $0x5c0] sm:$0xff]
    %v755 = vld [vmem:[#allocation4 + $0x5c8] sm:$0xff]
    %v756 = vld [vmem:[#allocation4 + $0x5d0] sm:$0xff]
    %v757 = vld [vmem:[#allocation4 + $0x5d8] sm:$0xff]
    %v758 = vld [vmem:[#allocation4 + $0x5e0] sm:$0xff]
    %v759 = vld [vmem:[#allocation4 + $0x5e8] sm:$0xff]
    %v760 = vld [vmem:[#allocation4 + $0x5f0] sm:$0xff]
    %v761 = vld [vmem:[#allocation4 + $0x5f8] sm:$0xff]
    %v762 = vld [vmem:[#allocation2] sm:$0xff]
    %v763 = vld [vmem:[#allocation2 + $0x8] sm:$0xff]
    %v764 = vld [vmem:[#allocation2 + $0x10] sm:$0xff]
    %v765 = vld [vmem:[#allocation2 + $0x18] sm:$0xff]
    %v766 = vld [vmem:[#allocation2 + $0x20] sm:$0xff]
    %v767 = vld [vmem:[#allocation2 + $0x28] sm:$0xff]
    %768 = vmatprep.subr.mxu0 %v661
    %769 = vmatpush1.msra.mxu0 %v660
    %770 = vmatprep.subr.mxu0 %v655
    %771 = vmatpush1.msra.mxu0 %v654
    %772 = vmatprep.subr.mxu0 %v649
    %773 = vmatpush1.msra.mxu0 %v648
    %774 = vmatprep.subr.mxu0 %v643
    %775 = vmatpush1.msra.mxu0 %v642
    %776 = vmatprep.subr.mxu0 %v637
    %777 = vmatpush1.msra.mxu0 %v636
    %778 = vmatprep.subr.mxu0 %v631
    %779 = vmatpush1.msra.mxu0 %v630
    %780 = vmatprep.subr.mxu0 %v625
    %781 = vmatpush1.msra.mxu0 %v624
    %782 = vmatprep.subr.mxu0 %v619
    %783 = vmatpush1.msra.mxu0 %v618
    %784 = vmatprep.subr.mxu0 %v613
    %785 = vmatpush1.msra.mxu0 %v612
    %786 = vmatprep.subr.mxu0 %v607
    %787 = vmatpush1.msra.mxu0 %v606
    %788 = vmatprep.subr.mxu0 %v601
    %789 = vmatpush1.msra.mxu0 %v600
    %790 = vmatprep.subr.mxu0 %v595
    %791 = vmatpush1.msra.mxu0 %v594
    %792 = vmatprep.subr.mxu0 %v589
    %793 = vmatpush1.msra.mxu0 %v588
    %794 = vmatprep.subr.mxu0 %v583
    %795 = vmatpush1.msra.mxu0 %v582
    %796 = vmatprep.subr.mxu0 %v577
    %797 = vmatpush1.msra.mxu0 %v576
    %798 = vmatprep.subr.mxu0 %v571
    %799 = vmatpush1.msra.mxu0 %v570
    %800 = vmatprep.subr.mxu0 %v757
    %801 = vmatpush2.msra.mxu0 %v756
    %802 = vmatprep.subr.mxu0 %v751
    %803 = vmatpush2.msra.mxu0 %v750
    %804 = vmatprep.subr.mxu0 %v745
    %805 = vmatpush2.msra.mxu0 %v744
    %806 = vmatprep.subr.mxu0 %v739
    %807 = vmatpush2.msra.mxu0 %v738
    %808 = vmatprep.subr.mxu0 %v733
    %809 = vmatpush2.msra.mxu0 %v732
    %810 = vmatprep.subr.mxu0 %v727
    %811 = vmatpush2.msra.mxu0 %v726
    %812 = vmatprep.subr.mxu0 %v721
    %813 = vmatpush2.msra.mxu0 %v720
    %814 = vmatprep.subr.mxu0 %v715
    %815 = vmatpush2.msra.mxu0 %v714
    %816 = vmatprep.subr.mxu0 %v709
    %817 = vmatpush2.msra.mxu0 %v708
    %818 = vmatprep.subr.mxu0 %v703
    %819 = vmatpush2.msra.mxu0 %v702
    %820 = vmatprep.subr.mxu0 %v697
    %821 = vmatpush2.msra.mxu0 %v696
    %822 = vmatprep.subr.mxu0 %v691
    %823 = vmatpush2.msra.mxu0 %v690
    %824 = vmatprep.subr.mxu0 %v685
    %825 = vmatpush2.msra.mxu0 %v684
    %826 = vmatprep.subr.mxu0 %v679
    %827 = vmatpush2.msra.mxu0 %v678
    %828 = vmatprep.subr.mxu0 %v673
    %829 = vmatpush2.msra.mxu0 %v672
    %830 = vmatprep.subr.mxu0 %v667
    %831 = vmatpush2.msra.mxu0 %v666
    %832 = vmatprep.mubr.f32.mxu0 0.0
    %833 = vmatmul.mubr.f32.gmra.mxu0 0.0
    %v834 = vpop.f32.mrf.mxu0
    %v835 = vadd.f32 0.0, %v834
    %v836 = vpop.f32.mrf.mxu0
    %v837 = vadd.f32 0.0, %v836
    %838 = vdwg.mxu0
    %839 = vmatprep.subr.mxu0 %v663
    %840 = vmatpush1.msra.mxu0 %v662
    %841 = vmatprep.subr.mxu0 %v657
    %842 = vmatpush1.msra.mxu0 %v656
    %843 = vmatprep.subr.mxu0 %v651
    %844 = vmatpush1.msra.mxu0 %v650
    %845 = vmatprep.subr.mxu0 %v645
    %846 = vmatpush1.msra.mxu0 %v644
    %847 = vmatprep.subr.mxu0 %v639
    %848 = vmatpush1.msra.mxu0 %v638
    %849 = vmatprep.subr.mxu0 %v633
    %850 = vmatpush1.msra.mxu0 %v632
    %851 = vmatprep.subr.mxu0 %v627
    %852 = vmatpush1.msra.mxu0 %v626
    %853 = vmatprep.subr.mxu0 %v621
    %854 = vmatpush1.msra.mxu0 %v620
    %855 = vmatprep.subr.mxu0 %v615
    %856 = vmatpush1.msra.mxu0 %v614
    %857 = vmatprep.subr.mxu0 %v609
    %858 = vmatpush1.msra.mxu0 %v608
    %859 = vmatprep.subr.mxu0 %v603
    %860 = vmatpush1.msra.mxu0 %v602
    %861 = vmatprep.subr.mxu0 %v597
    %862 = vmatpush1.msra.mxu0 %v596
    %863 = vmatprep.subr.mxu0 %v591
    %864 = vmatpush1.msra.mxu0 %v590
    %865 = vmatprep.subr.mxu0 %v585
    %866 = vmatpush1.msra.mxu0 %v584
    %867 = vmatprep.subr.mxu0 %v579
    %868 = vmatpush1.msra.mxu0 %v578
    %869 = vmatprep.subr.mxu0 %v573
    %870 = vmatpush1.msra.mxu0 %v572
    %871 = vmatprep.subr.mxu0 %v759
    %872 = vmatpush2.msra.mxu0 %v758
    %873 = vmatprep.subr.mxu0 %v753
    %874 = vmatpush2.msra.mxu0 %v752
    %875 = vmatprep.subr.mxu0 %v747
    %876 = vmatpush2.msra.mxu0 %v746
    %877 = vmatprep.subr.mxu0 %v741
    %878 = vmatpush2.msra.mxu0 %v740
    %879 = vmatprep.subr.mxu0 %v735
    %880 = vmatpush2.msra.mxu0 %v734
    %881 = vmatprep.subr.mxu0 %v729
    %882 = vmatpush2.msra.mxu0 %v728
    %883 = vmatprep.subr.mxu0 %v723
    %884 = vmatpush2.msra.mxu0 %v722
    %885 = vmatprep.subr.mxu0 %v717
    %886 = vmatpush2.msra.mxu0 %v716
    %887 = vmatprep.subr.mxu0 %v711
    %888 = vmatpush2.msra.mxu0 %v710
    %889 = vmatprep.subr.mxu0 %v705
    %890 = vmatpush2.msra.mxu0 %v704
    %891 = vmatprep.subr.mxu0 %v699
    %892 = vmatpush2.msra.mxu0 %v698
    %893 = vmatprep.subr.mxu0 %v693
    %894 = vmatpush2.msra.mxu0 %v692
    %895 = vmatprep.subr.mxu0 %v687
    %896 = vmatpush2.msra.mxu0 %v686
    %897 = vmatprep.subr.mxu0 %v681
    %898 = vmatpush2.msra.mxu0 %v680
    %899 = vmatprep.subr.mxu0 %v675
    %900 = vmatpush2.msra.mxu0 %v674
    %901 = vmatprep.subr.mxu0 %v669
    %902 = vmatpush2.msra.mxu0 %v668
    %903 = vmatprep.mubr.f32.mxu0 0.0
    %904 = vmatmul.mubr.f32.gmra.mxu0 0.0
    %v905 = vpop.f32.mrf.mxu0
    %v906 = vadd.f32 0.0, %v905
    %v907 = vpop.f32.mrf.mxu0
    %v908 = vadd.f32 0.0, %v907
    %909 = vdwg.mxu0
    %910 = vmatprep.subr.mxu0 %v665
    %911 = vmatpush1.msra.mxu0 %v664
    %912 = vmatprep.subr.mxu0 %v659
    %913 = vmatpush1.msra.mxu0 %v658
    %914 = vmatprep.subr.mxu0 %v653
    %915 = vmatpush1.msra.mxu0 %v652
    %916 = vmatprep.subr.mxu0 %v647
    %917 = vmatpush1.msra.mxu0 %v646
    %918 = vmatprep.subr.mxu0 %v641
    %919 = vmatpush1.msra.mxu0 %v640
    %920 = vmatprep.subr.mxu0 %v635
    %921 = vmatpush1.msra.mxu0 %v634
    %922 = vmatprep.subr.mxu0 %v629
    %923 = vmatpush1.msra.mxu0 %v628
    %924 = vmatprep.subr.mxu0 %v623
    %925 = vmatpush1.msra.mxu0 %v622
    %926 = vmatprep.subr.mxu0 %v617
    %927 = vmatpush1.msra.mxu0 %v616
    %928 = vmatprep.subr.mxu0 %v611
    %929 = vmatpush1.msra.mxu0 %v610
    %930 = vmatprep.subr.mxu0 %v605
    %931 = vmatpush1.msra.mxu0 %v604
    %932 = vmatprep.subr.mxu0 %v599
    %933 = vmatpush1.msra.mxu0 %v598
    %934 = vmatprep.subr.mxu0 %v593
    %935 = vmatpush1.msra.mxu0 %v592
    %936 = vmatprep.subr.mxu0 %v587
    %937 = vmatpush1.msra.mxu0 %v586
    %938 = vmatprep.subr.mxu0 %v581
    %939 = vmatpush1.msra.mxu0 %v580
    %940 = vmatprep.subr.mxu0 %v575
    %941 = vmatpush1.msra.mxu0 %v574
    %942 = vmatprep.subr.mxu0 %v761
    %943 = vmatpush2.msra.mxu0 %v760
    %944 = vmatprep.subr.mxu0 %v755
    %945 = vmatpush2.msra.mxu0 %v754
    %946 = vmatprep.subr.mxu0 %v749
    %947 = vmatpush2.msra.mxu0 %v748
    %948 = vmatprep.subr.mxu0 %v743
    %949 = vmatpush2.msra.mxu0 %v742
    %950 = vmatprep.subr.mxu0 %v737
    %951 = vmatpush2.msra.mxu0 %v736
    %952 = vmatprep.subr.mxu0 %v731
    %953 = vmatpush2.msra.mxu0 %v730
    %954 = vmatprep.subr.mxu0 %v725
    %955 = vmatpush2.msra.mxu0 %v724
    %956 = vmatprep.subr.mxu0 %v719
    %957 = vmatpush2.msra.mxu0 %v718
    %958 = vmatprep.subr.mxu0 %v713
    %959 = vmatpush2.msra.mxu0 %v712
    %960 = vmatprep.subr.mxu0 %v707
    %961 = vmatpush2.msra.mxu0 %v706
    %962 = vmatprep.subr.mxu0 %v701
    %963 = vmatpush2.msra.mxu0 %v700
    %964 = vmatprep.subr.mxu0 %v695
    %965 = vmatpush2.msra.mxu0 %v694
    %966 = vmatprep.subr.mxu0 %v689
    %967 = vmatpush2.msra.mxu0 %v688
    %968 = vmatprep.subr.mxu0 %v683
    %969 = vmatpush2.msra.mxu0 %v682
    %970 = vmatprep.subr.mxu0 %v677
    %971 = vmatpush2.msra.mxu0 %v676
    %972 = vmatprep.subr.mxu0 %v671
    %973 = vmatpush2.msra.mxu0 %v670
    %974 = vmatprep.mubr.f32.mxu0 0.0
    %975 = vmatmul.mubr.f32.gmra.mxu0 0.0
    %v976 = vpop.f32.mrf.mxu0
    %v977 = vadd.f32 0.0, %v976
    %v978 = vpop.f32.mrf.mxu0
    %v979 = vadd.f32 0.0, %v978
    %980 = vdwg.mxu0
    %v981 = vadd.f32 %v762, %v835
    %v982 = vadd.f32 %v763, %v837
    %v983 = vxor.u32 %v981, 2147483648
    %v984 = vxor.u32 %v982, 2147483648
    %v985 = vmul.f32 %v983, 1.442695
    %v986 = vpow.pop %v985
    %v987 = vmul.f32 %v984, 1.442695
    %v988 = vpow.pop %v987
    %v989 = vadd.f32 %v986, 1.0
    %v990 = vadd.f32 %v988, 1.0
    %v991 = vrcp.pop %v989
    %v992 = vmul.f32 1.0, %v991
    %v993 = vrcp.pop %v990
    %v994 = vmul.f32 1.0, %v993
    %v995 = vadd.f32 %v764, %v906
    %v996 = vadd.f32 %v765, %v908
    %v997 = vxor.u32 %v995, 2147483648
    %v998 = vxor.u32 %v996, 2147483648
    %v999 = vmul.f32 %v997, 1.442695
    %v1000 = vpow.pop %v999
    %v1001 = vmul.f32 %v998, 1.442695
    %v1002 = vpow.pop %v1001
    %v1003 = vadd.f32 %v1000, 1.0
    %v1004 = vadd.f32 %v1002, 1.0
    %v1005 = vrcp.pop %v1003
    %v1006 = vmul.f32 1.0, %v1005
    %v1007 = vrcp.pop %v1004
    %v1008 = vmul.f32 1.0, %v1007
    %v1009 = vadd.f32 %v977, %v563
    %v1010 = vadd.f32 %v979, %v567
    %v1011 = vmul.f32 %v992, %v1009
    %v1012 = vmul.f32 %v994, %v1010
    %v1013 = vadd.f32 %v766, %v1011
    %v1014 = vadd.f32 %v767, %v1012
    %v1015 = vtanh.pop %v1013
    %v1016 = vtanh.pop %v1014
    %v1017 = vsub.f32 1.0, %v1006
    %v1018 = vsub.f32 1.0, %v1008
    %v1019 = vmul.f32 %v1017, %v1015
    %v1020 = vmul.f32 %v1018, %v1016
    %v1021 = vmul.f32 %v1006, 0.0
    %v1022 = vmul.f32 %v1008, 0.0
    %v1023 = vadd.f32 %v1019, %v1021
    %v1024 = vadd.f32 %v1020, %v1022
    %1025 = vst [vmem:[#allocation3] sm:$0xff] %v1023
    %1026 = vst [vmem:[#allocation3 + $0x8] sm:$0xff] %v1024
    %s1027 = scalar_lea.vmem [#allocation2], 48
    %v1028 = vld [vmem:[%s1027] sm:$0xff]
    %v1029 = vld [vmem:[%s1027 + $0x8] sm:$0xff]
    %v1030 = vld [vmem:[%s1027 + $0x10] sm:$0xff]
    %v1031 = vld [vmem:[%s1027 + $0x18] sm:$0xff]
    %v1032 = vld [vmem:[%s1027 + $0x20] sm:$0xff]
    %v1033 = vld [vmem:[%s1027 + $0x28] sm:$0xff]
    %1034 = vmatprep.subr.mxu0 %v661
    %1035 = vmatpush1.msra.mxu0 %v660
    %1036 = vmatprep.subr.mxu0 %v655
    %1037 = vmatpush1.msra.mxu0 %v654
    %1038 = vmatprep.subr.mxu0 %v649
    %1039 = vmatpush1.msra.mxu0 %v648
    %1040 = vmatprep.subr.mxu0 %v643
    %1041 = vmatpush1.msra.mxu0 %v642
    %1042 = vmatprep.subr.mxu0 %v637
    %1043 = vmatpush1.msra.mxu0 %v636
    %1044 = vmatprep.subr.mxu0 %v631
    %1045 = vmatpush1.msra.mxu0 %v630
    %1046 = vmatprep.subr.mxu0 %v625
    %1047 = vmatpush1.msra.mxu0 %v624
    %1048 = vmatprep.subr.mxu0 %v619
    %1049 = vmatpush1.msra.mxu0 %v618
    %1050 = vmatprep.subr.mxu0 %v613
    %1051 = vmatpush1.msra.mxu0 %v612
    %1052 = vmatprep.subr.mxu0 %v607
    %1053 = vmatpush1.msra.mxu0 %v606
    %1054 = vmatprep.subr.mxu0 %v601
    %1055 = vmatpush1.msra.mxu0 %v600
    %1056 = vmatprep.subr.mxu0 %v595
    %1057 = vmatpush1.msra.mxu0 %v594
    %1058 = vmatprep.subr.mxu0 %v589
    %1059 = vmatpush1.msra.mxu0 %v588
    %1060 = vmatprep.subr.mxu0 %v583
    %1061 = vmatpush1.msra.mxu0 %v582
    %1062 = vmatprep.subr.mxu0 %v577
    %1063 = vmatpush1.msra.mxu0 %v576
    %1064 = vmatprep.subr.mxu0 %v571
    %1065 = vmatpush1.msra.mxu0 %v570
    %1066 = vmatprep.subr.mxu0 %v757
    %1067 = vmatpush2.msra.mxu0 %v756
    %1068 = vmatprep.subr.mxu0 %v751
    %1069 = vmatpush2.msra.mxu0 %v750
    %1070 = vmatprep.subr.mxu0 %v745
    %1071 = vmatpush2.msra.mxu0 %v744
    %1072 = vmatprep.subr.mxu0 %v739
    %1073 = vmatpush2.msra.mxu0 %v738
    %1074 = vmatprep.subr.mxu0 %v733
    %1075 = vmatpush2.msra.mxu0 %v732
    %1076 = vmatprep.subr.mxu0 %v727
    %1077 = vmatpush2.msra.mxu0 %v726
    %1078 = vmatprep.subr.mxu0 %v721
    %1079 = vmatpush2.msra.mxu0 %v720
    %1080 = vmatprep.subr.mxu0 %v715
    %1081 = vmatpush2.msra.mxu0 %v714
    %1082 = vmatprep.subr.mxu0 %v709
    %1083 = vmatpush2.msra.mxu0 %v708
    %1084 = vmatprep.subr.mxu0 %v703
    %1085 = vmatpush2.msra.mxu0 %v702
    %1086 = vmatprep.subr.mxu0 %v697
    %1087 = vmatpush2.msra.mxu0 %v696
    %1088 = vmatprep.subr.mxu0 %v691
    %1089 = vmatpush2.msra.mxu0 %v690
    %1090 = vmatprep.subr.mxu0 %v685
    %1091 = vmatpush2.msra.mxu0 %v684
    %1092 = vmatprep.subr.mxu0 %v679
    %1093 = vmatpush2.msra.mxu0 %v678
    %1094 = vmatprep.subr.mxu0 %v673
    %1095 = vmatpush2.msra.mxu0 %v672
    %1096 = vmatprep.subr.mxu0 %v667
    %1097 = vmatpush2.msra.mxu0 %v666
    %1098 = vmatprep.mubr.f32.mxu0 %v1024
    %1099 = vmatmul.mubr.f32.gmra.mxu0 %v1023
    %v1100 = vpop.f32.mrf.mxu0
    %v1101 = vadd.f32 0.0, %v1100
    %v1102 = vpop.f32.mrf.mxu0
    %v1103 = vadd.f32 0.0, %v1102
    %1104 = vdwg.mxu0
    %1105 = vmatprep.subr.mxu0 %v663
    %1106 = vmatpush1.msra.mxu0 %v662
    %1107 = vmatprep.subr.mxu0 %v657
    %1108 = vmatpush1.msra.mxu0 %v656
    %1109 = vmatprep.subr.mxu0 %v651
    %1110 = vmatpush1.msra.mxu0 %v650
    %1111 = vmatprep.subr.mxu0 %v645
    %1112 = vmatpush1.msra.mxu0 %v644
    %1113 = vmatprep.subr.mxu0 %v639
    %1114 = vmatpush1.msra.mxu0 %v638
    %1115 = vmatprep.subr.mxu0 %v633
    %1116 = vmatpush1.msra.mxu0 %v632
    %1117 = vmatprep.subr.mxu0 %v627
    %1118 = vmatpush1.msra.mxu0 %v626
    %1119 = vmatprep.subr.mxu0 %v621
    %1120 = vmatpush1.msra.mxu0 %v620
    %1121 = vmatprep.subr.mxu0 %v615
    %1122 = vmatpush1.msra.mxu0 %v614
    %1123 = vmatprep.subr.mxu0 %v609
    %1124 = vmatpush1.msra.mxu0 %v608
    %1125 = vmatprep.subr.mxu0 %v603
    %1126 = vmatpush1.msra.mxu0 %v602
    %1127 = vmatprep.subr.mxu0 %v597
    %1128 = vmatpush1.msra.mxu0 %v596
    %1129 = vmatprep.subr.mxu0 %v591
    %1130 = vmatpush1.msra.mxu0 %v590
    %1131 = vmatprep.subr.mxu0 %v585
    %1132 = vmatpush1.msra.mxu0 %v584
    %1133 = vmatprep.subr.mxu0 %v579
    %1134 = vmatpush1.msra.mxu0 %v578
    %1135 = vmatprep.subr.mxu0 %v573
    %1136 = vmatpush1.msra.mxu0 %v572
    %1137 = vmatprep.subr.mxu0 %v759
    %1138 = vmatpush2.msra.mxu0 %v758
    %1139 = vmatprep.subr.mxu0 %v753
    %1140 = vmatpush2.msra.mxu0 %v752
    %1141 = vmatprep.subr.mxu0 %v747
    %1142 = vmatpush2.msra.mxu0 %v746
    %1143 = vmatprep.subr.mxu0 %v741
    %1144 = vmatpush2.msra.mxu0 %v740
    %1145 = vmatprep.subr.mxu0 %v735
    %1146 = vmatpush2.msra.mxu0 %v734
    %1147 = vmatprep.subr.mxu0 %v729
    %1148 = vmatpush2.msra.mxu0 %v728
    %1149 = vmatprep.subr.mxu0 %v723
    %1150 = vmatpush2.msra.mxu0 %v722
    %1151 = vmatprep.subr.mxu0 %v717
    %1152 = vmatpush2.msra.mxu0 %v716
    %1153 = vmatprep.subr.mxu0 %v711
    %1154 = vmatpush2.msra.mxu0 %v710
    %1155 = vmatprep.subr.mxu0 %v705
    %1156 = vmatpush2.msra.mxu0 %v704
    %1157 = vmatprep.subr.mxu0 %v699
    %1158 = vmatpush2.msra.mxu0 %v698
    %1159 = vmatprep.subr.mxu0 %v693
    %1160 = vmatpush2.msra.mxu0 %v692
    %1161 = vmatprep.subr.mxu0 %v687
    %1162 = vmatpush2.msra.mxu0 %v686
    %1163 = vmatprep.subr.mxu0 %v681
    %1164 = vmatpush2.msra.mxu0 %v680
    %1165 = vmatprep.subr.mxu0 %v675
    %1166 = vmatpush2.msra.mxu0 %v674
    %1167 = vmatprep.subr.mxu0 %v669
    %1168 = vmatpush2.msra.mxu0 %v668
    %1169 = vmatprep.mubr.f32.mxu0 %v1024
    %1170 = vmatmul.mubr.f32.gmra.mxu0 %v1023
    %v1171 = vpop.f32.mrf.mxu0
    %v1172 = vadd.f32 0.0, %v1171
    %v1173 = vpop.f32.mrf.mxu0
    %v1174 = vadd.f32 0.0, %v1173
    %1175 = vdwg.mxu0
    %1176 = vmatprep.subr.mxu0 %v665
    %1177 = vmatpush1.msra.mxu0 %v664
    %1178 = vmatprep.subr.mxu0 %v659
    %1179 = vmatpush1.msra.mxu0 %v658
    %1180 = vmatprep.subr.mxu0 %v653
    %1181 = vmatpush1.msra.mxu0 %v652
    %1182 = vmatprep.subr.mxu0 %v647
    %1183 = vmatpush1.msra.mxu0 %v646
    %1184 = vmatprep.subr.mxu0 %v641
    %1185 = vmatpush1.msra.mxu0 %v640
    %1186 = vmatprep.subr.mxu0 %v635
    %1187 = vmatpush1.msra.mxu0 %v634
    %1188 = vmatprep.subr.mxu0 %v629
    %1189 = vmatpush1.msra.mxu0 %v628
    %1190 = vmatprep.subr.mxu0 %v623
    %1191 = vmatpush1.msra.mxu0 %v622
    %1192 = vmatprep.subr.mxu0 %v617
    %1193 = vmatpush1.msra.mxu0 %v616
    %1194 = vmatprep.subr.mxu0 %v611
    %1195 = vmatpush1.msra.mxu0 %v610
    %1196 = vmatprep.subr.mxu0 %v605
    %1197 = vmatpush1.msra.mxu0 %v604
    %1198 = vmatprep.subr.mxu0 %v599
    %1199 = vmatpush1.msra.mxu0 %v598
    %1200 = vmatprep.subr.mxu0 %v593
    %1201 = vmatpush1.msra.mxu0 %v592
    %1202 = vmatprep.subr.mxu0 %v587
    %1203 = vmatpush1.msra.mxu0 %v586
    %1204 = vmatprep.subr.mxu0 %v581
    %1205 = vmatpush1.msra.mxu0 %v580
    %1206 = vmatprep.subr.mxu0 %v575
    %1207 = vmatpush1.msra.mxu0 %v574
    %1208 = vmatprep.subr.mxu0 %v761
    %1209 = vmatpush2.msra.mxu0 %v760
    %1210 = vmatprep.subr.mxu0 %v755
    %1211 = vmatpush2.msra.mxu0 %v754
    %1212 = vmatprep.subr.mxu0 %v749
    %1213 = vmatpush2.msra.mxu0 %v748
    %1214 = vmatprep.subr.mxu0 %v743
    %1215 = vmatpush2.msra.mxu0 %v742
    %1216 = vmatprep.subr.mxu0 %v737
    %1217 = vmatpush2.msra.mxu0 %v736
    %1218 = vmatprep.subr.mxu0 %v731
    %1219 = vmatpush2.msra.mxu0 %v730
    %1220 = vmatprep.subr.mxu0 %v725
    %1221 = vmatpush2.msra.mxu0 %v724
    %1222 = vmatprep.subr.mxu0 %v719
    %1223 = vmatpush2.msra.mxu0 %v718
    %1224 = vmatprep.subr.mxu0 %v713
    %1225 = vmatpush2.msra.mxu0 %v712
    %1226 = vmatprep.subr.mxu0 %v707
    %1227 = vmatpush2.msra.mxu0 %v706
    %1228 = vmatprep.subr.mxu0 %v701
    %1229 = vmatpush2.msra.mxu0 %v700
    %1230 = vmatprep.subr.mxu0 %v695
    %1231 = vmatpush2.msra.mxu0 %v694
    %1232 = vmatprep.subr.mxu0 %v689
    %1233 = vmatpush2.msra.mxu0 %v688
    %1234 = vmatprep.subr.mxu0 %v683
    %1235 = vmatpush2.msra.mxu0 %v682
    %1236 = vmatprep.subr.mxu0 %v677
    %1237 = vmatpush2.msra.mxu0 %v676
    %1238 = vmatprep.subr.mxu0 %v671
    %1239 = vmatpush2.msra.mxu0 %v670
    %1240 = vmatprep.mubr.f32.mxu0 %v1024
    %1241 = vmatmul.mubr.f32.gmra.mxu0 %v1023
    %v1242 = vpop.f32.mrf.mxu0
    %v1243 = vadd.f32 0.0, %v1242
    %v1244 = vpop.f32.mrf.mxu0
    %v1245 = vadd.f32 0.0, %v1244
    %1246 = vdwg.mxu0
    %v1247 = vadd.f32 %v1028, %v1101
    %v1248 = vadd.f32 %v1029, %v1103
    %v1249 = vxor.u32 %v1247, 2147483648
    %v1250 = vxor.u32 %v1248, 2147483648
    %v1251 = vmul.f32 %v1249, 1.442695
    %v1252 = vpow.pop %v1251
    %v1253 = vmul.f32 %v1250, 1.442695
    %v1254 = vpow.pop %v1253
    %v1255 = vadd.f32 %v1252, 1.0
    %v1256 = vadd.f32 %v1254, 1.0
    %v1257 = vrcp.pop %v1255
    %v1258 = vmul.f32 1.0, %v1257
    %v1259 = vrcp.pop %v1256
    %v1260 = vmul.f32 1.0, %v1259
    %v1261 = vadd.f32 %v1030, %v1172
    %v1262 = vadd.f32 %v1031, %v1174
    %v1263 = vxor.u32 %v1261, 2147483648
    %v1264 = vxor.u32 %v1262, 2147483648
    %v1265 = vmul.f32 %v1263, 1.442695
    %v1266 = vpow.pop %v1265
    %v1267 = vmul.f32 %v1264, 1.442695
    %v1268 = vpow.pop %v1267
    %v1269 = vadd.f32 %v1266, 1.0
    %v1270 = vadd.f32 %v1268, 1.0
    %v1271 = vrcp.pop %v1269
    %v1272 = vmul.f32 1.0, %v1271
    %v1273 = vrcp.pop %v1270
    %v1274 = vmul.f32 1.0, %v1273
    %v1275 = vadd.f32 %v1243, %v563
    %v1276 = vadd.f32 %v1245, %v567
    %v1277 = vmul.f32 %v1258, %v1275
    %v1278 = vmul.f32 %v1260, %v1276
    %v1279 = vadd.f32 %v1032, %v1277
    %v1280 = vadd.f32 %v1033, %v1278
    %v1281 = vtanh.pop %v1279
    %v1282 = vtanh.pop %v1280
    %v1283 = vsub.f32 1.0, %v1272
    %v1284 = vsub.f32 1.0, %v1274
    %v1285 = vmul.f32 %v1283, %v1281
    %v1286 = vmul.f32 %v1284, %v1282
    %v1287 = vmul.f32 %v1272, %v1023
    %v1288 = vmul.f32 %v1274, %v1024
    %v1289 = vadd.f32 %v1285, %v1287
    %v1290 = vadd.f32 %v1286, %v1288
    %s1291 = scalar_lea.vmem [#allocation3], 16
    %1292 = vst [vmem:[%s1291] sm:$0xff] %v1289
    %1293 = vst [vmem:[%s1291 + $0x8] sm:$0xff] %v1290
    %s1294 = scalar_lea.vmem [#allocation2], 96
    %v1295 = vld [vmem:[%s1294] sm:$0xff]
    %v1296 = vld [vmem:[%s1294 + $0x8] sm:$0xff]
    %v1297 = vld [vmem:[%s1294 + $0x10] sm:$0xff]
    %v1298 = vld [vmem:[%s1294 + $0x18] sm:$0xff]
    %v1299 = vld [vmem:[%s1294 + $0x20] sm:$0xff]
    %v1300 = vld [vmem:[%s1294 + $0x28] sm:$0xff]
    %1301 = vmatprep.subr.mxu0 %v661
    %1302 = vmatpush1.msra.mxu0 %v660
    %1303 = vmatprep.subr.mxu0 %v655
    %1304 = vmatpush1.msra.mxu0 %v654
    %1305 = vmatprep.subr.mxu0 %v649
    %1306 = vmatpush1.msra.mxu0 %v648
    %1307 = vmatprep.subr.mxu0 %v643
    %1308 = vmatpush1.msra.mxu0 %v642
    %1309 = vmatprep.subr.mxu0 %v637
    %1310 = vmatpush1.msra.mxu0 %v636
    %1311 = vmatprep.subr.mxu0 %v631
    %1312 = vmatpush1.msra.mxu0 %v630
    %1313 = vmatprep.subr.mxu0 %v625
    %1314 = vmatpush1.msra.mxu0 %v624
    %1315 = vmatprep.subr.mxu0 %v619
    %1316 = vmatpush1.msra.mxu0 %v618
    %1317 = vmatprep.subr.mxu0 %v613
    %1318 = vmatpush1.msra.mxu0 %v612
    %1319 = vmatprep.subr.mxu0 %v607
    %1320 = vmatpush1.msra.mxu0 %v606
    %1321 = vmatprep.subr.mxu0 %v601
    %1322 = vmatpush1.msra.mxu0 %v600
    %1323 = vmatprep.subr.mxu0 %v595
    %1324 = vmatpush1.msra.mxu0 %v594
    %1325 = vmatprep.subr.mxu0 %v589
    %1326 = vmatpush1.msra.mxu0 %v588
    %1327 = vmatprep.subr.mxu0 %v583
    %1328 = vmatpush1.msra.mxu0 %v582
    %1329 = vmatprep.subr.mxu0 %v577
    %1330 = vmatpush1.msra.mxu0 %v576
    %1331 = vmatprep.subr.mxu0 %v571
    %1332 = vmatpush1.msra.mxu0 %v570
    %1333 = vmatprep.subr.mxu0 %v757
    %1334 = vmatpush2.msra.mxu0 %v756
    %1335 = vmatprep.subr.mxu0 %v751
    %1336 = vmatpush2.msra.mxu0 %v750
    %1337 = vmatprep.subr.mxu0 %v745
    %1338 = vmatpush2.msra.mxu0 %v744
    %1339 = vmatprep.subr.mxu0 %v739
    %1340 = vmatpush2.msra.mxu0 %v738
    %1341 = vmatprep.subr.mxu0 %v733
    %1342 = vmatpush2.msra.mxu0 %v732
    %1343 = vmatprep.subr.mxu0 %v727
    %1344 = vmatpush2.msra.mxu0 %v726
    %1345 = vmatprep.subr.mxu0 %v721
    %1346 = vmatpush2.msra.mxu0 %v720
    %1347 = vmatprep.subr.mxu0 %v715
    %1348 = vmatpush2.msra.mxu0 %v714
    %1349 = vmatprep.subr.mxu0 %v709
    %1350 = vmatpush2.msra.mxu0 %v708
    %1351 = vmatprep.subr.mxu0 %v703
    %1352 = vmatpush2.msra.mxu0 %v702
    %1353 = vmatprep.subr.mxu0 %v697
    %1354 = vmatpush2.msra.mxu0 %v696
    %1355 = vmatprep.subr.mxu0 %v691
    %1356 = vmatpush2.msra.mxu0 %v690
    %1357 = vmatprep.subr.mxu0 %v685
    %1358 = vmatpush2.msra.mxu0 %v684
    %1359 = vmatprep.subr.mxu0 %v679
    %1360 = vmatpush2.msra.mxu0 %v678
    %1361 = vmatprep.subr.mxu0 %v673
    %1362 = vmatpush2.msra.mxu0 %v672
    %1363 = vmatprep.subr.mxu0 %v667
    %1364 = vmatpush2.msra.mxu0 %v666
    %1365 = vmatprep.mubr.f32.mxu0 %v1290
    %1366 = vmatmul.mubr.f32.gmra.mxu0 %v1289
    %v1367 = vpop.f32.mrf.mxu0
    %v1368 = vadd.f32 0.0, %v1367
    %v1369 = vpop.f32.mrf.mxu0
    %v1370 = vadd.f32 0.0, %v1369
    %1371 = vdwg.mxu0
    %1372 = vmatprep.subr.mxu0 %v663
    %1373 = vmatpush1.msra.mxu0 %v662
    %1374 = vmatprep.subr.mxu0 %v657
    %1375 = vmatpush1.msra.mxu0 %v656
    %1376 = vmatprep.subr.mxu0 %v651
    %1377 = vmatpush1.msra.mxu0 %v650
    %1378 = vmatprep.subr.mxu0 %v645
    %1379 = vmatpush1.msra.mxu0 %v644
    %1380 = vmatprep.subr.mxu0 %v639
    %1381 = vmatpush1.msra.mxu0 %v638
    %1382 = vmatprep.subr.mxu0 %v633
    %1383 = vmatpush1.msra.mxu0 %v632
    %1384 = vmatprep.subr.mxu0 %v627
    %1385 = vmatpush1.msra.mxu0 %v626
    %1386 = vmatprep.subr.mxu0 %v621
    %1387 = vmatpush1.msra.mxu0 %v620
    %1388 = vmatprep.subr.mxu0 %v615
    %1389 = vmatpush1.msra.mxu0 %v614
    %1390 = vmatprep.subr.mxu0 %v609
    %1391 = vmatpush1.msra.mxu0 %v608
    %1392 = vmatprep.subr.mxu0 %v603
    %1393 = vmatpush1.msra.mxu0 %v602
    %1394 = vmatprep.subr.mxu0 %v597
    %1395 = vmatpush1.msra.mxu0 %v596
    %1396 = vmatprep.subr.mxu0 %v591
    %1397 = vmatpush1.msra.mxu0 %v590
    %1398 = vmatprep.subr.mxu0 %v585
    %1399 = vmatpush1.msra.mxu0 %v584
    %1400 = vmatprep.subr.mxu0 %v579
    %1401 = vmatpush1.msra.mxu0 %v578
    %1402 = vmatprep.subr.mxu0 %v573
    %1403 = vmatpush1.msra.mxu0 %v572
    %1404 = vmatprep.subr.mxu0 %v759
    %1405 = vmatpush2.msra.mxu0 %v758
    %1406 = vmatprep.subr.mxu0 %v753
    %1407 = vmatpush2.msra.mxu0 %v752
    %1408 = vmatprep.subr.mxu0 %v747
    %1409 = vmatpush2.msra.mxu0 %v746
    %1410 = vmatprep.subr.mxu0 %v741
    %1411 = vmatpush2.msra.mxu0 %v740
    %1412 = vmatprep.subr.mxu0 %v735
    %1413 = vmatpush2.msra.mxu0 %v734
    %1414 = vmatprep.subr.mxu0 %v729
    %1415 = vmatpush2.msra.mxu0 %v728
    %1416 = vmatprep.subr.mxu0 %v723
    %1417 = vmatpush2.msra.mxu0 %v722
    %1418 = vmatprep.subr.mxu0 %v717
    %1419 = vmatpush2.msra.mxu0 %v716
    %1420 = vmatprep.subr.mxu0 %v711
    %1421 = vmatpush2.msra.mxu0 %v710
    %1422 = vmatprep.subr.mxu0 %v705
    %1423 = vmatpush2.msra.mxu0 %v704
    %1424 = vmatprep.subr.mxu0 %v699
    %1425 = vmatpush2.msra.mxu0 %v698
    %1426 = vmatprep.subr.mxu0 %v693
    %1427 = vmatpush2.msra.mxu0 %v692
    %1428 = vmatprep.subr.mxu0 %v687
    %1429 = vmatpush2.msra.mxu0 %v686
    %1430 = vmatprep.subr.mxu0 %v681
    %1431 = vmatpush2.msra.mxu0 %v680
    %1432 = vmatprep.subr.mxu0 %v675
    %1433 = vmatpush2.msra.mxu0 %v674
    %1434 = vmatprep.subr.mxu0 %v669
    %1435 = vmatpush2.msra.mxu0 %v668
    %1436 = vmatprep.mubr.f32.mxu0 %v1290
    %1437 = vmatmul.mubr.f32.gmra.mxu0 %v1289
    %v1438 = vpop.f32.mrf.mxu0
    %v1439 = vadd.f32 0.0, %v1438
    %v1440 = vpop.f32.mrf.mxu0
    %v1441 = vadd.f32 0.0, %v1440
    %1442 = vdwg.mxu0
    %1443 = vmatprep.subr.mxu0 %v665
    %1444 = vmatpush1.msra.mxu0 %v664
    %1445 = vmatprep.subr.mxu0 %v659
    %1446 = vmatpush1.msra.mxu0 %v658
    %1447 = vmatprep.subr.mxu0 %v653
    %1448 = vmatpush1.msra.mxu0 %v652
    %1449 = vmatprep.subr.mxu0 %v647
    %1450 = vmatpush1.msra.mxu0 %v646
    %1451 = vmatprep.subr.mxu0 %v641
    %1452 = vmatpush1.msra.mxu0 %v640
    %1453 = vmatprep.subr.mxu0 %v635
    %1454 = vmatpush1.msra.mxu0 %v634
    %1455 = vmatprep.subr.mxu0 %v629
    %1456 = vmatpush1.msra.mxu0 %v628
    %1457 = vmatprep.subr.mxu0 %v623
    %1458 = vmatpush1.msra.mxu0 %v622
    %1459 = vmatprep.subr.mxu0 %v617
    %1460 = vmatpush1.msra.mxu0 %v616
    %1461 = vmatprep.subr.mxu0 %v611
    %1462 = vmatpush1.msra.mxu0 %v610
    %1463 = vmatprep.subr.mxu0 %v605
    %1464 = vmatpush1.msra.mxu0 %v604
    %1465 = vmatprep.subr.mxu0 %v599
    %1466 = vmatpush1.msra.mxu0 %v598
    %1467 = vmatprep.subr.mxu0 %v593
    %1468 = vmatpush1.msra.mxu0 %v592
    %1469 = vmatprep.subr.mxu0 %v587
    %1470 = vmatpush1.msra.mxu0 %v586
    %1471 = vmatprep.subr.mxu0 %v581
    %1472 = vmatpush1.msra.mxu0 %v580
    %1473 = vmatprep.subr.mxu0 %v575
    %1474 = vmatpush1.msra.mxu0 %v574
    %1475 = vmatprep.subr.mxu0 %v761
    %1476 = vmatpush2.msra.mxu0 %v760
    %1477 = vmatprep.subr.mxu0 %v755
    %1478 = vmatpush2.msra.mxu0 %v754
    %1479 = vmatprep.subr.mxu0 %v749
    %1480 = vmatpush2.msra.mxu0 %v748
    %1481 = vmatprep.subr.mxu0 %v743
    %1482 = vmatpush2.msra.mxu0 %v742
    %1483 = vmatprep.subr.mxu0 %v737
    %1484 = vmatpush2.msra.mxu0 %v736
    %1485 = vmatprep.subr.mxu0 %v731
    %1486 = vmatpush2.msra.mxu0 %v730
    %1487 = vmatprep.subr.mxu0 %v725
    %1488 = vmatpush2.msra.mxu0 %v724
    %1489 = vmatprep.subr.mxu0 %v719
    %1490 = vmatpush2.msra.mxu0 %v718
    %1491 = vmatprep.subr.mxu0 %v713
    %1492 = vmatpush2.msra.mxu0 %v712
    %1493 = vmatprep.subr.mxu0 %v707
    %1494 = vmatpush2.msra.mxu0 %v706
    %1495 = vmatprep.subr.mxu0 %v701
    %1496 = vmatpush2.msra.mxu0 %v700
    %1497 = vmatprep.subr.mxu0 %v695
    %1498 = vmatpush2.msra.mxu0 %v694
    %1499 = vmatprep.subr.mxu0 %v689
    %1500 = vmatpush2.msra.mxu0 %v688
    %1501 = vmatprep.subr.mxu0 %v683
    %1502 = vmatpush2.msra.mxu0 %v682
    %1503 = vmatprep.subr.mxu0 %v677
    %1504 = vmatpush2.msra.mxu0 %v676
    %1505 = vmatprep.subr.mxu0 %v671
    %1506 = vmatpush2.msra.mxu0 %v670
    %1507 = vmatprep.mubr.f32.mxu0 %v1290
    %1508 = vmatmul.mubr.f32.gmra.mxu0 %v1289
    %v1509 = vpop.f32.mrf.mxu0
    %v1510 = vadd.f32 0.0, %v1509
    %v1511 = vpop.f32.mrf.mxu0
    %v1512 = vadd.f32 0.0, %v1511
    %1513 = vdwg.mxu0
    %v1514 = vadd.f32 %v1295, %v1368
    %v1515 = vadd.f32 %v1296, %v1370
    %v1516 = vxor.u32 %v1514, 2147483648
    %v1517 = vxor.u32 %v1515, 2147483648
    %v1518 = vmul.f32 %v1516, 1.442695
    %v1519 = vpow.pop %v1518
    %v1520 = vmul.f32 %v1517, 1.442695
    %v1521 = vpow.pop %v1520
    %v1522 = vadd.f32 %v1519, 1.0
    %v1523 = vadd.f32 %v1521, 1.0
    %v1524 = vrcp.pop %v1522
    %v1525 = vmul.f32 1.0, %v1524
    %v1526 = vrcp.pop %v1523
    %v1527 = vmul.f32 1.0, %v1526
    %v1528 = vadd.f32 %v1297, %v1439
    %v1529 = vadd.f32 %v1298, %v1441
    %v1530 = vxor.u32 %v1528, 2147483648
    %v1531 = vxor.u32 %v1529, 2147483648
    %v1532 = vmul.f32 %v1530, 1.442695
    %v1533 = vpow.pop %v1532
    %v1534 = vmul.f32 %v1531, 1.442695
    %v1535 = vpow.pop %v1534
    %v1536 = vadd.f32 %v1533, 1.0
    %v1537 = vadd.f32 %v1535, 1.0
    %v1538 = vrcp.pop %v1536
    %v1539 = vmul.f32 1.0, %v1538
    %v1540 = vrcp.pop %v1537
    %v1541 = vmul.f32 1.0, %v1540
    %v1542 = vadd.f32 %v1510, %v563
    %v1543 = vadd.f32 %v1512, %v567
    %v1544 = vmul.f32 %v1525, %v1542
    %v1545 = vmul.f32 %v1527, %v1543
    %v1546 = vadd.f32 %v1299, %v1544
    %v1547 = vadd.f32 %v1300, %v1545
    %v1548 = vtanh.pop %v1546
    %v1549 = vtanh.pop %v1547
    %v1550 = vsub.f32 1.0, %v1539
    %v1551 = vsub.f32 1.0, %v1541
    %v1552 = vmul.f32 %v1550, %v1548
    %v1553 = vmul.f32 %v1551, %v1549
    %v1554 = vmul.f32 %v1539, %v1289
    %v1555 = vmul.f32 %v1541, %v1290
    %v1556 = vadd.f32 %v1552, %v1554
    %v1557 = vadd.f32 %v1553, %v1555
    %s1558 = scalar_lea.vmem [#allocation3], 32
    %1559 = vst [vmem:[%s1558] sm:$0xff] %v1556
    %1560 = vst [vmem:[%s1558 + $0x8] sm:$0xff] %v1557
    %s1561 = scalar_lea.vmem [#allocation2], 144
    %v1562 = vld [vmem:[%s1561] sm:$0xff]
    %v1563 = vld [vmem:[%s1561 + $0x8] sm:$0xff]
    %v1564 = vld [vmem:[%s1561 + $0x10] sm:$0xff]
    %v1565 = vld [vmem:[%s1561 + $0x18] sm:$0xff]
    %v1566 = vld [vmem:[%s1561 + $0x20] sm:$0xff]
    %v1567 = vld [vmem:[%s1561 + $0x28] sm:$0xff]
    %1568 = vmatprep.subr.mxu0 %v661
    %1569 = vmatpush1.msra.mxu0 %v660
    %1570 = vmatprep.subr.mxu0 %v655
    %1571 = vmatpush1.msra.mxu0 %v654
    %1572 = vmatprep.subr.mxu0 %v649
    %1573 = vmatpush1.msra.mxu0 %v648
    %1574 = vmatprep.subr.mxu0 %v643
    %1575 = vmatpush1.msra.mxu0 %v642
    %1576 = vmatprep.subr.mxu0 %v637
    %1577 = vmatpush1.msra.mxu0 %v636
    %1578 = vmatprep.subr.mxu0 %v631
    %1579 = vmatpush1.msra.mxu0 %v630
    %1580 = vmatprep.subr.mxu0 %v625
    %1581 = vmatpush1.msra.mxu0 %v624
    %1582 = vmatprep.subr.mxu0 %v619
    %1583 = vmatpush1.msra.mxu0 %v618
    %1584 = vmatprep.subr.mxu0 %v613
    %1585 = vmatpush1.msra.mxu0 %v612
    %1586 = vmatprep.subr.mxu0 %v607
    %1587 = vmatpush1.msra.mxu0 %v606
    %1588 = vmatprep.subr.mxu0 %v601
    %1589 = vmatpush1.msra.mxu0 %v600
    %1590 = vmatprep.subr.mxu0 %v595
    %1591 = vmatpush1.msra.mxu0 %v594
    %1592 = vmatprep.subr.mxu0 %v589
    %1593 = vmatpush1.msra.mxu0 %v588
    %1594 = vmatprep.subr.mxu0 %v583
    %1595 = vmatpush1.msra.mxu0 %v582
    %1596 = vmatprep.subr.mxu0 %v577
    %1597 = vmatpush1.msra.mxu0 %v576
    %1598 = vmatprep.subr.mxu0 %v571
    %1599 = vmatpush1.msra.mxu0 %v570
    %1600 = vmatprep.subr.mxu0 %v757
    %1601 = vmatpush2.msra.mxu0 %v756
    %1602 = vmatprep.subr.mxu0 %v751
    %1603 = vmatpush2.msra.mxu0 %v750
    %1604 = vmatprep.subr.mxu0 %v745
    %1605 = vmatpush2.msra.mxu0 %v744
    %1606 = vmatprep.subr.mxu0 %v739
    %1607 = vmatpush2.msra.mxu0 %v738
    %1608 = vmatprep.subr.mxu0 %v733
    %1609 = vmatpush2.msra.mxu0 %v732
    %1610 = vmatprep.subr.mxu0 %v727
    %1611 = vmatpush2.msra.mxu0 %v726
    %1612 = vmatprep.subr.mxu0 %v721
    %1613 = vmatpush2.msra.mxu0 %v720
    %1614 = vmatprep.subr.mxu0 %v715
    %1615 = vmatpush2.msra.mxu0 %v714
    %1616 = vmatprep.subr.mxu0 %v709
    %1617 = vmatpush2.msra.mxu0 %v708
    %1618 = vmatprep.subr.mxu0 %v703
    %1619 = vmatpush2.msra.mxu0 %v702
    %1620 = vmatprep.subr.mxu0 %v697
    %1621 = vmatpush2.msra.mxu0 %v696
    %1622 = vmatprep.subr.mxu0 %v691
    %1623 = vmatpush2.msra.mxu0 %v690
    %1624 = vmatprep.subr.mxu0 %v685
    %1625 = vmatpush2.msra.mxu0 %v684
    %1626 = vmatprep.subr.mxu0 %v679
    %1627 = vmatpush2.msra.mxu0 %v678
    %1628 = vmatprep.subr.mxu0 %v673
    %1629 = vmatpush2.msra.mxu0 %v672
    %1630 = vmatprep.subr.mxu0 %v667
    %1631 = vmatpush2.msra.mxu0 %v666
    %1632 = vmatprep.mubr.f32.mxu0 %v1557
    %1633 = vmatmul.mubr.f32.gmra.mxu0 %v1556
    %v1634 = vpop.f32.mrf.mxu0
    %v1635 = vadd.f32 0.0, %v1634
    %v1636 = vpop.f32.mrf.mxu0
    %v1637 = vadd.f32 0.0, %v1636
    %1638 = vdwg.mxu0
    %1639 = vmatprep.subr.mxu0 %v663
    %1640 = vmatpush1.msra.mxu0 %v662
    %1641 = vmatprep.subr.mxu0 %v657
    %1642 = vmatpush1.msra.mxu0 %v656
    %1643 = vmatprep.subr.mxu0 %v651
    %1644 = vmatpush1.msra.mxu0 %v650
    %1645 = vmatprep.subr.mxu0 %v645
    %1646 = vmatpush1.msra.mxu0 %v644
    %1647 = vmatprep.subr.mxu0 %v639
    %1648 = vmatpush1.msra.mxu0 %v638
    %1649 = vmatprep.subr.mxu0 %v633
    %1650 = vmatpush1.msra.mxu0 %v632
    %1651 = vmatprep.subr.mxu0 %v627
    %1652 = vmatpush1.msra.mxu0 %v626
    %1653 = vmatprep.subr.mxu0 %v621
    %1654 = vmatpush1.msra.mxu0 %v620
    %1655 = vmatprep.subr.mxu0 %v615
    %1656 = vmatpush1.msra.mxu0 %v614
    %1657 = vmatprep.subr.mxu0 %v609
    %1658 = vmatpush1.msra.mxu0 %v608
    %1659 = vmatprep.subr.mxu0 %v603
    %1660 = vmatpush1.msra.mxu0 %v602
    %1661 = vmatprep.subr.mxu0 %v597
    %1662 = vmatpush1.msra.mxu0 %v596
    %1663 = vmatprep.subr.mxu0 %v591
    %1664 = vmatpush1.msra.mxu0 %v590
    %1665 = vmatprep.subr.mxu0 %v585
    %1666 = vmatpush1.msra.mxu0 %v584
    %1667 = vmatprep.subr.mxu0 %v579
    %1668 = vmatpush1.msra.mxu0 %v578
    %1669 = vmatprep.subr.mxu0 %v573
    %1670 = vmatpush1.msra.mxu0 %v572
    %1671 = vmatprep.subr.mxu0 %v759
    %1672 = vmatpush2.msra.mxu0 %v758
    %1673 = vmatprep.subr.mxu0 %v753
    %1674 = vmatpush2.msra.mxu0 %v752
    %1675 = vmatprep.subr.mxu0 %v747
    %1676 = vmatpush2.msra.mxu0 %v746
    %1677 = vmatprep.subr.mxu0 %v741
    %1678 = vmatpush2.msra.mxu0 %v740
    %1679 = vmatprep.subr.mxu0 %v735
    %1680 = vmatpush2.msra.mxu0 %v734
    %1681 = vmatprep.subr.mxu0 %v729
    %1682 = vmatpush2.msra.mxu0 %v728
    %1683 = vmatprep.subr.mxu0 %v723
    %1684 = vmatpush2.msra.mxu0 %v722
    %1685 = vmatprep.subr.mxu0 %v717
    %1686 = vmatpush2.msra.mxu0 %v716
    %1687 = vmatprep.subr.mxu0 %v711
    %1688 = vmatpush2.msra.mxu0 %v710
    %1689 = vmatprep.subr.mxu0 %v705
    %1690 = vmatpush2.msra.mxu0 %v704
    %1691 = vmatprep.subr.mxu0 %v699
    %1692 = vmatpush2.msra.mxu0 %v698
    %1693 = vmatprep.subr.mxu0 %v693
    %1694 = vmatpush2.msra.mxu0 %v692
    %1695 = vmatprep.subr.mxu0 %v687
    %1696 = vmatpush2.msra.mxu0 %v686
    %1697 = vmatprep.subr.mxu0 %v681
    %1698 = vmatpush2.msra.mxu0 %v680
    %1699 = vmatprep.subr.mxu0 %v675
    %1700 = vmatpush2.msra.mxu0 %v674
    %1701 = vmatprep.subr.mxu0 %v669
    %1702 = vmatpush2.msra.mxu0 %v668
    %1703 = vmatprep.mubr.f32.mxu0 %v1557
    %1704 = vmatmul.mubr.f32.gmra.mxu0 %v1556
    %v1705 = vpop.f32.mrf.mxu0
    %v1706 = vadd.f32 0.0, %v1705
    %v1707 = vpop.f32.mrf.mxu0
    %v1708 = vadd.f32 0.0, %v1707
    %1709 = vdwg.mxu0
    %1710 = vmatprep.subr.mxu0 %v665
    %1711 = vmatpush1.msra.mxu0 %v664
    %1712 = vmatprep.subr.mxu0 %v659
    %1713 = vmatpush1.msra.mxu0 %v658
    %1714 = vmatprep.subr.mxu0 %v653
    %1715 = vmatpush1.msra.mxu0 %v652
    %1716 = vmatprep.subr.mxu0 %v647
    %1717 = vmatpush1.msra.mxu0 %v646
    %1718 = vmatprep.subr.mxu0 %v641
    %1719 = vmatpush1.msra.mxu0 %v640
    %1720 = vmatprep.subr.mxu0 %v635
    %1721 = vmatpush1.msra.mxu0 %v634
    %1722 = vmatprep.subr.mxu0 %v629
    %1723 = vmatpush1.msra.mxu0 %v628
    %1724 = vmatprep.subr.mxu0 %v623
    %1725 = vmatpush1.msra.mxu0 %v622
    %1726 = vmatprep.subr.mxu0 %v617
    %1727 = vmatpush1.msra.mxu0 %v616
    %1728 = vmatprep.subr.mxu0 %v611
    %1729 = vmatpush1.msra.mxu0 %v610
    %1730 = vmatprep.subr.mxu0 %v605
    %1731 = vmatpush1.msra.mxu0 %v604
    %1732 = vmatprep.subr.mxu0 %v599
    %1733 = vmatpush1.msra.mxu0 %v598
    %1734 = vmatprep.subr.mxu0 %v593
    %1735 = vmatpush1.msra.mxu0 %v592
    %1736 = vmatprep.subr.mxu0 %v587
    %1737 = vmatpush1.msra.mxu0 %v586
    %1738 = vmatprep.subr.mxu0 %v581
    %1739 = vmatpush1.msra.mxu0 %v580
    %1740 = vmatprep.subr.mxu0 %v575
    %1741 = vmatpush1.msra.mxu0 %v574
    %1742 = vmatprep.subr.mxu0 %v761
    %1743 = vmatpush2.msra.mxu0 %v760
    %1744 = vmatprep.subr.mxu0 %v755
    %1745 = vmatpush2.msra.mxu0 %v754
    %1746 = vmatprep.subr.mxu0 %v749
    %1747 = vmatpush2.msra.mxu0 %v748
    %1748 = vmatprep.subr.mxu0 %v743
    %1749 = vmatpush2.msra.mxu0 %v742
    %1750 = vmatprep.subr.mxu0 %v737
    %1751 = vmatpush2.msra.mxu0 %v736
    %1752 = vmatprep.subr.mxu0 %v731
    %1753 = vmatpush2.msra.mxu0 %v730
    %1754 = vmatprep.subr.mxu0 %v725
    %1755 = vmatpush2.msra.mxu0 %v724
    %1756 = vmatprep.subr.mxu0 %v719
    %1757 = vmatpush2.msra.mxu0 %v718
    %1758 = vmatprep.subr.mxu0 %v713
    %1759 = vmatpush2.msra.mxu0 %v712
    %1760 = vmatprep.subr.mxu0 %v707
    %1761 = vmatpush2.msra.mxu0 %v706
    %1762 = vmatprep.subr.mxu0 %v701
    %1763 = vmatpush2.msra.mxu0 %v700
    %1764 = vmatprep.subr.mxu0 %v695
    %1765 = vmatpush2.msra.mxu0 %v694
    %1766 = vmatprep.subr.mxu0 %v689
    %1767 = vmatpush2.msra.mxu0 %v688
    %1768 = vmatprep.subr.mxu0 %v683
    %1769 = vmatpush2.msra.mxu0 %v682
    %1770 = vmatprep.subr.mxu0 %v677
    %1771 = vmatpush2.msra.mxu0 %v676
    %1772 = vmatprep.subr.mxu0 %v671
    %1773 = vmatpush2.msra.mxu0 %v670
    %1774 = vmatprep.mubr.f32.mxu0 %v1557
    %1775 = vmatmul.mubr.f32.gmra.mxu0 %v1556
    %v1776 = vpop.f32.mrf.mxu0
    %v1777 = vadd.f32 0.0, %v1776
    %v1778 = vpop.f32.mrf.mxu0
    %v1779 = vadd.f32 0.0, %v1778
    %1780 = vdwg.mxu0
    %v1781 = vadd.f32 %v1562, %v1635
    %v1782 = vadd.f32 %v1563, %v1637
    %v1783 = vxor.u32 %v1781, 2147483648
    %v1784 = vxor.u32 %v1782, 2147483648
    %v1785 = vmul.f32 %v1783, 1.442695
    %v1786 = vpow.pop %v1785
    %v1787 = vmul.f32 %v1784, 1.442695
    %v1788 = vpow.pop %v1787
    %v1789 = vadd.f32 %v1786, 1.0
    %v1790 = vadd.f32 %v1788, 1.0
    %v1791 = vrcp.pop %v1789
    %v1792 = vmul.f32 1.0, %v1791
    %v1793 = vrcp.pop %v1790
    %v1794 = vmul.f32 1.0, %v1793
    %v1795 = vadd.f32 %v1564, %v1706
    %v1796 = vadd.f32 %v1565, %v1708
    %v1797 = vxor.u32 %v1795, 2147483648
    %v1798 = vxor.u32 %v1796, 2147483648
    %v1799 = vmul.f32 %v1797, 1.442695
    %v1800 = vpow.pop %v1799
    %v1801 = vmul.f32 %v1798, 1.442695
    %v1802 = vpow.pop %v1801
    %v1803 = vadd.f32 %v1800, 1.0
    %v1804 = vadd.f32 %v1802, 1.0
    %v1805 = vrcp.pop %v1803
    %v1806 = vmul.f32 1.0, %v1805
    %v1807 = vrcp.pop %v1804
    %v1808 = vmul.f32 1.0, %v1807
    %v1809 = vadd.f32 %v1777, %v563
    %v1810 = vadd.f32 %v1779, %v567
    %v1811 = vmul.f32 %v1792, %v1809
    %v1812 = vmul.f32 %v1794, %v1810
    %v1813 = vadd.f32 %v1566, %v1811
    %v1814 = vadd.f32 %v1567, %v1812
    %v1815 = vtanh.pop %v1813
    %v1816 = vtanh.pop %v1814
    %v1817 = vsub.f32 1.0, %v1806
    %v1818 = vsub.f32 1.0, %v1808
    %v1819 = vmul.f32 %v1817, %v1815
    %v1820 = vmul.f32 %v1818, %v1816
    %v1821 = vmul.f32 %v1806, %v1556
    %v1822 = vmul.f32 %v1808, %v1557
    %v1823 = vadd.f32 %v1819, %v1821
    %v1824 = vadd.f32 %v1820, %v1822
    %s1825 = scalar_lea.vmem [#allocation3], 48
    %1826 = vst [vmem:[%s1825] sm:$0xff] %v1823
    %1827 = vst [vmem:[%s1825 + $0x8] sm:$0xff] %v1824
    %s1828 = scalar_lea.vmem [#allocation2], 192
    %v1829 = vld [vmem:[%s1828] sm:$0xff]
    %v1830 = vld [vmem:[%s1828 + $0x8] sm:$0xff]
    %v1831 = vld [vmem:[%s1828 + $0x10] sm:$0xff]
    %v1832 = vld [vmem:[%s1828 + $0x18] sm:$0xff]
    %v1833 = vld [vmem:[%s1828 + $0x20] sm:$0xff]
    %v1834 = vld [vmem:[%s1828 + $0x28] sm:$0xff]
    %1835 = vmatprep.subr.mxu0 %v661
    %1836 = vmatpush1.msra.mxu0 %v660
    %1837 = vmatprep.subr.mxu0 %v655
    %1838 = vmatpush1.msra.mxu0 %v654
    %1839 = vmatprep.subr.mxu0 %v649
    %1840 = vmatpush1.msra.mxu0 %v648
    %1841 = vmatprep.subr.mxu0 %v643
    %1842 = vmatpush1.msra.mxu0 %v642
    %1843 = vmatprep.subr.mxu0 %v637
    %1844 = vmatpush1.msra.mxu0 %v636
    %1845 = vmatprep.subr.mxu0 %v631
    %1846 = vmatpush1.msra.mxu0 %v630
    %1847 = vmatprep.subr.mxu0 %v625
    %1848 = vmatpush1.msra.mxu0 %v624
    %1849 = vmatprep.subr.mxu0 %v619
    %1850 = vmatpush1.msra.mxu0 %v618
    %1851 = vmatprep.subr.mxu0 %v613
    %1852 = vmatpush1.msra.mxu0 %v612
    %1853 = vmatprep.subr.mxu0 %v607
    %1854 = vmatpush1.msra.mxu0 %v606
    %1855 = vmatprep.subr.mxu0 %v601
    %1856 = vmatpush1.msra.mxu0 %v600
    %1857 = vmatprep.subr.mxu0 %v595
    %1858 = vmatpush1.msra.mxu0 %v594
    %1859 = vmatprep.subr.mxu0 %v589
    %1860 = vmatpush1.msra.mxu0 %v588
    %1861 = vmatprep.subr.mxu0 %v583
    %1862 = vmatpush1.msra.mxu0 %v582
    %1863 = vmatprep.subr.mxu0 %v577
    %1864 = vmatpush1.msra.mxu0 %v576
    %1865 = vmatprep.subr.mxu0 %v571
    %1866 = vmatpush1.msra.mxu0 %v570
    %1867 = vmatprep.subr.mxu0 %v757
    %1868 = vmatpush2.msra.mxu0 %v756
    %1869 = vmatprep.subr.mxu0 %v751
    %1870 = vmatpush2.msra.mxu0 %v750
    %1871 = vmatprep.subr.mxu0 %v745
    %1872 = vmatpush2.msra.mxu0 %v744
    %1873 = vmatprep.subr.mxu0 %v739
    %1874 = vmatpush2.msra.mxu0 %v738
    %1875 = vmatprep.subr.mxu0 %v733
    %1876 = vmatpush2.msra.mxu0 %v732
    %1877 = vmatprep.subr.mxu0 %v727
    %1878 = vmatpush2.msra.mxu0 %v726
    %1879 = vmatprep.subr.mxu0 %v721
    %1880 = vmatpush2.msra.mxu0 %v720
    %1881 = vmatprep.subr.mxu0 %v715
    %1882 = vmatpush2.msra.mxu0 %v714
    %1883 = vmatprep.subr.mxu0 %v709
    %1884 = vmatpush2.msra.mxu0 %v708
    %1885 = vmatprep.subr.mxu0 %v703
    %1886 = vmatpush2.msra.mxu0 %v702
    %1887 = vmatprep.subr.mxu0 %v697
    %1888 = vmatpush2.msra.mxu0 %v696
    %1889 = vmatprep.subr.mxu0 %v691
    %1890 = vmatpush2.msra.mxu0 %v690
    %1891 = vmatprep.subr.mxu0 %v685
    %1892 = vmatpush2.msra.mxu0 %v684
    %1893 = vmatprep.subr.mxu0 %v679
    %1894 = vmatpush2.msra.mxu0 %v678
    %1895 = vmatprep.subr.mxu0 %v673
    %1896 = vmatpush2.msra.mxu0 %v672
    %1897 = vmatprep.subr.mxu0 %v667
    %1898 = vmatpush2.msra.mxu0 %v666
    %1899 = vmatprep.mubr.f32.mxu0 %v1824
    %1900 = vmatmul.mubr.f32.gmra.mxu0 %v1823
    %v1901 = vpop.f32.mrf.mxu0
    %v1902 = vadd.f32 0.0, %v1901
    %v1903 = vpop.f32.mrf.mxu0
    %v1904 = vadd.f32 0.0, %v1903
    %1905 = vdwg.mxu0
    %1906 = vmatprep.subr.mxu0 %v663
    %1907 = vmatpush1.msra.mxu0 %v662
    %1908 = vmatprep.subr.mxu0 %v657
    %1909 = vmatpush1.msra.mxu0 %v656
    %1910 = vmatprep.subr.mxu0 %v651
    %1911 = vmatpush1.msra.mxu0 %v650
    %1912 = vmatprep.subr.mxu0 %v645
    %1913 = vmatpush1.msra.mxu0 %v644
    %1914 = vmatprep.subr.mxu0 %v639
    %1915 = vmatpush1.msra.mxu0 %v638
    %1916 = vmatprep.subr.mxu0 %v633
    %1917 = vmatpush1.msra.mxu0 %v632
    %1918 = vmatprep.subr.mxu0 %v627
    %1919 = vmatpush1.msra.mxu0 %v626
    %1920 = vmatprep.subr.mxu0 %v621
    %1921 = vmatpush1.msra.mxu0 %v620
    %1922 = vmatprep.subr.mxu0 %v615
    %1923 = vmatpush1.msra.mxu0 %v614
    %1924 = vmatprep.subr.mxu0 %v609
    %1925 = vmatpush1.msra.mxu0 %v608
    %1926 = vmatprep.subr.mxu0 %v603
    %1927 = vmatpush1.msra.mxu0 %v602
    %1928 = vmatprep.subr.mxu0 %v597
    %1929 = vmatpush1.msra.mxu0 %v596
    %1930 = vmatprep.subr.mxu0 %v591
    %1931 = vmatpush1.msra.mxu0 %v590
    %1932 = vmatprep.subr.mxu0 %v585
    %1933 = vmatpush1.msra.mxu0 %v584
    %1934 = vmatprep.subr.mxu0 %v579
    %1935 = vmatpush1.msra.mxu0 %v578
    %1936 = vmatprep.subr.mxu0 %v573
    %1937 = vmatpush1.msra.mxu0 %v572
    %1938 = vmatprep.subr.mxu0 %v759
    %1939 = vmatpush2.msra.mxu0 %v758
    %1940 = vmatprep.subr.mxu0 %v753
    %1941 = vmatpush2.msra.mxu0 %v752
    %1942 = vmatprep.subr.mxu0 %v747
    %1943 = vmatpush2.msra.mxu0 %v746
    %1944 = vmatprep.subr.mxu0 %v741
    %1945 = vmatpush2.msra.mxu0 %v740
    %1946 = vmatprep.subr.mxu0 %v735
    %1947 = vmatpush2.msra.mxu0 %v734
    %1948 = vmatprep.subr.mxu0 %v729
    %1949 = vmatpush2.msra.mxu0 %v728
    %1950 = vmatprep.subr.mxu0 %v723
    %1951 = vmatpush2.msra.mxu0 %v722
    %1952 = vmatprep.subr.mxu0 %v717
    %1953 = vmatpush2.msra.mxu0 %v716
    %1954 = vmatprep.subr.mxu0 %v711
    %1955 = vmatpush2.msra.mxu0 %v710
    %1956 = vmatprep.subr.mxu0 %v705
    %1957 = vmatpush2.msra.mxu0 %v704
    %1958 = vmatprep.subr.mxu0 %v699
    %1959 = vmatpush2.msra.mxu0 %v698
    %1960 = vmatprep.subr.mxu0 %v693
    %1961 = vmatpush2.msra.mxu0 %v692
    %1962 = vmatprep.subr.mxu0 %v687
    %1963 = vmatpush2.msra.mxu0 %v686
    %1964 = vmatprep.subr.mxu0 %v681
    %1965 = vmatpush2.msra.mxu0 %v680
    %1966 = vmatprep.subr.mxu0 %v675
    %1967 = vmatpush2.msra.mxu0 %v674
    %1968 = vmatprep.subr.mxu0 %v669
    %1969 = vmatpush2.msra.mxu0 %v668
    %1970 = vmatprep.mubr.f32.mxu0 %v1824
    %1971 = vmatmul.mubr.f32.gmra.mxu0 %v1823
    %v1972 = vpop.f32.mrf.mxu0
    %v1973 = vadd.f32 0.0, %v1972
    %v1974 = vpop.f32.mrf.mxu0
    %v1975 = vadd.f32 0.0, %v1974
    %1976 = vdwg.mxu0
    %1977 = vmatprep.subr.mxu0 %v665
    %1978 = vmatpush1.msra.mxu0 %v664
    %1979 = vmatprep.subr.mxu0 %v659
    %1980 = vmatpush1.msra.mxu0 %v658
    %1981 = vmatprep.subr.mxu0 %v653
    %1982 = vmatpush1.msra.mxu0 %v652
    %1983 = vmatprep.subr.mxu0 %v647
    %1984 = vmatpush1.msra.mxu0 %v646
    %1985 = vmatprep.subr.mxu0 %v641
    %1986 = vmatpush1.msra.mxu0 %v640
    %1987 = vmatprep.subr.mxu0 %v635
    %1988 = vmatpush1.msra.mxu0 %v634
    %1989 = vmatprep.subr.mxu0 %v629
    %1990 = vmatpush1.msra.mxu0 %v628
    %1991 = vmatprep.subr.mxu0 %v623
    %1992 = vmatpush1.msra.mxu0 %v622
    %1993 = vmatprep.subr.mxu0 %v617
    %1994 = vmatpush1.msra.mxu0 %v616
    %1995 = vmatprep.subr.mxu0 %v611
    %1996 = vmatpush1.msra.mxu0 %v610
    %1997 = vmatprep.subr.mxu0 %v605
    %1998 = vmatpush1.msra.mxu0 %v604
    %1999 = vmatprep.subr.mxu0 %v599
    %2000 = vmatpush1.msra.mxu0 %v598
    %2001 = vmatprep.subr.mxu0 %v593
    %2002 = vmatpush1.msra.mxu0 %v592
    %2003 = vmatprep.subr.mxu0 %v587
    %2004 = vmatpush1.msra.mxu0 %v586
    %2005 = vmatprep.subr.mxu0 %v581
    %2006 = vmatpush1.msra.mxu0 %v580
    %2007 = vmatprep.subr.mxu0 %v575
    %2008 = vmatpush1.msra.mxu0 %v574
    %2009 = vmatprep.subr.mxu0 %v761
    %2010 = vmatpush2.msra.mxu0 %v760
    %2011 = vmatprep.subr.mxu0 %v755
    %2012 = vmatpush2.msra.mxu0 %v754
    %2013 = vmatprep.subr.mxu0 %v749
    %2014 = vmatpush2.msra.mxu0 %v748
    %2015 = vmatprep.subr.mxu0 %v743
    %2016 = vmatpush2.msra.mxu0 %v742
    %2017 = vmatprep.subr.mxu0 %v737
    %2018 = vmatpush2.msra.mxu0 %v736
    %2019 = vmatprep.subr.mxu0 %v731
    %2020 = vmatpush2.msra.mxu0 %v730
    %2021 = vmatprep.subr.mxu0 %v725
    %2022 = vmatpush2.msra.mxu0 %v724
    %2023 = vmatprep.subr.mxu0 %v719
    %2024 = vmatpush2.msra.mxu0 %v718
    %2025 = vmatprep.subr.mxu0 %v713
    %2026 = vmatpush2.msra.mxu0 %v712
    %2027 = vmatprep.subr.mxu0 %v707
    %2028 = vmatpush2.msra.mxu0 %v706
    %2029 = vmatprep.subr.mxu0 %v701
    %2030 = vmatpush2.msra.mxu0 %v700
    %2031 = vmatprep.subr.mxu0 %v695
    %2032 = vmatpush2.msra.mxu0 %v694
    %2033 = vmatprep.subr.mxu0 %v689
    %2034 = vmatpush2.msra.mxu0 %v688
    %2035 = vmatprep.subr.mxu0 %v683
    %2036 = vmatpush2.msra.mxu0 %v682
    %2037 = vmatprep.subr.mxu0 %v677
    %2038 = vmatpush2.msra.mxu0 %v676
    %2039 = vmatprep.subr.mxu0 %v671
    %2040 = vmatpush2.msra.mxu0 %v670
    %2041 = vmatprep.mubr.f32.mxu0 %v1824
    %2042 = vmatmul.mubr.f32.gmra.mxu0 %v1823
    %v2043 = vpop.f32.mrf.mxu0
    %v2044 = vadd.f32 0.0, %v2043
    %v2045 = vpop.f32.mrf.mxu0
    %v2046 = vadd.f32 0.0, %v2045
    %2047 = vdwg.mxu0
    %v2048 = vadd.f32 %v1829, %v1902
    %v2049 = vadd.f32 %v1830, %v1904
    %v2050 = vxor.u32 %v2048, 2147483648
    %v2051 = vxor.u32 %v2049, 2147483648
    %v2052 = vmul.f32 %v2050, 1.442695
    %v2053 = vpow.pop %v2052
    %v2054 = vmul.f32 %v2051, 1.442695
    %v2055 = vpow.pop %v2054
    %v2056 = vadd.f32 %v2053, 1.0
    %v2057 = vadd.f32 %v2055, 1.0
    %v2058 = vrcp.pop %v2056
    %v2059 = vmul.f32 1.0, %v2058
    %v2060 = vrcp.pop %v2057
    %v2061 = vmul.f32 1.0, %v2060
    %v2062 = vadd.f32 %v1831, %v1973
    %v2063 = vadd.f32 %v1832, %v1975
    %v2064 = vxor.u32 %v2062, 2147483648
    %v2065 = vxor.u32 %v2063, 2147483648
    %v2066 = vmul.f32 %v2064, 1.442695
    %v2067 = vpow.pop %v2066
    %v2068 = vmul.f32 %v2065, 1.442695
    %v2069 = vpow.pop %v2068
    %v2070 = vadd.f32 %v2067, 1.0
    %v2071 = vadd.f32 %v2069, 1.0
    %v2072 = vrcp.pop %v2070
    %v2073 = vmul.f32 1.0, %v2072
    %v2074 = vrcp.pop %v2071
    %v2075 = vmul.f32 1.0, %v2074
    %v2076 = vadd.f32 %v2044, %v563
    %v2077 = vadd.f32 %v2046, %v567
    %v2078 = vmul.f32 %v2059, %v2076
    %v2079 = vmul.f32 %v2061, %v2077
    %v2080 = vadd.f32 %v1833, %v2078
    %v2081 = vadd.f32 %v1834, %v2079
    %v2082 = vtanh.pop %v2080
    %v2083 = vtanh.pop %v2081
    %v2084 = vsub.f32 1.0, %v2073
    %v2085 = vsub.f32 1.0, %v2075
    %v2086 = vmul.f32 %v2084, %v2082
    %v2087 = vmul.f32 %v2085, %v2083
    %v2088 = vmul.f32 %v2073, %v1823
    %v2089 = vmul.f32 %v2075, %v1824
    %v2090 = vadd.f32 %v2086, %v2088
    %v2091 = vadd.f32 %v2087, %v2089
    %s2092 = scalar_lea.vmem [#allocation3], 64
    %2093 = vst [vmem:[%s2092] sm:$0xff] %v2090
    %2094 = vst [vmem:[%s2092 + $0x8] sm:$0xff] %v2091
    %s2095 = scalar_lea.vmem [#allocation2], 240
    %v2096 = vld [vmem:[%s2095] sm:$0xff]
    %v2097 = vld [vmem:[%s2095 + $0x8] sm:$0xff]
    %v2098 = vld [vmem:[%s2095 + $0x10] sm:$0xff]
    %v2099 = vld [vmem:[%s2095 + $0x18] sm:$0xff]
    %v2100 = vld [vmem:[%s2095 + $0x20] sm:$0xff]
    %v2101 = vld [vmem:[%s2095 + $0x28] sm:$0xff]
    %2102 = vmatprep.subr.mxu0 %v661
    %2103 = vmatpush1.msra.mxu0 %v660
    %2104 = vmatprep.subr.mxu0 %v655
    %2105 = vmatpush1.msra.mxu0 %v654
    %2106 = vmatprep.subr.mxu0 %v649
    %2107 = vmatpush1.msra.mxu0 %v648
    %2108 = vmatprep.subr.mxu0 %v643
    %2109 = vmatpush1.msra.mxu0 %v642
    %2110 = vmatprep.subr.mxu0 %v637
    %2111 = vmatpush1.msra.mxu0 %v636
    %2112 = vmatprep.subr.mxu0 %v631
    %2113 = vmatpush1.msra.mxu0 %v630
    %2114 = vmatprep.subr.mxu0 %v625
    %2115 = vmatpush1.msra.mxu0 %v624
    %2116 = vmatprep.subr.mxu0 %v619
    %2117 = vmatpush1.msra.mxu0 %v618
    %2118 = vmatprep.subr.mxu0 %v613
    %2119 = vmatpush1.msra.mxu0 %v612
    %2120 = vmatprep.subr.mxu0 %v607
    %2121 = vmatpush1.msra.mxu0 %v606
    %2122 = vmatprep.subr.mxu0 %v601
    %2123 = vmatpush1.msra.mxu0 %v600
    %2124 = vmatprep.subr.mxu0 %v595
    %2125 = vmatpush1.msra.mxu0 %v594
    %2126 = vmatprep.subr.mxu0 %v589
    %2127 = vmatpush1.msra.mxu0 %v588
    %2128 = vmatprep.subr.mxu0 %v583
    %2129 = vmatpush1.msra.mxu0 %v582
    %2130 = vmatprep.subr.mxu0 %v577
    %2131 = vmatpush1.msra.mxu0 %v576
    %2132 = vmatprep.subr.mxu0 %v571
    %2133 = vmatpush1.msra.mxu0 %v570
    %2134 = vmatprep.subr.mxu0 %v757
    %2135 = vmatpush2.msra.mxu0 %v756
    %2136 = vmatprep.subr.mxu0 %v751
    %2137 = vmatpush2.msra.mxu0 %v750
    %2138 = vmatprep.subr.mxu0 %v745
    %2139 = vmatpush2.msra.mxu0 %v744
    %2140 = vmatprep.subr.mxu0 %v739
    %2141 = vmatpush2.msra.mxu0 %v738
    %2142 = vmatprep.subr.mxu0 %v733
    %2143 = vmatpush2.msra.mxu0 %v732
    %2144 = vmatprep.subr.mxu0 %v727
    %2145 = vmatpush2.msra.mxu0 %v726
    %2146 = vmatprep.subr.mxu0 %v721
    %2147 = vmatpush2.msra.mxu0 %v720
    %2148 = vmatprep.subr.mxu0 %v715
    %2149 = vmatpush2.msra.mxu0 %v714
    %2150 = vmatprep.subr.mxu0 %v709
    %2151 = vmatpush2.msra.mxu0 %v708
    %2152 = vmatprep.subr.mxu0 %v703
    %2153 = vmatpush2.msra.mxu0 %v702
    %2154 = vmatprep.subr.mxu0 %v697
    %2155 = vmatpush2.msra.mxu0 %v696
    %2156 = vmatprep.subr.mxu0 %v691
    %2157 = vmatpush2.msra.mxu0 %v690
    %2158 = vmatprep.subr.mxu0 %v685
    %2159 = vmatpush2.msra.mxu0 %v684
    %2160 = vmatprep.subr.mxu0 %v679
    %2161 = vmatpush2.msra.mxu0 %v678
    %2162 = vmatprep.subr.mxu0 %v673
    %2163 = vmatpush2.msra.mxu0 %v672
    %2164 = vmatprep.subr.mxu0 %v667
    %2165 = vmatpush2.msra.mxu0 %v666
    %2166 = vmatprep.mubr.f32.mxu0 %v2091
    %2167 = vmatmul.mubr.f32.gmra.mxu0 %v2090
    %v2168 = vpop.f32.mrf.mxu0
    %v2169 = vadd.f32 0.0, %v2168
    %v2170 = vpop.f32.mrf.mxu0
    %v2171 = vadd.f32 0.0, %v2170
    %2172 = vdwg.mxu0
    %2173 = vmatprep.subr.mxu0 %v663
    %2174 = vmatpush1.msra.mxu0 %v662
    %2175 = vmatprep.subr.mxu0 %v657
    %2176 = vmatpush1.msra.mxu0 %v656
    %2177 = vmatprep.subr.mxu0 %v651
    %2178 = vmatpush1.msra.mxu0 %v650
    %2179 = vmatprep.subr.mxu0 %v645
    %2180 = vmatpush1.msra.mxu0 %v644
    %2181 = vmatprep.subr.mxu0 %v639
    %2182 = vmatpush1.msra.mxu0 %v638
    %2183 = vmatprep.subr.mxu0 %v633
    %2184 = vmatpush1.msra.mxu0 %v632
    %2185 = vmatprep.subr.mxu0 %v627
    %2186 = vmatpush1.msra.mxu0 %v626
    %2187 = vmatprep.subr.mxu0 %v621
    %2188 = vmatpush1.msra.mxu0 %v620
    %2189 = vmatprep.subr.mxu0 %v615
    %2190 = vmatpush1.msra.mxu0 %v614
    %2191 = vmatprep.subr.mxu0 %v609
    %2192 = vmatpush1.msra.mxu0 %v608
    %2193 = vmatprep.subr.mxu0 %v603
    %2194 = vmatpush1.msra.mxu0 %v602
    %2195 = vmatprep.subr.mxu0 %v597
    %2196 = vmatpush1.msra.mxu0 %v596
    %2197 = vmatprep.subr.mxu0 %v591
    %2198 = vmatpush1.msra.mxu0 %v590
    %2199 = vmatprep.subr.mxu0 %v585
    %2200 = vmatpush1.msra.mxu0 %v584
    %2201 = vmatprep.subr.mxu0 %v579
    %2202 = vmatpush1.msra.mxu0 %v578
    %2203 = vmatprep.subr.mxu0 %v573
    %2204 = vmatpush1.msra.mxu0 %v572
    %2205 = vmatprep.subr.mxu0 %v759
    %2206 = vmatpush2.msra.mxu0 %v758
    %2207 = vmatprep.subr.mxu0 %v753
    %2208 = vmatpush2.msra.mxu0 %v752
    %2209 = vmatprep.subr.mxu0 %v747
    %2210 = vmatpush2.msra.mxu0 %v746
    %2211 = vmatprep.subr.mxu0 %v741
    %2212 = vmatpush2.msra.mxu0 %v740
    %2213 = vmatprep.subr.mxu0 %v735
    %2214 = vmatpush2.msra.mxu0 %v734
    %2215 = vmatprep.subr.mxu0 %v729
    %2216 = vmatpush2.msra.mxu0 %v728
    %2217 = vmatprep.subr.mxu0 %v723
    %2218 = vmatpush2.msra.mxu0 %v722
    %2219 = vmatprep.subr.mxu0 %v717
    %2220 = vmatpush2.msra.mxu0 %v716
    %2221 = vmatprep.subr.mxu0 %v711
    %2222 = vmatpush2.msra.mxu0 %v710
    %2223 = vmatprep.subr.mxu0 %v705
    %2224 = vmatpush2.msra.mxu0 %v704
    %2225 = vmatprep.subr.mxu0 %v699
    %2226 = vmatpush2.msra.mxu0 %v698
    %2227 = vmatprep.subr.mxu0 %v693
    %2228 = vmatpush2.msra.mxu0 %v692
    %2229 = vmatprep.subr.mxu0 %v687
    %2230 = vmatpush2.msra.mxu0 %v686
    %2231 = vmatprep.subr.mxu0 %v681
    %2232 = vmatpush2.msra.mxu0 %v680
    %2233 = vmatprep.subr.mxu0 %v675
    %2234 = vmatpush2.msra.mxu0 %v674
    %2235 = vmatprep.subr.mxu0 %v669
    %2236 = vmatpush2.msra.mxu0 %v668
    %2237 = vmatprep.mubr.f32.mxu0 %v2091
    %2238 = vmatmul.mubr.f32.gmra.mxu0 %v2090
    %v2239 = vpop.f32.mrf.mxu0
    %v2240 = vadd.f32 0.0, %v2239
    %v2241 = vpop.f32.mrf.mxu0
    %v2242 = vadd.f32 0.0, %v2241
    %2243 = vdwg.mxu0
    %2244 = vmatprep.subr.mxu0 %v665
    %2245 = vmatpush1.msra.mxu0 %v664
    %2246 = vmatprep.subr.mxu0 %v659
    %2247 = vmatpush1.msra.mxu0 %v658
    %2248 = vmatprep.subr.mxu0 %v653
    %2249 = vmatpush1.msra.mxu0 %v652
    %2250 = vmatprep.subr.mxu0 %v647
    %2251 = vmatpush1.msra.mxu0 %v646
    %2252 = vmatprep.subr.mxu0 %v641
    %2253 = vmatpush1.msra.mxu0 %v640
    %2254 = vmatprep.subr.mxu0 %v635
    %2255 = vmatpush1.msra.mxu0 %v634
    %2256 = vmatprep.subr.mxu0 %v629
    %2257 = vmatpush1.msra.mxu0 %v628
    %2258 = vmatprep.subr.mxu0 %v623
    %2259 = vmatpush1.msra.mxu0 %v622
    %2260 = vmatprep.subr.mxu0 %v617
    %2261 = vmatpush1.msra.mxu0 %v616
    %2262 = vmatprep.subr.mxu0 %v611
    %2263 = vmatpush1.msra.mxu0 %v610
    %2264 = vmatprep.subr.mxu0 %v605
    %2265 = vmatpush1.msra.mxu0 %v604
    %2266 = vmatprep.subr.mxu0 %v599
    %2267 = vmatpush1.msra.mxu0 %v598
    %2268 = vmatprep.subr.mxu0 %v593
    %2269 = vmatpush1.msra.mxu0 %v592
    %2270 = vmatprep.subr.mxu0 %v587
    %2271 = vmatpush1.msra.mxu0 %v586
    %2272 = vmatprep.subr.mxu0 %v581
    %2273 = vmatpush1.msra.mxu0 %v580
    %2274 = vmatprep.subr.mxu0 %v575
    %2275 = vmatpush1.msra.mxu0 %v574
    %2276 = vmatprep.subr.mxu0 %v761
    %2277 = vmatpush2.msra.mxu0 %v760
    %2278 = vmatprep.subr.mxu0 %v755
    %2279 = vmatpush2.msra.mxu0 %v754
    %2280 = vmatprep.subr.mxu0 %v749
    %2281 = vmatpush2.msra.mxu0 %v748
    %2282 = vmatprep.subr.mxu0 %v743
    %2283 = vmatpush2.msra.mxu0 %v742
    %2284 = vmatprep.subr.mxu0 %v737
    %2285 = vmatpush2.msra.mxu0 %v736
    %2286 = vmatprep.subr.mxu0 %v731
    %2287 = vmatpush2.msra.mxu0 %v730
    %2288 = vmatprep.subr.mxu0 %v725
    %2289 = vmatpush2.msra.mxu0 %v724
    %2290 = vmatprep.subr.mxu0 %v719
    %2291 = vmatpush2.msra.mxu0 %v718
    %2292 = vmatprep.subr.mxu0 %v713
    %2293 = vmatpush2.msra.mxu0 %v712
    %2294 = vmatprep.subr.mxu0 %v707
    %2295 = vmatpush2.msra.mxu0 %v706
    %2296 = vmatprep.subr.mxu0 %v701
    %2297 = vmatpush2.msra.mxu0 %v700
    %2298 = vmatprep.subr.mxu0 %v695
    %2299 = vmatpush2.msra.mxu0 %v694
    %2300 = vmatprep.subr.mxu0 %v689
    %2301 = vmatpush2.msra.mxu0 %v688
    %2302 = vmatprep.subr.mxu0 %v683
    %2303 = vmatpush2.msra.mxu0 %v682
    %2304 = vmatprep.subr.mxu0 %v677
    %2305 = vmatpush2.msra.mxu0 %v676
    %2306 = vmatprep.subr.mxu0 %v671
    %2307 = vmatpush2.msra.mxu0 %v670
    %2308 = vmatprep.mubr.f32.mxu0 %v2091
    %2309 = vmatmul.mubr.f32.gmra.mxu0 %v2090
    %v2310 = vpop.f32.mrf.mxu0
    %v2311 = vadd.f32 0.0, %v2310
    %v2312 = vpop.f32.mrf.mxu0
    %v2313 = vadd.f32 0.0, %v2312
    %2314 = vdwg.mxu0
    %v2315 = vadd.f32 %v2096, %v2169
    %v2316 = vadd.f32 %v2097, %v2171
    %v2317 = vxor.u32 %v2315, 2147483648
    %v2318 = vxor.u32 %v2316, 2147483648
    %v2319 = vmul.f32 %v2317, 1.442695
    %v2320 = vpow.pop %v2319
    %v2321 = vmul.f32 %v2318, 1.442695
    %v2322 = vpow.pop %v2321
    %v2323 = vadd.f32 %v2320, 1.0
    %v2324 = vadd.f32 %v2322, 1.0
    %v2325 = vrcp.pop %v2323
    %v2326 = vmul.f32 1.0, %v2325
    %v2327 = vrcp.pop %v2324
    %v2328 = vmul.f32 1.0, %v2327
    %v2329 = vadd.f32 %v2098, %v2240
    %v2330 = vadd.f32 %v2099, %v2242
    %v2331 = vxor.u32 %v2329, 2147483648
    %v2332 = vxor.u32 %v2330, 2147483648
    %v2333 = vmul.f32 %v2331, 1.442695
    %v2334 = vpow.pop %v2333
    %v2335 = vmul.f32 %v2332, 1.442695
    %v2336 = vpow.pop %v2335
    %v2337 = vadd.f32 %v2334, 1.0
    %v2338 = vadd.f32 %v2336, 1.0
    %v2339 = vrcp.pop %v2337
    %v2340 = vmul.f32 1.0, %v2339
    %v2341 = vrcp.pop %v2338
    %v2342 = vmul.f32 1.0, %v2341
    %v2343 = vadd.f32 %v2311, %v563
    %v2344 = vadd.f32 %v2313, %v567
    %v2345 = vmul.f32 %v2326, %v2343
    %v2346 = vmul.f32 %v2328, %v2344
    %v2347 = vadd.f32 %v2100, %v2345
    %v2348 = vadd.f32 %v2101, %v2346
    %v2349 = vtanh.pop %v2347
    %v2350 = vtanh.pop %v2348
    %v2351 = vsub.f32 1.0, %v2340
    %v2352 = vsub.f32 1.0, %v2342
    %v2353 = vmul.f32 %v2351, %v2349
    %v2354 = vmul.f32 %v2352, %v2350
    %v2355 = vmul.f32 %v2340, %v2090
    %v2356 = vmul.f32 %v2342, %v2091
    %v2357 = vadd.f32 %v2353, %v2355
    %v2358 = vadd.f32 %v2354, %v2356
    %s2359 = scalar_lea.vmem [#allocation3], 80
    %2360 = vst [vmem:[%s2359] sm:$0xff] %v2357
    %2361 = vst [vmem:[%s2359 + $0x8] sm:$0xff] %v2358
    %s2362 = scalar_lea.vmem [#allocation2], 288
    %v2363 = vld [vmem:[%s2362] sm:$0xff]
    %v2364 = vld [vmem:[%s2362 + $0x8] sm:$0xff]
    %v2365 = vld [vmem:[%s2362 + $0x10] sm:$0xff]
    %v2366 = vld [vmem:[%s2362 + $0x18] sm:$0xff]
    %v2367 = vld [vmem:[%s2362 + $0x20] sm:$0xff]
    %v2368 = vld [vmem:[%s2362 + $0x28] sm:$0xff]
    %2369 = vmatprep.subr.mxu0 %v661
    %2370 = vmatpush1.msra.mxu0 %v660
    %2371 = vmatprep.subr.mxu0 %v655
    %2372 = vmatpush1.msra.mxu0 %v654
    %2373 = vmatprep.subr.mxu0 %v649
    %2374 = vmatpush1.msra.mxu0 %v648
    %2375 = vmatprep.subr.mxu0 %v643
    %2376 = vmatpush1.msra.mxu0 %v642
    %2377 = vmatprep.subr.mxu0 %v637
    %2378 = vmatpush1.msra.mxu0 %v636
    %2379 = vmatprep.subr.mxu0 %v631
    %2380 = vmatpush1.msra.mxu0 %v630
    %2381 = vmatprep.subr.mxu0 %v625
    %2382 = vmatpush1.msra.mxu0 %v624
    %2383 = vmatprep.subr.mxu0 %v619
    %2384 = vmatpush1.msra.mxu0 %v618
    %2385 = vmatprep.subr.mxu0 %v613
    %2386 = vmatpush1.msra.mxu0 %v612
    %2387 = vmatprep.subr.mxu0 %v607
    %2388 = vmatpush1.msra.mxu0 %v606
    %2389 = vmatprep.subr.mxu0 %v601
    %2390 = vmatpush1.msra.mxu0 %v600
    %2391 = vmatprep.subr.mxu0 %v595
    %2392 = vmatpush1.msra.mxu0 %v594
    %2393 = vmatprep.subr.mxu0 %v589
    %2394 = vmatpush1.msra.mxu0 %v588
    %2395 = vmatprep.subr.mxu0 %v583
    %2396 = vmatpush1.msra.mxu0 %v582
    %2397 = vmatprep.subr.mxu0 %v577
    %2398 = vmatpush1.msra.mxu0 %v576
    %2399 = vmatprep.subr.mxu0 %v571
    %2400 = vmatpush1.msra.mxu0 %v570
    %2401 = vmatprep.subr.mxu0 %v757
    %2402 = vmatpush2.msra.mxu0 %v756
    %2403 = vmatprep.subr.mxu0 %v751
    %2404 = vmatpush2.msra.mxu0 %v750
    %2405 = vmatprep.subr.mxu0 %v745
    %2406 = vmatpush2.msra.mxu0 %v744
    %2407 = vmatprep.subr.mxu0 %v739
    %2408 = vmatpush2.msra.mxu0 %v738
    %2409 = vmatprep.subr.mxu0 %v733
    %2410 = vmatpush2.msra.mxu0 %v732
    %2411 = vmatprep.subr.mxu0 %v727
    %2412 = vmatpush2.msra.mxu0 %v726
    %2413 = vmatprep.subr.mxu0 %v721
    %2414 = vmatpush2.msra.mxu0 %v720
    %2415 = vmatprep.subr.mxu0 %v715
    %2416 = vmatpush2.msra.mxu0 %v714
    %2417 = vmatprep.subr.mxu0 %v709
    %2418 = vmatpush2.msra.mxu0 %v708
    %2419 = vmatprep.subr.mxu0 %v703
    %2420 = vmatpush2.msra.mxu0 %v702
    %2421 = vmatprep.subr.mxu0 %v697
    %2422 = vmatpush2.msra.mxu0 %v696
    %2423 = vmatprep.subr.mxu0 %v691
    %2424 = vmatpush2.msra.mxu0 %v690
    %2425 = vmatprep.subr.mxu0 %v685
    %2426 = vmatpush2.msra.mxu0 %v684
    %2427 = vmatprep.subr.mxu0 %v679
    %2428 = vmatpush2.msra.mxu0 %v678
    %2429 = vmatprep.subr.mxu0 %v673
    %2430 = vmatpush2.msra.mxu0 %v672
    %2431 = vmatprep.subr.mxu0 %v667
    %2432 = vmatpush2.msra.mxu0 %v666
    %2433 = vmatprep.mubr.f32.mxu0 %v2358
    %2434 = vmatmul.mubr.f32.gmra.mxu0 %v2357
    %v2435 = vpop.f32.mrf.mxu0
    %v2436 = vadd.f32 0.0, %v2435
    %v2437 = vpop.f32.mrf.mxu0
    %v2438 = vadd.f32 0.0, %v2437
    %2439 = vdwg.mxu0
    %2440 = vmatprep.subr.mxu0 %v663
    %2441 = vmatpush1.msra.mxu0 %v662
    %2442 = vmatprep.subr.mxu0 %v657
    %2443 = vmatpush1.msra.mxu0 %v656
    %2444 = vmatprep.subr.mxu0 %v651
    %2445 = vmatpush1.msra.mxu0 %v650
    %2446 = vmatprep.subr.mxu0 %v645
    %2447 = vmatpush1.msra.mxu0 %v644
    %2448 = vmatprep.subr.mxu0 %v639
    %2449 = vmatpush1.msra.mxu0 %v638
    %2450 = vmatprep.subr.mxu0 %v633
    %2451 = vmatpush1.msra.mxu0 %v632
    %2452 = vmatprep.subr.mxu0 %v627
    %2453 = vmatpush1.msra.mxu0 %v626
    %2454 = vmatprep.subr.mxu0 %v621
    %2455 = vmatpush1.msra.mxu0 %v620
    %2456 = vmatprep.subr.mxu0 %v615
    %2457 = vmatpush1.msra.mxu0 %v614
    %2458 = vmatprep.subr.mxu0 %v609
    %2459 = vmatpush1.msra.mxu0 %v608
    %2460 = vmatprep.subr.mxu0 %v603
    %2461 = vmatpush1.msra.mxu0 %v602
    %2462 = vmatprep.subr.mxu0 %v597
    %2463 = vmatpush1.msra.mxu0 %v596
    %2464 = vmatprep.subr.mxu0 %v591
    %2465 = vmatpush1.msra.mxu0 %v590
    %2466 = vmatprep.subr.mxu0 %v585
    %2467 = vmatpush1.msra.mxu0 %v584
    %2468 = vmatprep.subr.mxu0 %v579
    %2469 = vmatpush1.msra.mxu0 %v578
    %2470 = vmatprep.subr.mxu0 %v573
    %2471 = vmatpush1.msra.mxu0 %v572
    %2472 = vmatprep.subr.mxu0 %v759
    %2473 = vmatpush2.msra.mxu0 %v758
    %2474 = vmatprep.subr.mxu0 %v753
    %2475 = vmatpush2.msra.mxu0 %v752
    %2476 = vmatprep.subr.mxu0 %v747
    %2477 = vmatpush2.msra.mxu0 %v746
    %2478 = vmatprep.subr.mxu0 %v741
    %2479 = vmatpush2.msra.mxu0 %v740
    %2480 = vmatprep.subr.mxu0 %v735
    %2481 = vmatpush2.msra.mxu0 %v734
    %2482 = vmatprep.subr.mxu0 %v729
    %2483 = vmatpush2.msra.mxu0 %v728
    %2484 = vmatprep.subr.mxu0 %v723
    %2485 = vmatpush2.msra.mxu0 %v722
    %2486 = vmatprep.subr.mxu0 %v717
    %2487 = vmatpush2.msra.mxu0 %v716
    %2488 = vmatprep.subr.mxu0 %v711
    %2489 = vmatpush2.msra.mxu0 %v710
    %2490 = vmatprep.subr.mxu0 %v705
    %2491 = vmatpush2.msra.mxu0 %v704
    %2492 = vmatprep.subr.mxu0 %v699
    %2493 = vmatpush2.msra.mxu0 %v698
    %2494 = vmatprep.subr.mxu0 %v693
    %2495 = vmatpush2.msra.mxu0 %v692
    %2496 = vmatprep.subr.mxu0 %v687
    %2497 = vmatpush2.msra.mxu0 %v686
    %2498 = vmatprep.subr.mxu0 %v681
    %2499 = vmatpush2.msra.mxu0 %v680
    %2500 = vmatprep.subr.mxu0 %v675
    %2501 = vmatpush2.msra.mxu0 %v674
    %2502 = vmatprep.subr.mxu0 %v669
    %2503 = vmatpush2.msra.mxu0 %v668
    %2504 = vmatprep.mubr.f32.mxu0 %v2358
    %2505 = vmatmul.mubr.f32.gmra.mxu0 %v2357
    %v2506 = vpop.f32.mrf.mxu0
    %v2507 = vadd.f32 0.0, %v2506
    %v2508 = vpop.f32.mrf.mxu0
    %v2509 = vadd.f32 0.0, %v2508
    %2510 = vdwg.mxu0
    %2511 = vmatprep.subr.mxu0 %v665
    %2512 = vmatpush1.msra.mxu0 %v664
    %2513 = vmatprep.subr.mxu0 %v659
    %2514 = vmatpush1.msra.mxu0 %v658
    %2515 = vmatprep.subr.mxu0 %v653
    %2516 = vmatpush1.msra.mxu0 %v652
    %2517 = vmatprep.subr.mxu0 %v647
    %2518 = vmatpush1.msra.mxu0 %v646
    %2519 = vmatprep.subr.mxu0 %v641
    %2520 = vmatpush1.msra.mxu0 %v640
    %2521 = vmatprep.subr.mxu0 %v635
    %2522 = vmatpush1.msra.mxu0 %v634
    %2523 = vmatprep.subr.mxu0 %v629
    %2524 = vmatpush1.msra.mxu0 %v628
    %2525 = vmatprep.subr.mxu0 %v623
    %2526 = vmatpush1.msra.mxu0 %v622
    %2527 = vmatprep.subr.mxu0 %v617
    %2528 = vmatpush1.msra.mxu0 %v616
    %2529 = vmatprep.subr.mxu0 %v611
    %2530 = vmatpush1.msra.mxu0 %v610
    %2531 = vmatprep.subr.mxu0 %v605
    %2532 = vmatpush1.msra.mxu0 %v604
    %2533 = vmatprep.subr.mxu0 %v599
    %2534 = vmatpush1.msra.mxu0 %v598
    %2535 = vmatprep.subr.mxu0 %v593
    %2536 = vmatpush1.msra.mxu0 %v592
    %2537 = vmatprep.subr.mxu0 %v587
    %2538 = vmatpush1.msra.mxu0 %v586
    %2539 = vmatprep.subr.mxu0 %v581
    %2540 = vmatpush1.msra.mxu0 %v580
    %2541 = vmatprep.subr.mxu0 %v575
    %2542 = vmatpush1.msra.mxu0 %v574
    %2543 = vmatprep.subr.mxu0 %v761
    %2544 = vmatpush2.msra.mxu0 %v760
    %2545 = vmatprep.subr.mxu0 %v755
    %2546 = vmatpush2.msra.mxu0 %v754
    %2547 = vmatprep.subr.mxu0 %v749
    %2548 = vmatpush2.msra.mxu0 %v748
    %2549 = vmatprep.subr.mxu0 %v743
    %2550 = vmatpush2.msra.mxu0 %v742
    %2551 = vmatprep.subr.mxu0 %v737
    %2552 = vmatpush2.msra.mxu0 %v736
    %2553 = vmatprep.subr.mxu0 %v731
    %2554 = vmatpush2.msra.mxu0 %v730
    %2555 = vmatprep.subr.mxu0 %v725
    %2556 = vmatpush2.msra.mxu0 %v724
    %2557 = vmatprep.subr.mxu0 %v719
    %2558 = vmatpush2.msra.mxu0 %v718
    %2559 = vmatprep.subr.mxu0 %v713
    %2560 = vmatpush2.msra.mxu0 %v712
    %2561 = vmatprep.subr.mxu0 %v707
    %2562 = vmatpush2.msra.mxu0 %v706
    %2563 = vmatprep.subr.mxu0 %v701
    %2564 = vmatpush2.msra.mxu0 %v700
    %2565 = vmatprep.subr.mxu0 %v695
    %2566 = vmatpush2.msra.mxu0 %v694
    %2567 = vmatprep.subr.mxu0 %v689
    %2568 = vmatpush2.msra.mxu0 %v688
    %2569 = vmatprep.subr.mxu0 %v683
    %2570 = vmatpush2.msra.mxu0 %v682
    %2571 = vmatprep.subr.mxu0 %v677
    %2572 = vmatpush2.msra.mxu0 %v676
    %2573 = vmatprep.subr.mxu0 %v671
    %2574 = vmatpush2.msra.mxu0 %v670
    %2575 = vmatprep.mubr.f32.mxu0 %v2358
    %2576 = vmatmul.mubr.f32.gmra.mxu0 %v2357
    %v2577 = vpop.f32.mrf.mxu0
    %v2578 = vadd.f32 0.0, %v2577
    %v2579 = vpop.f32.mrf.mxu0
    %v2580 = vadd.f32 0.0, %v2579
    %2581 = vdwg.mxu0
    %v2582 = vadd.f32 %v2363, %v2436
    %v2583 = vadd.f32 %v2364, %v2438
    %v2584 = vxor.u32 %v2582, 2147483648
    %v2585 = vxor.u32 %v2583, 2147483648
    %v2586 = vmul.f32 %v2584, 1.442695
    %v2587 = vpow.pop %v2586
    %v2588 = vmul.f32 %v2585, 1.442695
    %v2589 = vpow.pop %v2588
    %v2590 = vadd.f32 %v2587, 1.0
    %v2591 = vadd.f32 %v2589, 1.0
    %v2592 = vrcp.pop %v2590
    %v2593 = vmul.f32 1.0, %v2592
    %v2594 = vrcp.pop %v2591
    %v2595 = vmul.f32 1.0, %v2594
    %v2596 = vadd.f32 %v2365, %v2507
    %v2597 = vadd.f32 %v2366, %v2509
    %v2598 = vxor.u32 %v2596, 2147483648
    %v2599 = vxor.u32 %v2597, 2147483648
    %v2600 = vmul.f32 %v2598, 1.442695
    %v2601 = vpow.pop %v2600
    %v2602 = vmul.f32 %v2599, 1.442695
    %v2603 = vpow.pop %v2602
    %v2604 = vadd.f32 %v2601, 1.0
    %v2605 = vadd.f32 %v2603, 1.0
    %v2606 = vrcp.pop %v2604
    %v2607 = vmul.f32 1.0, %v2606
    %v2608 = vrcp.pop %v2605
    %v2609 = vmul.f32 1.0, %v2608
    %v2610 = vadd.f32 %v2578, %v563
    %v2611 = vadd.f32 %v2580, %v567
    %v2612 = vmul.f32 %v2593, %v2610
    %v2613 = vmul.f32 %v2595, %v2611
    %v2614 = vadd.f32 %v2367, %v2612
    %v2615 = vadd.f32 %v2368, %v2613
    %v2616 = vtanh.pop %v2614
    %v2617 = vtanh.pop %v2615
    %v2618 = vsub.f32 1.0, %v2607
    %v2619 = vsub.f32 1.0, %v2609
    %v2620 = vmul.f32 %v2618, %v2616
    %v2621 = vmul.f32 %v2619, %v2617
    %v2622 = vmul.f32 %v2607, %v2357
    %v2623 = vmul.f32 %v2609, %v2358
    %v2624 = vadd.f32 %v2620, %v2622
    %v2625 = vadd.f32 %v2621, %v2623
    %s2626 = scalar_lea.vmem [#allocation3], 96
    %2627 = vst [vmem:[%s2626] sm:$0xff] %v2624
    %2628 = vst [vmem:[%s2626 + $0x8] sm:$0xff] %v2625
    %s2629 = scalar_lea.vmem [#allocation2], 336
    %v2630 = vld [vmem:[%s2629] sm:$0xff]
    %v2631 = vld [vmem:[%s2629 + $0x8] sm:$0xff]
    %v2632 = vld [vmem:[%s2629 + $0x10] sm:$0xff]
    %v2633 = vld [vmem:[%s2629 + $0x18] sm:$0xff]
    %v2634 = vld [vmem:[%s2629 + $0x20] sm:$0xff]
    %v2635 = vld [vmem:[%s2629 + $0x28] sm:$0xff]
    %2636 = vmatprep.subr.mxu0 %v661
    %2637 = vmatpush1.msra.mxu0 %v660
    %2638 = vmatprep.subr.mxu0 %v655
    %2639 = vmatpush1.msra.mxu0 %v654
    %2640 = vmatprep.subr.mxu0 %v649
    %2641 = vmatpush1.msra.mxu0 %v648
    %2642 = vmatprep.subr.mxu0 %v643
    %2643 = vmatpush1.msra.mxu0 %v642
    %2644 = vmatprep.subr.mxu0 %v637
    %2645 = vmatpush1.msra.mxu0 %v636
    %2646 = vmatprep.subr.mxu0 %v631
    %2647 = vmatpush1.msra.mxu0 %v630
    %2648 = vmatprep.subr.mxu0 %v625
    %2649 = vmatpush1.msra.mxu0 %v624
    %2650 = vmatprep.subr.mxu0 %v619
    %2651 = vmatpush1.msra.mxu0 %v618
    %2652 = vmatprep.subr.mxu0 %v613
    %2653 = vmatpush1.msra.mxu0 %v612
    %2654 = vmatprep.subr.mxu0 %v607
    %2655 = vmatpush1.msra.mxu0 %v606
    %2656 = vmatprep.subr.mxu0 %v601
    %2657 = vmatpush1.msra.mxu0 %v600
    %2658 = vmatprep.subr.mxu0 %v595
    %2659 = vmatpush1.msra.mxu0 %v594
    %2660 = vmatprep.subr.mxu0 %v589
    %2661 = vmatpush1.msra.mxu0 %v588
    %2662 = vmatprep.subr.mxu0 %v583
    %2663 = vmatpush1.msra.mxu0 %v582
    %2664 = vmatprep.subr.mxu0 %v577
    %2665 = vmatpush1.msra.mxu0 %v576
    %2666 = vmatprep.subr.mxu0 %v571
    %2667 = vmatpush1.msra.mxu0 %v570
    %2668 = vmatprep.subr.mxu0 %v757
    %2669 = vmatpush2.msra.mxu0 %v756
    %2670 = vmatprep.subr.mxu0 %v751
    %2671 = vmatpush2.msra.mxu0 %v750
    %2672 = vmatprep.subr.mxu0 %v745
    %2673 = vmatpush2.msra.mxu0 %v744
    %2674 = vmatprep.subr.mxu0 %v739
    %2675 = vmatpush2.msra.mxu0 %v738
    %2676 = vmatprep.subr.mxu0 %v733
    %2677 = vmatpush2.msra.mxu0 %v732
    %2678 = vmatprep.subr.mxu0 %v727
    %2679 = vmatpush2.msra.mxu0 %v726
    %2680 = vmatprep.subr.mxu0 %v721
    %2681 = vmatpush2.msra.mxu0 %v720
    %2682 = vmatprep.subr.mxu0 %v715
    %2683 = vmatpush2.msra.mxu0 %v714
    %2684 = vmatprep.subr.mxu0 %v709
    %2685 = vmatpush2.msra.mxu0 %v708
    %2686 = vmatprep.subr.mxu0 %v703
    %2687 = vmatpush2.msra.mxu0 %v702
    %2688 = vmatprep.subr.mxu0 %v697
    %2689 = vmatpush2.msra.mxu0 %v696
    %2690 = vmatprep.subr.mxu0 %v691
    %2691 = vmatpush2.msra.mxu0 %v690
    %2692 = vmatprep.subr.mxu0 %v685
    %2693 = vmatpush2.msra.mxu0 %v684
    %2694 = vmatprep.subr.mxu0 %v679
    %2695 = vmatpush2.msra.mxu0 %v678
    %2696 = vmatprep.subr.mxu0 %v673
    %2697 = vmatpush2.msra.mxu0 %v672
    %2698 = vmatprep.subr.mxu0 %v667
    %2699 = vmatpush2.msra.mxu0 %v666
    %2700 = vmatprep.mubr.f32.mxu0 %v2625
    %2701 = vmatmul.mubr.f32.gmra.mxu0 %v2624
    %v2702 = vpop.f32.mrf.mxu0
    %v2703 = vadd.f32 0.0, %v2702
    %v2704 = vpop.f32.mrf.mxu0
    %v2705 = vadd.f32 0.0, %v2704
    %2706 = vdwg.mxu0
    %2707 = vmatprep.subr.mxu0 %v663
    %2708 = vmatpush1.msra.mxu0 %v662
    %2709 = vmatprep.subr.mxu0 %v657
    %2710 = vmatpush1.msra.mxu0 %v656
    %2711 = vmatprep.subr.mxu0 %v651
    %2712 = vmatpush1.msra.mxu0 %v650
    %2713 = vmatprep.subr.mxu0 %v645
    %2714 = vmatpush1.msra.mxu0 %v644
    %2715 = vmatprep.subr.mxu0 %v639
    %2716 = vmatpush1.msra.mxu0 %v638
    %2717 = vmatprep.subr.mxu0 %v633
    %2718 = vmatpush1.msra.mxu0 %v632
    %2719 = vmatprep.subr.mxu0 %v627
    %2720 = vmatpush1.msra.mxu0 %v626
    %2721 = vmatprep.subr.mxu0 %v621
    %2722 = vmatpush1.msra.mxu0 %v620
    %2723 = vmatprep.subr.mxu0 %v615
    %2724 = vmatpush1.msra.mxu0 %v614
    %2725 = vmatprep.subr.mxu0 %v609
    %2726 = vmatpush1.msra.mxu0 %v608
    %2727 = vmatprep.subr.mxu0 %v603
    %2728 = vmatpush1.msra.mxu0 %v602
    %2729 = vmatprep.subr.mxu0 %v597
    %2730 = vmatpush1.msra.mxu0 %v596
    %2731 = vmatprep.subr.mxu0 %v591
    %2732 = vmatpush1.msra.mxu0 %v590
    %2733 = vmatprep.subr.mxu0 %v585
    %2734 = vmatpush1.msra.mxu0 %v584
    %2735 = vmatprep.subr.mxu0 %v579
    %2736 = vmatpush1.msra.mxu0 %v578
    %2737 = vmatprep.subr.mxu0 %v573
    %2738 = vmatpush1.msra.mxu0 %v572
    %2739 = vmatprep.subr.mxu0 %v759
    %2740 = vmatpush2.msra.mxu0 %v758
    %2741 = vmatprep.subr.mxu0 %v753
    %2742 = vmatpush2.msra.mxu0 %v752
    %2743 = vmatprep.subr.mxu0 %v747
    %2744 = vmatpush2.msra.mxu0 %v746
    %2745 = vmatprep.subr.mxu0 %v741
    %2746 = vmatpush2.msra.mxu0 %v740
    %2747 = vmatprep.subr.mxu0 %v735
    %2748 = vmatpush2.msra.mxu0 %v734
    %2749 = vmatprep.subr.mxu0 %v729
    %2750 = vmatpush2.msra.mxu0 %v728
    %2751 = vmatprep.subr.mxu0 %v723
    %2752 = vmatpush2.msra.mxu0 %v722
    %2753 = vmatprep.subr.mxu0 %v717
    %2754 = vmatpush2.msra.mxu0 %v716
    %2755 = vmatprep.subr.mxu0 %v711
    %2756 = vmatpush2.msra.mxu0 %v710
    %2757 = vmatprep.subr.mxu0 %v705
    %2758 = vmatpush2.msra.mxu0 %v704
    %2759 = vmatprep.subr.mxu0 %v699
    %2760 = vmatpush2.msra.mxu0 %v698
    %2761 = vmatprep.subr.mxu0 %v693
    %2762 = vmatpush2.msra.mxu0 %v692
    %2763 = vmatprep.subr.mxu0 %v687
    %2764 = vmatpush2.msra.mxu0 %v686
    %2765 = vmatprep.subr.mxu0 %v681
    %2766 = vmatpush2.msra.mxu0 %v680
    %2767 = vmatprep.subr.mxu0 %v675
    %2768 = vmatpush2.msra.mxu0 %v674
    %2769 = vmatprep.subr.mxu0 %v669
    %2770 = vmatpush2.msra.mxu0 %v668
    %2771 = vmatprep.mubr.f32.mxu0 %v2625
    %2772 = vmatmul.mubr.f32.gmra.mxu0 %v2624
    %v2773 = vpop.f32.mrf.mxu0
    %v2774 = vadd.f32 0.0, %v2773
    %v2775 = vpop.f32.mrf.mxu0
    %v2776 = vadd.f32 0.0, %v2775
    %2777 = vdwg.mxu0
    %2778 = vmatprep.subr.mxu0 %v665
    %2779 = vmatpush1.msra.mxu0 %v664
    %2780 = vmatprep.subr.mxu0 %v659
    %2781 = vmatpush1.msra.mxu0 %v658
    %2782 = vmatprep.subr.mxu0 %v653
    %2783 = vmatpush1.msra.mxu0 %v652
    %2784 = vmatprep.subr.mxu0 %v647
    %2785 = vmatpush1.msra.mxu0 %v646
    %2786 = vmatprep.subr.mxu0 %v641
    %2787 = vmatpush1.msra.mxu0 %v640
    %2788 = vmatprep.subr.mxu0 %v635
    %2789 = vmatpush1.msra.mxu0 %v634
    %2790 = vmatprep.subr.mxu0 %v629
    %2791 = vmatpush1.msra.mxu0 %v628
    %2792 = vmatprep.subr.mxu0 %v623
    %2793 = vmatpush1.msra.mxu0 %v622
    %2794 = vmatprep.subr.mxu0 %v617
    %2795 = vmatpush1.msra.mxu0 %v616
    %2796 = vmatprep.subr.mxu0 %v611
    %2797 = vmatpush1.msra.mxu0 %v610
    %2798 = vmatprep.subr.mxu0 %v605
    %2799 = vmatpush1.msra.mxu0 %v604
    %2800 = vmatprep.subr.mxu0 %v599
    %2801 = vmatpush1.msra.mxu0 %v598
    %2802 = vmatprep.subr.mxu0 %v593
    %2803 = vmatpush1.msra.mxu0 %v592
    %2804 = vmatprep.subr.mxu0 %v587
    %2805 = vmatpush1.msra.mxu0 %v586
    %2806 = vmatprep.subr.mxu0 %v581
    %2807 = vmatpush1.msra.mxu0 %v580
    %2808 = vmatprep.subr.mxu0 %v575
    %2809 = vmatpush1.msra.mxu0 %v574
    %2810 = vmatprep.subr.mxu0 %v761
    %2811 = vmatpush2.msra.mxu0 %v760
    %2812 = vmatprep.subr.mxu0 %v755
    %2813 = vmatpush2.msra.mxu0 %v754
    %2814 = vmatprep.subr.mxu0 %v749
    %2815 = vmatpush2.msra.mxu0 %v748
    %2816 = vmatprep.subr.mxu0 %v743
    %2817 = vmatpush2.msra.mxu0 %v742
    %2818 = vmatprep.subr.mxu0 %v737
    %2819 = vmatpush2.msra.mxu0 %v736
    %2820 = vmatprep.subr.mxu0 %v731
    %2821 = vmatpush2.msra.mxu0 %v730
    %2822 = vmatprep.subr.mxu0 %v725
    %2823 = vmatpush2.msra.mxu0 %v724
    %2824 = vmatprep.subr.mxu0 %v719
    %2825 = vmatpush2.msra.mxu0 %v718
    %2826 = vmatprep.subr.mxu0 %v713
    %2827 = vmatpush2.msra.mxu0 %v712
    %2828 = vmatprep.subr.mxu0 %v707
    %2829 = vmatpush2.msra.mxu0 %v706
    %2830 = vmatprep.subr.mxu0 %v701
    %2831 = vmatpush2.msra.mxu0 %v700
    %2832 = vmatprep.subr.mxu0 %v695
    %2833 = vmatpush2.msra.mxu0 %v694
    %2834 = vmatprep.subr.mxu0 %v689
    %2835 = vmatpush2.msra.mxu0 %v688
    %2836 = vmatprep.subr.mxu0 %v683
    %2837 = vmatpush2.msra.mxu0 %v682
    %2838 = vmatprep.subr.mxu0 %v677
    %2839 = vmatpush2.msra.mxu0 %v676
    %2840 = vmatprep.subr.mxu0 %v671
    %2841 = vmatpush2.msra.mxu0 %v670
    %2842 = vmatprep.mubr.f32.mxu0 %v2625
    %2843 = vmatmul.mubr.f32.gmra.mxu0 %v2624
    %v2844 = vpop.f32.mrf.mxu0
    %v2845 = vadd.f32 0.0, %v2844
    %v2846 = vpop.f32.mrf.mxu0
    %v2847 = vadd.f32 0.0, %v2846
    %2848 = vdwg.mxu0
    %v2849 = vadd.f32 %v2630, %v2703
    %v2850 = vadd.f32 %v2631, %v2705
    %v2851 = vxor.u32 %v2849, 2147483648
    %v2852 = vxor.u32 %v2850, 2147483648
    %v2853 = vmul.f32 %v2851, 1.442695
    %v2854 = vpow.pop %v2853
    %v2855 = vmul.f32 %v2852, 1.442695
    %v2856 = vpow.pop %v2855
    %v2857 = vadd.f32 %v2854, 1.0
    %v2858 = vadd.f32 %v2856, 1.0
    %v2859 = vrcp.pop %v2857
    %v2860 = vmul.f32 1.0, %v2859
    %v2861 = vrcp.pop %v2858
    %v2862 = vmul.f32 1.0, %v2861
    %v2863 = vadd.f32 %v2632, %v2774
    %v2864 = vadd.f32 %v2633, %v2776
    %v2865 = vxor.u32 %v2863, 2147483648
    %v2866 = vxor.u32 %v2864, 2147483648
    %v2867 = vmul.f32 %v2865, 1.442695
    %v2868 = vpow.pop %v2867
    %v2869 = vmul.f32 %v2866, 1.442695
    %v2870 = vpow.pop %v2869
    %v2871 = vadd.f32 %v2868, 1.0
    %v2872 = vadd.f32 %v2870, 1.0
    %v2873 = vrcp.pop %v2871
    %v2874 = vmul.f32 1.0, %v2873
    %v2875 = vrcp.pop %v2872
    %v2876 = vmul.f32 1.0, %v2875
    %v2877 = vadd.f32 %v2845, %v563
    %v2878 = vadd.f32 %v2847, %v567
    %v2879 = vmul.f32 %v2860, %v2877
    %v2880 = vmul.f32 %v2862, %v2878
    %v2881 = vadd.f32 %v2634, %v2879
    %v2882 = vadd.f32 %v2635, %v2880
    %v2883 = vtanh.pop %v2881
    %v2884 = vtanh.pop %v2882
    %v2885 = vsub.f32 1.0, %v2874
    %v2886 = vsub.f32 1.0, %v2876
    %v2887 = vmul.f32 %v2885, %v2883
    %v2888 = vmul.f32 %v2886, %v2884
    %v2889 = vmul.f32 %v2874, %v2624
    %v2890 = vmul.f32 %v2876, %v2625
    %v2891 = vadd.f32 %v2887, %v2889
    %v2892 = vadd.f32 %v2888, %v2890
    %s2893 = scalar_lea.vmem [#allocation3], 112
    %2894 = vst [vmem:[%s2893] sm:$0xff] %v2891
    %2895 = vst [vmem:[%s2893 + $0x8] sm:$0xff] %v2892
    %v2896 = vld [vmem:[#allocation3] sm:$0xff]
    %v2897 = vld [vmem:[#allocation3 + $0x8] sm:$0xff]
    %v2898 = vld [vmem:[#allocation3 + $0x10] sm:$0xff]
    %v2899 = vld [vmem:[#allocation3 + $0x18] sm:$0xff]
    %v2900 = vld [vmem:[#allocation3 + $0x20] sm:$0xff]
    %v2901 = vld [vmem:[#allocation3 + $0x28] sm:$0xff]
    %v2902 = vld [vmem:[#allocation3 + $0x30] sm:$0xff]
    %v2903 = vld [vmem:[#allocation3 + $0x38] sm:$0xff]
    %v2904 = vld [vmem:[#allocation3 + $0x40] sm:$0xff]
    %v2905 = vld [vmem:[#allocation3 + $0x48] sm:$0xff]
    %v2906 = vld [vmem:[#allocation3 + $0x50] sm:$0xff]
    %v2907 = vld [vmem:[#allocation3 + $0x58] sm:$0xff]
    %v2908 = vld [vmem:[#allocation3 + $0x60] sm:$0xff]
    %v2909 = vld [vmem:[#allocation3 + $0x68] sm:$0xff]
    %v2910 = vld [vmem:[#allocation3 + $0x70] sm:$0xff]
    %v2911 = vld [vmem:[#allocation3 + $0x78] sm:$0xff]
    %v2912 = vld [vmem:[#allocation7] sm:$0xff]
    %v2913 = vld [vmem:[#allocation7 + $0x8] sm:$0xff]
    %v2914 = vld [vmem:[#allocation7 + $0x10] sm:$0xff]
    %v2915 = vld [vmem:[#allocation7 + $0x18] sm:$0xff]
    %v2916 = vld [vmem:[#allocation7 + $0x20] sm:$0xff]
    %v2917 = vld [vmem:[#allocation7 + $0x28] sm:$0xff]
    %v2918 = vld [vmem:[#allocation7 + $0x30] sm:$0xff]
    %v2919 = vld [vmem:[#allocation7 + $0x38] sm:$0xff]
    %v2920 = vld [vmem:[#allocation7 + $0x40] sm:$0xff]
    %v2921 = vld [vmem:[#allocation7 + $0x48] sm:$0xff]
    %v2922 = vld [vmem:[#allocation7 + $0x50] sm:$0xff]
    %v2923 = vld [vmem:[#allocation7 + $0x58] sm:$0xff]
    %v2924 = vld [vmem:[#allocation7 + $0x60] sm:$0xff]
    %v2925 = vld [vmem:[#allocation7 + $0x68] sm:$0xff]
    %v2926 = vld [vmem:[#allocation7 + $0x70] sm:$0xff]
    %v2927 = vld [vmem:[#allocation7 + $0x78] sm:$0xff]
    %v2928 = vld [vmem:[#allocation7 + $0x80] sm:$0xff]
    %v2929 = vld [vmem:[#allocation7 + $0x88] sm:$0xff]
    %v2930 = vld [vmem:[#allocation7 + $0x90] sm:$0xff]
    %v2931 = vld [vmem:[#allocation7 + $0x98] sm:$0xff]
    %v2932 = vld [vmem:[#allocation7 + $0xa0] sm:$0xff]
    %v2933 = vld [vmem:[#allocation7 + $0xa8] sm:$0xff]
    %v2934 = vld [vmem:[#allocation7 + $0xb0] sm:$0xff]
    %v2935 = vld [vmem:[#allocation7 + $0xb8] sm:$0xff]
    %v2936 = vld [vmem:[#allocation7 + $0xc0] sm:$0xff]
    %v2937 = vld [vmem:[#allocation7 + $0xc8] sm:$0xff]
    %v2938 = vld [vmem:[#allocation7 + $0xd0] sm:$0xff]
    %v2939 = vld [vmem:[#allocation7 + $0xd8] sm:$0xff]
    %v2940 = vld [vmem:[#allocation7 + $0xe0] sm:$0xff]
    %v2941 = vld [vmem:[#allocation7 + $0xe8] sm:$0xff]
    %v2942 = vld [vmem:[#allocation7 + $0xf0] sm:$0xff]
    %v2943 = vld [vmem:[#allocation7 + $0xf8] sm:$0xff]
    %v2944 = vld [vmem:[#allocation7 + $0x100] sm:$0xff]
    %v2945 = vld [vmem:[#allocation7 + $0x108] sm:$0xff]
    %v2946 = vld [vmem:[#allocation7 + $0x110] sm:$0xff]
    %v2947 = vld [vmem:[#allocation7 + $0x118] sm:$0xff]
    %v2948 = vld [vmem:[#allocation7 + $0x120] sm:$0xff]
    %v2949 = vld [vmem:[#allocation7 + $0x128] sm:$0xff]
    %v2950 = vld [vmem:[#allocation7 + $0x130] sm:$0xff]
    %v2951 = vld [vmem:[#allocation7 + $0x138] sm:$0xff]
    %v2952 = vld [vmem:[#allocation7 + $0x140] sm:$0xff]
    %v2953 = vld [vmem:[#allocation7 + $0x148] sm:$0xff]
    %v2954 = vld [vmem:[#allocation7 + $0x150] sm:$0xff]
    %v2955 = vld [vmem:[#allocation7 + $0x158] sm:$0xff]
    %v2956 = vld [vmem:[#allocation7 + $0x160] sm:$0xff]
    %v2957 = vld [vmem:[#allocation7 + $0x168] sm:$0xff]
    %v2958 = vld [vmem:[#allocation7 + $0x170] sm:$0xff]
    %v2959 = vld [vmem:[#allocation7 + $0x178] sm:$0xff]
    %v2960 = vld [vmem:[#allocation7 + $0x180] sm:$0xff]
    %v2961 = vld [vmem:[#allocation7 + $0x188] sm:$0xff]
    %v2962 = vld [vmem:[#allocation7 + $0x190] sm:$0xff]
    %v2963 = vld [vmem:[#allocation7 + $0x198] sm:$0xff]
    %v2964 = vld [vmem:[#allocation7 + $0x1a0] sm:$0xff]
    %v2965 = vld [vmem:[#allocation7 + $0x1a8] sm:$0xff]
    %v2966 = vld [vmem:[#allocation7 + $0x1b0] sm:$0xff]
    %v2967 = vld [vmem:[#allocation7 + $0x1b8] sm:$0xff]
    %v2968 = vld [vmem:[#allocation7 + $0x1c0] sm:$0xff]
    %v2969 = vld [vmem:[#allocation7 + $0x1c8] sm:$0xff]
    %v2970 = vld [vmem:[#allocation7 + $0x1d0] sm:$0xff]
    %v2971 = vld [vmem:[#allocation7 + $0x1d8] sm:$0xff]
    %v2972 = vld [vmem:[#allocation7 + $0x1e0] sm:$0xff]
    %v2973 = vld [vmem:[#allocation7 + $0x1e8] sm:$0xff]
    %v2974 = vld [vmem:[#allocation7 + $0x1f0] sm:$0xff]
    %v2975 = vld [vmem:[#allocation7 + $0x1f8] sm:$0xff]
    %v2976 = vld [vmem:[#allocation7 + $0x200] sm:$0xff]
    %v2977 = vld [vmem:[#allocation7 + $0x208] sm:$0xff]
    %v2978 = vld [vmem:[#allocation7 + $0x210] sm:$0xff]
    %v2979 = vld [vmem:[#allocation7 + $0x218] sm:$0xff]
    %v2980 = vld [vmem:[#allocation7 + $0x220] sm:$0xff]
    %v2981 = vld [vmem:[#allocation7 + $0x228] sm:$0xff]
    %v2982 = vld [vmem:[#allocation7 + $0x230] sm:$0xff]
    %v2983 = vld [vmem:[#allocation7 + $0x238] sm:$0xff]
    %v2984 = vld [vmem:[#allocation7 + $0x240] sm:$0xff]
    %v2985 = vld [vmem:[#allocation7 + $0x248] sm:$0xff]
    %v2986 = vld [vmem:[#allocation7 + $0x250] sm:$0xff]
    %v2987 = vld [vmem:[#allocation7 + $0x258] sm:$0xff]
    %v2988 = vld [vmem:[#allocation7 + $0x260] sm:$0xff]
    %v2989 = vld [vmem:[#allocation7 + $0x268] sm:$0xff]
    %v2990 = vld [vmem:[#allocation7 + $0x270] sm:$0xff]
    %v2991 = vld [vmem:[#allocation7 + $0x278] sm:$0xff]
    %v2992 = vld [vmem:[#allocation7 + $0x280] sm:$0xff]
    %v2993 = vld [vmem:[#allocation7 + $0x288] sm:$0xff]
    %v2994 = vld [vmem:[#allocation7 + $0x290] sm:$0xff]
    %v2995 = vld [vmem:[#allocation7 + $0x298] sm:$0xff]
    %v2996 = vld [vmem:[#allocation7 + $0x2a0] sm:$0xff]
    %v2997 = vld [vmem:[#allocation7 + $0x2a8] sm:$0xff]
    %v2998 = vld [vmem:[#allocation7 + $0x2b0] sm:$0xff]
    %v2999 = vld [vmem:[#allocation7 + $0x2b8] sm:$0xff]
    %v3000 = vld [vmem:[#allocation7 + $0x2c0] sm:$0xff]
    %v3001 = vld [vmem:[#allocation7 + $0x2c8] sm:$0xff]
    %v3002 = vld [vmem:[#allocation7 + $0x2d0] sm:$0xff]
    %v3003 = vld [vmem:[#allocation7 + $0x2d8] sm:$0xff]
    %v3004 = vld [vmem:[#allocation7 + $0x2e0] sm:$0xff]
    %v3005 = vld [vmem:[#allocation7 + $0x2e8] sm:$0xff]
    %v3006 = vld [vmem:[#allocation7 + $0x2f0] sm:$0xff]
    %v3007 = vld [vmem:[#allocation7 + $0x2f8] sm:$0xff]
    %v3008 = vld [vmem:[#allocation7 + $0x300] sm:$0xff]
    %v3009 = vld [vmem:[#allocation7 + $0x308] sm:$0xff]
    %v3010 = vld [vmem:[#allocation7 + $0x310] sm:$0xff]
    %v3011 = vld [vmem:[#allocation7 + $0x318] sm:$0xff]
    %v3012 = vld [vmem:[#allocation7 + $0x320] sm:$0xff]
    %v3013 = vld [vmem:[#allocation7 + $0x328] sm:$0xff]
    %v3014 = vld [vmem:[#allocation7 + $0x330] sm:$0xff]
    %v3015 = vld [vmem:[#allocation7 + $0x338] sm:$0xff]
    %v3016 = vld [vmem:[#allocation7 + $0x340] sm:$0xff]
    %v3017 = vld [vmem:[#allocation7 + $0x348] sm:$0xff]
    %v3018 = vld [vmem:[#allocation7 + $0x350] sm:$0xff]
    %v3019 = vld [vmem:[#allocation7 + $0x358] sm:$0xff]
    %v3020 = vld [vmem:[#allocation7 + $0x360] sm:$0xff]
    %v3021 = vld [vmem:[#allocation7 + $0x368] sm:$0xff]
    %v3022 = vld [vmem:[#allocation7 + $0x370] sm:$0xff]
    %v3023 = vld [vmem:[#allocation7 + $0x378] sm:$0xff]
    %v3024 = vld [vmem:[#allocation7 + $0x380] sm:$0xff]
    %v3025 = vld [vmem:[#allocation7 + $0x388] sm:$0xff]
    %v3026 = vld [vmem:[#allocation7 + $0x390] sm:$0xff]
    %v3027 = vld [vmem:[#allocation7 + $0x398] sm:$0xff]
    %v3028 = vld [vmem:[#allocation7 + $0x3a0] sm:$0xff]
    %v3029 = vld [vmem:[#allocation7 + $0x3a8] sm:$0xff]
    %v3030 = vld [vmem:[#allocation7 + $0x3b0] sm:$0xff]
    %v3031 = vld [vmem:[#allocation7 + $0x3b8] sm:$0xff]
    %v3032 = vld [vmem:[#allocation7 + $0x3c0] sm:$0xff]
    %v3033 = vld [vmem:[#allocation7 + $0x3c8] sm:$0xff]
    %v3034 = vld [vmem:[#allocation7 + $0x3d0] sm:$0xff]
    %v3035 = vld [vmem:[#allocation7 + $0x3d8] sm:$0xff]
    %v3036 = vld [vmem:[#allocation7 + $0x3e0] sm:$0xff]
    %v3037 = vld [vmem:[#allocation7 + $0x3e8] sm:$0xff]
    %v3038 = vld [vmem:[#allocation7 + $0x3f0] sm:$0xff]
    %v3039 = vld [vmem:[#allocation7 + $0x3f8] sm:$0xff]
    %v3040 = vld [vmem:[#allocation7 + $0x400] sm:$0xff]
    %v3041 = vld [vmem:[#allocation7 + $0x408] sm:$0xff]
    %v3042 = vld [vmem:[#allocation7 + $0x410] sm:$0xff]
    %v3043 = vld [vmem:[#allocation7 + $0x418] sm:$0xff]
    %v3044 = vld [vmem:[#allocation7 + $0x420] sm:$0xff]
    %v3045 = vld [vmem:[#allocation7 + $0x428] sm:$0xff]
    %v3046 = vld [vmem:[#allocation7 + $0x430] sm:$0xff]
    %v3047 = vld [vmem:[#allocation7 + $0x438] sm:$0xff]
    %v3048 = vld [vmem:[#allocation7 + $0x440] sm:$0xff]
    %v3049 = vld [vmem:[#allocation7 + $0x448] sm:$0xff]
    %v3050 = vld [vmem:[#allocation7 + $0x450] sm:$0xff]
    %v3051 = vld [vmem:[#allocation7 + $0x458] sm:$0xff]
    %v3052 = vld [vmem:[#allocation7 + $0x460] sm:$0xff]
    %v3053 = vld [vmem:[#allocation7 + $0x468] sm:$0xff]
    %v3054 = vld [vmem:[#allocation7 + $0x470] sm:$0xff]
    %v3055 = vld [vmem:[#allocation7 + $0x478] sm:$0xff]
    %v3056 = vld [vmem:[#allocation7 + $0x480] sm:$0xff]
    %v3057 = vld [vmem:[#allocation7 + $0x488] sm:$0xff]
    %v3058 = vld [vmem:[#allocation7 + $0x490] sm:$0xff]
    %v3059 = vld [vmem:[#allocation7 + $0x498] sm:$0xff]
    %v3060 = vld [vmem:[#allocation7 + $0x4a0] sm:$0xff]
    %v3061 = vld [vmem:[#allocation7 + $0x4a8] sm:$0xff]
    %v3062 = vld [vmem:[#allocation7 + $0x4b0] sm:$0xff]
    %v3063 = vld [vmem:[#allocation7 + $0x4b8] sm:$0xff]
    %v3064 = vld [vmem:[#allocation7 + $0x4c0] sm:$0xff]
    %v3065 = vld [vmem:[#allocation7 + $0x4c8] sm:$0xff]
    %v3066 = vld [vmem:[#allocation7 + $0x4d0] sm:$0xff]
    %v3067 = vld [vmem:[#allocation7 + $0x4d8] sm:$0xff]
    %v3068 = vld [vmem:[#allocation7 + $0x4e0] sm:$0xff]
    %v3069 = vld [vmem:[#allocation7 + $0x4e8] sm:$0xff]
    %v3070 = vld [vmem:[#allocation7 + $0x4f0] sm:$0xff]
    %v3071 = vld [vmem:[#allocation7 + $0x4f8] sm:$0xff]
    %v3072 = vld [vmem:[#allocation7 + $0x500] sm:$0xff]
    %v3073 = vld [vmem:[#allocation7 + $0x508] sm:$0xff]
    %v3074 = vld [vmem:[#allocation7 + $0x510] sm:$0xff]
    %v3075 = vld [vmem:[#allocation7 + $0x518] sm:$0xff]
    %v3076 = vld [vmem:[#allocation7 + $0x520] sm:$0xff]
    %v3077 = vld [vmem:[#allocation7 + $0x528] sm:$0xff]
    %v3078 = vld [vmem:[#allocation7 + $0x530] sm:$0xff]
    %v3079 = vld [vmem:[#allocation7 + $0x538] sm:$0xff]
    %v3080 = vld [vmem:[#allocation7 + $0x540] sm:$0xff]
    %v3081 = vld [vmem:[#allocation7 + $0x548] sm:$0xff]
    %v3082 = vld [vmem:[#allocation7 + $0x550] sm:$0xff]
    %v3083 = vld [vmem:[#allocation7 + $0x558] sm:$0xff]
    %v3084 = vld [vmem:[#allocation7 + $0x560] sm:$0xff]
    %v3085 = vld [vmem:[#allocation7 + $0x568] sm:$0xff]
    %v3086 = vld [vmem:[#allocation7 + $0x570] sm:$0xff]
    %v3087 = vld [vmem:[#allocation7 + $0x578] sm:$0xff]
    %v3088 = vld [vmem:[#allocation7 + $0x580] sm:$0xff]
    %v3089 = vld [vmem:[#allocation7 + $0x588] sm:$0xff]
    %v3090 = vld [vmem:[#allocation7 + $0x590] sm:$0xff]
    %v3091 = vld [vmem:[#allocation7 + $0x598] sm:$0xff]
    %v3092 = vld [vmem:[#allocation7 + $0x5a0] sm:$0xff]
    %v3093 = vld [vmem:[#allocation7 + $0x5a8] sm:$0xff]
    %v3094 = vld [vmem:[#allocation7 + $0x5b0] sm:$0xff]
    %v3095 = vld [vmem:[#allocation7 + $0x5b8] sm:$0xff]
    %v3096 = vld [vmem:[#allocation7 + $0x5c0] sm:$0xff]
    %v3097 = vld [vmem:[#allocation7 + $0x5c8] sm:$0xff]
    %v3098 = vld [vmem:[#allocation7 + $0x5d0] sm:$0xff]
    %v3099 = vld [vmem:[#allocation7 + $0x5d8] sm:$0xff]
    %v3100 = vld [vmem:[#allocation7 + $0x5e0] sm:$0xff]
    %v3101 = vld [vmem:[#allocation7 + $0x5e8] sm:$0xff]
    %v3102 = vld [vmem:[#allocation7 + $0x5f0] sm:$0xff]
    %v3103 = vld [vmem:[#allocation7 + $0x5f8] sm:$0xff]
    %v3104 = vld [vmem:[%s7] sm:$0x3f]
    %v3106 = vlaneseq
    %v3107 = vshrl.u32 %v3106, 7
    %v3108 = vsub.s32 0, %v3107
    %v3109 = vrot.slane %v3104, %v3108
    %v3110 = vlaneseq
    %v3111 = vshrl.u32 %v3110, 7
    %v3112 = vsub.s32 1, %v3111
    %v3113 = vrot.slane %v3104, %v3112
    %v3114 = vlaneseq
    %v3115 = vshrl.u32 %v3114, 7
    %v3116 = vsub.s32 2, %v3115
    %v3117 = vrot.slane %v3104, %v3116
    %v3118 = vlaneseq
    %v3119 = vshrl.u32 %v3118, 7
    %v3120 = vsub.s32 3, %v3119
    %v3121 = vrot.slane %v3104, %v3120
    %v3122 = vlaneseq
    %v3123 = vshrl.u32 %v3122, 7
    %v3124 = vsub.s32 4, %v3123
    %v3125 = vrot.slane %v3104, %v3124
    %v3126 = vlaneseq
    %v3127 = vshrl.u32 %v3126, 7
    %v3128 = vsub.s32 5, %v3127
    %v3129 = vrot.slane %v3104, %v3128
    %3136 = vmatprep.subr.mxu0 %v3003
    %3137 = vmatpush1.msra.mxu0 %v3002
    %3138 = vmatprep.subr.mxu0 %v2997
    %3139 = vmatpush1.msra.mxu0 %v2996
    %3140 = vmatprep.subr.mxu0 %v2991
    %3141 = vmatpush1.msra.mxu0 %v2990
    %3142 = vmatprep.subr.mxu0 %v2985
    %3143 = vmatpush1.msra.mxu0 %v2984
    %3144 = vmatprep.subr.mxu0 %v2979
    %3145 = vmatpush1.msra.mxu0 %v2978
    %3146 = vmatprep.subr.mxu0 %v2973
    %3147 = vmatpush1.msra.mxu0 %v2972
    %3148 = vmatprep.subr.mxu0 %v2967
    %3149 = vmatpush1.msra.mxu0 %v2966
    %3150 = vmatprep.subr.mxu0 %v2961
    %3151 = vmatpush1.msra.mxu0 %v2960
    %3152 = vmatprep.subr.mxu0 %v2955
    %3153 = vmatpush1.msra.mxu0 %v2954
    %3154 = vmatprep.subr.mxu0 %v2949
    %3155 = vmatpush1.msra.mxu0 %v2948
    %3156 = vmatprep.subr.mxu0 %v2943
    %3157 = vmatpush1.msra.mxu0 %v2942
    %3158 = vmatprep.subr.mxu0 %v2937
    %3159 = vmatpush1.msra.mxu0 %v2936
    %3160 = vmatprep.subr.mxu0 %v2931
    %3161 = vmatpush1.msra.mxu0 %v2930
    %3162 = vmatprep.subr.mxu0 %v2925
    %3163 = vmatpush1.msra.mxu0 %v2924
    %3164 = vmatprep.subr.mxu0 %v2919
    %3165 = vmatpush1.msra.mxu0 %v2918
    %3166 = vmatprep.subr.mxu0 %v2913
    %3167 = vmatpush1.msra.mxu0 %v2912
    %3168 = vmatprep.subr.mxu0 %v3099
    %3169 = vmatpush2.msra.mxu0 %v3098
    %3170 = vmatprep.subr.mxu0 %v3093
    %3171 = vmatpush2.msra.mxu0 %v3092
    %3172 = vmatprep.subr.mxu0 %v3087
    %3173 = vmatpush2.msra.mxu0 %v3086
    %3174 = vmatprep.subr.mxu0 %v3081
    %3175 = vmatpush2.msra.mxu0 %v3080
    %3176 = vmatprep.subr.mxu0 %v3075
    %3177 = vmatpush2.msra.mxu0 %v3074
    %3178 = vmatprep.subr.mxu0 %v3069
    %3179 = vmatpush2.msra.mxu0 %v3068
    %3180 = vmatprep.subr.mxu0 %v3063
    %3181 = vmatpush2.msra.mxu0 %v3062
    %3182 = vmatprep.subr.mxu0 %v3057
    %3183 = vmatpush2.msra.mxu0 %v3056
    %3184 = vmatprep.subr.mxu0 %v3051
    %3185 = vmatpush2.msra.mxu0 %v3050
    %3186 = vmatprep.subr.mxu0 %v3045
    %3187 = vmatpush2.msra.mxu0 %v3044
    %3188 = vmatprep.subr.mxu0 %v3039
    %3189 = vmatpush2.msra.mxu0 %v3038
    %3190 = vmatprep.subr.mxu0 %v3033
    %3191 = vmatpush2.msra.mxu0 %v3032
    %3192 = vmatprep.subr.mxu0 %v3027
    %3193 = vmatpush2.msra.mxu0 %v3026
    %3194 = vmatprep.subr.mxu0 %v3021
    %3195 = vmatpush2.msra.mxu0 %v3020
    %3196 = vmatprep.subr.mxu0 %v3015
    %3197 = vmatpush2.msra.mxu0 %v3014
    %3198 = vmatprep.subr.mxu0 %v3009
    %3199 = vmatpush2.msra.mxu0 %v3008
    %3200 = vmatprep.mubr.f32.mxu0 %v2897
    %3201 = vmatmul.mubr.f32.gmra.mxu0 %v2896
    %v3202 = vpop.f32.mrf.mxu0
    %v3203 = vadd.f32 %v3109, %v3202
    %v3204 = vpop.f32.mrf.mxu0
    %v3205 = vadd.f32 %v3113, %v3204
    %3206 = vmatprep.mubr.f32.mxu0 %v2899
    %3207 = vmatmul.mubr.f32.gmra.mxu0 %v2898
    %v3208 = vpop.f32.mrf.mxu0
    %v3209 = vadd.f32 %v3109, %v3208
    %v3210 = vpop.f32.mrf.mxu0
    %v3211 = vadd.f32 %v3113, %v3210
    %3212 = vmatprep.mubr.f32.mxu0 %v2901
    %3213 = vmatmul.mubr.f32.gmra.mxu0 %v2900
    %v3214 = vpop.f32.mrf.mxu0
    %v3215 = vadd.f32 %v3109, %v3214
    %v3216 = vpop.f32.mrf.mxu0
    %v3217 = vadd.f32 %v3113, %v3216
    %3218 = vmatprep.mubr.f32.mxu0 %v2903
    %3219 = vmatmul.mubr.f32.gmra.mxu0 %v2902
    %v3220 = vpop.f32.mrf.mxu0
    %v3221 = vadd.f32 %v3109, %v3220
    %v3222 = vpop.f32.mrf.mxu0
    %v3223 = vadd.f32 %v3113, %v3222
    %3224 = vmatprep.mubr.f32.mxu0 %v2905
    %3225 = vmatmul.mubr.f32.gmra.mxu0 %v2904
    %v3226 = vpop.f32.mrf.mxu0
    %v3227 = vadd.f32 %v3109, %v3226
    %v3228 = vpop.f32.mrf.mxu0
    %v3229 = vadd.f32 %v3113, %v3228
    %3230 = vmatprep.mubr.f32.mxu0 %v2907
    %3231 = vmatmul.mubr.f32.gmra.mxu0 %v2906
    %v3232 = vpop.f32.mrf.mxu0
    %v3233 = vadd.f32 %v3109, %v3232
    %v3234 = vpop.f32.mrf.mxu0
    %v3235 = vadd.f32 %v3113, %v3234
    %3236 = vmatprep.mubr.f32.mxu0 %v2909
    %3237 = vmatmul.mubr.f32.gmra.mxu0 %v2908
    %v3238 = vpop.f32.mrf.mxu0
    %v3239 = vadd.f32 %v3109, %v3238
    %v3240 = vpop.f32.mrf.mxu0
    %v3241 = vadd.f32 %v3113, %v3240
    %3242 = vmatprep.mubr.f32.mxu0 %v2911
    %3243 = vmatmul.mubr.f32.gmra.mxu0 %v2910
    %v3244 = vpop.f32.mrf.mxu0
    %v3245 = vadd.f32 %v3109, %v3244
    %v3246 = vpop.f32.mrf.mxu0
    %v3247 = vadd.f32 %v3113, %v3246
    %3248 = vdwg.mxu0
    %3249 = vmatprep.subr.mxu0 %v3005
    %3250 = vmatpush1.msra.mxu0 %v3004
    %3251 = vmatprep.subr.mxu0 %v2999
    %3252 = vmatpush1.msra.mxu0 %v2998
    %3253 = vmatprep.subr.mxu0 %v2993
    %3254 = vmatpush1.msra.mxu0 %v2992
    %3255 = vmatprep.subr.mxu0 %v2987
    %3256 = vmatpush1.msra.mxu0 %v2986
    %3257 = vmatprep.subr.mxu0 %v2981
    %3258 = vmatpush1.msra.mxu0 %v2980
    %3259 = vmatprep.subr.mxu0 %v2975
    %3260 = vmatpush1.msra.mxu0 %v2974
    %3261 = vmatprep.subr.mxu0 %v2969
    %3262 = vmatpush1.msra.mxu0 %v2968
    %3263 = vmatprep.subr.mxu0 %v2963
    %3264 = vmatpush1.msra.mxu0 %v2962
    %3265 = vmatprep.subr.mxu0 %v2957
    %3266 = vmatpush1.msra.mxu0 %v2956
    %3267 = vmatprep.subr.mxu0 %v2951
    %3268 = vmatpush1.msra.mxu0 %v2950
    %3269 = vmatprep.subr.mxu0 %v2945
    %3270 = vmatpush1.msra.mxu0 %v2944
    %3271 = vmatprep.subr.mxu0 %v2939
    %3272 = vmatpush1.msra.mxu0 %v2938
    %3273 = vmatprep.subr.mxu0 %v2933
    %3274 = vmatpush1.msra.mxu0 %v2932
    %3275 = vmatprep.subr.mxu0 %v2927
    %3276 = vmatpush1.msra.mxu0 %v2926
    %3277 = vmatprep.subr.mxu0 %v2921
    %3278 = vmatpush1.msra.mxu0 %v2920
    %3279 = vmatprep.subr.mxu0 %v2915
    %3280 = vmatpush1.msra.mxu0 %v2914
    %3281 = vmatprep.subr.mxu0 %v3101
    %3282 = vmatpush2.msra.mxu0 %v3100
    %3283 = vmatprep.subr.mxu0 %v3095
    %3284 = vmatpush2.msra.mxu0 %v3094
    %3285 = vmatprep.subr.mxu0 %v3089
    %3286 = vmatpush2.msra.mxu0 %v3088
    %3287 = vmatprep.subr.mxu0 %v3083
    %3288 = vmatpush2.msra.mxu0 %v3082
    %3289 = vmatprep.subr.mxu0 %v3077
    %3290 = vmatpush2.msra.mxu0 %v3076
    %3291 = vmatprep.subr.mxu0 %v3071
    %3292 = vmatpush2.msra.mxu0 %v3070
    %3293 = vmatprep.subr.mxu0 %v3065
    %3294 = vmatpush2.msra.mxu0 %v3064
    %3295 = vmatprep.subr.mxu0 %v3059
    %3296 = vmatpush2.msra.mxu0 %v3058
    %3297 = vmatprep.subr.mxu0 %v3053
    %3298 = vmatpush2.msra.mxu0 %v3052
    %3299 = vmatprep.subr.mxu0 %v3047
    %3300 = vmatpush2.msra.mxu0 %v3046
    %3301 = vmatprep.subr.mxu0 %v3041
    %3302 = vmatpush2.msra.mxu0 %v3040
    %3303 = vmatprep.subr.mxu0 %v3035
    %3304 = vmatpush2.msra.mxu0 %v3034
    %3305 = vmatprep.subr.mxu0 %v3029
    %3306 = vmatpush2.msra.mxu0 %v3028
    %3307 = vmatprep.subr.mxu0 %v3023
    %3308 = vmatpush2.msra.mxu0 %v3022
    %3309 = vmatprep.subr.mxu0 %v3017
    %3310 = vmatpush2.msra.mxu0 %v3016
    %3311 = vmatprep.subr.mxu0 %v3011
    %3312 = vmatpush2.msra.mxu0 %v3010
    %3313 = vmatprep.mubr.f32.mxu0 %v2897
    %3314 = vmatmul.mubr.f32.gmra.mxu0 %v2896
    %v3315 = vpop.f32.mrf.mxu0
    %v3316 = vadd.f32 %v3117, %v3315
    %v3317 = vpop.f32.mrf.mxu0
    %v3318 = vadd.f32 %v3121, %v3317
    %3319 = vmatprep.mubr.f32.mxu0 %v2899
    %3320 = vmatmul.mubr.f32.gmra.mxu0 %v2898
    %v3321 = vpop.f32.mrf.mxu0
    %v3322 = vadd.f32 %v3117, %v3321
    %v3323 = vpop.f32.mrf.mxu0
    %v3324 = vadd.f32 %v3121, %v3323
    %3325 = vmatprep.mubr.f32.mxu0 %v2901
    %3326 = vmatmul.mubr.f32.gmra.mxu0 %v2900
    %v3327 = vpop.f32.mrf.mxu0
    %v3328 = vadd.f32 %v3117, %v3327
    %v3329 = vpop.f32.mrf.mxu0
    %v3330 = vadd.f32 %v3121, %v3329
    %3331 = vmatprep.mubr.f32.mxu0 %v2903
    %3332 = vmatmul.mubr.f32.gmra.mxu0 %v2902
    %v3333 = vpop.f32.mrf.mxu0
    %v3334 = vadd.f32 %v3117, %v3333
    %v3335 = vpop.f32.mrf.mxu0
    %v3336 = vadd.f32 %v3121, %v3335
    %3337 = vmatprep.mubr.f32.mxu0 %v2905
    %3338 = vmatmul.mubr.f32.gmra.mxu0 %v2904
    %v3339 = vpop.f32.mrf.mxu0
    %v3340 = vadd.f32 %v3117, %v3339
    %v3341 = vpop.f32.mrf.mxu0
    %v3342 = vadd.f32 %v3121, %v3341
    %3343 = vmatprep.mubr.f32.mxu0 %v2907
    %3344 = vmatmul.mubr.f32.gmra.mxu0 %v2906
    %v3345 = vpop.f32.mrf.mxu0
    %v3346 = vadd.f32 %v3117, %v3345
    %v3347 = vpop.f32.mrf.mxu0
    %v3348 = vadd.f32 %v3121, %v3347
    %3349 = vmatprep.mubr.f32.mxu0 %v2909
    %3350 = vmatmul.mubr.f32.gmra.mxu0 %v2908
    %v3351 = vpop.f32.mrf.mxu0
    %v3352 = vadd.f32 %v3117, %v3351
    %v3353 = vpop.f32.mrf.mxu0
    %v3354 = vadd.f32 %v3121, %v3353
    %3355 = vmatprep.mubr.f32.mxu0 %v2911
    %3356 = vmatmul.mubr.f32.gmra.mxu0 %v2910
    %v3357 = vpop.f32.mrf.mxu0
    %v3358 = vadd.f32 %v3117, %v3357
    %v3359 = vpop.f32.mrf.mxu0
    %v3360 = vadd.f32 %v3121, %v3359
    %3361 = vdwg.mxu0
    %3362 = vmatprep.subr.mxu0 %v3007
    %3363 = vmatpush1.msra.mxu0 %v3006
    %3364 = vmatprep.subr.mxu0 %v3001
    %3365 = vmatpush1.msra.mxu0 %v3000
    %3366 = vmatprep.subr.mxu0 %v2995
    %3367 = vmatpush1.msra.mxu0 %v2994
    %3368 = vmatprep.subr.mxu0 %v2989
    %3369 = vmatpush1.msra.mxu0 %v2988
    %3370 = vmatprep.subr.mxu0 %v2983
    %3371 = vmatpush1.msra.mxu0 %v2982
    %3372 = vmatprep.subr.mxu0 %v2977
    %3373 = vmatpush1.msra.mxu0 %v2976
    %3374 = vmatprep.subr.mxu0 %v2971
    %3375 = vmatpush1.msra.mxu0 %v2970
    %3376 = vmatprep.subr.mxu0 %v2965
    %3377 = vmatpush1.msra.mxu0 %v2964
    %3378 = vmatprep.subr.mxu0 %v2959
    %3379 = vmatpush1.msra.mxu0 %v2958
    %3380 = vmatprep.subr.mxu0 %v2953
    %3381 = vmatpush1.msra.mxu0 %v2952
    %3382 = vmatprep.subr.mxu0 %v2947
    %3383 = vmatpush1.msra.mxu0 %v2946
    %3384 = vmatprep.subr.mxu0 %v2941
    %3385 = vmatpush1.msra.mxu0 %v2940
    %3386 = vmatprep.subr.mxu0 %v2935
    %3387 = vmatpush1.msra.mxu0 %v2934
    %3388 = vmatprep.subr.mxu0 %v2929
    %3389 = vmatpush1.msra.mxu0 %v2928
    %3390 = vmatprep.subr.mxu0 %v2923
    %3391 = vmatpush1.msra.mxu0 %v2922
    %3392 = vmatprep.subr.mxu0 %v2917
    %3393 = vmatpush1.msra.mxu0 %v2916
    %3394 = vmatprep.subr.mxu0 %v3103
    %3395 = vmatpush2.msra.mxu0 %v3102
    %3396 = vmatprep.subr.mxu0 %v3097
    %3397 = vmatpush2.msra.mxu0 %v3096
    %3398 = vmatprep.subr.mxu0 %v3091
    %3399 = vmatpush2.msra.mxu0 %v3090
    %3400 = vmatprep.subr.mxu0 %v3085
    %3401 = vmatpush2.msra.mxu0 %v3084
    %3402 = vmatprep.subr.mxu0 %v3079
    %3403 = vmatpush2.msra.mxu0 %v3078
    %3404 = vmatprep.subr.mxu0 %v3073
    %3405 = vmatpush2.msra.mxu0 %v3072
    %3406 = vmatprep.subr.mxu0 %v3067
    %3407 = vmatpush2.msra.mxu0 %v3066
    %3408 = vmatprep.subr.mxu0 %v3061
    %3409 = vmatpush2.msra.mxu0 %v3060
    %3410 = vmatprep.subr.mxu0 %v3055
    %3411 = vmatpush2.msra.mxu0 %v3054
    %3412 = vmatprep.subr.mxu0 %v3049
    %3413 = vmatpush2.msra.mxu0 %v3048
    %3414 = vmatprep.subr.mxu0 %v3043
    %3415 = vmatpush2.msra.mxu0 %v3042
    %3416 = vmatprep.subr.mxu0 %v3037
    %3417 = vmatpush2.msra.mxu0 %v3036
    %3418 = vmatprep.subr.mxu0 %v3031
    %3419 = vmatpush2.msra.mxu0 %v3030
    %3420 = vmatprep.subr.mxu0 %v3025
    %3421 = vmatpush2.msra.mxu0 %v3024
    %3422 = vmatprep.subr.mxu0 %v3019
    %3423 = vmatpush2.msra.mxu0 %v3018
    %3424 = vmatprep.subr.mxu0 %v3013
    %3425 = vmatpush2.msra.mxu0 %v3012
    %3426 = vmatprep.mubr.f32.mxu0 %v2897
    %3427 = vmatmul.mubr.f32.gmra.mxu0 %v2896
    %v3428 = vpop.f32.mrf.mxu0
    %v3429 = vadd.f32 %v3125, %v3428
    %v3430 = vpop.f32.mrf.mxu0
    %v3431 = vadd.f32 %v3129, %v3430
    %3432 = vmatprep.mubr.f32.mxu0 %v2899
    %3433 = vmatmul.mubr.f32.gmra.mxu0 %v2898
    %v3434 = vpop.f32.mrf.mxu0
    %v3435 = vadd.f32 %v3125, %v3434
    %v3436 = vpop.f32.mrf.mxu0
    %v3437 = vadd.f32 %v3129, %v3436
    %3438 = vmatprep.mubr.f32.mxu0 %v2901
    %3439 = vmatmul.mubr.f32.gmra.mxu0 %v2900
    %v3440 = vpop.f32.mrf.mxu0
    %v3441 = vadd.f32 %v3125, %v3440
    %v3442 = vpop.f32.mrf.mxu0
    %v3443 = vadd.f32 %v3129, %v3442
    %3444 = vmatprep.mubr.f32.mxu0 %v2903
    %3445 = vmatmul.mubr.f32.gmra.mxu0 %v2902
    %v3446 = vpop.f32.mrf.mxu0
    %v3447 = vadd.f32 %v3125, %v3446
    %v3448 = vpop.f32.mrf.mxu0
    %v3449 = vadd.f32 %v3129, %v3448
    %3450 = vmatprep.mubr.f32.mxu0 %v2905
    %3451 = vmatmul.mubr.f32.gmra.mxu0 %v2904
    %v3452 = vpop.f32.mrf.mxu0
    %v3453 = vadd.f32 %v3125, %v3452
    %v3454 = vpop.f32.mrf.mxu0
    %v3455 = vadd.f32 %v3129, %v3454
    %3456 = vmatprep.mubr.f32.mxu0 %v2907
    %3457 = vmatmul.mubr.f32.gmra.mxu0 %v2906
    %v3458 = vpop.f32.mrf.mxu0
    %v3459 = vadd.f32 %v3125, %v3458
    %v3460 = vpop.f32.mrf.mxu0
    %v3461 = vadd.f32 %v3129, %v3460
    %3462 = vmatprep.mubr.f32.mxu0 %v2909
    %3463 = vmatmul.mubr.f32.gmra.mxu0 %v2908
    %v3464 = vpop.f32.mrf.mxu0
    %v3465 = vadd.f32 %v3125, %v3464
    %v3466 = vpop.f32.mrf.mxu0
    %v3467 = vadd.f32 %v3129, %v3466
    %3468 = vmatprep.mubr.f32.mxu0 %v2911
    %3469 = vmatmul.mubr.f32.gmra.mxu0 %v2910
    %v3470 = vpop.f32.mrf.mxu0
    %v3471 = vadd.f32 %v3125, %v3470
    %v3472 = vpop.f32.mrf.mxu0
    %v3473 = vadd.f32 %v3129, %v3472
    %3474 = vdwg.mxu0
    %3475 = vst [vmem:[#allocation2] sm:$0xff] %v3203
    %3476 = vst [vmem:[#allocation2 + $0x8] sm:$0xff] %v3205
    %3477 = vst [vmem:[#allocation2 + $0x10] sm:$0xff] %v3316
    %3478 = vst [vmem:[#allocation2 + $0x18] sm:$0xff] %v3318
    %3479 = vst [vmem:[#allocation2 + $0x20] sm:$0xff] %v3429
    %3480 = vst [vmem:[#allocation2 + $0x28] sm:$0xff] %v3431
    %3481 = vst [vmem:[#allocation2 + $0x30] sm:$0xff] %v3209
    %3482 = vst [vmem:[#allocation2 + $0x38] sm:$0xff] %v3211
    %3483 = vst [vmem:[#allocation2 + $0x40] sm:$0xff] %v3322
    %3484 = vst [vmem:[#allocation2 + $0x48] sm:$0xff] %v3324
    %3485 = vst [vmem:[#allocation2 + $0x50] sm:$0xff] %v3435
    %3486 = vst [vmem:[#allocation2 + $0x58] sm:$0xff] %v3437
    %3487 = vst [vmem:[#allocation2 + $0x60] sm:$0xff] %v3215
    %3488 = vst [vmem:[#allocation2 + $0x68] sm:$0xff] %v3217
    %3489 = vst [vmem:[#allocation2 + $0x70] sm:$0xff] %v3328
    %3490 = vst [vmem:[#allocation2 + $0x78] sm:$0xff] %v3330
    %3491 = vst [vmem:[#allocation2 + $0x80] sm:$0xff] %v3441
    %3492 = vst [vmem:[#allocation2 + $0x88] sm:$0xff] %v3443
    %3493 = vst [vmem:[#allocation2 + $0x90] sm:$0xff] %v3221
    %3494 = vst [vmem:[#allocation2 + $0x98] sm:$0xff] %v3223
    %3495 = vst [vmem:[#allocation2 + $0xa0] sm:$0xff] %v3334
    %3496 = vst [vmem:[#allocation2 + $0xa8] sm:$0xff] %v3336
    %3497 = vst [vmem:[#allocation2 + $0xb0] sm:$0xff] %v3447
    %3498 = vst [vmem:[#allocation2 + $0xb8] sm:$0xff] %v3449
    %3499 = vst [vmem:[#allocation2 + $0xc0] sm:$0xff] %v3227
    %3500 = vst [vmem:[#allocation2 + $0xc8] sm:$0xff] %v3229
    %3501 = vst [vmem:[#allocation2 + $0xd0] sm:$0xff] %v3340
    %3502 = vst [vmem:[#allocation2 + $0xd8] sm:$0xff] %v3342
    %3503 = vst [vmem:[#allocation2 + $0xe0] sm:$0xff] %v3453
    %3504 = vst [vmem:[#allocation2 + $0xe8] sm:$0xff] %v3455
    %3505 = vst [vmem:[#allocation2 + $0xf0] sm:$0xff] %v3233
    %3506 = vst [vmem:[#allocation2 + $0xf8] sm:$0xff] %v3235
    %3507 = vst [vmem:[#allocation2 + $0x100] sm:$0xff] %v3346
    %3508 = vst [vmem:[#allocation2 + $0x108] sm:$0xff] %v3348
    %3509 = vst [vmem:[#allocation2 + $0x110] sm:$0xff] %v3459
    %3510 = vst [vmem:[#allocation2 + $0x118] sm:$0xff] %v3461
    %3511 = vst [vmem:[#allocation2 + $0x120] sm:$0xff] %v3239
    %3512 = vst [vmem:[#allocation2 + $0x128] sm:$0xff] %v3241
    %3513 = vst [vmem:[#allocation2 + $0x130] sm:$0xff] %v3352
    %3514 = vst [vmem:[#allocation2 + $0x138] sm:$0xff] %v3354
    %3515 = vst [vmem:[#allocation2 + $0x140] sm:$0xff] %v3465
    %3516 = vst [vmem:[#allocation2 + $0x148] sm:$0xff] %v3467
    %3517 = vst [vmem:[#allocation2 + $0x150] sm:$0xff] %v3245
    %3518 = vst [vmem:[#allocation2 + $0x158] sm:$0xff] %v3247
    %3519 = vst [vmem:[#allocation2 + $0x160] sm:$0xff] %v3358
    %3520 = vst [vmem:[#allocation2 + $0x168] sm:$0xff] %v3360
    %3521 = vst [vmem:[#allocation2 + $0x170] sm:$0xff] %v3471
    %3522 = vst [vmem:[#allocation2 + $0x178] sm:$0xff] %v3473
    %v3523 = vld [vmem:[%s8] sm:$0x3]
    %v3525 = vlaneseq
    %v3526 = vshrl.u32 %v3525, 7
    %v3527 = vsub.s32 0, %v3526
    %v3528 = vrot.slane %v3523, %v3527
    %v3529 = vlaneseq
    %v3530 = vshrl.u32 %v3529, 7
    %v3531 = vsub.s32 1, %v3530
    %v3532 = vrot.slane %v3523, %v3531
    %v3535 = vld [vmem:[#allocation9] sm:$0xff]
    %v3536 = vld [vmem:[#allocation9 + $0x8] sm:$0xff]
    %v3537 = vld [vmem:[#allocation9 + $0x10] sm:$0xff]
    %v3538 = vld [vmem:[#allocation9 + $0x18] sm:$0xff]
    %v3539 = vld [vmem:[#allocation9 + $0x20] sm:$0xff]
    %v3540 = vld [vmem:[#allocation9 + $0x28] sm:$0xff]
    %v3541 = vld [vmem:[#allocation9 + $0x30] sm:$0xff]
    %v3542 = vld [vmem:[#allocation9 + $0x38] sm:$0xff]
    %v3543 = vld [vmem:[#allocation9 + $0x40] sm:$0xff]
    %v3544 = vld [vmem:[#allocation9 + $0x48] sm:$0xff]
    %v3545 = vld [vmem:[#allocation9 + $0x50] sm:$0xff]
    %v3546 = vld [vmem:[#allocation9 + $0x58] sm:$0xff]
    %v3547 = vld [vmem:[#allocation9 + $0x60] sm:$0xff]
    %v3548 = vld [vmem:[#allocation9 + $0x68] sm:$0xff]
    %v3549 = vld [vmem:[#allocation9 + $0x70] sm:$0xff]
    %v3550 = vld [vmem:[#allocation9 + $0x78] sm:$0xff]
    %v3551 = vld [vmem:[#allocation9 + $0x80] sm:$0xff]
    %v3552 = vld [vmem:[#allocation9 + $0x88] sm:$0xff]
    %v3553 = vld [vmem:[#allocation9 + $0x90] sm:$0xff]
    %v3554 = vld [vmem:[#allocation9 + $0x98] sm:$0xff]
    %v3555 = vld [vmem:[#allocation9 + $0xa0] sm:$0xff]
    %v3556 = vld [vmem:[#allocation9 + $0xa8] sm:$0xff]
    %v3557 = vld [vmem:[#allocation9 + $0xb0] sm:$0xff]
    %v3558 = vld [vmem:[#allocation9 + $0xb8] sm:$0xff]
    %v3559 = vld [vmem:[#allocation9 + $0xc0] sm:$0xff]
    %v3560 = vld [vmem:[#allocation9 + $0xc8] sm:$0xff]
    %v3561 = vld [vmem:[#allocation9 + $0xd0] sm:$0xff]
    %v3562 = vld [vmem:[#allocation9 + $0xd8] sm:$0xff]
    %v3563 = vld [vmem:[#allocation9 + $0xe0] sm:$0xff]
    %v3564 = vld [vmem:[#allocation9 + $0xe8] sm:$0xff]
    %v3565 = vld [vmem:[#allocation9 + $0xf0] sm:$0xff]
    %v3566 = vld [vmem:[#allocation9 + $0xf8] sm:$0xff]
    %v3567 = vld [vmem:[#allocation9 + $0x100] sm:$0xff]
    %v3568 = vld [vmem:[#allocation9 + $0x108] sm:$0xff]
    %v3569 = vld [vmem:[#allocation9 + $0x110] sm:$0xff]
    %v3570 = vld [vmem:[#allocation9 + $0x118] sm:$0xff]
    %v3571 = vld [vmem:[#allocation9 + $0x120] sm:$0xff]
    %v3572 = vld [vmem:[#allocation9 + $0x128] sm:$0xff]
    %v3573 = vld [vmem:[#allocation9 + $0x130] sm:$0xff]
    %v3574 = vld [vmem:[#allocation9 + $0x138] sm:$0xff]
    %v3575 = vld [vmem:[#allocation9 + $0x140] sm:$0xff]
    %v3576 = vld [vmem:[#allocation9 + $0x148] sm:$0xff]
    %v3577 = vld [vmem:[#allocation9 + $0x150] sm:$0xff]
    %v3578 = vld [vmem:[#allocation9 + $0x158] sm:$0xff]
    %v3579 = vld [vmem:[#allocation9 + $0x160] sm:$0xff]
    %v3580 = vld [vmem:[#allocation9 + $0x168] sm:$0xff]
    %v3581 = vld [vmem:[#allocation9 + $0x170] sm:$0xff]
    %v3582 = vld [vmem:[#allocation9 + $0x178] sm:$0xff]
    %v3583 = vld [vmem:[#allocation9 + $0x180] sm:$0xff]
    %v3584 = vld [vmem:[#allocation9 + $0x188] sm:$0xff]
    %v3585 = vld [vmem:[#allocation9 + $0x190] sm:$0xff]
    %v3586 = vld [vmem:[#allocation9 + $0x198] sm:$0xff]
    %v3587 = vld [vmem:[#allocation9 + $0x1a0] sm:$0xff]
    %v3588 = vld [vmem:[#allocation9 + $0x1a8] sm:$0xff]
    %v3589 = vld [vmem:[#allocation9 + $0x1b0] sm:$0xff]
    %v3590 = vld [vmem:[#allocation9 + $0x1b8] sm:$0xff]
    %v3591 = vld [vmem:[#allocation9 + $0x1c0] sm:$0xff]
    %v3592 = vld [vmem:[#allocation9 + $0x1c8] sm:$0xff]
    %v3593 = vld [vmem:[#allocation9 + $0x1d0] sm:$0xff]
    %v3594 = vld [vmem:[#allocation9 + $0x1d8] sm:$0xff]
    %v3595 = vld [vmem:[#allocation9 + $0x1e0] sm:$0xff]
    %v3596 = vld [vmem:[#allocation9 + $0x1e8] sm:$0xff]
    %v3597 = vld [vmem:[#allocation9 + $0x1f0] sm:$0xff]
    %v3598 = vld [vmem:[#allocation9 + $0x1f8] sm:$0xff]
    %v3599 = vld [vmem:[#allocation9 + $0x200] sm:$0xff]
    %v3600 = vld [vmem:[#allocation9 + $0x208] sm:$0xff]
    %v3601 = vld [vmem:[#allocation9 + $0x210] sm:$0xff]
    %v3602 = vld [vmem:[#allocation9 + $0x218] sm:$0xff]
    %v3603 = vld [vmem:[#allocation9 + $0x220] sm:$0xff]
    %v3604 = vld [vmem:[#allocation9 + $0x228] sm:$0xff]
    %v3605 = vld [vmem:[#allocation9 + $0x230] sm:$0xff]
    %v3606 = vld [vmem:[#allocation9 + $0x238] sm:$0xff]
    %v3607 = vld [vmem:[#allocation9 + $0x240] sm:$0xff]
    %v3608 = vld [vmem:[#allocation9 + $0x248] sm:$0xff]
    %v3609 = vld [vmem:[#allocation9 + $0x250] sm:$0xff]
    %v3610 = vld [vmem:[#allocation9 + $0x258] sm:$0xff]
    %v3611 = vld [vmem:[#allocation9 + $0x260] sm:$0xff]
    %v3612 = vld [vmem:[#allocation9 + $0x268] sm:$0xff]
    %v3613 = vld [vmem:[#allocation9 + $0x270] sm:$0xff]
    %v3614 = vld [vmem:[#allocation9 + $0x278] sm:$0xff]
    %v3615 = vld [vmem:[#allocation9 + $0x280] sm:$0xff]
    %v3616 = vld [vmem:[#allocation9 + $0x288] sm:$0xff]
    %v3617 = vld [vmem:[#allocation9 + $0x290] sm:$0xff]
    %v3618 = vld [vmem:[#allocation9 + $0x298] sm:$0xff]
    %v3619 = vld [vmem:[#allocation9 + $0x2a0] sm:$0xff]
    %v3620 = vld [vmem:[#allocation9 + $0x2a8] sm:$0xff]
    %v3621 = vld [vmem:[#allocation9 + $0x2b0] sm:$0xff]
    %v3622 = vld [vmem:[#allocation9 + $0x2b8] sm:$0xff]
    %v3623 = vld [vmem:[#allocation9 + $0x2c0] sm:$0xff]
    %v3624 = vld [vmem:[#allocation9 + $0x2c8] sm:$0xff]
    %v3625 = vld [vmem:[#allocation9 + $0x2d0] sm:$0xff]
    %v3626 = vld [vmem:[#allocation9 + $0x2d8] sm:$0xff]
    %v3627 = vld [vmem:[#allocation9 + $0x2e0] sm:$0xff]
    %v3628 = vld [vmem:[#allocation9 + $0x2e8] sm:$0xff]
    %v3629 = vld [vmem:[#allocation9 + $0x2f0] sm:$0xff]
    %v3630 = vld [vmem:[#allocation9 + $0x2f8] sm:$0xff]
    %v3631 = vld [vmem:[#allocation9 + $0x300] sm:$0xff]
    %v3632 = vld [vmem:[#allocation9 + $0x308] sm:$0xff]
    %v3633 = vld [vmem:[#allocation9 + $0x310] sm:$0xff]
    %v3634 = vld [vmem:[#allocation9 + $0x318] sm:$0xff]
    %v3635 = vld [vmem:[#allocation9 + $0x320] sm:$0xff]
    %v3636 = vld [vmem:[#allocation9 + $0x328] sm:$0xff]
    %v3637 = vld [vmem:[#allocation9 + $0x330] sm:$0xff]
    %v3638 = vld [vmem:[#allocation9 + $0x338] sm:$0xff]
    %v3639 = vld [vmem:[#allocation9 + $0x340] sm:$0xff]
    %v3640 = vld [vmem:[#allocation9 + $0x348] sm:$0xff]
    %v3641 = vld [vmem:[#allocation9 + $0x350] sm:$0xff]
    %v3642 = vld [vmem:[#allocation9 + $0x358] sm:$0xff]
    %v3643 = vld [vmem:[#allocation9 + $0x360] sm:$0xff]
    %v3644 = vld [vmem:[#allocation9 + $0x368] sm:$0xff]
    %v3645 = vld [vmem:[#allocation9 + $0x370] sm:$0xff]
    %v3646 = vld [vmem:[#allocation9 + $0x378] sm:$0xff]
    %v3647 = vld [vmem:[#allocation9 + $0x380] sm:$0xff]
    %v3648 = vld [vmem:[#allocation9 + $0x388] sm:$0xff]
    %v3649 = vld [vmem:[#allocation9 + $0x390] sm:$0xff]
    %v3650 = vld [vmem:[#allocation9 + $0x398] sm:$0xff]
    %v3651 = vld [vmem:[#allocation9 + $0x3a0] sm:$0xff]
    %v3652 = vld [vmem:[#allocation9 + $0x3a8] sm:$0xff]
    %v3653 = vld [vmem:[#allocation9 + $0x3b0] sm:$0xff]
    %v3654 = vld [vmem:[#allocation9 + $0x3b8] sm:$0xff]
    %v3655 = vld [vmem:[#allocation9 + $0x3c0] sm:$0xff]
    %v3656 = vld [vmem:[#allocation9 + $0x3c8] sm:$0xff]
    %v3657 = vld [vmem:[#allocation9 + $0x3d0] sm:$0xff]
    %v3658 = vld [vmem:[#allocation9 + $0x3d8] sm:$0xff]
    %v3659 = vld [vmem:[#allocation9 + $0x3e0] sm:$0xff]
    %v3660 = vld [vmem:[#allocation9 + $0x3e8] sm:$0xff]
    %v3661 = vld [vmem:[#allocation9 + $0x3f0] sm:$0xff]
    %v3662 = vld [vmem:[#allocation9 + $0x3f8] sm:$0xff]
    %v3663 = vld [vmem:[#allocation9 + $0x400] sm:$0xff]
    %v3664 = vld [vmem:[#allocation9 + $0x408] sm:$0xff]
    %v3665 = vld [vmem:[#allocation9 + $0x410] sm:$0xff]
    %v3666 = vld [vmem:[#allocation9 + $0x418] sm:$0xff]
    %v3667 = vld [vmem:[#allocation9 + $0x420] sm:$0xff]
    %v3668 = vld [vmem:[#allocation9 + $0x428] sm:$0xff]
    %v3669 = vld [vmem:[#allocation9 + $0x430] sm:$0xff]
    %v3670 = vld [vmem:[#allocation9 + $0x438] sm:$0xff]
    %v3671 = vld [vmem:[#allocation9 + $0x440] sm:$0xff]
    %v3672 = vld [vmem:[#allocation9 + $0x448] sm:$0xff]
    %v3673 = vld [vmem:[#allocation9 + $0x450] sm:$0xff]
    %v3674 = vld [vmem:[#allocation9 + $0x458] sm:$0xff]
    %v3675 = vld [vmem:[#allocation9 + $0x460] sm:$0xff]
    %v3676 = vld [vmem:[#allocation9 + $0x468] sm:$0xff]
    %v3677 = vld [vmem:[#allocation9 + $0x470] sm:$0xff]
    %v3678 = vld [vmem:[#allocation9 + $0x478] sm:$0xff]
    %v3679 = vld [vmem:[#allocation9 + $0x480] sm:$0xff]
    %v3680 = vld [vmem:[#allocation9 + $0x488] sm:$0xff]
    %v3681 = vld [vmem:[#allocation9 + $0x490] sm:$0xff]
    %v3682 = vld [vmem:[#allocation9 + $0x498] sm:$0xff]
    %v3683 = vld [vmem:[#allocation9 + $0x4a0] sm:$0xff]
    %v3684 = vld [vmem:[#allocation9 + $0x4a8] sm:$0xff]
    %v3685 = vld [vmem:[#allocation9 + $0x4b0] sm:$0xff]
    %v3686 = vld [vmem:[#allocation9 + $0x4b8] sm:$0xff]
    %v3687 = vld [vmem:[#allocation9 + $0x4c0] sm:$0xff]
    %v3688 = vld [vmem:[#allocation9 + $0x4c8] sm:$0xff]
    %v3689 = vld [vmem:[#allocation9 + $0x4d0] sm:$0xff]
    %v3690 = vld [vmem:[#allocation9 + $0x4d8] sm:$0xff]
    %v3691 = vld [vmem:[#allocation9 + $0x4e0] sm:$0xff]
    %v3692 = vld [vmem:[#allocation9 + $0x4e8] sm:$0xff]
    %v3693 = vld [vmem:[#allocation9 + $0x4f0] sm:$0xff]
    %v3694 = vld [vmem:[#allocation9 + $0x4f8] sm:$0xff]
    %v3695 = vld [vmem:[#allocation9 + $0x500] sm:$0xff]
    %v3696 = vld [vmem:[#allocation9 + $0x508] sm:$0xff]
    %v3697 = vld [vmem:[#allocation9 + $0x510] sm:$0xff]
    %v3698 = vld [vmem:[#allocation9 + $0x518] sm:$0xff]
    %v3699 = vld [vmem:[#allocation9 + $0x520] sm:$0xff]
    %v3700 = vld [vmem:[#allocation9 + $0x528] sm:$0xff]
    %v3701 = vld [vmem:[#allocation9 + $0x530] sm:$0xff]
    %v3702 = vld [vmem:[#allocation9 + $0x538] sm:$0xff]
    %v3703 = vld [vmem:[#allocation9 + $0x540] sm:$0xff]
    %v3704 = vld [vmem:[#allocation9 + $0x548] sm:$0xff]
    %v3705 = vld [vmem:[#allocation9 + $0x550] sm:$0xff]
    %v3706 = vld [vmem:[#allocation9 + $0x558] sm:$0xff]
    %v3707 = vld [vmem:[#allocation9 + $0x560] sm:$0xff]
    %v3708 = vld [vmem:[#allocation9 + $0x568] sm:$0xff]
    %v3709 = vld [vmem:[#allocation9 + $0x570] sm:$0xff]
    %v3710 = vld [vmem:[#allocation9 + $0x578] sm:$0xff]
    %v3711 = vld [vmem:[#allocation9 + $0x580] sm:$0xff]
    %v3712 = vld [vmem:[#allocation9 + $0x588] sm:$0xff]
    %v3713 = vld [vmem:[#allocation9 + $0x590] sm:$0xff]
    %v3714 = vld [vmem:[#allocation9 + $0x598] sm:$0xff]
    %v3715 = vld [vmem:[#allocation9 + $0x5a0] sm:$0xff]
    %v3716 = vld [vmem:[#allocation9 + $0x5a8] sm:$0xff]
    %v3717 = vld [vmem:[#allocation9 + $0x5b0] sm:$0xff]
    %v3718 = vld [vmem:[#allocation9 + $0x5b8] sm:$0xff]
    %v3719 = vld [vmem:[#allocation9 + $0x5c0] sm:$0xff]
    %v3720 = vld [vmem:[#allocation9 + $0x5c8] sm:$0xff]
    %v3721 = vld [vmem:[#allocation9 + $0x5d0] sm:$0xff]
    %v3722 = vld [vmem:[#allocation9 + $0x5d8] sm:$0xff]
    %v3723 = vld [vmem:[#allocation9 + $0x5e0] sm:$0xff]
    %v3724 = vld [vmem:[#allocation9 + $0x5e8] sm:$0xff]
    %v3725 = vld [vmem:[#allocation9 + $0x5f0] sm:$0xff]
    %v3726 = vld [vmem:[#allocation9 + $0x5f8] sm:$0xff]
    %v3727 = vld [vmem:[#allocation2] sm:$0xff]
    %v3728 = vld [vmem:[#allocation2 + $0x8] sm:$0xff]
    %v3729 = vld [vmem:[#allocation2 + $0x10] sm:$0xff]
    %v3730 = vld [vmem:[#allocation2 + $0x18] sm:$0xff]
    %v3731 = vld [vmem:[#allocation2 + $0x20] sm:$0xff]
    %v3732 = vld [vmem:[#allocation2 + $0x28] sm:$0xff]
    %3733 = vmatprep.subr.mxu0 %v3626
    %3734 = vmatpush1.msra.mxu0 %v3625
    %3735 = vmatprep.subr.mxu0 %v3620
    %3736 = vmatpush1.msra.mxu0 %v3619
    %3737 = vmatprep.subr.mxu0 %v3614
    %3738 = vmatpush1.msra.mxu0 %v3613
    %3739 = vmatprep.subr.mxu0 %v3608
    %3740 = vmatpush1.msra.mxu0 %v3607
    %3741 = vmatprep.subr.mxu0 %v3602
    %3742 = vmatpush1.msra.mxu0 %v3601
    %3743 = vmatprep.subr.mxu0 %v3596
    %3744 = vmatpush1.msra.mxu0 %v3595
    %3745 = vmatprep.subr.mxu0 %v3590
    %3746 = vmatpush1.msra.mxu0 %v3589
    %3747 = vmatprep.subr.mxu0 %v3584
    %3748 = vmatpush1.msra.mxu0 %v3583
    %3749 = vmatprep.subr.mxu0 %v3578
    %3750 = vmatpush1.msra.mxu0 %v3577
    %3751 = vmatprep.subr.mxu0 %v3572
    %3752 = vmatpush1.msra.mxu0 %v3571
    %3753 = vmatprep.subr.mxu0 %v3566
    %3754 = vmatpush1.msra.mxu0 %v3565
    %3755 = vmatprep.subr.mxu0 %v3560
    %3756 = vmatpush1.msra.mxu0 %v3559
    %3757 = vmatprep.subr.mxu0 %v3554
    %3758 = vmatpush1.msra.mxu0 %v3553
    %3759 = vmatprep.subr.mxu0 %v3548
    %3760 = vmatpush1.msra.mxu0 %v3547
    %3761 = vmatprep.subr.mxu0 %v3542
    %3762 = vmatpush1.msra.mxu0 %v3541
    %3763 = vmatprep.subr.mxu0 %v3536
    %3764 = vmatpush1.msra.mxu0 %v3535
    %3765 = vmatprep.subr.mxu0 %v3722
    %3766 = vmatpush2.msra.mxu0 %v3721
    %3767 = vmatprep.subr.mxu0 %v3716
    %3768 = vmatpush2.msra.mxu0 %v3715
    %3769 = vmatprep.subr.mxu0 %v3710
    %3770 = vmatpush2.msra.mxu0 %v3709
    %3771 = vmatprep.subr.mxu0 %v3704
    %3772 = vmatpush2.msra.mxu0 %v3703
    %3773 = vmatprep.subr.mxu0 %v3698
    %3774 = vmatpush2.msra.mxu0 %v3697
    %3775 = vmatprep.subr.mxu0 %v3692
    %3776 = vmatpush2.msra.mxu0 %v3691
    %3777 = vmatprep.subr.mxu0 %v3686
    %3778 = vmatpush2.msra.mxu0 %v3685
    %3779 = vmatprep.subr.mxu0 %v3680
    %3780 = vmatpush2.msra.mxu0 %v3679
    %3781 = vmatprep.subr.mxu0 %v3674
    %3782 = vmatpush2.msra.mxu0 %v3673
    %3783 = vmatprep.subr.mxu0 %v3668
    %3784 = vmatpush2.msra.mxu0 %v3667
    %3785 = vmatprep.subr.mxu0 %v3662
    %3786 = vmatpush2.msra.mxu0 %v3661
    %3787 = vmatprep.subr.mxu0 %v3656
    %3788 = vmatpush2.msra.mxu0 %v3655
    %3789 = vmatprep.subr.mxu0 %v3650
    %3790 = vmatpush2.msra.mxu0 %v3649
    %3791 = vmatprep.subr.mxu0 %v3644
    %3792 = vmatpush2.msra.mxu0 %v3643
    %3793 = vmatprep.subr.mxu0 %v3638
    %3794 = vmatpush2.msra.mxu0 %v3637
    %3795 = vmatprep.subr.mxu0 %v3632
    %3796 = vmatpush2.msra.mxu0 %v3631
    %3797 = vmatprep.mubr.f32.mxu0 0.0
    %3798 = vmatmul.mubr.f32.gmra.mxu0 0.0
    %v3799 = vpop.f32.mrf.mxu0
    %v3800 = vadd.f32 0.0, %v3799
    %v3801 = vpop.f32.mrf.mxu0
    %v3802 = vadd.f32 0.0, %v3801
    %3803 = vdwg.mxu0
    %3804 = vmatprep.subr.mxu0 %v3628
    %3805 = vmatpush1.msra.mxu0 %v3627
    %3806 = vmatprep.subr.mxu0 %v3622
    %3807 = vmatpush1.msra.mxu0 %v3621
    %3808 = vmatprep.subr.mxu0 %v3616
    %3809 = vmatpush1.msra.mxu0 %v3615
    %3810 = vmatprep.subr.mxu0 %v3610
    %3811 = vmatpush1.msra.mxu0 %v3609
    %3812 = vmatprep.subr.mxu0 %v3604
    %3813 = vmatpush1.msra.mxu0 %v3603
    %3814 = vmatprep.subr.mxu0 %v3598
    %3815 = vmatpush1.msra.mxu0 %v3597
    %3816 = vmatprep.subr.mxu0 %v3592
    %3817 = vmatpush1.msra.mxu0 %v3591
    %3818 = vmatprep.subr.mxu0 %v3586
    %3819 = vmatpush1.msra.mxu0 %v3585
    %3820 = vmatprep.subr.mxu0 %v3580
    %3821 = vmatpush1.msra.mxu0 %v3579
    %3822 = vmatprep.subr.mxu0 %v3574
    %3823 = vmatpush1.msra.mxu0 %v3573
    %3824 = vmatprep.subr.mxu0 %v3568
    %3825 = vmatpush1.msra.mxu0 %v3567
    %3826 = vmatprep.subr.mxu0 %v3562
    %3827 = vmatpush1.msra.mxu0 %v3561
    %3828 = vmatprep.subr.mxu0 %v3556
    %3829 = vmatpush1.msra.mxu0 %v3555
    %3830 = vmatprep.subr.mxu0 %v3550
    %3831 = vmatpush1.msra.mxu0 %v3549
    %3832 = vmatprep.subr.mxu0 %v3544
    %3833 = vmatpush1.msra.mxu0 %v3543
    %3834 = vmatprep.subr.mxu0 %v3538
    %3835 = vmatpush1.msra.mxu0 %v3537
    %3836 = vmatprep.subr.mxu0 %v3724
    %3837 = vmatpush2.msra.mxu0 %v3723
    %3838 = vmatprep.subr.mxu0 %v3718
    %3839 = vmatpush2.msra.mxu0 %v3717
    %3840 = vmatprep.subr.mxu0 %v3712
    %3841 = vmatpush2.msra.mxu0 %v3711
    %3842 = vmatprep.subr.mxu0 %v3706
    %3843 = vmatpush2.msra.mxu0 %v3705
    %3844 = vmatprep.subr.mxu0 %v3700
    %3845 = vmatpush2.msra.mxu0 %v3699
    %3846 = vmatprep.subr.mxu0 %v3694
    %3847 = vmatpush2.msra.mxu0 %v3693
    %3848 = vmatprep.subr.mxu0 %v3688
    %3849 = vmatpush2.msra.mxu0 %v3687
    %3850 = vmatprep.subr.mxu0 %v3682
    %3851 = vmatpush2.msra.mxu0 %v3681
    %3852 = vmatprep.subr.mxu0 %v3676
    %3853 = vmatpush2.msra.mxu0 %v3675
    %3854 = vmatprep.subr.mxu0 %v3670
    %3855 = vmatpush2.msra.mxu0 %v3669
    %3856 = vmatprep.subr.mxu0 %v3664
    %3857 = vmatpush2.msra.mxu0 %v3663
    %3858 = vmatprep.subr.mxu0 %v3658
    %3859 = vmatpush2.msra.mxu0 %v3657
    %3860 = vmatprep.subr.mxu0 %v3652
    %3861 = vmatpush2.msra.mxu0 %v3651
    %3862 = vmatprep.subr.mxu0 %v3646
    %3863 = vmatpush2.msra.mxu0 %v3645
    %3864 = vmatprep.subr.mxu0 %v3640
    %3865 = vmatpush2.msra.mxu0 %v3639
    %3866 = vmatprep.subr.mxu0 %v3634
    %3867 = vmatpush2.msra.mxu0 %v3633
    %3868 = vmatprep.mubr.f32.mxu0 0.0
    %3869 = vmatmul.mubr.f32.gmra.mxu0 0.0
    %v3870 = vpop.f32.mrf.mxu0
    %v3871 = vadd.f32 0.0, %v3870
    %v3872 = vpop.f32.mrf.mxu0
    %v3873 = vadd.f32 0.0, %v3872
    %3874 = vdwg.mxu0
    %3875 = vmatprep.subr.mxu0 %v3630
    %3876 = vmatpush1.msra.mxu0 %v3629
    %3877 = vmatprep.subr.mxu0 %v3624
    %3878 = vmatpush1.msra.mxu0 %v3623
    %3879 = vmatprep.subr.mxu0 %v3618
    %3880 = vmatpush1.msra.mxu0 %v3617
    %3881 = vmatprep.subr.mxu0 %v3612
    %3882 = vmatpush1.msra.mxu0 %v3611
    %3883 = vmatprep.subr.mxu0 %v3606
    %3884 = vmatpush1.msra.mxu0 %v3605
    %3885 = vmatprep.subr.mxu0 %v3600
    %3886 = vmatpush1.msra.mxu0 %v3599
    %3887 = vmatprep.subr.mxu0 %v3594
    %3888 = vmatpush1.msra.mxu0 %v3593
    %3889 = vmatprep.subr.mxu0 %v3588
    %3890 = vmatpush1.msra.mxu0 %v3587
    %3891 = vmatprep.subr.mxu0 %v3582
    %3892 = vmatpush1.msra.mxu0 %v3581
    %3893 = vmatprep.subr.mxu0 %v3576
    %3894 = vmatpush1.msra.mxu0 %v3575
    %3895 = vmatprep.subr.mxu0 %v3570
    %3896 = vmatpush1.msra.mxu0 %v3569
    %3897 = vmatprep.subr.mxu0 %v3564
    %3898 = vmatpush1.msra.mxu0 %v3563
    %3899 = vmatprep.subr.mxu0 %v3558
    %3900 = vmatpush1.msra.mxu0 %v3557
    %3901 = vmatprep.subr.mxu0 %v3552
    %3902 = vmatpush1.msra.mxu0 %v3551
    %3903 = vmatprep.subr.mxu0 %v3546
    %3904 = vmatpush1.msra.mxu0 %v3545
    %3905 = vmatprep.subr.mxu0 %v3540
    %3906 = vmatpush1.msra.mxu0 %v3539
    %3907 = vmatprep.subr.mxu0 %v3726
    %3908 = vmatpush2.msra.mxu0 %v3725
    %3909 = vmatprep.subr.mxu0 %v3720
    %3910 = vmatpush2.msra.mxu0 %v3719
    %3911 = vmatprep.subr.mxu0 %v3714
    %3912 = vmatpush2.msra.mxu0 %v3713
    %3913 = vmatprep.subr.mxu0 %v3708
    %3914 = vmatpush2.msra.mxu0 %v3707
    %3915 = vmatprep.subr.mxu0 %v3702
    %3916 = vmatpush2.msra.mxu0 %v3701
    %3917 = vmatprep.subr.mxu0 %v3696
    %3918 = vmatpush2.msra.mxu0 %v3695
    %3919 = vmatprep.subr.mxu0 %v3690
    %3920 = vmatpush2.msra.mxu0 %v3689
    %3921 = vmatprep.subr.mxu0 %v3684
    %3922 = vmatpush2.msra.mxu0 %v3683
    %3923 = vmatprep.subr.mxu0 %v3678
    %3924 = vmatpush2.msra.mxu0 %v3677
    %3925 = vmatprep.subr.mxu0 %v3672
    %3926 = vmatpush2.msra.mxu0 %v3671
    %3927 = vmatprep.subr.mxu0 %v3666
    %3928 = vmatpush2.msra.mxu0 %v3665
    %3929 = vmatprep.subr.mxu0 %v3660
    %3930 = vmatpush2.msra.mxu0 %v3659
    %3931 = vmatprep.subr.mxu0 %v3654
    %3932 = vmatpush2.msra.mxu0 %v3653
    %3933 = vmatprep.subr.mxu0 %v3648
    %3934 = vmatpush2.msra.mxu0 %v3647
    %3935 = vmatprep.subr.mxu0 %v3642
    %3936 = vmatpush2.msra.mxu0 %v3641
    %3937 = vmatprep.subr.mxu0 %v3636
    %3938 = vmatpush2.msra.mxu0 %v3635
    %3939 = vmatprep.mubr.f32.mxu0 0.0
    %3940 = vmatmul.mubr.f32.gmra.mxu0 0.0
    %v3941 = vpop.f32.mrf.mxu0
    %v3942 = vadd.f32 0.0, %v3941
    %v3943 = vpop.f32.mrf.mxu0
    %v3944 = vadd.f32 0.0, %v3943
    %3945 = vdwg.mxu0
    %v3946 = vadd.f32 %v3727, %v3800
    %v3947 = vadd.f32 %v3728, %v3802
    %v3948 = vxor.u32 %v3946, 2147483648
    %v3949 = vxor.u32 %v3947, 2147483648
    %v3950 = vmul.f32 %v3948, 1.442695
    %v3951 = vpow.pop %v3950
    %v3952 = vmul.f32 %v3949, 1.442695
    %v3953 = vpow.pop %v3952
    %v3954 = vadd.f32 %v3951, 1.0
    %v3955 = vadd.f32 %v3953, 1.0
    %v3956 = vrcp.pop %v3954
    %v3957 = vmul.f32 1.0, %v3956
    %v3958 = vrcp.pop %v3955
    %v3959 = vmul.f32 1.0, %v3958
    %v3960 = vadd.f32 %v3729, %v3871
    %v3961 = vadd.f32 %v3730, %v3873
    %v3962 = vxor.u32 %v3960, 2147483648
    %v3963 = vxor.u32 %v3961, 2147483648
    %v3964 = vmul.f32 %v3962, 1.442695
    %v3965 = vpow.pop %v3964
    %v3966 = vmul.f32 %v3963, 1.442695
    %v3967 = vpow.pop %v3966
    %v3968 = vadd.f32 %v3965, 1.0
    %v3969 = vadd.f32 %v3967, 1.0
    %v3970 = vrcp.pop %v3968
    %v3971 = vmul.f32 1.0, %v3970
    %v3972 = vrcp.pop %v3969
    %v3973 = vmul.f32 1.0, %v3972
    %v3974 = vadd.f32 %v3942, %v3528
    %v3975 = vadd.f32 %v3944, %v3532
    %v3976 = vmul.f32 %v3957, %v3974
    %v3977 = vmul.f32 %v3959, %v3975
    %v3978 = vadd.f32 %v3731, %v3976
    %v3979 = vadd.f32 %v3732, %v3977
    %v3980 = vtanh.pop %v3978
    %v3981 = vtanh.pop %v3979
    %v3982 = vsub.f32 1.0, %v3971
    %v3983 = vsub.f32 1.0, %v3973
    %v3984 = vmul.f32 %v3982, %v3980
    %v3985 = vmul.f32 %v3983, %v3981
    %v3986 = vmul.f32 %v3971, 0.0
    %v3987 = vmul.f32 %v3973, 0.0
    %v3988 = vadd.f32 %v3984, %v3986
    %v3989 = vadd.f32 %v3985, %v3987
    %v3990 = vld [vmem:[%s1027] sm:$0xff]
    %v3991 = vld [vmem:[%s1027 + $0x8] sm:$0xff]
    %v3992 = vld [vmem:[%s1027 + $0x10] sm:$0xff]
    %v3993 = vld [vmem:[%s1027 + $0x18] sm:$0xff]
    %v3994 = vld [vmem:[%s1027 + $0x20] sm:$0xff]
    %v3995 = vld [vmem:[%s1027 + $0x28] sm:$0xff]
    %3996 = vmatprep.subr.mxu0 %v3626
    %3997 = vmatpush1.msra.mxu0 %v3625
    %3998 = vmatprep.subr.mxu0 %v3620
    %3999 = vmatpush1.msra.mxu0 %v3619
    %4000 = vmatprep.subr.mxu0 %v3614
    %4001 = vmatpush1.msra.mxu0 %v3613
    %4002 = vmatprep.subr.mxu0 %v3608
    %4003 = vmatpush1.msra.mxu0 %v3607
    %4004 = vmatprep.subr.mxu0 %v3602
    %4005 = vmatpush1.msra.mxu0 %v3601
    %4006 = vmatprep.subr.mxu0 %v3596
    %4007 = vmatpush1.msra.mxu0 %v3595
    %4008 = vmatprep.subr.mxu0 %v3590
    %4009 = vmatpush1.msra.mxu0 %v3589
    %4010 = vmatprep.subr.mxu0 %v3584
    %4011 = vmatpush1.msra.mxu0 %v3583
    %4012 = vmatprep.subr.mxu0 %v3578
    %4013 = vmatpush1.msra.mxu0 %v3577
    %4014 = vmatprep.subr.mxu0 %v3572
    %4015 = vmatpush1.msra.mxu0 %v3571
    %4016 = vmatprep.subr.mxu0 %v3566
    %4017 = vmatpush1.msra.mxu0 %v3565
    %4018 = vmatprep.subr.mxu0 %v3560
    %4019 = vmatpush1.msra.mxu0 %v3559
    %4020 = vmatprep.subr.mxu0 %v3554
    %4021 = vmatpush1.msra.mxu0 %v3553
    %4022 = vmatprep.subr.mxu0 %v3548
    %4023 = vmatpush1.msra.mxu0 %v3547
    %4024 = vmatprep.subr.mxu0 %v3542
    %4025 = vmatpush1.msra.mxu0 %v3541
    %4026 = vmatprep.subr.mxu0 %v3536
    %4027 = vmatpush1.msra.mxu0 %v3535
    %4028 = vmatprep.subr.mxu0 %v3722
    %4029 = vmatpush2.msra.mxu0 %v3721
    %4030 = vmatprep.subr.mxu0 %v3716
    %4031 = vmatpush2.msra.mxu0 %v3715
    %4032 = vmatprep.subr.mxu0 %v3710
    %4033 = vmatpush2.msra.mxu0 %v3709
    %4034 = vmatprep.subr.mxu0 %v3704
    %4035 = vmatpush2.msra.mxu0 %v3703
    %4036 = vmatprep.subr.mxu0 %v3698
    %4037 = vmatpush2.msra.mxu0 %v3697
    %4038 = vmatprep.subr.mxu0 %v3692
    %4039 = vmatpush2.msra.mxu0 %v3691
    %4040 = vmatprep.subr.mxu0 %v3686
    %4041 = vmatpush2.msra.mxu0 %v3685
    %4042 = vmatprep.subr.mxu0 %v3680
    %4043 = vmatpush2.msra.mxu0 %v3679
    %4044 = vmatprep.subr.mxu0 %v3674
    %4045 = vmatpush2.msra.mxu0 %v3673
    %4046 = vmatprep.subr.mxu0 %v3668
    %4047 = vmatpush2.msra.mxu0 %v3667
    %4048 = vmatprep.subr.mxu0 %v3662
    %4049 = vmatpush2.msra.mxu0 %v3661
    %4050 = vmatprep.subr.mxu0 %v3656
    %4051 = vmatpush2.msra.mxu0 %v3655
    %4052 = vmatprep.subr.mxu0 %v3650
    %4053 = vmatpush2.msra.mxu0 %v3649
    %4054 = vmatprep.subr.mxu0 %v3644
    %4055 = vmatpush2.msra.mxu0 %v3643
    %4056 = vmatprep.subr.mxu0 %v3638
    %4057 = vmatpush2.msra.mxu0 %v3637
    %4058 = vmatprep.subr.mxu0 %v3632
    %4059 = vmatpush2.msra.mxu0 %v3631
    %4060 = vmatprep.mubr.f32.mxu0 %v3989
    %4061 = vmatmul.mubr.f32.gmra.mxu0 %v3988
    %v4062 = vpop.f32.mrf.mxu0
    %v4063 = vadd.f32 0.0, %v4062
    %v4064 = vpop.f32.mrf.mxu0
    %v4065 = vadd.f32 0.0, %v4064
    %4066 = vdwg.mxu0
    %4067 = vmatprep.subr.mxu0 %v3628
    %4068 = vmatpush1.msra.mxu0 %v3627
    %4069 = vmatprep.subr.mxu0 %v3622
    %4070 = vmatpush1.msra.mxu0 %v3621
    %4071 = vmatprep.subr.mxu0 %v3616
    %4072 = vmatpush1.msra.mxu0 %v3615
    %4073 = vmatprep.subr.mxu0 %v3610
    %4074 = vmatpush1.msra.mxu0 %v3609
    %4075 = vmatprep.subr.mxu0 %v3604
    %4076 = vmatpush1.msra.mxu0 %v3603
    %4077 = vmatprep.subr.mxu0 %v3598
    %4078 = vmatpush1.msra.mxu0 %v3597
    %4079 = vmatprep.subr.mxu0 %v3592
    %4080 = vmatpush1.msra.mxu0 %v3591
    %4081 = vmatprep.subr.mxu0 %v3586
    %4082 = vmatpush1.msra.mxu0 %v3585
    %4083 = vmatprep.subr.mxu0 %v3580
    %4084 = vmatpush1.msra.mxu0 %v3579
    %4085 = vmatprep.subr.mxu0 %v3574
    %4086 = vmatpush1.msra.mxu0 %v3573
    %4087 = vmatprep.subr.mxu0 %v3568
    %4088 = vmatpush1.msra.mxu0 %v3567
    %4089 = vmatprep.subr.mxu0 %v3562
    %4090 = vmatpush1.msra.mxu0 %v3561
    %4091 = vmatprep.subr.mxu0 %v3556
    %4092 = vmatpush1.msra.mxu0 %v3555
    %4093 = vmatprep.subr.mxu0 %v3550
    %4094 = vmatpush1.msra.mxu0 %v3549
    %4095 = vmatprep.subr.mxu0 %v3544
    %4096 = vmatpush1.msra.mxu0 %v3543
    %4097 = vmatprep.subr.mxu0 %v3538
    %4098 = vmatpush1.msra.mxu0 %v3537
    %4099 = vmatprep.subr.mxu0 %v3724
    %4100 = vmatpush2.msra.mxu0 %v3723
    %4101 = vmatprep.subr.mxu0 %v3718
    %4102 = vmatpush2.msra.mxu0 %v3717
    %4103 = vmatprep.subr.mxu0 %v3712
    %4104 = vmatpush2.msra.mxu0 %v3711
    %4105 = vmatprep.subr.mxu0 %v3706
    %4106 = vmatpush2.msra.mxu0 %v3705
    %4107 = vmatprep.subr.mxu0 %v3700
    %4108 = vmatpush2.msra.mxu0 %v3699
    %4109 = vmatprep.subr.mxu0 %v3694
    %4110 = vmatpush2.msra.mxu0 %v3693
    %4111 = vmatprep.subr.mxu0 %v3688
    %4112 = vmatpush2.msra.mxu0 %v3687
    %4113 = vmatprep.subr.mxu0 %v3682
    %4114 = vmatpush2.msra.mxu0 %v3681
    %4115 = vmatprep.subr.mxu0 %v3676
    %4116 = vmatpush2.msra.mxu0 %v3675
    %4117 = vmatprep.subr.mxu0 %v3670
    %4118 = vmatpush2.msra.mxu0 %v3669
    %4119 = vmatprep.subr.mxu0 %v3664
    %4120 = vmatpush2.msra.mxu0 %v3663
    %4121 = vmatprep.subr.mxu0 %v3658
    %4122 = vmatpush2.msra.mxu0 %v3657
    %4123 = vmatprep.subr.mxu0 %v3652
    %4124 = vmatpush2.msra.mxu0 %v3651
    %4125 = vmatprep.subr.mxu0 %v3646
    %4126 = vmatpush2.msra.mxu0 %v3645
    %4127 = vmatprep.subr.mxu0 %v3640
    %4128 = vmatpush2.msra.mxu0 %v3639
    %4129 = vmatprep.subr.mxu0 %v3634
    %4130 = vmatpush2.msra.mxu0 %v3633
    %4131 = vmatprep.mubr.f32.mxu0 %v3989
    %4132 = vmatmul.mubr.f32.gmra.mxu0 %v3988
    %v4133 = vpop.f32.mrf.mxu0
    %v4134 = vadd.f32 0.0, %v4133
    %v4135 = vpop.f32.mrf.mxu0
    %v4136 = vadd.f32 0.0, %v4135
    %4137 = vdwg.mxu0
    %4138 = vmatprep.subr.mxu0 %v3630
    %4139 = vmatpush1.msra.mxu0 %v3629
    %4140 = vmatprep.subr.mxu0 %v3624
    %4141 = vmatpush1.msra.mxu0 %v3623
    %4142 = vmatprep.subr.mxu0 %v3618
    %4143 = vmatpush1.msra.mxu0 %v3617
    %4144 = vmatprep.subr.mxu0 %v3612
    %4145 = vmatpush1.msra.mxu0 %v3611
    %4146 = vmatprep.subr.mxu0 %v3606
    %4147 = vmatpush1.msra.mxu0 %v3605
    %4148 = vmatprep.subr.mxu0 %v3600
    %4149 = vmatpush1.msra.mxu0 %v3599
    %4150 = vmatprep.subr.mxu0 %v3594
    %4151 = vmatpush1.msra.mxu0 %v3593
    %4152 = vmatprep.subr.mxu0 %v3588
    %4153 = vmatpush1.msra.mxu0 %v3587
    %4154 = vmatprep.subr.mxu0 %v3582
    %4155 = vmatpush1.msra.mxu0 %v3581
    %4156 = vmatprep.subr.mxu0 %v3576
    %4157 = vmatpush1.msra.mxu0 %v3575
    %4158 = vmatprep.subr.mxu0 %v3570
    %4159 = vmatpush1.msra.mxu0 %v3569
    %4160 = vmatprep.subr.mxu0 %v3564
    %4161 = vmatpush1.msra.mxu0 %v3563
    %4162 = vmatprep.subr.mxu0 %v3558
    %4163 = vmatpush1.msra.mxu0 %v3557
    %4164 = vmatprep.subr.mxu0 %v3552
    %4165 = vmatpush1.msra.mxu0 %v3551
    %4166 = vmatprep.subr.mxu0 %v3546
    %4167 = vmatpush1.msra.mxu0 %v3545
    %4168 = vmatprep.subr.mxu0 %v3540
    %4169 = vmatpush1.msra.mxu0 %v3539
    %4170 = vmatprep.subr.mxu0 %v3726
    %4171 = vmatpush2.msra.mxu0 %v3725
    %4172 = vmatprep.subr.mxu0 %v3720
    %4173 = vmatpush2.msra.mxu0 %v3719
    %4174 = vmatprep.subr.mxu0 %v3714
    %4175 = vmatpush2.msra.mxu0 %v3713
    %4176 = vmatprep.subr.mxu0 %v3708
    %4177 = vmatpush2.msra.mxu0 %v3707
    %4178 = vmatprep.subr.mxu0 %v3702
    %4179 = vmatpush2.msra.mxu0 %v3701
    %4180 = vmatprep.subr.mxu0 %v3696
    %4181 = vmatpush2.msra.mxu0 %v3695
    %4182 = vmatprep.subr.mxu0 %v3690
    %4183 = vmatpush2.msra.mxu0 %v3689
    %4184 = vmatprep.subr.mxu0 %v3684
    %4185 = vmatpush2.msra.mxu0 %v3683
    %4186 = vmatprep.subr.mxu0 %v3678
    %4187 = vmatpush2.msra.mxu0 %v3677
    %4188 = vmatprep.subr.mxu0 %v3672
    %4189 = vmatpush2.msra.mxu0 %v3671
    %4190 = vmatprep.subr.mxu0 %v3666
    %4191 = vmatpush2.msra.mxu0 %v3665
    %4192 = vmatprep.subr.mxu0 %v3660
    %4193 = vmatpush2.msra.mxu0 %v3659
    %4194 = vmatprep.subr.mxu0 %v3654
    %4195 = vmatpush2.msra.mxu0 %v3653
    %4196 = vmatprep.subr.mxu0 %v3648
    %4197 = vmatpush2.msra.mxu0 %v3647
    %4198 = vmatprep.subr.mxu0 %v3642
    %4199 = vmatpush2.msra.mxu0 %v3641
    %4200 = vmatprep.subr.mxu0 %v3636
    %4201 = vmatpush2.msra.mxu0 %v3635
    %4202 = vmatprep.mubr.f32.mxu0 %v3989
    %4203 = vmatmul.mubr.f32.gmra.mxu0 %v3988
    %v4204 = vpop.f32.mrf.mxu0
    %v4205 = vadd.f32 0.0, %v4204
    %v4206 = vpop.f32.mrf.mxu0
    %v4207 = vadd.f32 0.0, %v4206
    %4208 = vdwg.mxu0
    %v4209 = vadd.f32 %v3990, %v4063
    %v4210 = vadd.f32 %v3991, %v4065
    %v4211 = vxor.u32 %v4209, 2147483648
    %v4212 = vxor.u32 %v4210, 2147483648
    %v4213 = vmul.f32 %v4211, 1.442695
    %v4214 = vpow.pop %v4213
    %v4215 = vmul.f32 %v4212, 1.442695
    %v4216 = vpow.pop %v4215
    %v4217 = vadd.f32 %v4214, 1.0
    %v4218 = vadd.f32 %v4216, 1.0
    %v4219 = vrcp.pop %v4217
    %v4220 = vmul.f32 1.0, %v4219
    %v4221 = vrcp.pop %v4218
    %v4222 = vmul.f32 1.0, %v4221
    %v4223 = vadd.f32 %v3992, %v4134
    %v4224 = vadd.f32 %v3993, %v4136
    %v4225 = vxor.u32 %v4223, 2147483648
    %v4226 = vxor.u32 %v4224, 2147483648
    %v4227 = vmul.f32 %v4225, 1.442695
    %v4228 = vpow.pop %v4227
    %v4229 = vmul.f32 %v4226, 1.442695
    %v4230 = vpow.pop %v4229
    %v4231 = vadd.f32 %v4228, 1.0
    %v4232 = vadd.f32 %v4230, 1.0
    %v4233 = vrcp.pop %v4231
    %v4234 = vmul.f32 1.0, %v4233
    %v4235 = vrcp.pop %v4232
    %v4236 = vmul.f32 1.0, %v4235
    %v4237 = vadd.f32 %v4205, %v3528
    %v4238 = vadd.f32 %v4207, %v3532
    %v4239 = vmul.f32 %v4220, %v4237
    %v4240 = vmul.f32 %v4222, %v4238
    %v4241 = vadd.f32 %v3994, %v4239
    %v4242 = vadd.f32 %v3995, %v4240
    %v4243 = vtanh.pop %v4241
    %v4244 = vtanh.pop %v4242
    %v4245 = vsub.f32 1.0, %v4234
    %v4246 = vsub.f32 1.0, %v4236
    %v4247 = vmul.f32 %v4245, %v4243
    %v4248 = vmul.f32 %v4246, %v4244
    %v4249 = vmul.f32 %v4234, %v3988
    %v4250 = vmul.f32 %v4236, %v3989
    %v4251 = vadd.f32 %v4247, %v4249
    %v4252 = vadd.f32 %v4248, %v4250
    %v4253 = vld [vmem:[%s1294] sm:$0xff]
    %v4254 = vld [vmem:[%s1294 + $0x8] sm:$0xff]
    %v4255 = vld [vmem:[%s1294 + $0x10] sm:$0xff]
    %v4256 = vld [vmem:[%s1294 + $0x18] sm:$0xff]
    %v4257 = vld [vmem:[%s1294 + $0x20] sm:$0xff]
    %v4258 = vld [vmem:[%s1294 + $0x28] sm:$0xff]
    %4259 = vmatprep.subr.mxu0 %v3626
    %4260 = vmatpush1.msra.mxu0 %v3625
    %4261 = vmatprep.subr.mxu0 %v3620
    %4262 = vmatpush1.msra.mxu0 %v3619
    %4263 = vmatprep.subr.mxu0 %v3614
    %4264 = vmatpush1.msra.mxu0 %v3613
    %4265 = vmatprep.subr.mxu0 %v3608
    %4266 = vmatpush1.msra.mxu0 %v3607
    %4267 = vmatprep.subr.mxu0 %v3602
    %4268 = vmatpush1.msra.mxu0 %v3601
    %4269 = vmatprep.subr.mxu0 %v3596
    %4270 = vmatpush1.msra.mxu0 %v3595
    %4271 = vmatprep.subr.mxu0 %v3590
    %4272 = vmatpush1.msra.mxu0 %v3589
    %4273 = vmatprep.subr.mxu0 %v3584
    %4274 = vmatpush1.msra.mxu0 %v3583
    %4275 = vmatprep.subr.mxu0 %v3578
    %4276 = vmatpush1.msra.mxu0 %v3577
    %4277 = vmatprep.subr.mxu0 %v3572
    %4278 = vmatpush1.msra.mxu0 %v3571
    %4279 = vmatprep.subr.mxu0 %v3566
    %4280 = vmatpush1.msra.mxu0 %v3565
    %4281 = vmatprep.subr.mxu0 %v3560
    %4282 = vmatpush1.msra.mxu0 %v3559
    %4283 = vmatprep.subr.mxu0 %v3554
    %4284 = vmatpush1.msra.mxu0 %v3553
    %4285 = vmatprep.subr.mxu0 %v3548
    %4286 = vmatpush1.msra.mxu0 %v3547
    %4287 = vmatprep.subr.mxu0 %v3542
    %4288 = vmatpush1.msra.mxu0 %v3541
    %4289 = vmatprep.subr.mxu0 %v3536
    %4290 = vmatpush1.msra.mxu0 %v3535
    %4291 = vmatprep.subr.mxu0 %v3722
    %4292 = vmatpush2.msra.mxu0 %v3721
    %4293 = vmatprep.subr.mxu0 %v3716
    %4294 = vmatpush2.msra.mxu0 %v3715
    %4295 = vmatprep.subr.mxu0 %v3710
    %4296 = vmatpush2.msra.mxu0 %v3709
    %4297 = vmatprep.subr.mxu0 %v3704
    %4298 = vmatpush2.msra.mxu0 %v3703
    %4299 = vmatprep.subr.mxu0 %v3698
    %4300 = vmatpush2.msra.mxu0 %v3697
    %4301 = vmatprep.subr.mxu0 %v3692
    %4302 = vmatpush2.msra.mxu0 %v3691
    %4303 = vmatprep.subr.mxu0 %v3686
    %4304 = vmatpush2.msra.mxu0 %v3685
    %4305 = vmatprep.subr.mxu0 %v3680
    %4306 = vmatpush2.msra.mxu0 %v3679
    %4307 = vmatprep.subr.mxu0 %v3674
    %4308 = vmatpush2.msra.mxu0 %v3673
    %4309 = vmatprep.subr.mxu0 %v3668
    %4310 = vmatpush2.msra.mxu0 %v3667
    %4311 = vmatprep.subr.mxu0 %v3662
    %4312 = vmatpush2.msra.mxu0 %v3661
    %4313 = vmatprep.subr.mxu0 %v3656
    %4314 = vmatpush2.msra.mxu0 %v3655
    %4315 = vmatprep.subr.mxu0 %v3650
    %4316 = vmatpush2.msra.mxu0 %v3649
    %4317 = vmatprep.subr.mxu0 %v3644
    %4318 = vmatpush2.msra.mxu0 %v3643
    %4319 = vmatprep.subr.mxu0 %v3638
    %4320 = vmatpush2.msra.mxu0 %v3637
    %4321 = vmatprep.subr.mxu0 %v3632
    %4322 = vmatpush2.msra.mxu0 %v3631
    %4323 = vmatprep.mubr.f32.mxu0 %v4252
    %4324 = vmatmul.mubr.f32.gmra.mxu0 %v4251
    %v4325 = vpop.f32.mrf.mxu0
    %v4326 = vadd.f32 0.0, %v4325
    %v4327 = vpop.f32.mrf.mxu0
    %v4328 = vadd.f32 0.0, %v4327
    %4329 = vdwg.mxu0
    %4330 = vmatprep.subr.mxu0 %v3628
    %4331 = vmatpush1.msra.mxu0 %v3627
    %4332 = vmatprep.subr.mxu0 %v3622
    %4333 = vmatpush1.msra.mxu0 %v3621
    %4334 = vmatprep.subr.mxu0 %v3616
    %4335 = vmatpush1.msra.mxu0 %v3615
    %4336 = vmatprep.subr.mxu0 %v3610
    %4337 = vmatpush1.msra.mxu0 %v3609
    %4338 = vmatprep.subr.mxu0 %v3604
    %4339 = vmatpush1.msra.mxu0 %v3603
    %4340 = vmatprep.subr.mxu0 %v3598
    %4341 = vmatpush1.msra.mxu0 %v3597
    %4342 = vmatprep.subr.mxu0 %v3592
    %4343 = vmatpush1.msra.mxu0 %v3591
    %4344 = vmatprep.subr.mxu0 %v3586
    %4345 = vmatpush1.msra.mxu0 %v3585
    %4346 = vmatprep.subr.mxu0 %v3580
    %4347 = vmatpush1.msra.mxu0 %v3579
    %4348 = vmatprep.subr.mxu0 %v3574
    %4349 = vmatpush1.msra.mxu0 %v3573
    %4350 = vmatprep.subr.mxu0 %v3568
    %4351 = vmatpush1.msra.mxu0 %v3567
    %4352 = vmatprep.subr.mxu0 %v3562
    %4353 = vmatpush1.msra.mxu0 %v3561
    %4354 = vmatprep.subr.mxu0 %v3556
    %4355 = vmatpush1.msra.mxu0 %v3555
    %4356 = vmatprep.subr.mxu0 %v3550
    %4357 = vmatpush1.msra.mxu0 %v3549
    %4358 = vmatprep.subr.mxu0 %v3544
    %4359 = vmatpush1.msra.mxu0 %v3543
    %4360 = vmatprep.subr.mxu0 %v3538
    %4361 = vmatpush1.msra.mxu0 %v3537
    %4362 = vmatprep.subr.mxu0 %v3724
    %4363 = vmatpush2.msra.mxu0 %v3723
    %4364 = vmatprep.subr.mxu0 %v3718
    %4365 = vmatpush2.msra.mxu0 %v3717
    %4366 = vmatprep.subr.mxu0 %v3712
    %4367 = vmatpush2.msra.mxu0 %v3711
    %4368 = vmatprep.subr.mxu0 %v3706
    %4369 = vmatpush2.msra.mxu0 %v3705
    %4370 = vmatprep.subr.mxu0 %v3700
    %4371 = vmatpush2.msra.mxu0 %v3699
    %4372 = vmatprep.subr.mxu0 %v3694
    %4373 = vmatpush2.msra.mxu0 %v3693
    %4374 = vmatprep.subr.mxu0 %v3688
    %4375 = vmatpush2.msra.mxu0 %v3687
    %4376 = vmatprep.subr.mxu0 %v3682
    %4377 = vmatpush2.msra.mxu0 %v3681
    %4378 = vmatprep.subr.mxu0 %v3676
    %4379 = vmatpush2.msra.mxu0 %v3675
    %4380 = vmatprep.subr.mxu0 %v3670
    %4381 = vmatpush2.msra.mxu0 %v3669
    %4382 = vmatprep.subr.mxu0 %v3664
    %4383 = vmatpush2.msra.mxu0 %v3663
    %4384 = vmatprep.subr.mxu0 %v3658
    %4385 = vmatpush2.msra.mxu0 %v3657
    %4386 = vmatprep.subr.mxu0 %v3652
    %4387 = vmatpush2.msra.mxu0 %v3651
    %4388 = vmatprep.subr.mxu0 %v3646
    %4389 = vmatpush2.msra.mxu0 %v3645
    %4390 = vmatprep.subr.mxu0 %v3640
    %4391 = vmatpush2.msra.mxu0 %v3639
    %4392 = vmatprep.subr.mxu0 %v3634
    %4393 = vmatpush2.msra.mxu0 %v3633
    %4394 = vmatprep.mubr.f32.mxu0 %v4252
    %4395 = vmatmul.mubr.f32.gmra.mxu0 %v4251
    %v4396 = vpop.f32.mrf.mxu0
    %v4397 = vadd.f32 0.0, %v4396
    %v4398 = vpop.f32.mrf.mxu0
    %v4399 = vadd.f32 0.0, %v4398
    %4400 = vdwg.mxu0
    %4401 = vmatprep.subr.mxu0 %v3630
    %4402 = vmatpush1.msra.mxu0 %v3629
    %4403 = vmatprep.subr.mxu0 %v3624
    %4404 = vmatpush1.msra.mxu0 %v3623
    %4405 = vmatprep.subr.mxu0 %v3618
    %4406 = vmatpush1.msra.mxu0 %v3617
    %4407 = vmatprep.subr.mxu0 %v3612
    %4408 = vmatpush1.msra.mxu0 %v3611
    %4409 = vmatprep.subr.mxu0 %v3606
    %4410 = vmatpush1.msra.mxu0 %v3605
    %4411 = vmatprep.subr.mxu0 %v3600
    %4412 = vmatpush1.msra.mxu0 %v3599
    %4413 = vmatprep.subr.mxu0 %v3594
    %4414 = vmatpush1.msra.mxu0 %v3593
    %4415 = vmatprep.subr.mxu0 %v3588
    %4416 = vmatpush1.msra.mxu0 %v3587
    %4417 = vmatprep.subr.mxu0 %v3582
    %4418 = vmatpush1.msra.mxu0 %v3581
    %4419 = vmatprep.subr.mxu0 %v3576
    %4420 = vmatpush1.msra.mxu0 %v3575
    %4421 = vmatprep.subr.mxu0 %v3570
    %4422 = vmatpush1.msra.mxu0 %v3569
    %4423 = vmatprep.subr.mxu0 %v3564
    %4424 = vmatpush1.msra.mxu0 %v3563
    %4425 = vmatprep.subr.mxu0 %v3558
    %4426 = vmatpush1.msra.mxu0 %v3557
    %4427 = vmatprep.subr.mxu0 %v3552
    %4428 = vmatpush1.msra.mxu0 %v3551
    %4429 = vmatprep.subr.mxu0 %v3546
    %4430 = vmatpush1.msra.mxu0 %v3545
    %4431 = vmatprep.subr.mxu0 %v3540
    %4432 = vmatpush1.msra.mxu0 %v3539
    %4433 = vmatprep.subr.mxu0 %v3726
    %4434 = vmatpush2.msra.mxu0 %v3725
    %4435 = vmatprep.subr.mxu0 %v3720
    %4436 = vmatpush2.msra.mxu0 %v3719
    %4437 = vmatprep.subr.mxu0 %v3714
    %4438 = vmatpush2.msra.mxu0 %v3713
    %4439 = vmatprep.subr.mxu0 %v3708
    %4440 = vmatpush2.msra.mxu0 %v3707
    %4441 = vmatprep.subr.mxu0 %v3702
    %4442 = vmatpush2.msra.mxu0 %v3701
    %4443 = vmatprep.subr.mxu0 %v3696
    %4444 = vmatpush2.msra.mxu0 %v3695
    %4445 = vmatprep.subr.mxu0 %v3690
    %4446 = vmatpush2.msra.mxu0 %v3689
    %4447 = vmatprep.subr.mxu0 %v3684
    %4448 = vmatpush2.msra.mxu0 %v3683
    %4449 = vmatprep.subr.mxu0 %v3678
    %4450 = vmatpush2.msra.mxu0 %v3677
    %4451 = vmatprep.subr.mxu0 %v3672
    %4452 = vmatpush2.msra.mxu0 %v3671
    %4453 = vmatprep.subr.mxu0 %v3666
    %4454 = vmatpush2.msra.mxu0 %v3665
    %4455 = vmatprep.subr.mxu0 %v3660
    %4456 = vmatpush2.msra.mxu0 %v3659
    %4457 = vmatprep.subr.mxu0 %v3654
    %4458 = vmatpush2.msra.mxu0 %v3653
    %4459 = vmatprep.subr.mxu0 %v3648
    %4460 = vmatpush2.msra.mxu0 %v3647
    %4461 = vmatprep.subr.mxu0 %v3642
    %4462 = vmatpush2.msra.mxu0 %v3641
    %4463 = vmatprep.subr.mxu0 %v3636
    %4464 = vmatpush2.msra.mxu0 %v3635
    %4465 = vmatprep.mubr.f32.mxu0 %v4252
    %4466 = vmatmul.mubr.f32.gmra.mxu0 %v4251
    %v4467 = vpop.f32.mrf.mxu0
    %v4468 = vadd.f32 0.0, %v4467
    %v4469 = vpop.f32.mrf.mxu0
    %v4470 = vadd.f32 0.0, %v4469
    %4471 = vdwg.mxu0
    %v4472 = vadd.f32 %v4253, %v4326
    %v4473 = vadd.f32 %v4254, %v4328
    %v4474 = vxor.u32 %v4472, 2147483648
    %v4475 = vxor.u32 %v4473, 2147483648
    %v4476 = vmul.f32 %v4474, 1.442695
    %v4477 = vpow.pop %v4476
    %v4478 = vmul.f32 %v4475, 1.442695
    %v4479 = vpow.pop %v4478
    %v4480 = vadd.f32 %v4477, 1.0
    %v4481 = vadd.f32 %v4479, 1.0
    %v4482 = vrcp.pop %v4480
    %v4483 = vmul.f32 1.0, %v4482
    %v4484 = vrcp.pop %v4481
    %v4485 = vmul.f32 1.0, %v4484
    %v4486 = vadd.f32 %v4255, %v4397
    %v4487 = vadd.f32 %v4256, %v4399
    %v4488 = vxor.u32 %v4486, 2147483648
    %v4489 = vxor.u32 %v4487, 2147483648
    %v4490 = vmul.f32 %v4488, 1.442695
    %v4491 = vpow.pop %v4490
    %v4492 = vmul.f32 %v4489, 1.442695
    %v4493 = vpow.pop %v4492
    %v4494 = vadd.f32 %v4491, 1.0
    %v4495 = vadd.f32 %v4493, 1.0
    %v4496 = vrcp.pop %v4494
    %v4497 = vmul.f32 1.0, %v4496
    %v4498 = vrcp.pop %v4495
    %v4499 = vmul.f32 1.0, %v4498
    %v4500 = vadd.f32 %v4468, %v3528
    %v4501 = vadd.f32 %v4470, %v3532
    %v4502 = vmul.f32 %v4483, %v4500
    %v4503 = vmul.f32 %v4485, %v4501
    %v4504 = vadd.f32 %v4257, %v4502
    %v4505 = vadd.f32 %v4258, %v4503
    %v4506 = vtanh.pop %v4504
    %v4507 = vtanh.pop %v4505
    %v4508 = vsub.f32 1.0, %v4497
    %v4509 = vsub.f32 1.0, %v4499
    %v4510 = vmul.f32 %v4508, %v4506
    %v4511 = vmul.f32 %v4509, %v4507
    %v4512 = vmul.f32 %v4497, %v4251
    %v4513 = vmul.f32 %v4499, %v4252
    %v4514 = vadd.f32 %v4510, %v4512
    %v4515 = vadd.f32 %v4511, %v4513
    %v4516 = vld [vmem:[%s1561] sm:$0xff]
    %v4517 = vld [vmem:[%s1561 + $0x8] sm:$0xff]
    %v4518 = vld [vmem:[%s1561 + $0x10] sm:$0xff]
    %v4519 = vld [vmem:[%s1561 + $0x18] sm:$0xff]
    %v4520 = vld [vmem:[%s1561 + $0x20] sm:$0xff]
    %v4521 = vld [vmem:[%s1561 + $0x28] sm:$0xff]
    %4522 = vmatprep.subr.mxu0 %v3626
    %4523 = vmatpush1.msra.mxu0 %v3625
    %4524 = vmatprep.subr.mxu0 %v3620
    %4525 = vmatpush1.msra.mxu0 %v3619
    %4526 = vmatprep.subr.mxu0 %v3614
    %4527 = vmatpush1.msra.mxu0 %v3613
    %4528 = vmatprep.subr.mxu0 %v3608
    %4529 = vmatpush1.msra.mxu0 %v3607
    %4530 = vmatprep.subr.mxu0 %v3602
    %4531 = vmatpush1.msra.mxu0 %v3601
    %4532 = vmatprep.subr.mxu0 %v3596
    %4533 = vmatpush1.msra.mxu0 %v3595
    %4534 = vmatprep.subr.mxu0 %v3590
    %4535 = vmatpush1.msra.mxu0 %v3589
    %4536 = vmatprep.subr.mxu0 %v3584
    %4537 = vmatpush1.msra.mxu0 %v3583
    %4538 = vmatprep.subr.mxu0 %v3578
    %4539 = vmatpush1.msra.mxu0 %v3577
    %4540 = vmatprep.subr.mxu0 %v3572
    %4541 = vmatpush1.msra.mxu0 %v3571
    %4542 = vmatprep.subr.mxu0 %v3566
    %4543 = vmatpush1.msra.mxu0 %v3565
    %4544 = vmatprep.subr.mxu0 %v3560
    %4545 = vmatpush1.msra.mxu0 %v3559
    %4546 = vmatprep.subr.mxu0 %v3554
    %4547 = vmatpush1.msra.mxu0 %v3553
    %4548 = vmatprep.subr.mxu0 %v3548
    %4549 = vmatpush1.msra.mxu0 %v3547
    %4550 = vmatprep.subr.mxu0 %v3542
    %4551 = vmatpush1.msra.mxu0 %v3541
    %4552 = vmatprep.subr.mxu0 %v3536
    %4553 = vmatpush1.msra.mxu0 %v3535
    %4554 = vmatprep.subr.mxu0 %v3722
    %4555 = vmatpush2.msra.mxu0 %v3721
    %4556 = vmatprep.subr.mxu0 %v3716
    %4557 = vmatpush2.msra.mxu0 %v3715
    %4558 = vmatprep.subr.mxu0 %v3710
    %4559 = vmatpush2.msra.mxu0 %v3709
    %4560 = vmatprep.subr.mxu0 %v3704
    %4561 = vmatpush2.msra.mxu0 %v3703
    %4562 = vmatprep.subr.mxu0 %v3698
    %4563 = vmatpush2.msra.mxu0 %v3697
    %4564 = vmatprep.subr.mxu0 %v3692
    %4565 = vmatpush2.msra.mxu0 %v3691
    %4566 = vmatprep.subr.mxu0 %v3686
    %4567 = vmatpush2.msra.mxu0 %v3685
    %4568 = vmatprep.subr.mxu0 %v3680
    %4569 = vmatpush2.msra.mxu0 %v3679
    %4570 = vmatprep.subr.mxu0 %v3674
    %4571 = vmatpush2.msra.mxu0 %v3673
    %4572 = vmatprep.subr.mxu0 %v3668
    %4573 = vmatpush2.msra.mxu0 %v3667
    %4574 = vmatprep.subr.mxu0 %v3662
    %4575 = vmatpush2.msra.mxu0 %v3661
    %4576 = vmatprep.subr.mxu0 %v3656
    %4577 = vmatpush2.msra.mxu0 %v3655
    %4578 = vmatprep.subr.mxu0 %v3650
    %4579 = vmatpush2.msra.mxu0 %v3649
    %4580 = vmatprep.subr.mxu0 %v3644
    %4581 = vmatpush2.msra.mxu0 %v3643
    %4582 = vmatprep.subr.mxu0 %v3638
    %4583 = vmatpush2.msra.mxu0 %v3637
    %4584 = vmatprep.subr.mxu0 %v3632
    %4585 = vmatpush2.msra.mxu0 %v3631
    %4586 = vmatprep.mubr.f32.mxu0 %v4515
    %4587 = vmatmul.mubr.f32.gmra.mxu0 %v4514
    %v4588 = vpop.f32.mrf.mxu0
    %v4589 = vadd.f32 0.0, %v4588
    %v4590 = vpop.f32.mrf.mxu0
    %v4591 = vadd.f32 0.0, %v4590
    %4592 = vdwg.mxu0
    %4593 = vmatprep.subr.mxu0 %v3628
    %4594 = vmatpush1.msra.mxu0 %v3627
    %4595 = vmatprep.subr.mxu0 %v3622
    %4596 = vmatpush1.msra.mxu0 %v3621
    %4597 = vmatprep.subr.mxu0 %v3616
    %4598 = vmatpush1.msra.mxu0 %v3615
    %4599 = vmatprep.subr.mxu0 %v3610
    %4600 = vmatpush1.msra.mxu0 %v3609
    %4601 = vmatprep.subr.mxu0 %v3604
    %4602 = vmatpush1.msra.mxu0 %v3603
    %4603 = vmatprep.subr.mxu0 %v3598
    %4604 = vmatpush1.msra.mxu0 %v3597
    %4605 = vmatprep.subr.mxu0 %v3592
    %4606 = vmatpush1.msra.mxu0 %v3591
    %4607 = vmatprep.subr.mxu0 %v3586
    %4608 = vmatpush1.msra.mxu0 %v3585
    %4609 = vmatprep.subr.mxu0 %v3580
    %4610 = vmatpush1.msra.mxu0 %v3579
    %4611 = vmatprep.subr.mxu0 %v3574
    %4612 = vmatpush1.msra.mxu0 %v3573
    %4613 = vmatprep.subr.mxu0 %v3568
    %4614 = vmatpush1.msra.mxu0 %v3567
    %4615 = vmatprep.subr.mxu0 %v3562
    %4616 = vmatpush1.msra.mxu0 %v3561
    %4617 = vmatprep.subr.mxu0 %v3556
    %4618 = vmatpush1.msra.mxu0 %v3555
    %4619 = vmatprep.subr.mxu0 %v3550
    %4620 = vmatpush1.msra.mxu0 %v3549
    %4621 = vmatprep.subr.mxu0 %v3544
    %4622 = vmatpush1.msra.mxu0 %v3543
    %4623 = vmatprep.subr.mxu0 %v3538
    %4624 = vmatpush1.msra.mxu0 %v3537
    %4625 = vmatprep.subr.mxu0 %v3724
    %4626 = vmatpush2.msra.mxu0 %v3723
    %4627 = vmatprep.subr.mxu0 %v3718
    %4628 = vmatpush2.msra.mxu0 %v3717
    %4629 = vmatprep.subr.mxu0 %v3712
    %4630 = vmatpush2.msra.mxu0 %v3711
    %4631 = vmatprep.subr.mxu0 %v3706
    %4632 = vmatpush2.msra.mxu0 %v3705
    %4633 = vmatprep.subr.mxu0 %v3700
    %4634 = vmatpush2.msra.mxu0 %v3699
    %4635 = vmatprep.subr.mxu0 %v3694
    %4636 = vmatpush2.msra.mxu0 %v3693
    %4637 = vmatprep.subr.mxu0 %v3688
    %4638 = vmatpush2.msra.mxu0 %v3687
    %4639 = vmatprep.subr.mxu0 %v3682
    %4640 = vmatpush2.msra.mxu0 %v3681
    %4641 = vmatprep.subr.mxu0 %v3676
    %4642 = vmatpush2.msra.mxu0 %v3675
    %4643 = vmatprep.subr.mxu0 %v3670
    %4644 = vmatpush2.msra.mxu0 %v3669
    %4645 = vmatprep.subr.mxu0 %v3664
    %4646 = vmatpush2.msra.mxu0 %v3663
    %4647 = vmatprep.subr.mxu0 %v3658
    %4648 = vmatpush2.msra.mxu0 %v3657
    %4649 = vmatprep.subr.mxu0 %v3652
    %4650 = vmatpush2.msra.mxu0 %v3651
    %4651 = vmatprep.subr.mxu0 %v3646
    %4652 = vmatpush2.msra.mxu0 %v3645
    %4653 = vmatprep.subr.mxu0 %v3640
    %4654 = vmatpush2.msra.mxu0 %v3639
    %4655 = vmatprep.subr.mxu0 %v3634
    %4656 = vmatpush2.msra.mxu0 %v3633
    %4657 = vmatprep.mubr.f32.mxu0 %v4515
    %4658 = vmatmul.mubr.f32.gmra.mxu0 %v4514
    %v4659 = vpop.f32.mrf.mxu0
    %v4660 = vadd.f32 0.0, %v4659
    %v4661 = vpop.f32.mrf.mxu0
    %v4662 = vadd.f32 0.0, %v4661
    %4663 = vdwg.mxu0
    %4664 = vmatprep.subr.mxu0 %v3630
    %4665 = vmatpush1.msra.mxu0 %v3629
    %4666 = vmatprep.subr.mxu0 %v3624
    %4667 = vmatpush1.msra.mxu0 %v3623
    %4668 = vmatprep.subr.mxu0 %v3618
    %4669 = vmatpush1.msra.mxu0 %v3617
    %4670 = vmatprep.subr.mxu0 %v3612
    %4671 = vmatpush1.msra.mxu0 %v3611
    %4672 = vmatprep.subr.mxu0 %v3606
    %4673 = vmatpush1.msra.mxu0 %v3605
    %4674 = vmatprep.subr.mxu0 %v3600
    %4675 = vmatpush1.msra.mxu0 %v3599
    %4676 = vmatprep.subr.mxu0 %v3594
    %4677 = vmatpush1.msra.mxu0 %v3593
    %4678 = vmatprep.subr.mxu0 %v3588
    %4679 = vmatpush1.msra.mxu0 %v3587
    %4680 = vmatprep.subr.mxu0 %v3582
    %4681 = vmatpush1.msra.mxu0 %v3581
    %4682 = vmatprep.subr.mxu0 %v3576
    %4683 = vmatpush1.msra.mxu0 %v3575
    %4684 = vmatprep.subr.mxu0 %v3570
    %4685 = vmatpush1.msra.mxu0 %v3569
    %4686 = vmatprep.subr.mxu0 %v3564
    %4687 = vmatpush1.msra.mxu0 %v3563
    %4688 = vmatprep.subr.mxu0 %v3558
    %4689 = vmatpush1.msra.mxu0 %v3557
    %4690 = vmatprep.subr.mxu0 %v3552
    %4691 = vmatpush1.msra.mxu0 %v3551
    %4692 = vmatprep.subr.mxu0 %v3546
    %4693 = vmatpush1.msra.mxu0 %v3545
    %4694 = vmatprep.subr.mxu0 %v3540
    %4695 = vmatpush1.msra.mxu0 %v3539
    %4696 = vmatprep.subr.mxu0 %v3726
    %4697 = vmatpush2.msra.mxu0 %v3725
    %4698 = vmatprep.subr.mxu0 %v3720
    %4699 = vmatpush2.msra.mxu0 %v3719
    %4700 = vmatprep.subr.mxu0 %v3714
    %4701 = vmatpush2.msra.mxu0 %v3713
    %4702 = vmatprep.subr.mxu0 %v3708
    %4703 = vmatpush2.msra.mxu0 %v3707
    %4704 = vmatprep.subr.mxu0 %v3702
    %4705 = vmatpush2.msra.mxu0 %v3701
    %4706 = vmatprep.subr.mxu0 %v3696
    %4707 = vmatpush2.msra.mxu0 %v3695
    %4708 = vmatprep.subr.mxu0 %v3690
    %4709 = vmatpush2.msra.mxu0 %v3689
    %4710 = vmatprep.subr.mxu0 %v3684
    %4711 = vmatpush2.msra.mxu0 %v3683
    %4712 = vmatprep.subr.mxu0 %v3678
    %4713 = vmatpush2.msra.mxu0 %v3677
    %4714 = vmatprep.subr.mxu0 %v3672
    %4715 = vmatpush2.msra.mxu0 %v3671
    %4716 = vmatprep.subr.mxu0 %v3666
    %4717 = vmatpush2.msra.mxu0 %v3665
    %4718 = vmatprep.subr.mxu0 %v3660
    %4719 = vmatpush2.msra.mxu0 %v3659
    %4720 = vmatprep.subr.mxu0 %v3654
    %4721 = vmatpush2.msra.mxu0 %v3653
    %4722 = vmatprep.subr.mxu0 %v3648
    %4723 = vmatpush2.msra.mxu0 %v3647
    %4724 = vmatprep.subr.mxu0 %v3642
    %4725 = vmatpush2.msra.mxu0 %v3641
    %4726 = vmatprep.subr.mxu0 %v3636
    %4727 = vmatpush2.msra.mxu0 %v3635
    %4728 = vmatprep.mubr.f32.mxu0 %v4515
    %4729 = vmatmul.mubr.f32.gmra.mxu0 %v4514
    %v4730 = vpop.f32.mrf.mxu0
    %v4731 = vadd.f32 0.0, %v4730
    %v4732 = vpop.f32.mrf.mxu0
    %v4733 = vadd.f32 0.0, %v4732
    %4734 = vdwg.mxu0
    %v4735 = vadd.f32 %v4516, %v4589
    %v4736 = vadd.f32 %v4517, %v4591
    %v4737 = vxor.u32 %v4735, 2147483648
    %v4738 = vxor.u32 %v4736, 2147483648
    %v4739 = vmul.f32 %v4737, 1.442695
    %v4740 = vpow.pop %v4739
    %v4741 = vmul.f32 %v4738, 1.442695
    %v4742 = vpow.pop %v4741
    %v4743 = vadd.f32 %v4740, 1.0
    %v4744 = vadd.f32 %v4742, 1.0
    %v4745 = vrcp.pop %v4743
    %v4746 = vmul.f32 1.0, %v4745
    %v4747 = vrcp.pop %v4744
    %v4748 = vmul.f32 1.0, %v4747
    %v4749 = vadd.f32 %v4518, %v4660
    %v4750 = vadd.f32 %v4519, %v4662
    %v4751 = vxor.u32 %v4749, 2147483648
    %v4752 = vxor.u32 %v4750, 2147483648
    %v4753 = vmul.f32 %v4751, 1.442695
    %v4754 = vpow.pop %v4753
    %v4755 = vmul.f32 %v4752, 1.442695
    %v4756 = vpow.pop %v4755
    %v4757 = vadd.f32 %v4754, 1.0
    %v4758 = vadd.f32 %v4756, 1.0
    %v4759 = vrcp.pop %v4757
    %v4760 = vmul.f32 1.0, %v4759
    %v4761 = vrcp.pop %v4758
    %v4762 = vmul.f32 1.0, %v4761
    %v4763 = vadd.f32 %v4731, %v3528
    %v4764 = vadd.f32 %v4733, %v3532
    %v4765 = vmul.f32 %v4746, %v4763
    %v4766 = vmul.f32 %v4748, %v4764
    %v4767 = vadd.f32 %v4520, %v4765
    %v4768 = vadd.f32 %v4521, %v4766
    %v4769 = vtanh.pop %v4767
    %v4770 = vtanh.pop %v4768
    %v4771 = vsub.f32 1.0, %v4760
    %v4772 = vsub.f32 1.0, %v4762
    %v4773 = vmul.f32 %v4771, %v4769
    %v4774 = vmul.f32 %v4772, %v4770
    %v4775 = vmul.f32 %v4760, %v4514
    %v4776 = vmul.f32 %v4762, %v4515
    %v4777 = vadd.f32 %v4773, %v4775
    %v4778 = vadd.f32 %v4774, %v4776
    %v4779 = vld [vmem:[%s1828] sm:$0xff]
    %v4780 = vld [vmem:[%s1828 + $0x8] sm:$0xff]
    %v4781 = vld [vmem:[%s1828 + $0x10] sm:$0xff]
    %v4782 = vld [vmem:[%s1828 + $0x18] sm:$0xff]
    %v4783 = vld [vmem:[%s1828 + $0x20] sm:$0xff]
    %v4784 = vld [vmem:[%s1828 + $0x28] sm:$0xff]
    %4785 = vmatprep.subr.mxu0 %v3626
    %4786 = vmatpush1.msra.mxu0 %v3625
    %4787 = vmatprep.subr.mxu0 %v3620
    %4788 = vmatpush1.msra.mxu0 %v3619
    %4789 = vmatprep.subr.mxu0 %v3614
    %4790 = vmatpush1.msra.mxu0 %v3613
    %4791 = vmatprep.subr.mxu0 %v3608
    %4792 = vmatpush1.msra.mxu0 %v3607
    %4793 = vmatprep.subr.mxu0 %v3602
    %4794 = vmatpush1.msra.mxu0 %v3601
    %4795 = vmatprep.subr.mxu0 %v3596
    %4796 = vmatpush1.msra.mxu0 %v3595
    %4797 = vmatprep.subr.mxu0 %v3590
    %4798 = vmatpush1.msra.mxu0 %v3589
    %4799 = vmatprep.subr.mxu0 %v3584
    %4800 = vmatpush1.msra.mxu0 %v3583
    %4801 = vmatprep.subr.mxu0 %v3578
    %4802 = vmatpush1.msra.mxu0 %v3577
    %4803 = vmatprep.subr.mxu0 %v3572
    %4804 = vmatpush1.msra.mxu0 %v3571
    %4805 = vmatprep.subr.mxu0 %v3566
    %4806 = vmatpush1.msra.mxu0 %v3565
    %4807 = vmatprep.subr.mxu0 %v3560
    %4808 = vmatpush1.msra.mxu0 %v3559
    %4809 = vmatprep.subr.mxu0 %v3554
    %4810 = vmatpush1.msra.mxu0 %v3553
    %4811 = vmatprep.subr.mxu0 %v3548
    %4812 = vmatpush1.msra.mxu0 %v3547
    %4813 = vmatprep.subr.mxu0 %v3542
    %4814 = vmatpush1.msra.mxu0 %v3541
    %4815 = vmatprep.subr.mxu0 %v3536
    %4816 = vmatpush1.msra.mxu0 %v3535
    %4817 = vmatprep.subr.mxu0 %v3722
    %4818 = vmatpush2.msra.mxu0 %v3721
    %4819 = vmatprep.subr.mxu0 %v3716
    %4820 = vmatpush2.msra.mxu0 %v3715
    %4821 = vmatprep.subr.mxu0 %v3710
    %4822 = vmatpush2.msra.mxu0 %v3709
    %4823 = vmatprep.subr.mxu0 %v3704
    %4824 = vmatpush2.msra.mxu0 %v3703
    %4825 = vmatprep.subr.mxu0 %v3698
    %4826 = vmatpush2.msra.mxu0 %v3697
    %4827 = vmatprep.subr.mxu0 %v3692
    %4828 = vmatpush2.msra.mxu0 %v3691
    %4829 = vmatprep.subr.mxu0 %v3686
    %4830 = vmatpush2.msra.mxu0 %v3685
    %4831 = vmatprep.subr.mxu0 %v3680
    %4832 = vmatpush2.msra.mxu0 %v3679
    %4833 = vmatprep.subr.mxu0 %v3674
    %4834 = vmatpush2.msra.mxu0 %v3673
    %4835 = vmatprep.subr.mxu0 %v3668
    %4836 = vmatpush2.msra.mxu0 %v3667
    %4837 = vmatprep.subr.mxu0 %v3662
    %4838 = vmatpush2.msra.mxu0 %v3661
    %4839 = vmatprep.subr.mxu0 %v3656
    %4840 = vmatpush2.msra.mxu0 %v3655
    %4841 = vmatprep.subr.mxu0 %v3650
    %4842 = vmatpush2.msra.mxu0 %v3649
    %4843 = vmatprep.subr.mxu0 %v3644
    %4844 = vmatpush2.msra.mxu0 %v3643
    %4845 = vmatprep.subr.mxu0 %v3638
    %4846 = vmatpush2.msra.mxu0 %v3637
    %4847 = vmatprep.subr.mxu0 %v3632
    %4848 = vmatpush2.msra.mxu0 %v3631
    %4849 = vmatprep.mubr.f32.mxu0 %v4778
    %4850 = vmatmul.mubr.f32.gmra.mxu0 %v4777
    %v4851 = vpop.f32.mrf.mxu0
    %v4852 = vadd.f32 0.0, %v4851
    %v4853 = vpop.f32.mrf.mxu0
    %v4854 = vadd.f32 0.0, %v4853
    %4855 = vdwg.mxu0
    %4856 = vmatprep.subr.mxu0 %v3628
    %4857 = vmatpush1.msra.mxu0 %v3627
    %4858 = vmatprep.subr.mxu0 %v3622
    %4859 = vmatpush1.msra.mxu0 %v3621
    %4860 = vmatprep.subr.mxu0 %v3616
    %4861 = vmatpush1.msra.mxu0 %v3615
    %4862 = vmatprep.subr.mxu0 %v3610
    %4863 = vmatpush1.msra.mxu0 %v3609
    %4864 = vmatprep.subr.mxu0 %v3604
    %4865 = vmatpush1.msra.mxu0 %v3603
    %4866 = vmatprep.subr.mxu0 %v3598
    %4867 = vmatpush1.msra.mxu0 %v3597
    %4868 = vmatprep.subr.mxu0 %v3592
    %4869 = vmatpush1.msra.mxu0 %v3591
    %4870 = vmatprep.subr.mxu0 %v3586
    %4871 = vmatpush1.msra.mxu0 %v3585
    %4872 = vmatprep.subr.mxu0 %v3580
    %4873 = vmatpush1.msra.mxu0 %v3579
    %4874 = vmatprep.subr.mxu0 %v3574
    %4875 = vmatpush1.msra.mxu0 %v3573
    %4876 = vmatprep.subr.mxu0 %v3568
    %4877 = vmatpush1.msra.mxu0 %v3567
    %4878 = vmatprep.subr.mxu0 %v3562
    %4879 = vmatpush1.msra.mxu0 %v3561
    %4880 = vmatprep.subr.mxu0 %v3556
    %4881 = vmatpush1.msra.mxu0 %v3555
    %4882 = vmatprep.subr.mxu0 %v3550
    %4883 = vmatpush1.msra.mxu0 %v3549
    %4884 = vmatprep.subr.mxu0 %v3544
    %4885 = vmatpush1.msra.mxu0 %v3543
    %4886 = vmatprep.subr.mxu0 %v3538
    %4887 = vmatpush1.msra.mxu0 %v3537
    %4888 = vmatprep.subr.mxu0 %v3724
    %4889 = vmatpush2.msra.mxu0 %v3723
    %4890 = vmatprep.subr.mxu0 %v3718
    %4891 = vmatpush2.msra.mxu0 %v3717
    %4892 = vmatprep.subr.mxu0 %v3712
    %4893 = vmatpush2.msra.mxu0 %v3711
    %4894 = vmatprep.subr.mxu0 %v3706
    %4895 = vmatpush2.msra.mxu0 %v3705
    %4896 = vmatprep.subr.mxu0 %v3700
    %4897 = vmatpush2.msra.mxu0 %v3699
    %4898 = vmatprep.subr.mxu0 %v3694
    %4899 = vmatpush2.msra.mxu0 %v3693
    %4900 = vmatprep.subr.mxu0 %v3688
    %4901 = vmatpush2.msra.mxu0 %v3687
    %4902 = vmatprep.subr.mxu0 %v3682
    %4903 = vmatpush2.msra.mxu0 %v3681
    %4904 = vmatprep.subr.mxu0 %v3676
    %4905 = vmatpush2.msra.mxu0 %v3675
    %4906 = vmatprep.subr.mxu0 %v3670
    %4907 = vmatpush2.msra.mxu0 %v3669
    %4908 = vmatprep.subr.mxu0 %v3664
    %4909 = vmatpush2.msra.mxu0 %v3663
    %4910 = vmatprep.subr.mxu0 %v3658
    %4911 = vmatpush2.msra.mxu0 %v3657
    %4912 = vmatprep.subr.mxu0 %v3652
    %4913 = vmatpush2.msra.mxu0 %v3651
    %4914 = vmatprep.subr.mxu0 %v3646
    %4915 = vmatpush2.msra.mxu0 %v3645
    %4916 = vmatprep.subr.mxu0 %v3640
    %4917 = vmatpush2.msra.mxu0 %v3639
    %4918 = vmatprep.subr.mxu0 %v3634
    %4919 = vmatpush2.msra.mxu0 %v3633
    %4920 = vmatprep.mubr.f32.mxu0 %v4778
    %4921 = vmatmul.mubr.f32.gmra.mxu0 %v4777
    %v4922 = vpop.f32.mrf.mxu0
    %v4923 = vadd.f32 0.0, %v4922
    %v4924 = vpop.f32.mrf.mxu0
    %v4925 = vadd.f32 0.0, %v4924
    %4926 = vdwg.mxu0
    %4927 = vmatprep.subr.mxu0 %v3630
    %4928 = vmatpush1.msra.mxu0 %v3629
    %4929 = vmatprep.subr.mxu0 %v3624
    %4930 = vmatpush1.msra.mxu0 %v3623
    %4931 = vmatprep.subr.mxu0 %v3618
    %4932 = vmatpush1.msra.mxu0 %v3617
    %4933 = vmatprep.subr.mxu0 %v3612
    %4934 = vmatpush1.msra.mxu0 %v3611
    %4935 = vmatprep.subr.mxu0 %v3606
    %4936 = vmatpush1.msra.mxu0 %v3605
    %4937 = vmatprep.subr.mxu0 %v3600
    %4938 = vmatpush1.msra.mxu0 %v3599
    %4939 = vmatprep.subr.mxu0 %v3594
    %4940 = vmatpush1.msra.mxu0 %v3593
    %4941 = vmatprep.subr.mxu0 %v3588
    %4942 = vmatpush1.msra.mxu0 %v3587
    %4943 = vmatprep.subr.mxu0 %v3582
    %4944 = vmatpush1.msra.mxu0 %v3581
    %4945 = vmatprep.subr.mxu0 %v3576
    %4946 = vmatpush1.msra.mxu0 %v3575
    %4947 = vmatprep.subr.mxu0 %v3570
    %4948 = vmatpush1.msra.mxu0 %v3569
    %4949 = vmatprep.subr.mxu0 %v3564
    %4950 = vmatpush1.msra.mxu0 %v3563
    %4951 = vmatprep.subr.mxu0 %v3558
    %4952 = vmatpush1.msra.mxu0 %v3557
    %4953 = vmatprep.subr.mxu0 %v3552
    %4954 = vmatpush1.msra.mxu0 %v3551
    %4955 = vmatprep.subr.mxu0 %v3546
    %4956 = vmatpush1.msra.mxu0 %v3545
    %4957 = vmatprep.subr.mxu0 %v3540
    %4958 = vmatpush1.msra.mxu0 %v3539
    %4959 = vmatprep.subr.mxu0 %v3726
    %4960 = vmatpush2.msra.mxu0 %v3725
    %4961 = vmatprep.subr.mxu0 %v3720
    %4962 = vmatpush2.msra.mxu0 %v3719
    %4963 = vmatprep.subr.mxu0 %v3714
    %4964 = vmatpush2.msra.mxu0 %v3713
    %4965 = vmatprep.subr.mxu0 %v3708
    %4966 = vmatpush2.msra.mxu0 %v3707
    %4967 = vmatprep.subr.mxu0 %v3702
    %4968 = vmatpush2.msra.mxu0 %v3701
    %4969 = vmatprep.subr.mxu0 %v3696
    %4970 = vmatpush2.msra.mxu0 %v3695
    %4971 = vmatprep.subr.mxu0 %v3690
    %4972 = vmatpush2.msra.mxu0 %v3689
    %4973 = vmatprep.subr.mxu0 %v3684
    %4974 = vmatpush2.msra.mxu0 %v3683
    %4975 = vmatprep.subr.mxu0 %v3678
    %4976 = vmatpush2.msra.mxu0 %v3677
    %4977 = vmatprep.subr.mxu0 %v3672
    %4978 = vmatpush2.msra.mxu0 %v3671
    %4979 = vmatprep.subr.mxu0 %v3666
    %4980 = vmatpush2.msra.mxu0 %v3665
    %4981 = vmatprep.subr.mxu0 %v3660
    %4982 = vmatpush2.msra.mxu0 %v3659
    %4983 = vmatprep.subr.mxu0 %v3654
    %4984 = vmatpush2.msra.mxu0 %v3653
    %4985 = vmatprep.subr.mxu0 %v3648
    %4986 = vmatpush2.msra.mxu0 %v3647
    %4987 = vmatprep.subr.mxu0 %v3642
    %4988 = vmatpush2.msra.mxu0 %v3641
    %4989 = vmatprep.subr.mxu0 %v3636
    %4990 = vmatpush2.msra.mxu0 %v3635
    %4991 = vmatprep.mubr.f32.mxu0 %v4778
    %4992 = vmatmul.mubr.f32.gmra.mxu0 %v4777
    %v4993 = vpop.f32.mrf.mxu0
    %v4994 = vadd.f32 0.0, %v4993
    %v4995 = vpop.f32.mrf.mxu0
    %v4996 = vadd.f32 0.0, %v4995
    %4997 = vdwg.mxu0
    %v4998 = vadd.f32 %v4779, %v4852
    %v4999 = vadd.f32 %v4780, %v4854
    %v5000 = vxor.u32 %v4998, 2147483648
    %v5001 = vxor.u32 %v4999, 2147483648
    %v5002 = vmul.f32 %v5000, 1.442695
    %v5003 = vpow.pop %v5002
    %v5004 = vmul.f32 %v5001, 1.442695
    %v5005 = vpow.pop %v5004
    %v5006 = vadd.f32 %v5003, 1.0
    %v5007 = vadd.f32 %v5005, 1.0
    %v5008 = vrcp.pop %v5006
    %v5009 = vmul.f32 1.0, %v5008
    %v5010 = vrcp.pop %v5007
    %v5011 = vmul.f32 1.0, %v5010
    %v5012 = vadd.f32 %v4781, %v4923
    %v5013 = vadd.f32 %v4782, %v4925
    %v5014 = vxor.u32 %v5012, 2147483648
    %v5015 = vxor.u32 %v5013, 2147483648
    %v5016 = vmul.f32 %v5014, 1.442695
    %v5017 = vpow.pop %v5016
    %v5018 = vmul.f32 %v5015, 1.442695
    %v5019 = vpow.pop %v5018
    %v5020 = vadd.f32 %v5017, 1.0
    %v5021 = vadd.f32 %v5019, 1.0
    %v5022 = vrcp.pop %v5020
    %v5023 = vmul.f32 1.0, %v5022
    %v5024 = vrcp.pop %v5021
    %v5025 = vmul.f32 1.0, %v5024
    %v5026 = vadd.f32 %v4994, %v3528
    %v5027 = vadd.f32 %v4996, %v3532
    %v5028 = vmul.f32 %v5009, %v5026
    %v5029 = vmul.f32 %v5011, %v5027
    %v5030 = vadd.f32 %v4783, %v5028
    %v5031 = vadd.f32 %v4784, %v5029
    %v5032 = vtanh.pop %v5030
    %v5033 = vtanh.pop %v5031
    %v5034 = vsub.f32 1.0, %v5023
    %v5035 = vsub.f32 1.0, %v5025
    %v5036 = vmul.f32 %v5034, %v5032
    %v5037 = vmul.f32 %v5035, %v5033
    %v5038 = vmul.f32 %v5023, %v4777
    %v5039 = vmul.f32 %v5025, %v4778
    %v5040 = vadd.f32 %v5036, %v5038
    %v5041 = vadd.f32 %v5037, %v5039
    %v5042 = vld [vmem:[%s2095] sm:$0xff]
    %v5043 = vld [vmem:[%s2095 + $0x8] sm:$0xff]
    %v5044 = vld [vmem:[%s2095 + $0x10] sm:$0xff]
    %v5045 = vld [vmem:[%s2095 + $0x18] sm:$0xff]
    %v5046 = vld [vmem:[%s2095 + $0x20] sm:$0xff]
    %v5047 = vld [vmem:[%s2095 + $0x28] sm:$0xff]
    %5048 = vmatprep.subr.mxu0 %v3626
    %5049 = vmatpush1.msra.mxu0 %v3625
    %5050 = vmatprep.subr.mxu0 %v3620
    %5051 = vmatpush1.msra.mxu0 %v3619
    %5052 = vmatprep.subr.mxu0 %v3614
    %5053 = vmatpush1.msra.mxu0 %v3613
    %5054 = vmatprep.subr.mxu0 %v3608
    %5055 = vmatpush1.msra.mxu0 %v3607
    %5056 = vmatprep.subr.mxu0 %v3602
    %5057 = vmatpush1.msra.mxu0 %v3601
    %5058 = vmatprep.subr.mxu0 %v3596
    %5059 = vmatpush1.msra.mxu0 %v3595
    %5060 = vmatprep.subr.mxu0 %v3590
    %5061 = vmatpush1.msra.mxu0 %v3589
    %5062 = vmatprep.subr.mxu0 %v3584
    %5063 = vmatpush1.msra.mxu0 %v3583
    %5064 = vmatprep.subr.mxu0 %v3578
    %5065 = vmatpush1.msra.mxu0 %v3577
    %5066 = vmatprep.subr.mxu0 %v3572
    %5067 = vmatpush1.msra.mxu0 %v3571
    %5068 = vmatprep.subr.mxu0 %v3566
    %5069 = vmatpush1.msra.mxu0 %v3565
    %5070 = vmatprep.subr.mxu0 %v3560
    %5071 = vmatpush1.msra.mxu0 %v3559
    %5072 = vmatprep.subr.mxu0 %v3554
    %5073 = vmatpush1.msra.mxu0 %v3553
    %5074 = vmatprep.subr.mxu0 %v3548
    %5075 = vmatpush1.msra.mxu0 %v3547
    %5076 = vmatprep.subr.mxu0 %v3542
    %5077 = vmatpush1.msra.mxu0 %v3541
    %5078 = vmatprep.subr.mxu0 %v3536
    %5079 = vmatpush1.msra.mxu0 %v3535
    %5080 = vmatprep.subr.mxu0 %v3722
    %5081 = vmatpush2.msra.mxu0 %v3721
    %5082 = vmatprep.subr.mxu0 %v3716
    %5083 = vmatpush2.msra.mxu0 %v3715
    %5084 = vmatprep.subr.mxu0 %v3710
    %5085 = vmatpush2.msra.mxu0 %v3709
    %5086 = vmatprep.subr.mxu0 %v3704
    %5087 = vmatpush2.msra.mxu0 %v3703
    %5088 = vmatprep.subr.mxu0 %v3698
    %5089 = vmatpush2.msra.mxu0 %v3697
    %5090 = vmatprep.subr.mxu0 %v3692
    %5091 = vmatpush2.msra.mxu0 %v3691
    %5092 = vmatprep.subr.mxu0 %v3686
    %5093 = vmatpush2.msra.mxu0 %v3685
    %5094 = vmatprep.subr.mxu0 %v3680
    %5095 = vmatpush2.msra.mxu0 %v3679
    %5096 = vmatprep.subr.mxu0 %v3674
    %5097 = vmatpush2.msra.mxu0 %v3673
    %5098 = vmatprep.subr.mxu0 %v3668
    %5099 = vmatpush2.msra.mxu0 %v3667
    %5100 = vmatprep.subr.mxu0 %v3662
    %5101 = vmatpush2.msra.mxu0 %v3661
    %5102 = vmatprep.subr.mxu0 %v3656
    %5103 = vmatpush2.msra.mxu0 %v3655
    %5104 = vmatprep.subr.mxu0 %v3650
    %5105 = vmatpush2.msra.mxu0 %v3649
    %5106 = vmatprep.subr.mxu0 %v3644
    %5107 = vmatpush2.msra.mxu0 %v3643
    %5108 = vmatprep.subr.mxu0 %v3638
    %5109 = vmatpush2.msra.mxu0 %v3637
    %5110 = vmatprep.subr.mxu0 %v3632
    %5111 = vmatpush2.msra.mxu0 %v3631
    %5112 = vmatprep.mubr.f32.mxu0 %v5041
    %5113 = vmatmul.mubr.f32.gmra.mxu0 %v5040
    %v5114 = vpop.f32.mrf.mxu0
    %v5115 = vadd.f32 0.0, %v5114
    %v5116 = vpop.f32.mrf.mxu0
    %v5117 = vadd.f32 0.0, %v5116
    %5118 = vdwg.mxu0
    %5119 = vmatprep.subr.mxu0 %v3628
    %5120 = vmatpush1.msra.mxu0 %v3627
    %5121 = vmatprep.subr.mxu0 %v3622
    %5122 = vmatpush1.msra.mxu0 %v3621
    %5123 = vmatprep.subr.mxu0 %v3616
    %5124 = vmatpush1.msra.mxu0 %v3615
    %5125 = vmatprep.subr.mxu0 %v3610
    %5126 = vmatpush1.msra.mxu0 %v3609
    %5127 = vmatprep.subr.mxu0 %v3604
    %5128 = vmatpush1.msra.mxu0 %v3603
    %5129 = vmatprep.subr.mxu0 %v3598
    %5130 = vmatpush1.msra.mxu0 %v3597
    %5131 = vmatprep.subr.mxu0 %v3592
    %5132 = vmatpush1.msra.mxu0 %v3591
    %5133 = vmatprep.subr.mxu0 %v3586
    %5134 = vmatpush1.msra.mxu0 %v3585
    %5135 = vmatprep.subr.mxu0 %v3580
    %5136 = vmatpush1.msra.mxu0 %v3579
    %5137 = vmatprep.subr.mxu0 %v3574
    %5138 = vmatpush1.msra.mxu0 %v3573
    %5139 = vmatprep.subr.mxu0 %v3568
    %5140 = vmatpush1.msra.mxu0 %v3567
    %5141 = vmatprep.subr.mxu0 %v3562
    %5142 = vmatpush1.msra.mxu0 %v3561
    %5143 = vmatprep.subr.mxu0 %v3556
    %5144 = vmatpush1.msra.mxu0 %v3555
    %5145 = vmatprep.subr.mxu0 %v3550
    %5146 = vmatpush1.msra.mxu0 %v3549
    %5147 = vmatprep.subr.mxu0 %v3544
    %5148 = vmatpush1.msra.mxu0 %v3543
    %5149 = vmatprep.subr.mxu0 %v3538
    %5150 = vmatpush1.msra.mxu0 %v3537
    %5151 = vmatprep.subr.mxu0 %v3724
    %5152 = vmatpush2.msra.mxu0 %v3723
    %5153 = vmatprep.subr.mxu0 %v3718
    %5154 = vmatpush2.msra.mxu0 %v3717
    %5155 = vmatprep.subr.mxu0 %v3712
    %5156 = vmatpush2.msra.mxu0 %v3711
    %5157 = vmatprep.subr.mxu0 %v3706
    %5158 = vmatpush2.msra.mxu0 %v3705
    %5159 = vmatprep.subr.mxu0 %v3700
    %5160 = vmatpush2.msra.mxu0 %v3699
    %5161 = vmatprep.subr.mxu0 %v3694
    %5162 = vmatpush2.msra.mxu0 %v3693
    %5163 = vmatprep.subr.mxu0 %v3688
    %5164 = vmatpush2.msra.mxu0 %v3687
    %5165 = vmatprep.subr.mxu0 %v3682
    %5166 = vmatpush2.msra.mxu0 %v3681
    %5167 = vmatprep.subr.mxu0 %v3676
    %5168 = vmatpush2.msra.mxu0 %v3675
    %5169 = vmatprep.subr.mxu0 %v3670
    %5170 = vmatpush2.msra.mxu0 %v3669
    %5171 = vmatprep.subr.mxu0 %v3664
    %5172 = vmatpush2.msra.mxu0 %v3663
    %5173 = vmatprep.subr.mxu0 %v3658
    %5174 = vmatpush2.msra.mxu0 %v3657
    %5175 = vmatprep.subr.mxu0 %v3652
    %5176 = vmatpush2.msra.mxu0 %v3651
    %5177 = vmatprep.subr.mxu0 %v3646
    %5178 = vmatpush2.msra.mxu0 %v3645
    %5179 = vmatprep.subr.mxu0 %v3640
    %5180 = vmatpush2.msra.mxu0 %v3639
    %5181 = vmatprep.subr.mxu0 %v3634
    %5182 = vmatpush2.msra.mxu0 %v3633
    %5183 = vmatprep.mubr.f32.mxu0 %v5041
    %5184 = vmatmul.mubr.f32.gmra.mxu0 %v5040
    %v5185 = vpop.f32.mrf.mxu0
    %v5186 = vadd.f32 0.0, %v5185
    %v5187 = vpop.f32.mrf.mxu0
    %v5188 = vadd.f32 0.0, %v5187
    %5189 = vdwg.mxu0
    %5190 = vmatprep.subr.mxu0 %v3630
    %5191 = vmatpush1.msra.mxu0 %v3629
    %5192 = vmatprep.subr.mxu0 %v3624
    %5193 = vmatpush1.msra.mxu0 %v3623
    %5194 = vmatprep.subr.mxu0 %v3618
    %5195 = vmatpush1.msra.mxu0 %v3617
    %5196 = vmatprep.subr.mxu0 %v3612
    %5197 = vmatpush1.msra.mxu0 %v3611
    %5198 = vmatprep.subr.mxu0 %v3606
    %5199 = vmatpush1.msra.mxu0 %v3605
    %5200 = vmatprep.subr.mxu0 %v3600
    %5201 = vmatpush1.msra.mxu0 %v3599
    %5202 = vmatprep.subr.mxu0 %v3594
    %5203 = vmatpush1.msra.mxu0 %v3593
    %5204 = vmatprep.subr.mxu0 %v3588
    %5205 = vmatpush1.msra.mxu0 %v3587
    %5206 = vmatprep.subr.mxu0 %v3582
    %5207 = vmatpush1.msra.mxu0 %v3581
    %5208 = vmatprep.subr.mxu0 %v3576
    %5209 = vmatpush1.msra.mxu0 %v3575
    %5210 = vmatprep.subr.mxu0 %v3570
    %5211 = vmatpush1.msra.mxu0 %v3569
    %5212 = vmatprep.subr.mxu0 %v3564
    %5213 = vmatpush1.msra.mxu0 %v3563
    %5214 = vmatprep.subr.mxu0 %v3558
    %5215 = vmatpush1.msra.mxu0 %v3557
    %5216 = vmatprep.subr.mxu0 %v3552
    %5217 = vmatpush1.msra.mxu0 %v3551
    %5218 = vmatprep.subr.mxu0 %v3546
    %5219 = vmatpush1.msra.mxu0 %v3545
    %5220 = vmatprep.subr.mxu0 %v3540
    %5221 = vmatpush1.msra.mxu0 %v3539
    %5222 = vmatprep.subr.mxu0 %v3726
    %5223 = vmatpush2.msra.mxu0 %v3725
    %5224 = vmatprep.subr.mxu0 %v3720
    %5225 = vmatpush2.msra.mxu0 %v3719
    %5226 = vmatprep.subr.mxu0 %v3714
    %5227 = vmatpush2.msra.mxu0 %v3713
    %5228 = vmatprep.subr.mxu0 %v3708
    %5229 = vmatpush2.msra.mxu0 %v3707
    %5230 = vmatprep.subr.mxu0 %v3702
    %5231 = vmatpush2.msra.mxu0 %v3701
    %5232 = vmatprep.subr.mxu0 %v3696
    %5233 = vmatpush2.msra.mxu0 %v3695
    %5234 = vmatprep.subr.mxu0 %v3690
    %5235 = vmatpush2.msra.mxu0 %v3689
    %5236 = vmatprep.subr.mxu0 %v3684
    %5237 = vmatpush2.msra.mxu0 %v3683
    %5238 = vmatprep.subr.mxu0 %v3678
    %5239 = vmatpush2.msra.mxu0 %v3677
    %5240 = vmatprep.subr.mxu0 %v3672
    %5241 = vmatpush2.msra.mxu0 %v3671
    %5242 = vmatprep.subr.mxu0 %v3666
    %5243 = vmatpush2.msra.mxu0 %v3665
    %5244 = vmatprep.subr.mxu0 %v3660
    %5245 = vmatpush2.msra.mxu0 %v3659
    %5246 = vmatprep.subr.mxu0 %v3654
    %5247 = vmatpush2.msra.mxu0 %v3653
    %5248 = vmatprep.subr.mxu0 %v3648
    %5249 = vmatpush2.msra.mxu0 %v3647
    %5250 = vmatprep.subr.mxu0 %v3642
    %5251 = vmatpush2.msra.mxu0 %v3641
    %5252 = vmatprep.subr.mxu0 %v3636
    %5253 = vmatpush2.msra.mxu0 %v3635
    %5254 = vmatprep.mubr.f32.mxu0 %v5041
    %5255 = vmatmul.mubr.f32.gmra.mxu0 %v5040
    %v5256 = vpop.f32.mrf.mxu0
    %v5257 = vadd.f32 0.0, %v5256
    %v5258 = vpop.f32.mrf.mxu0
    %v5259 = vadd.f32 0.0, %v5258
    %5260 = vdwg.mxu0
    %v5261 = vadd.f32 %v5042, %v5115
    %v5262 = vadd.f32 %v5043, %v5117
    %v5263 = vxor.u32 %v5261, 2147483648
    %v5264 = vxor.u32 %v5262, 2147483648
    %v5265 = vmul.f32 %v5263, 1.442695
    %v5266 = vpow.pop %v5265
    %v5267 = vmul.f32 %v5264, 1.442695
    %v5268 = vpow.pop %v5267
    %v5269 = vadd.f32 %v5266, 1.0
    %v5270 = vadd.f32 %v5268, 1.0
    %v5271 = vrcp.pop %v5269
    %v5272 = vmul.f32 1.0, %v5271
    %v5273 = vrcp.pop %v5270
    %v5274 = vmul.f32 1.0, %v5273
    %v5275 = vadd.f32 %v5044, %v5186
    %v5276 = vadd.f32 %v5045, %v5188
    %v5277 = vxor.u32 %v5275, 2147483648
    %v5278 = vxor.u32 %v5276, 2147483648
    %v5279 = vmul.f32 %v5277, 1.442695
    %v5280 = vpow.pop %v5279
    %v5281 = vmul.f32 %v5278, 1.442695
    %v5282 = vpow.pop %v5281
    %v5283 = vadd.f32 %v5280, 1.0
    %v5284 = vadd.f32 %v5282, 1.0
    %v5285 = vrcp.pop %v5283
    %v5286 = vmul.f32 1.0, %v5285
    %v5287 = vrcp.pop %v5284
    %v5288 = vmul.f32 1.0, %v5287
    %v5289 = vadd.f32 %v5257, %v3528
    %v5290 = vadd.f32 %v5259, %v3532
    %v5291 = vmul.f32 %v5272, %v5289
    %v5292 = vmul.f32 %v5274, %v5290
    %v5293 = vadd.f32 %v5046, %v5291
    %v5294 = vadd.f32 %v5047, %v5292
    %v5295 = vtanh.pop %v5293
    %v5296 = vtanh.pop %v5294
    %v5297 = vsub.f32 1.0, %v5286
    %v5298 = vsub.f32 1.0, %v5288
    %v5299 = vmul.f32 %v5297, %v5295
    %v5300 = vmul.f32 %v5298, %v5296
    %v5301 = vmul.f32 %v5286, %v5040
    %v5302 = vmul.f32 %v5288, %v5041
    %v5303 = vadd.f32 %v5299, %v5301
    %v5304 = vadd.f32 %v5300, %v5302
    %v5305 = vld [vmem:[%s2362] sm:$0xff]
    %v5306 = vld [vmem:[%s2362 + $0x8] sm:$0xff]
    %v5307 = vld [vmem:[%s2362 + $0x10] sm:$0xff]
    %v5308 = vld [vmem:[%s2362 + $0x18] sm:$0xff]
    %v5309 = vld [vmem:[%s2362 + $0x20] sm:$0xff]
    %v5310 = vld [vmem:[%s2362 + $0x28] sm:$0xff]
    %5311 = vmatprep.subr.mxu0 %v3626
    %5312 = vmatpush1.msra.mxu0 %v3625
    %5313 = vmatprep.subr.mxu0 %v3620
    %5314 = vmatpush1.msra.mxu0 %v3619
    %5315 = vmatprep.subr.mxu0 %v3614
    %5316 = vmatpush1.msra.mxu0 %v3613
    %5317 = vmatprep.subr.mxu0 %v3608
    %5318 = vmatpush1.msra.mxu0 %v3607
    %5319 = vmatprep.subr.mxu0 %v3602
    %5320 = vmatpush1.msra.mxu0 %v3601
    %5321 = vmatprep.subr.mxu0 %v3596
    %5322 = vmatpush1.msra.mxu0 %v3595
    %5323 = vmatprep.subr.mxu0 %v3590
    %5324 = vmatpush1.msra.mxu0 %v3589
    %5325 = vmatprep.subr.mxu0 %v3584
    %5326 = vmatpush1.msra.mxu0 %v3583
    %5327 = vmatprep.subr.mxu0 %v3578
    %5328 = vmatpush1.msra.mxu0 %v3577
    %5329 = vmatprep.subr.mxu0 %v3572
    %5330 = vmatpush1.msra.mxu0 %v3571
    %5331 = vmatprep.subr.mxu0 %v3566
    %5332 = vmatpush1.msra.mxu0 %v3565
    %5333 = vmatprep.subr.mxu0 %v3560
    %5334 = vmatpush1.msra.mxu0 %v3559
    %5335 = vmatprep.subr.mxu0 %v3554
    %5336 = vmatpush1.msra.mxu0 %v3553
    %5337 = vmatprep.subr.mxu0 %v3548
    %5338 = vmatpush1.msra.mxu0 %v3547
    %5339 = vmatprep.subr.mxu0 %v3542
    %5340 = vmatpush1.msra.mxu0 %v3541
    %5341 = vmatprep.subr.mxu0 %v3536
    %5342 = vmatpush1.msra.mxu0 %v3535
    %5343 = vmatprep.subr.mxu0 %v3722
    %5344 = vmatpush2.msra.mxu0 %v3721
    %5345 = vmatprep.subr.mxu0 %v3716
    %5346 = vmatpush2.msra.mxu0 %v3715
    %5347 = vmatprep.subr.mxu0 %v3710
    %5348 = vmatpush2.msra.mxu0 %v3709
    %5349 = vmatprep.subr.mxu0 %v3704
    %5350 = vmatpush2.msra.mxu0 %v3703
    %5351 = vmatprep.subr.mxu0 %v3698
    %5352 = vmatpush2.msra.mxu0 %v3697
    %5353 = vmatprep.subr.mxu0 %v3692
    %5354 = vmatpush2.msra.mxu0 %v3691
    %5355 = vmatprep.subr.mxu0 %v3686
    %5356 = vmatpush2.msra.mxu0 %v3685
    %5357 = vmatprep.subr.mxu0 %v3680
    %5358 = vmatpush2.msra.mxu0 %v3679
    %5359 = vmatprep.subr.mxu0 %v3674
    %5360 = vmatpush2.msra.mxu0 %v3673
    %5361 = vmatprep.subr.mxu0 %v3668
    %5362 = vmatpush2.msra.mxu0 %v3667
    %5363 = vmatprep.subr.mxu0 %v3662
    %5364 = vmatpush2.msra.mxu0 %v3661
    %5365 = vmatprep.subr.mxu0 %v3656
    %5366 = vmatpush2.msra.mxu0 %v3655
    %5367 = vmatprep.subr.mxu0 %v3650
    %5368 = vmatpush2.msra.mxu0 %v3649
    %5369 = vmatprep.subr.mxu0 %v3644
    %5370 = vmatpush2.msra.mxu0 %v3643
    %5371 = vmatprep.subr.mxu0 %v3638
    %5372 = vmatpush2.msra.mxu0 %v3637
    %5373 = vmatprep.subr.mxu0 %v3632
    %5374 = vmatpush2.msra.mxu0 %v3631
    %5375 = vmatprep.mubr.f32.mxu0 %v5304
    %5376 = vmatmul.mubr.f32.gmra.mxu0 %v5303
    %v5377 = vpop.f32.mrf.mxu0
    %v5378 = vadd.f32 0.0, %v5377
    %v5379 = vpop.f32.mrf.mxu0
    %v5380 = vadd.f32 0.0, %v5379
    %5381 = vdwg.mxu0
    %5382 = vmatprep.subr.mxu0 %v3628
    %5383 = vmatpush1.msra.mxu0 %v3627
    %5384 = vmatprep.subr.mxu0 %v3622
    %5385 = vmatpush1.msra.mxu0 %v3621
    %5386 = vmatprep.subr.mxu0 %v3616
    %5387 = vmatpush1.msra.mxu0 %v3615
    %5388 = vmatprep.subr.mxu0 %v3610
    %5389 = vmatpush1.msra.mxu0 %v3609
    %5390 = vmatprep.subr.mxu0 %v3604
    %5391 = vmatpush1.msra.mxu0 %v3603
    %5392 = vmatprep.subr.mxu0 %v3598
    %5393 = vmatpush1.msra.mxu0 %v3597
    %5394 = vmatprep.subr.mxu0 %v3592
    %5395 = vmatpush1.msra.mxu0 %v3591
    %5396 = vmatprep.subr.mxu0 %v3586
    %5397 = vmatpush1.msra.mxu0 %v3585
    %5398 = vmatprep.subr.mxu0 %v3580
    %5399 = vmatpush1.msra.mxu0 %v3579
    %5400 = vmatprep.subr.mxu0 %v3574
    %5401 = vmatpush1.msra.mxu0 %v3573
    %5402 = vmatprep.subr.mxu0 %v3568
    %5403 = vmatpush1.msra.mxu0 %v3567
    %5404 = vmatprep.subr.mxu0 %v3562
    %5405 = vmatpush1.msra.mxu0 %v3561
    %5406 = vmatprep.subr.mxu0 %v3556
    %5407 = vmatpush1.msra.mxu0 %v3555
    %5408 = vmatprep.subr.mxu0 %v3550
    %5409 = vmatpush1.msra.mxu0 %v3549
    %5410 = vmatprep.subr.mxu0 %v3544
    %5411 = vmatpush1.msra.mxu0 %v3543
    %5412 = vmatprep.subr.mxu0 %v3538
    %5413 = vmatpush1.msra.mxu0 %v3537
    %5414 = vmatprep.subr.mxu0 %v3724
    %5415 = vmatpush2.msra.mxu0 %v3723
    %5416 = vmatprep.subr.mxu0 %v3718
    %5417 = vmatpush2.msra.mxu0 %v3717
    %5418 = vmatprep.subr.mxu0 %v3712
    %5419 = vmatpush2.msra.mxu0 %v3711
    %5420 = vmatprep.subr.mxu0 %v3706
    %5421 = vmatpush2.msra.mxu0 %v3705
    %5422 = vmatprep.subr.mxu0 %v3700
    %5423 = vmatpush2.msra.mxu0 %v3699
    %5424 = vmatprep.subr.mxu0 %v3694
    %5425 = vmatpush2.msra.mxu0 %v3693
    %5426 = vmatprep.subr.mxu0 %v3688
    %5427 = vmatpush2.msra.mxu0 %v3687
    %5428 = vmatprep.subr.mxu0 %v3682
    %5429 = vmatpush2.msra.mxu0 %v3681
    %5430 = vmatprep.subr.mxu0 %v3676
    %5431 = vmatpush2.msra.mxu0 %v3675
    %5432 = vmatprep.subr.mxu0 %v3670
    %5433 = vmatpush2.msra.mxu0 %v3669
    %5434 = vmatprep.subr.mxu0 %v3664
    %5435 = vmatpush2.msra.mxu0 %v3663
    %5436 = vmatprep.subr.mxu0 %v3658
    %5437 = vmatpush2.msra.mxu0 %v3657
    %5438 = vmatprep.subr.mxu0 %v3652
    %5439 = vmatpush2.msra.mxu0 %v3651
    %5440 = vmatprep.subr.mxu0 %v3646
    %5441 = vmatpush2.msra.mxu0 %v3645
    %5442 = vmatprep.subr.mxu0 %v3640
    %5443 = vmatpush2.msra.mxu0 %v3639
    %5444 = vmatprep.subr.mxu0 %v3634
    %5445 = vmatpush2.msra.mxu0 %v3633
    %5446 = vmatprep.mubr.f32.mxu0 %v5304
    %5447 = vmatmul.mubr.f32.gmra.mxu0 %v5303
    %v5448 = vpop.f32.mrf.mxu0
    %v5449 = vadd.f32 0.0, %v5448
    %v5450 = vpop.f32.mrf.mxu0
    %v5451 = vadd.f32 0.0, %v5450
    %5452 = vdwg.mxu0
    %5453 = vmatprep.subr.mxu0 %v3630
    %5454 = vmatpush1.msra.mxu0 %v3629
    %5455 = vmatprep.subr.mxu0 %v3624
    %5456 = vmatpush1.msra.mxu0 %v3623
    %5457 = vmatprep.subr.mxu0 %v3618
    %5458 = vmatpush1.msra.mxu0 %v3617
    %5459 = vmatprep.subr.mxu0 %v3612
    %5460 = vmatpush1.msra.mxu0 %v3611
    %5461 = vmatprep.subr.mxu0 %v3606
    %5462 = vmatpush1.msra.mxu0 %v3605
    %5463 = vmatprep.subr.mxu0 %v3600
    %5464 = vmatpush1.msra.mxu0 %v3599
    %5465 = vmatprep.subr.mxu0 %v3594
    %5466 = vmatpush1.msra.mxu0 %v3593
    %5467 = vmatprep.subr.mxu0 %v3588
    %5468 = vmatpush1.msra.mxu0 %v3587
    %5469 = vmatprep.subr.mxu0 %v3582
    %5470 = vmatpush1.msra.mxu0 %v3581
    %5471 = vmatprep.subr.mxu0 %v3576
    %5472 = vmatpush1.msra.mxu0 %v3575
    %5473 = vmatprep.subr.mxu0 %v3570
    %5474 = vmatpush1.msra.mxu0 %v3569
    %5475 = vmatprep.subr.mxu0 %v3564
    %5476 = vmatpush1.msra.mxu0 %v3563
    %5477 = vmatprep.subr.mxu0 %v3558
    %5478 = vmatpush1.msra.mxu0 %v3557
    %5479 = vmatprep.subr.mxu0 %v3552
    %5480 = vmatpush1.msra.mxu0 %v3551
    %5481 = vmatprep.subr.mxu0 %v3546
    %5482 = vmatpush1.msra.mxu0 %v3545
    %5483 = vmatprep.subr.mxu0 %v3540
    %5484 = vmatpush1.msra.mxu0 %v3539
    %5485 = vmatprep.subr.mxu0 %v3726
    %5486 = vmatpush2.msra.mxu0 %v3725
    %5487 = vmatprep.subr.mxu0 %v3720
    %5488 = vmatpush2.msra.mxu0 %v3719
    %5489 = vmatprep.subr.mxu0 %v3714
    %5490 = vmatpush2.msra.mxu0 %v3713
    %5491 = vmatprep.subr.mxu0 %v3708
    %5492 = vmatpush2.msra.mxu0 %v3707
    %5493 = vmatprep.subr.mxu0 %v3702
    %5494 = vmatpush2.msra.mxu0 %v3701
    %5495 = vmatprep.subr.mxu0 %v3696
    %5496 = vmatpush2.msra.mxu0 %v3695
    %5497 = vmatprep.subr.mxu0 %v3690
    %5498 = vmatpush2.msra.mxu0 %v3689
    %5499 = vmatprep.subr.mxu0 %v3684
    %5500 = vmatpush2.msra.mxu0 %v3683
    %5501 = vmatprep.subr.mxu0 %v3678
    %5502 = vmatpush2.msra.mxu0 %v3677
    %5503 = vmatprep.subr.mxu0 %v3672
    %5504 = vmatpush2.msra.mxu0 %v3671
    %5505 = vmatprep.subr.mxu0 %v3666
    %5506 = vmatpush2.msra.mxu0 %v3665
    %5507 = vmatprep.subr.mxu0 %v3660
    %5508 = vmatpush2.msra.mxu0 %v3659
    %5509 = vmatprep.subr.mxu0 %v3654
    %5510 = vmatpush2.msra.mxu0 %v3653
    %5511 = vmatprep.subr.mxu0 %v3648
    %5512 = vmatpush2.msra.mxu0 %v3647
    %5513 = vmatprep.subr.mxu0 %v3642
    %5514 = vmatpush2.msra.mxu0 %v3641
    %5515 = vmatprep.subr.mxu0 %v3636
    %5516 = vmatpush2.msra.mxu0 %v3635
    %5517 = vmatprep.mubr.f32.mxu0 %v5304
    %5518 = vmatmul.mubr.f32.gmra.mxu0 %v5303
    %v5519 = vpop.f32.mrf.mxu0
    %v5520 = vadd.f32 0.0, %v5519
    %v5521 = vpop.f32.mrf.mxu0
    %v5522 = vadd.f32 0.0, %v5521
    %5523 = vdwg.mxu0
    %v5524 = vadd.f32 %v5305, %v5378
    %v5525 = vadd.f32 %v5306, %v5380
    %v5526 = vxor.u32 %v5524, 2147483648
    %v5527 = vxor.u32 %v5525, 2147483648
    %v5528 = vmul.f32 %v5526, 1.442695
    %v5529 = vpow.pop %v5528
    %v5530 = vmul.f32 %v5527, 1.442695
    %v5531 = vpow.pop %v5530
    %v5532 = vadd.f32 %v5529, 1.0
    %v5533 = vadd.f32 %v5531, 1.0
    %v5534 = vrcp.pop %v5532
    %v5535 = vmul.f32 1.0, %v5534
    %v5536 = vrcp.pop %v5533
    %v5537 = vmul.f32 1.0, %v5536
    %v5538 = vadd.f32 %v5307, %v5449
    %v5539 = vadd.f32 %v5308, %v5451
    %v5540 = vxor.u32 %v5538, 2147483648
    %v5541 = vxor.u32 %v5539, 2147483648
    %v5542 = vmul.f32 %v5540, 1.442695
    %v5543 = vpow.pop %v5542
    %v5544 = vmul.f32 %v5541, 1.442695
    %v5545 = vpow.pop %v5544
    %v5546 = vadd.f32 %v5543, 1.0
    %v5547 = vadd.f32 %v5545, 1.0
    %v5548 = vrcp.pop %v5546
    %v5549 = vmul.f32 1.0, %v5548
    %v5550 = vrcp.pop %v5547
    %v5551 = vmul.f32 1.0, %v5550
    %v5552 = vadd.f32 %v5520, %v3528
    %v5553 = vadd.f32 %v5522, %v3532
    %v5554 = vmul.f32 %v5535, %v5552
    %v5555 = vmul.f32 %v5537, %v5553
    %v5556 = vadd.f32 %v5309, %v5554
    %v5557 = vadd.f32 %v5310, %v5555
    %v5558 = vtanh.pop %v5556
    %v5559 = vtanh.pop %v5557
    %v5560 = vsub.f32 1.0, %v5549
    %v5561 = vsub.f32 1.0, %v5551
    %v5562 = vmul.f32 %v5560, %v5558
    %v5563 = vmul.f32 %v5561, %v5559
    %v5564 = vmul.f32 %v5549, %v5303
    %v5565 = vmul.f32 %v5551, %v5304
    %v5566 = vadd.f32 %v5562, %v5564
    %v5567 = vadd.f32 %v5563, %v5565
    %v5568 = vld [vmem:[%s2629] sm:$0xff]
    %v5569 = vld [vmem:[%s2629 + $0x8] sm:$0xff]
    %v5570 = vld [vmem:[%s2629 + $0x10] sm:$0xff]
    %v5571 = vld [vmem:[%s2629 + $0x18] sm:$0xff]
    %v5572 = vld [vmem:[%s2629 + $0x20] sm:$0xff]
    %v5573 = vld [vmem:[%s2629 + $0x28] sm:$0xff]
    %5574 = vmatprep.subr.mxu0 %v3626
    %5575 = vmatpush1.msra.mxu0 %v3625
    %5576 = vmatprep.subr.mxu0 %v3620
    %5577 = vmatpush1.msra.mxu0 %v3619
    %5578 = vmatprep.subr.mxu0 %v3614
    %5579 = vmatpush1.msra.mxu0 %v3613
    %5580 = vmatprep.subr.mxu0 %v3608
    %5581 = vmatpush1.msra.mxu0 %v3607
    %5582 = vmatprep.subr.mxu0 %v3602
    %5583 = vmatpush1.msra.mxu0 %v3601
    %5584 = vmatprep.subr.mxu0 %v3596
    %5585 = vmatpush1.msra.mxu0 %v3595
    %5586 = vmatprep.subr.mxu0 %v3590
    %5587 = vmatpush1.msra.mxu0 %v3589
    %5588 = vmatprep.subr.mxu0 %v3584
    %5589 = vmatpush1.msra.mxu0 %v3583
    %5590 = vmatprep.subr.mxu0 %v3578
    %5591 = vmatpush1.msra.mxu0 %v3577
    %5592 = vmatprep.subr.mxu0 %v3572
    %5593 = vmatpush1.msra.mxu0 %v3571
    %5594 = vmatprep.subr.mxu0 %v3566
    %5595 = vmatpush1.msra.mxu0 %v3565
    %5596 = vmatprep.subr.mxu0 %v3560
    %5597 = vmatpush1.msra.mxu0 %v3559
    %5598 = vmatprep.subr.mxu0 %v3554
    %5599 = vmatpush1.msra.mxu0 %v3553
    %5600 = vmatprep.subr.mxu0 %v3548
    %5601 = vmatpush1.msra.mxu0 %v3547
    %5602 = vmatprep.subr.mxu0 %v3542
    %5603 = vmatpush1.msra.mxu0 %v3541
    %5604 = vmatprep.subr.mxu0 %v3536
    %5605 = vmatpush1.msra.mxu0 %v3535
    %5606 = vmatprep.subr.mxu0 %v3722
    %5607 = vmatpush2.msra.mxu0 %v3721
    %5608 = vmatprep.subr.mxu0 %v3716
    %5609 = vmatpush2.msra.mxu0 %v3715
    %5610 = vmatprep.subr.mxu0 %v3710
    %5611 = vmatpush2.msra.mxu0 %v3709
    %5612 = vmatprep.subr.mxu0 %v3704
    %5613 = vmatpush2.msra.mxu0 %v3703
    %5614 = vmatprep.subr.mxu0 %v3698
    %5615 = vmatpush2.msra.mxu0 %v3697
    %5616 = vmatprep.subr.mxu0 %v3692
    %5617 = vmatpush2.msra.mxu0 %v3691
    %5618 = vmatprep.subr.mxu0 %v3686
    %5619 = vmatpush2.msra.mxu0 %v3685
    %5620 = vmatprep.subr.mxu0 %v3680
    %5621 = vmatpush2.msra.mxu0 %v3679
    %5622 = vmatprep.subr.mxu0 %v3674
    %5623 = vmatpush2.msra.mxu0 %v3673
    %5624 = vmatprep.subr.mxu0 %v3668
    %5625 = vmatpush2.msra.mxu0 %v3667
    %5626 = vmatprep.subr.mxu0 %v3662
    %5627 = vmatpush2.msra.mxu0 %v3661
    %5628 = vmatprep.subr.mxu0 %v3656
    %5629 = vmatpush2.msra.mxu0 %v3655
    %5630 = vmatprep.subr.mxu0 %v3650
    %5631 = vmatpush2.msra.mxu0 %v3649
    %5632 = vmatprep.subr.mxu0 %v3644
    %5633 = vmatpush2.msra.mxu0 %v3643
    %5634 = vmatprep.subr.mxu0 %v3638
    %5635 = vmatpush2.msra.mxu0 %v3637
    %5636 = vmatprep.subr.mxu0 %v3632
    %5637 = vmatpush2.msra.mxu0 %v3631
    %5638 = vmatprep.mubr.f32.mxu0 %v5567
    %5639 = vmatmul.mubr.f32.gmra.mxu0 %v5566
    %v5640 = vpop.f32.mrf.mxu0
    %v5641 = vadd.f32 0.0, %v5640
    %v5642 = vpop.f32.mrf.mxu0
    %v5643 = vadd.f32 0.0, %v5642
    %5644 = vdwg.mxu0
    %5645 = vmatprep.subr.mxu0 %v3628
    %5646 = vmatpush1.msra.mxu0 %v3627
    %5647 = vmatprep.subr.mxu0 %v3622
    %5648 = vmatpush1.msra.mxu0 %v3621
    %5649 = vmatprep.subr.mxu0 %v3616
    %5650 = vmatpush1.msra.mxu0 %v3615
    %5651 = vmatprep.subr.mxu0 %v3610
    %5652 = vmatpush1.msra.mxu0 %v3609
    %5653 = vmatprep.subr.mxu0 %v3604
    %5654 = vmatpush1.msra.mxu0 %v3603
    %5655 = vmatprep.subr.mxu0 %v3598
    %5656 = vmatpush1.msra.mxu0 %v3597
    %5657 = vmatprep.subr.mxu0 %v3592
    %5658 = vmatpush1.msra.mxu0 %v3591
    %5659 = vmatprep.subr.mxu0 %v3586
    %5660 = vmatpush1.msra.mxu0 %v3585
    %5661 = vmatprep.subr.mxu0 %v3580
    %5662 = vmatpush1.msra.mxu0 %v3579
    %5663 = vmatprep.subr.mxu0 %v3574
    %5664 = vmatpush1.msra.mxu0 %v3573
    %5665 = vmatprep.subr.mxu0 %v3568
    %5666 = vmatpush1.msra.mxu0 %v3567
    %5667 = vmatprep.subr.mxu0 %v3562
    %5668 = vmatpush1.msra.mxu0 %v3561
    %5669 = vmatprep.subr.mxu0 %v3556
    %5670 = vmatpush1.msra.mxu0 %v3555
    %5671 = vmatprep.subr.mxu0 %v3550
    %5672 = vmatpush1.msra.mxu0 %v3549
    %5673 = vmatprep.subr.mxu0 %v3544
    %5674 = vmatpush1.msra.mxu0 %v3543
    %5675 = vmatprep.subr.mxu0 %v3538
    %5676 = vmatpush1.msra.mxu0 %v3537
    %5677 = vmatprep.subr.mxu0 %v3724
    %5678 = vmatpush2.msra.mxu0 %v3723
    %5679 = vmatprep.subr.mxu0 %v3718
    %5680 = vmatpush2.msra.mxu0 %v3717
    %5681 = vmatprep.subr.mxu0 %v3712
    %5682 = vmatpush2.msra.mxu0 %v3711
    %5683 = vmatprep.subr.mxu0 %v3706
    %5684 = vmatpush2.msra.mxu0 %v3705
    %5685 = vmatprep.subr.mxu0 %v3700
    %5686 = vmatpush2.msra.mxu0 %v3699
    %5687 = vmatprep.subr.mxu0 %v3694
    %5688 = vmatpush2.msra.mxu0 %v3693
    %5689 = vmatprep.subr.mxu0 %v3688
    %5690 = vmatpush2.msra.mxu0 %v3687
    %5691 = vmatprep.subr.mxu0 %v3682
    %5692 = vmatpush2.msra.mxu0 %v3681
    %5693 = vmatprep.subr.mxu0 %v3676
    %5694 = vmatpush2.msra.mxu0 %v3675
    %5695 = vmatprep.subr.mxu0 %v3670
    %5696 = vmatpush2.msra.mxu0 %v3669
    %5697 = vmatprep.subr.mxu0 %v3664
    %5698 = vmatpush2.msra.mxu0 %v3663
    %5699 = vmatprep.subr.mxu0 %v3658
    %5700 = vmatpush2.msra.mxu0 %v3657
    %5701 = vmatprep.subr.mxu0 %v3652
    %5702 = vmatpush2.msra.mxu0 %v3651
    %5703 = vmatprep.subr.mxu0 %v3646
    %5704 = vmatpush2.msra.mxu0 %v3645
    %5705 = vmatprep.subr.mxu0 %v3640
    %5706 = vmatpush2.msra.mxu0 %v3639
    %5707 = vmatprep.subr.mxu0 %v3634
    %5708 = vmatpush2.msra.mxu0 %v3633
    %5709 = vmatprep.mubr.f32.mxu0 %v5567
    %5710 = vmatmul.mubr.f32.gmra.mxu0 %v5566
    %v5711 = vpop.f32.mrf.mxu0
    %v5712 = vadd.f32 0.0, %v5711
    %v5713 = vpop.f32.mrf.mxu0
    %v5714 = vadd.f32 0.0, %v5713
    %5715 = vdwg.mxu0
    %5716 = vmatprep.subr.mxu0 %v3630
    %5717 = vmatpush1.msra.mxu0 %v3629
    %5718 = vmatprep.subr.mxu0 %v3624
    %5719 = vmatpush1.msra.mxu0 %v3623
    %5720 = vmatprep.subr.mxu0 %v3618
    %5721 = vmatpush1.msra.mxu0 %v3617
    %5722 = vmatprep.subr.mxu0 %v3612
    %5723 = vmatpush1.msra.mxu0 %v3611
    %5724 = vmatprep.subr.mxu0 %v3606
    %5725 = vmatpush1.msra.mxu0 %v3605
    %5726 = vmatprep.subr.mxu0 %v3600
    %5727 = vmatpush1.msra.mxu0 %v3599
    %5728 = vmatprep.subr.mxu0 %v3594
    %5729 = vmatpush1.msra.mxu0 %v3593
    %5730 = vmatprep.subr.mxu0 %v3588
    %5731 = vmatpush1.msra.mxu0 %v3587
    %5732 = vmatprep.subr.mxu0 %v3582
    %5733 = vmatpush1.msra.mxu0 %v3581
    %5734 = vmatprep.subr.mxu0 %v3576
    %5735 = vmatpush1.msra.mxu0 %v3575
    %5736 = vmatprep.subr.mxu0 %v3570
    %5737 = vmatpush1.msra.mxu0 %v3569
    %5738 = vmatprep.subr.mxu0 %v3564
    %5739 = vmatpush1.msra.mxu0 %v3563
    %5740 = vmatprep.subr.mxu0 %v3558
    %5741 = vmatpush1.msra.mxu0 %v3557
    %5742 = vmatprep.subr.mxu0 %v3552
    %5743 = vmatpush1.msra.mxu0 %v3551
    %5744 = vmatprep.subr.mxu0 %v3546
    %5745 = vmatpush1.msra.mxu0 %v3545
    %5746 = vmatprep.subr.mxu0 %v3540
    %5747 = vmatpush1.msra.mxu0 %v3539
    %5748 = vmatprep.subr.mxu0 %v3726
    %5749 = vmatpush2.msra.mxu0 %v3725
    %5750 = vmatprep.subr.mxu0 %v3720
    %5751 = vmatpush2.msra.mxu0 %v3719
    %5752 = vmatprep.subr.mxu0 %v3714
    %5753 = vmatpush2.msra.mxu0 %v3713
    %5754 = vmatprep.subr.mxu0 %v3708
    %5755 = vmatpush2.msra.mxu0 %v3707
    %5756 = vmatprep.subr.mxu0 %v3702
    %5757 = vmatpush2.msra.mxu0 %v3701
    %5758 = vmatprep.subr.mxu0 %v3696
    %5759 = vmatpush2.msra.mxu0 %v3695
    %5760 = vmatprep.subr.mxu0 %v3690
    %5761 = vmatpush2.msra.mxu0 %v3689
    %5762 = vmatprep.subr.mxu0 %v3684
    %5763 = vmatpush2.msra.mxu0 %v3683
    %5764 = vmatprep.subr.mxu0 %v3678
    %5765 = vmatpush2.msra.mxu0 %v3677
    %5766 = vmatprep.subr.mxu0 %v3672
    %5767 = vmatpush2.msra.mxu0 %v3671
    %5768 = vmatprep.subr.mxu0 %v3666
    %5769 = vmatpush2.msra.mxu0 %v3665
    %5770 = vmatprep.subr.mxu0 %v3660
    %5771 = vmatpush2.msra.mxu0 %v3659
    %5772 = vmatprep.subr.mxu0 %v3654
    %5773 = vmatpush2.msra.mxu0 %v3653
    %5774 = vmatprep.subr.mxu0 %v3648
    %5775 = vmatpush2.msra.mxu0 %v3647
    %5776 = vmatprep.subr.mxu0 %v3642
    %5777 = vmatpush2.msra.mxu0 %v3641
    %5778 = vmatprep.subr.mxu0 %v3636
    %5779 = vmatpush2.msra.mxu0 %v3635
    %5780 = vmatprep.mubr.f32.mxu0 %v5567
    %5781 = vmatmul.mubr.f32.gmra.mxu0 %v5566
    %v5782 = vpop.f32.mrf.mxu0
    %v5783 = vadd.f32 0.0, %v5782
    %v5784 = vpop.f32.mrf.mxu0
    %v5785 = vadd.f32 0.0, %v5784
    %5786 = vdwg.mxu0
    %v5787 = vadd.f32 %v5568, %v5641
    %v5788 = vadd.f32 %v5569, %v5643
    %v5789 = vxor.u32 %v5787, 2147483648
    %v5790 = vxor.u32 %v5788, 2147483648
    %v5791 = vmul.f32 %v5789, 1.442695
    %v5792 = vpow.pop %v5791
    %v5793 = vmul.f32 %v5790, 1.442695
    %v5794 = vpow.pop %v5793
    %v5795 = vadd.f32 %v5792, 1.0
    %v5796 = vadd.f32 %v5794, 1.0
    %v5797 = vrcp.pop %v5795
    %v5798 = vmul.f32 1.0, %v5797
    %v5799 = vrcp.pop %v5796
    %v5800 = vmul.f32 1.0, %v5799
    %v5801 = vadd.f32 %v5570, %v5712
    %v5802 = vadd.f32 %v5571, %v5714
    %v5803 = vxor.u32 %v5801, 2147483648
    %v5804 = vxor.u32 %v5802, 2147483648
    %v5805 = vmul.f32 %v5803, 1.442695
    %v5806 = vpow.pop %v5805
    %v5807 = vmul.f32 %v5804, 1.442695
    %v5808 = vpow.pop %v5807
    %v5809 = vadd.f32 %v5806, 1.0
    %v5810 = vadd.f32 %v5808, 1.0
    %v5811 = vrcp.pop %v5809
    %v5812 = vmul.f32 1.0, %v5811
    %v5813 = vrcp.pop %v5810
    %v5814 = vmul.f32 1.0, %v5813
    %v5815 = vadd.f32 %v5783, %v3528
    %v5816 = vadd.f32 %v5785, %v3532
    %v5817 = vmul.f32 %v5798, %v5815
    %v5818 = vmul.f32 %v5800, %v5816
    %v5819 = vadd.f32 %v5572, %v5817
    %v5820 = vadd.f32 %v5573, %v5818
    %v5821 = vtanh.pop %v5819
    %v5822 = vtanh.pop %v5820
    %v5823 = vsub.f32 1.0, %v5812
    %v5824 = vsub.f32 1.0, %v5814
    %v5825 = vmul.f32 %v5823, %v5821
    %v5826 = vmul.f32 %v5824, %v5822
    %v5827 = vmul.f32 %v5812, %v5566
    %v5828 = vmul.f32 %v5814, %v5567
    %v5829 = vadd.f32 %v5825, %v5827
    %v5830 = vadd.f32 %v5826, %v5828
    %v5831 = vld [vmem:[#allocation10] sm:$0xff]
    %v5832 = vld [vmem:[#allocation10 + $0x8] sm:$0xff]
    %v5833 = vld [vmem:[#allocation10 + $0x10] sm:$0xff]
    %v5834 = vld [vmem:[#allocation10 + $0x18] sm:$0xff]
    %v5835 = vld [vmem:[#allocation10 + $0x20] sm:$0xff]
    %v5836 = vld [vmem:[#allocation10 + $0x28] sm:$0xff]
    %v5837 = vld [vmem:[#allocation10 + $0x30] sm:$0xff]
    %v5838 = vld [vmem:[#allocation10 + $0x38] sm:$0xff]
    %v5839 = vld [vmem:[#allocation10 + $0x40] sm:$0xff]
    %v5840 = vld [vmem:[#allocation10 + $0x48] sm:$0xff]
    %v5841 = vld [vmem:[#allocation10 + $0x50] sm:$0xff]
    %v5842 = vld [vmem:[#allocation10 + $0x58] sm:$0xff]
    %v5843 = vld [vmem:[#allocation10 + $0x60] sm:$0xff]
    %v5844 = vld [vmem:[#allocation10 + $0x68] sm:$0xff]
    %v5845 = vld [vmem:[#allocation10 + $0x70] sm:$0xff]
    %v5846 = vld [vmem:[#allocation10 + $0x78] sm:$0xff]
    %v5847 = vld [vmem:[#allocation10 + $0x80] sm:$0xff]
    %v5848 = vld [vmem:[#allocation10 + $0x88] sm:$0xff]
    %v5849 = vld [vmem:[#allocation10 + $0x90] sm:$0xff]
    %v5850 = vld [vmem:[#allocation10 + $0x98] sm:$0xff]
    %v5851 = vld [vmem:[#allocation10 + $0xa0] sm:$0xff]
    %v5852 = vld [vmem:[#allocation10 + $0xa8] sm:$0xff]
    %v5853 = vld [vmem:[#allocation10 + $0xb0] sm:$0xff]
    %v5854 = vld [vmem:[#allocation10 + $0xb8] sm:$0xff]
    %v5855 = vld [vmem:[#allocation10 + $0xc0] sm:$0xff]
    %v5856 = vld [vmem:[#allocation10 + $0xc8] sm:$0xff]
    %v5857 = vld [vmem:[#allocation10 + $0xd0] sm:$0xff]
    %v5858 = vld [vmem:[#allocation10 + $0xd8] sm:$0xff]
    %v5859 = vld [vmem:[#allocation10 + $0xe0] sm:$0xff]
    %v5860 = vld [vmem:[#allocation10 + $0xe8] sm:$0xff]
    %v5861 = vld [vmem:[#allocation10 + $0xf0] sm:$0xff]
    %v5862 = vld [vmem:[#allocation10 + $0xf8] sm:$0xff]
    %v5863 = vld [vmem:[%s10] sm:$0x1]
    %v5865 = vlaneseq
    %v5866 = vshrl.u32 %v5865, 7
    %v5867 = vsub.s32 0, %v5866
    %v5868 = vrot.slane %v5863, %v5867
    %5870 = vmatprep.subr.mxu0 0.0
    %5871 = vmatpush1.msra.mxu0 %v5846
    %5872 = vmatprep.subr.mxu0 0.0
    %5873 = vmatpush1.msra.mxu0 %v5845
    %5874 = vmatprep.subr.mxu0 0.0
    %5875 = vmatpush1.msra.mxu0 %v5844
    %5876 = vmatprep.subr.mxu0 0.0
    %5877 = vmatpush1.msra.mxu0 %v5843
    %5878 = vmatprep.subr.mxu0 0.0
    %5879 = vmatpush1.msra.mxu0 %v5842
    %5880 = vmatprep.subr.mxu0 0.0
    %5881 = vmatpush1.msra.mxu0 %v5841
    %5882 = vmatprep.subr.mxu0 0.0
    %5883 = vmatpush1.msra.mxu0 %v5840
    %5884 = vmatprep.subr.mxu0 0.0
    %5885 = vmatpush1.msra.mxu0 %v5839
    %5886 = vmatprep.subr.mxu0 0.0
    %5887 = vmatpush1.msra.mxu0 %v5838
    %5888 = vmatprep.subr.mxu0 0.0
    %5889 = vmatpush1.msra.mxu0 %v5837
    %5890 = vmatprep.subr.mxu0 0.0
    %5891 = vmatpush1.msra.mxu0 %v5836
    %5892 = vmatprep.subr.mxu0 0.0
    %5893 = vmatpush1.msra.mxu0 %v5835
    %5894 = vmatprep.subr.mxu0 0.0
    %5895 = vmatpush1.msra.mxu0 %v5834
    %5896 = vmatprep.subr.mxu0 0.0
    %5897 = vmatpush1.msra.mxu0 %v5833
    %5898 = vmatprep.subr.mxu0 0.0
    %5899 = vmatpush1.msra.mxu0 %v5832
    %5900 = vmatprep.subr.mxu0 0.0
    %5901 = vmatpush1.msra.mxu0 %v5831
    %5902 = vmatprep.subr.mxu0 0.0
    %5903 = vmatpush2.msra.mxu0 %v5862
    %5904 = vmatprep.subr.mxu0 0.0
    %5905 = vmatpush2.msra.mxu0 %v5861
    %5906 = vmatprep.subr.mxu0 0.0
    %5907 = vmatpush2.msra.mxu0 %v5860
    %5908 = vmatprep.subr.mxu0 0.0
    %5909 = vmatpush2.msra.mxu0 %v5859
    %5910 = vmatprep.subr.mxu0 0.0
    %5911 = vmatpush2.msra.mxu0 %v5858
    %5912 = vmatprep.subr.mxu0 0.0
    %5913 = vmatpush2.msra.mxu0 %v5857
    %5914 = vmatprep.subr.mxu0 0.0
    %5915 = vmatpush2.msra.mxu0 %v5856
    %5916 = vmatprep.subr.mxu0 0.0
    %5917 = vmatpush2.msra.mxu0 %v5855
    %5918 = vmatprep.subr.mxu0 0.0
    %5919 = vmatpush2.msra.mxu0 %v5854
    %5920 = vmatprep.subr.mxu0 0.0
    %5921 = vmatpush2.msra.mxu0 %v5853
    %5922 = vmatprep.subr.mxu0 0.0
    %5923 = vmatpush2.msra.mxu0 %v5852
    %5924 = vmatprep.subr.mxu0 0.0
    %5925 = vmatpush2.msra.mxu0 %v5851
    %5926 = vmatprep.subr.mxu0 0.0
    %5927 = vmatpush2.msra.mxu0 %v5850
    %5928 = vmatprep.subr.mxu0 0.0
    %5929 = vmatpush2.msra.mxu0 %v5849
    %5930 = vmatprep.subr.mxu0 0.0
    %5931 = vmatpush2.msra.mxu0 %v5848
    %5932 = vmatprep.subr.mxu0 0.0
    %5933 = vmatpush2.msra.mxu0 %v5847
    %5934 = vmatprep.mubr.f32.mxu0 %v5830
    %5935 = vmatmul.mubr.f32.gmra.mxu0 %v5829
    %v5936 = vpop.f32.mrf.mxu0
    %v5937 = vadd.f32 %v5868, %v5936
    %v5938 = vpop.f32.mrf.mxu0
    %5939 = vdwg.mxu0
    %5940 = vst [vmem:[#allocation12] sm:$0xff] %v5937
    // Predicated region
    $region62: #{gru_encoder_forward.1} parent=1 // pred_check
      _
    $region63: #{gru_encoder_forward.1} parent=1 // pred_check_branch
      %5942 = sbr.rel (0) target = $region65
    $region64: #{gru_encoder_forward.1} parent=1 // pred_region
      %s5944 = ssub.s32 128, 128
      %5945 = vsyncadd [#allocation6], %s5944
      %s5947 = sshll.u32 [#allocation12], 4
      %s5948 = int_to_ptr.vmem [resolvable:$true] %s5947
      %5950 = dma.vmem_to_hbm [thread:$0]  %s5948, 128, %s11, [#allocation6]
    $region65: #{gru_encoder_forward.1} parent=1 // pred_fallthru
      _
    // Predicated region
    $region66: #{gru_encoder_forward.1} parent=1 // pred_check
      _
    $region67: #{gru_encoder_forward.1} parent=1 // pred_check_branch
      %5952 = sbr.rel (0) target = $region69
    $region68: #{gru_encoder_forward.1} parent=1 // pred_region
      %5953 = dma.done [#allocation6], 128
    $region69: #{gru_encoder_forward.1} parent=1 // pred_fallthru
      _
    %5954 = vsyncpa [#allocation5], 1
    %5955 = vsyncpa [#allocation8], 1
    %5956 = vsyncpa [#allocation11], 1
    %5957 = vsyncpa [#allocation6], 1

</llo_original>
